<compile_context>
chip_gen: v7x
topology: tpu7x:2x2x1
jax: 0.10.0
libtpu: 0.0.40
codegen_flags: <defaults>
</compile_context>

<pallas_src>
import functools

import jax
import jax.numpy as jnp
from jax.experimental import pallas as pl
from jax.experimental.pallas import tpu as pltpu


def _round_up(x, m):
    return (x + m - 1) // m * m


# ----------------------------------------------------------------------------
# Pallas kernel: transposed fused matmul + bias + activation (conv hot path)
#   o[Cp, tp] = act( w[Cp, Kp] @ a[Kp, tp] + b[Cp, 1] )
# ----------------------------------------------------------------------------
def _mm_bias_act_kernel(w_ref, a_ref, b_ref, o_ref, *, act):
    acc = jnp.dot(w_ref[...], a_ref[...], preferred_element_type=jnp.float32)
    acc = acc + b_ref[...]                       # (Cp, 1) broadcasts over lanes
    if act == "leaky":                           # LeakyReLU(0.1)
        acc = jnp.where(acc >= 0.0, acc, 0.1 * acc)
    elif act == "sigmoid":
        acc = jax.nn.sigmoid(acc)
    # act == "none": identity
    o_ref[...] = acc


def _choose_tp(P, target=2048):
    """Lane tile for the pixel axis: large for throughput, but keep >=2 grid
    steps where possible so both v7x TensorCores get work."""
    Pp = _round_up(P, 128)
    if Pp <= 128:
        return 128
    return min(target, max(128, _round_up(Pp // 2, 128)))


def matmul_bias_act_T(patches_T, w_T, b, act):
    """patches_T: (K, P), w_T: (Cout, K), b: (Cout,) -> (Cout, P) f32."""
    K, P = patches_T.shape
    Cout = w_T.shape[0]
    Kp = _round_up(K, 16)          # bf16 sublane-friendly; zero pad is exact
    Cp = _round_up(Cout, 8)
    tp = _choose_tp(P)
    Pp = _round_up(P, tp)

    a_pad = jnp.zeros((Kp, Pp), jnp.bfloat16).at[:K, :P].set(
        patches_T.astype(jnp.bfloat16))
    w_pad = jnp.zeros((Cp, Kp), jnp.bfloat16).at[:Cout, :K].set(
        w_T.astype(jnp.bfloat16))
    b_pad = jnp.zeros((Cp, 1), jnp.float32).at[:Cout, 0].set(
        b.astype(jnp.float32))

    out = pl.pallas_call(
        functools.partial(_mm_bias_act_kernel, act=act),
        out_shape=jax.ShapeDtypeStruct((Cp, Pp), jnp.float32),
        grid_spec=pltpu.PrefetchScalarGridSpec(
            num_scalar_prefetch=0,
            grid=(Pp // tp,),
            in_specs=[
                pl.BlockSpec((Cp, Kp), lambda i: (0, 0)),   # weight (resident)
                pl.BlockSpec((Kp, tp), lambda i: (0, i)),   # patch tile
                pl.BlockSpec((Cp, 1), lambda i: (0, 0)),    # bias (resident)
            ],
            out_specs=pl.BlockSpec((Cp, tp), lambda i: (0, i)),
        ),
        compiler_params=pltpu.CompilerParams(
            dimension_semantics=("parallel",)),
    )(w_pad, a_pad, b_pad)
    return out[:Cout, :P]


# ----------------------------------------------------------------------------
# JAX glue: transposed im2col (CNHW layout, pixel axis last / lane-dense)
# ----------------------------------------------------------------------------
def _im2col_T(x, kh, kw, stride, pad):
    """x: (C, N, H, W) -> patches_T (C*kh*kw, N*Ho*Wo); K ordered (c, i, j)."""
    x = jnp.pad(x, ((0, 0), (0, 0), (pad, pad), (pad, pad)))
    C, N, H, W = x.shape
    Ho = (H - kh) // stride + 1
    Wo = (W - kw) // stride + 1
    cols = []
    for i in range(kh):
        for j in range(kw):
            cols.append(x[:, :, i:i + stride * (Ho - 1) + 1:stride,
                              j:j + stride * (Wo - 1) + 1:stride])
    pt = jnp.stack(cols, axis=1)                       # (C, kh*kw, N, Ho, Wo)
    return pt.reshape(C * kh * kw, N * Ho * Wo), N, Ho, Wo


def _phase_weight_k4s2p1(w):
    """ConvTranspose2d(k=4, s=2, p=1) weight (Cin, Cout, 4, 4) -> weight of an
    equivalent stride-1 3x3 conv (pad=1) producing 2x2 phases per pixel.
    Rows ordered (phase_r, phase_t, cout); K ordered (cin, di, dj).

    For output row oh = 2a + r, input row a + da hits kernel row i:
      r=0: da=-1 -> i=3, da=0 -> i=1      r=1: da=0 -> i=2, da=+1 -> i=0
    (same mapping for columns)."""
    Cin, Cout = w.shape[0], w.shape[1]
    wp = jnp.zeros((2, 2, Cout, Cin, 3, 3), w.dtype)
    tap = {0: ((-1, 3), (0, 1)), 1: ((0, 2), (1, 0))}
    for r in (0, 1):
        for t in (0, 1):
            for da, i in tap[r]:
                for db, j in tap[t]:
                    wp = wp.at[r, t, :, :, da + 1, db + 1].set(w[:, :, i, j].T)
    return wp.reshape(4 * Cout, Cin * 9)


# ----------------------------------------------------------------------------
# Model: build-time weight prep (hoisted), jitted forward
# ----------------------------------------------------------------------------
def build_conv_ae(key, z_dim, c_hid, c_in):
    c = c_hid
    cfg = [
        # (kind, cin, cout, k, stride, pad, act)  -- encoder then decoder
        ("conv",  c_in,  c,     4, 2, 1, "leaky"),
        ("conv",  c,     c,     4, 2, 1, "leaky"),
        ("conv",  c,     c,     3, 1, 1, "leaky"),
        ("conv",  c,     2*c,   4, 2, 1, "leaky"),
        ("conv",  2*c,   2*c,   3, 1, 1, "leaky"),
        ("conv",  2*c,   4*c,   4, 2, 1, "leaky"),
        ("conv",  4*c,   2*c,   3, 1, 1, "leaky"),
        ("conv",  2*c,   c,     3, 1, 1, "leaky"),
        ("conv",  c,     z_dim, 8, 1, 0, "none"),
        ("convT", z_dim, c,     8, 1, 0, "leaky"),
        ("conv",  c,     2*c,   3, 1, 1, "leaky"),
        ("conv",  2*c,   4*c,   3, 1, 1, "leaky"),
        ("convT", 4*c,   2*c,   4, 2, 1, "leaky"),
        ("conv",  2*c,   2*c,   3, 1, 1, "leaky"),
        ("convT", 2*c,   c,     4, 2, 1, "leaky"),
        ("conv",  c,     c,     3, 1, 1, "leaky"),
        ("convT", c,     c,     4, 2, 1, "leaky"),
        ("convT", c,     c_in,  4, 2, 1, "sigmoid"),
    ]
    keys = jax.random.split(key, len(cfg))
    statics, params = [], []
    for k_i, (kind, cin, cout, k, s, p, act) in zip(keys, cfg):
        kw_key, kb_key = jax.random.split(k_i)
        bound = 1.0 / (cin * k * k) ** 0.5
        b = jax.random.uniform(kb_key, (cout,), jnp.float32, -bound, bound)
        if kind == "conv":
            w = jax.random.uniform(kw_key, (cout, cin, k, k), jnp.float32,
                                   -bound, bound)
            statics.append(dict(k=k, stride=s, pad=p, act=act, shuffle=None))
            params.append((w.reshape(cout, cin * k * k), b))
        else:  # ConvTranspose2d, PyTorch weight layout (cin, cout, k, k)
            w = jax.random.uniform(kw_key, (cin, cout, k, k), jnp.float32,
                                   -bound, bound)
            if s == 1:
                # stride-1 convT == conv with flipped weight, pad = k-1-p
                wg = jnp.flip(w, (2, 3)).transpose(1, 0, 2, 3)
                statics.append(dict(k=k, stride=1, pad=k - 1 - p, act=act,
                                    shuffle=None))
                params.append((wg.reshape(cout, cin * k * k), b))
            else:
                assert s == 2 and k == 4 and p == 1
                statics.append(dict(k=3, stride=1, pad=1, act=act,
                                    shuffle=cout))
                params.append((_phase_weight_k4s2p1(w), jnp.tile(b, 4)))
    return statics, params


def conv_ae_forward(statics, params, x_nchw):
    x = x_nchw.transpose(1, 0, 2, 3)                       # NCHW -> CNHW once
    for cfg, (wg, bg) in zip(statics, params):
        pt, N, Ho, Wo = _im2col_T(x, cfg["k"], cfg["k"], cfg["stride"],
                                  cfg["pad"])
        out = matmul_bias_act_T(pt, wg, bg, cfg["act"])    # (rows, N*Ho*Wo)
        if cfg["shuffle"] is not None:                     # 2x2 pixel shuffle
            cout = cfg["shuffle"]
            out = out.reshape(2, 2, cout, N, Ho, Wo)
            out = out.transpose(2, 3, 4, 0, 5, 1).reshape(
                cout, N, 2 * Ho, 2 * Wo)
        else:
            out = out.reshape(-1, N, Ho, Wo)
        x = out
    return x.transpose(1, 0, 2, 3)                         # CNHW -> NCHW once


# ----------------------------------------------------------------------------
if __name__ == "__main__":
    key = jax.random.PRNGKey(0)
    k_param, k_x = jax.random.split(key)

    # ConvAE(z_dim=8, c_hid=4, c_in=1).  128x128 is the smallest input the
    # architecture supports (four stride-2 halvings must leave an 8x8 map for
    # the final valid 8x8 conv).
    z_dim, c_hid, c_in = 8, 4, 1
    N, H, W = 2, 128, 128

    statics, params = build_conv_ae(k_param, z_dim, c_hid, c_in)
    x = jax.random.uniform(k_x, (N, c_in, H, W), jnp.float32)

    fwd = jax.jit(functools.partial(conv_ae_forward, statics))
    out = jax.block_until_ready(fwd(params, x))

    assert out.shape == (N, c_in, H, W), out.shape
    assert bool(jnp.all(jnp.isfinite(out)))
    assert bool(jnp.all((out >= 0.0) & (out <= 1.0)))   # sigmoid output range
    print("KERNEL_OK")
</pallas_src>

<mosaic_0001>
module attributes {stable_mosaic.version = 11 : i64} {
  func.func @_mm_bias_act_kernel(%arg0: i32, %arg1: memref<8x16xbf16, #tpu.memory_space<vmem>>, %arg2: memref<16x2048xbf16, #tpu.memory_space<vmem>>, %arg3: memref<8x1xf32, #tpu.memory_space<vmem>>, %arg4: memref<8x2048xf32, #tpu.memory_space<vmem>>) attributes {dimension_semantics = [#tpu.dimension_semantics<parallel>], iteration_bounds = array<i64: 4>, scalar_prefetch = 0 : i64, scratch_operands = 0 : i64, tpu.core_type = #tpu.core_type<tc>, window_params = [{pipeline_mode = #tpu.pipeline_mode<synchronous>, transform_indices = @transform_0, window_bounds = array<i64: 8, 16>}, {transform_indices = @transform_1, window_bounds = array<i64: 16, 2048>}, {pipeline_mode = #tpu.pipeline_mode<synchronous>, transform_indices = @transform_2, window_bounds = array<i64: 8, 1>}, {transform_indices = @transform_3, window_bounds = array<i64: 8, 2048>}]} {
    %c0 = arith.constant 0 : index
    %c0_0 = arith.constant 0 : index
    %0 = vector.load %arg1[%c0, %c0_0] : memref<8x16xbf16, #tpu.memory_space<vmem>>, vector<8x16xbf16>
    %c0_1 = arith.constant 0 : index
    %c0_2 = arith.constant 0 : index
    %1 = vector.load %arg2[%c0_1, %c0_2] : memref<16x2048xbf16, #tpu.memory_space<vmem>>, vector<16x2048xbf16>
    %cst = arith.constant dense<0.000000e+00> : vector<8x2048xf32>
    %2 = tpu.matmul %0, %1, %cst {dimension_numbers = #tpu.dot_dimension_numbers<[1], [0], [0], [1], [0, 0, 1, 1], [], []>} : vector<8x16xbf16>, vector<16x2048xbf16>, vector<8x2048xf32> -> vector<8x2048xf32>
    %c0_3 = arith.constant 0 : index
    %c0_4 = arith.constant 0 : index
    %3 = vector.load %arg3[%c0_3, %c0_4] : memref<8x1xf32, #tpu.memory_space<vmem>>, vector<8x1xf32>
    %4 = vector.broadcast %3 : vector<8x1xf32> to vector<8x2048xf32>
    %5 = arith.addf %2, %4 : vector<8x2048xf32>
    %cst_5 = arith.constant 0.000000e+00 : f32
    %6 = vector.broadcast %cst_5 : f32 to vector<8x2048xf32>
    %7 = arith.cmpf oge, %5, %6 : vector<8x2048xf32>
    %cst_6 = arith.constant 1.000000e-01 : f32
    %8 = vector.broadcast %cst_6 : f32 to vector<8x2048xf32>
    %9 = arith.mulf %8, %5 : vector<8x2048xf32>
    %10 = arith.select %7, %5, %9 : vector<8x2048xi1>, vector<8x2048xf32>
    %c0_7 = arith.constant 0 : index
    %c0_8 = arith.constant 0 : index
    %11 = vector.load %arg4[%c0_7, %c0_8] : memref<8x2048xf32, #tpu.memory_space<vmem>>, vector<8x2048xf32>
    tpu.vector_store %arg4[%c0_7, %c0_8], %10 {strides = array<i32>} : memref<8x2048xf32, #tpu.memory_space<vmem>>, vector<8x2048xf32>,
    return
  }
  func.func @transform_0(%arg0: i32) -> (i32, i32) {
    %c0_i32 = arith.constant 0 : i32
    %c0_i32_0 = arith.constant 0 : i32
    %c0_i32_1 = arith.constant 0 : i32
    return %c0_i32, %c0_i32_0 : i32, i32
  }
  func.func @transform_1(%arg0: i32) -> (i32, i32) {
    %c0_i32 = arith.constant 0 : i32
    %c0_i32_0 = arith.constant 0 : i32
    return %c0_i32, %arg0 : i32, i32
  }
  func.func @transform_2(%arg0: i32) -> (i32, i32) {
    %c0_i32 = arith.constant 0 : i32
    %c0_i32_0 = arith.constant 0 : i32
    %c0_i32_1 = arith.constant 0 : i32
    return %c0_i32, %c0_i32_0 : i32, i32
  }
  func.func @transform_3(%arg0: i32) -> (i32, i32) {
    %c0_i32 = arith.constant 0 : i32
    %c0_i32_0 = arith.constant 0 : i32
    return %c0_i32, %arg0 : i32, i32
  }
}

module attributes {stable_mosaic.version = 11 : i64} {
  func.func @_mm_bias_act_kernel(%arg0: i32, %arg1: memref<8x64xbf16, #tpu.memory_space<vmem>>, %arg2: memref<64x1024xbf16, #tpu.memory_space<vmem>>, %arg3: memref<8x1xf32, #tpu.memory_space<vmem>>, %arg4: memref<8x1024xf32, #tpu.memory_space<vmem>>) attributes {dimension_semantics = [#tpu.dimension_semantics<parallel>], iteration_bounds = array<i64: 2>, scalar_prefetch = 0 : i64, scratch_operands = 0 : i64, tpu.core_type = #tpu.core_type<tc>, window_params = [{pipeline_mode = #tpu.pipeline_mode<synchronous>, transform_indices = @transform_0, window_bounds = array<i64: 8, 64>}, {transform_indices = @transform_1, window_bounds = array<i64: 64, 1024>}, {pipeline_mode = #tpu.pipeline_mode<synchronous>, transform_indices = @transform_2, window_bounds = array<i64: 8, 1>}, {transform_indices = @transform_3, window_bounds = array<i64: 8, 1024>}]} {
    %c0 = arith.constant 0 : index
    %c0_0 = arith.constant 0 : index
    %0 = vector.load %arg1[%c0, %c0_0] : memref<8x64xbf16, #tpu.memory_space<vmem>>, vector<8x64xbf16>
    %c0_1 = arith.constant 0 : index
    %c0_2 = arith.constant 0 : index
    %1 = vector.load %arg2[%c0_1, %c0_2] : memref<64x1024xbf16, #tpu.memory_space<vmem>>, vector<64x1024xbf16>
    %cst = arith.constant dense<0.000000e+00> : vector<8x1024xf32>
    %2 = tpu.matmul %0, %1, %cst {dimension_numbers = #tpu.dot_dimension_numbers<[1], [0], [0], [1], [0, 0, 1, 1], [], []>} : vector<8x64xbf16>, vector<64x1024xbf16>, vector<8x1024xf32> -> vector<8x1024xf32>
    %c0_3 = arith.constant 0 : index
    %c0_4 = arith.constant 0 : index
    %3 = vector.load %arg3[%c0_3, %c0_4] : memref<8x1xf32, #tpu.memory_space<vmem>>, vector<8x1xf32>
    %4 = vector.broadcast %3 : vector<8x1xf32> to vector<8x1024xf32>
    %5 = arith.addf %2, %4 : vector<8x1024xf32>
    %cst_5 = arith.constant 0.000000e+00 : f32
    %6 = vector.broadcast %cst_5 : f32 to vector<8x1024xf32>
    %7 = arith.cmpf oge, %5, %6 : vector<8x1024xf32>
    %cst_6 = arith.constant 1.000000e-01 : f32
    %8 = vector.broadcast %cst_6 : f32 to vector<8x1024xf32>
    %9 = arith.mulf %8, %5 : vector<8x1024xf32>
    %10 = arith.select %7, %5, %9 : vector<8x1024xi1>, vector<8x1024xf32>
    %c0_7 = arith.constant 0 : index
    %c0_8 = arith.constant 0 : index
    %11 = vector.load %arg4[%c0_7, %c0_8] : memref<8x1024xf32, #tpu.memory_space<vmem>>, vector<8x1024xf32>
    tpu.vector_store %arg4[%c0_7, %c0_8], %10 {strides = array<i32>} : memref<8x1024xf32, #tpu.memory_space<vmem>>, vector<8x1024xf32>,
    return
  }
  func.func @transform_0(%arg0: i32) -> (i32, i32) {
    %c0_i32 = arith.constant 0 : i32
    %c0_i32_0 = arith.constant 0 : i32
    %c0_i32_1 = arith.constant 0 : i32
    return %c0_i32, %c0_i32_0 : i32, i32
  }
  func.func @transform_1(%arg0: i32) -> (i32, i32) {
    %c0_i32 = arith.constant 0 : i32
    %c0_i32_0 = arith.constant 0 : i32
    return %c0_i32, %arg0 : i32, i32
  }
  func.func @transform_2(%arg0: i32) -> (i32, i32) {
    %c0_i32 = arith.constant 0 : i32
    %c0_i32_0 = arith.constant 0 : i32
    %c0_i32_1 = arith.constant 0 : i32
    return %c0_i32, %c0_i32_0 : i32, i32
  }
  func.func @transform_3(%arg0: i32) -> (i32, i32) {
    %c0_i32 = arith.constant 0 : i32
    %c0_i32_0 = arith.constant 0 : i32
    return %c0_i32, %arg0 : i32, i32
  }
}

module attributes {stable_mosaic.version = 11 : i64} {
  func.func @_mm_bias_act_kernel(%arg0: i32, %arg1: memref<8x48xbf16, #tpu.memory_space<vmem>>, %arg2: memref<48x1024xbf16, #tpu.memory_space<vmem>>, %arg3: memref<8x1xf32, #tpu.memory_space<vmem>>, %arg4: memref<8x1024xf32, #tpu.memory_space<vmem>>) attributes {dimension_semantics = [#tpu.dimension_semantics<parallel>], iteration_bounds = array<i64: 2>, scalar_prefetch = 0 : i64, scratch_operands = 0 : i64, tpu.core_type = #tpu.core_type<tc>, window_params = [{pipeline_mode = #tpu.pipeline_mode<synchronous>, transform_indices = @transform_0, window_bounds = array<i64: 8, 48>}, {transform_indices = @transform_1, window_bounds = array<i64: 48, 1024>}, {pipeline_mode = #tpu.pipeline_mode<synchronous>, transform_indices = @transform_2, window_bounds = array<i64: 8, 1>}, {transform_indices = @transform_3, window_bounds = array<i64: 8, 1024>}]} {
    %c0 = arith.constant 0 : index
    %c0_0 = arith.constant 0 : index
    %0 = vector.load %arg1[%c0, %c0_0] : memref<8x48xbf16, #tpu.memory_space<vmem>>, vector<8x48xbf16>
    %c0_1 = arith.constant 0 : index
    %c0_2 = arith.constant 0 : index
    %1 = vector.load %arg2[%c0_1, %c0_2] : memref<48x1024xbf16, #tpu.memory_space<vmem>>, vector<48x1024xbf16>
    %cst = arith.constant dense<0.000000e+00> : vector<8x1024xf32>
    %2 = tpu.matmul %0, %1, %cst {dimension_numbers = #tpu.dot_dimension_numbers<[1], [0], [0], [1], [0, 0, 1, 1], [], []>} : vector<8x48xbf16>, vector<48x1024xbf16>, vector<8x1024xf32> -> vector<8x1024xf32>
    %c0_3 = arith.constant 0 : index
    %c0_4 = arith.constant 0 : index
    %3 = vector.load %arg3[%c0_3, %c0_4] : memref<8x1xf32, #tpu.memory_space<vmem>>, vector<8x1xf32>
    %4 = vector.broadcast %3 : vector<8x1xf32> to vector<8x1024xf32>
    %5 = arith.addf %2, %4 : vector<8x1024xf32>
    %cst_5 = arith.constant 0.000000e+00 : f32
    %6 = vector.broadcast %cst_5 : f32 to vector<8x1024xf32>
    %7 = arith.cmpf oge, %5, %6 : vector<8x1024xf32>
    %cst_6 = arith.constant 1.000000e-01 : f32
    %8 = vector.broadcast %cst_6 : f32 to vector<8x1024xf32>
    %9 = arith.mulf %8, %5 : vector<8x1024xf32>
    %10 = arith.select %7, %5, %9 : vector<8x1024xi1>, vector<8x1024xf32>
    %c0_7 = arith.constant 0 : index
    %c0_8 = arith.constant 0 : index
    %11 = vector.load %arg4[%c0_7, %c0_8] : memref<8x1024xf32, #tpu.memory_space<vmem>>, vector<8x1024xf32>
    tpu.vector_store %arg4[%c0_7, %c0_8], %10 {strides = array<i32>} : memref<8x1024xf32, #tpu.memory_space<vmem>>, vector<8x1024xf32>,
    return
  }
  func.func @transform_0(%arg0: i32) -> (i32, i32) {
    %c0_i32 = arith.constant 0 : i32
    %c0_i32_0 = arith.constant 0 : i32
    %c0_i32_1 = arith.constant 0 : i32
    return %c0_i32, %c0_i32_0 : i32, i32
  }
  func.func @transform_1(%arg0: i32) -> (i32, i32) {
    %c0_i32 = arith.constant 0 : i32
    %c0_i32_0 = arith.constant 0 : i32
    return %c0_i32, %arg0 : i32, i32
  }
  func.func @transform_2(%arg0: i32) -> (i32, i32) {
    %c0_i32 = arith.constant 0 : i32
    %c0_i32_0 = arith.constant 0 : i32
    %c0_i32_1 = arith.constant 0 : i32
    return %c0_i32, %c0_i32_0 : i32, i32
  }
  func.func @transform_3(%arg0: i32) -> (i32, i32) {
    %c0_i32 = arith.constant 0 : i32
    %c0_i32_0 = arith.constant 0 : i32
    return %c0_i32, %arg0 : i32, i32
  }
}

module attributes {stable_mosaic.version = 11 : i64} {
  func.func @_mm_bias_act_kernel(%arg0: i32, %arg1: memref<8x64xbf16, #tpu.memory_space<vmem>>, %arg2: memref<64x256xbf16, #tpu.memory_space<vmem>>, %arg3: memref<8x1xf32, #tpu.memory_space<vmem>>, %arg4: memref<8x256xf32, #tpu.memory_space<vmem>>) attributes {dimension_semantics = [#tpu.dimension_semantics<parallel>], iteration_bounds = array<i64: 2>, scalar_prefetch = 0 : i64, scratch_operands = 0 : i64, tpu.core_type = #tpu.core_type<tc>, window_params = [{pipeline_mode = #tpu.pipeline_mode<synchronous>, transform_indices = @transform_0, window_bounds = array<i64: 8, 64>}, {transform_indices = @transform_1, window_bounds = array<i64: 64, 256>}, {pipeline_mode = #tpu.pipeline_mode<synchronous>, transform_indices = @transform_2, window_bounds = array<i64: 8, 1>}, {transform_indices = @transform_3, window_bounds = array<i64: 8, 256>}]} {
    %c0 = arith.constant 0 : index
    %c0_0 = arith.constant 0 : index
    %0 = vector.load %arg1[%c0, %c0_0] : memref<8x64xbf16, #tpu.memory_space<vmem>>, vector<8x64xbf16>
    %c0_1 = arith.constant 0 : index
    %c0_2 = arith.constant 0 : index
    %1 = vector.load %arg2[%c0_1, %c0_2] : memref<64x256xbf16, #tpu.memory_space<vmem>>, vector<64x256xbf16>
    %cst = arith.constant dense<0.000000e+00> : vector<8x256xf32>
    %2 = tpu.matmul %0, %1, %cst {dimension_numbers = #tpu.dot_dimension_numbers<[1], [0], [0], [1], [0, 0, 1, 1], [], []>} : vector<8x64xbf16>, vector<64x256xbf16>, vector<8x256xf32> -> vector<8x256xf32>
    %c0_3 = arith.constant 0 : index
    %c0_4 = arith.constant 0 : index
    %3 = vector.load %arg3[%c0_3, %c0_4] : memref<8x1xf32, #tpu.memory_space<vmem>>, vector<8x1xf32>
    %4 = vector.broadcast %3 : vector<8x1xf32> to vector<8x256xf32>
    %5 = arith.addf %2, %4 : vector<8x256xf32>
    %cst_5 = arith.constant 0.000000e+00 : f32
    %6 = vector.broadcast %cst_5 : f32 to vector<8x256xf32>
    %7 = arith.cmpf oge, %5, %6 : vector<8x256xf32>
    %cst_6 = arith.constant 1.000000e-01 : f32
    %8 = vector.broadcast %cst_6 : f32 to vector<8x256xf32>
    %9 = arith.mulf %8, %5 : vector<8x256xf32>
    %10 = arith.select %7, %5, %9 : vector<8x256xi1>, vector<8x256xf32>
    %c0_7 = arith.constant 0 : index
    %c0_8 = arith.constant 0 : index
    %11 = vector.load %arg4[%c0_7, %c0_8] : memref<8x256xf32, #tpu.memory_space<vmem>>, vector<8x256xf32>
    tpu.vector_store %arg4[%c0_7, %c0_8], %10 {strides = array<i32>} : memref<8x256xf32, #tpu.memory_space<vmem>>, vector<8x256xf32>,
    return
  }
  func.func @transform_0(%arg0: i32) -> (i32, i32) {
    %c0_i32 = arith.constant 0 : i32
    %c0_i32_0 = arith.constant 0 : i32
    %c0_i32_1 = arith.constant 0 : i32
    return %c0_i32, %c0_i32_0 : i32, i32
  }
  func.func @transform_1(%arg0: i32) -> (i32, i32) {
    %c0_i32 = arith.constant 0 : i32
    %c0_i32_0 = arith.constant 0 : i32
    return %c0_i32, %arg0 : i32, i32
  }
  func.func @transform_2(%arg0: i32) -> (i32, i32) {
    %c0_i32 = arith.constant 0 : i32
    %c0_i32_0 = arith.constant 0 : i32
    %c0_i32_1 = arith.constant 0 : i32
    return %c0_i32, %c0_i32_0 : i32, i32
  }
  func.func @transform_3(%arg0: i32) -> (i32, i32) {
    %c0_i32 = arith.constant 0 : i32
    %c0_i32_0 = arith.constant 0 : i32
    return %c0_i32, %arg0 : i32, i32
  }
}

module attributes {stable_mosaic.version = 11 : i64} {
  func.func @_mm_bias_act_kernel(%arg0: i32, %arg1: memref<8x80xbf16, #tpu.memory_space<vmem>>, %arg2: memref<80x256xbf16, #tpu.memory_space<vmem>>, %arg3: memref<8x1xf32, #tpu.memory_space<vmem>>, %arg4: memref<8x256xf32, #tpu.memory_space<vmem>>) attributes {dimension_semantics = [#tpu.dimension_semantics<parallel>], iteration_bounds = array<i64: 2>, scalar_prefetch = 0 : i64, scratch_operands = 0 : i64, tpu.core_type = #tpu.core_type<tc>, window_params = [{pipeline_mode = #tpu.pipeline_mode<synchronous>, transform_indices = @transform_0, window_bounds = array<i64: 8, 80>}, {transform_indices = @transform_1, window_bounds = array<i64: 80, 256>}, {pipeline_mode = #tpu.pipeline_mode<synchronous>, transform_indices = @transform_2, window_bounds = array<i64: 8, 1>}, {transform_indices = @transform_3, window_bounds = array<i64: 8, 256>}]} {
    %c0 = arith.constant 0 : index
    %c0_0 = arith.constant 0 : index
    %0 = vector.load %arg1[%c0, %c0_0] : memref<8x80xbf16, #tpu.memory_space<vmem>>, vector<8x80xbf16>
    %c0_1 = arith.constant 0 : index
    %c0_2 = arith.constant 0 : index
    %1 = vector.load %arg2[%c0_1, %c0_2] : memref<80x256xbf16, #tpu.memory_space<vmem>>, vector<80x256xbf16>
    %cst = arith.constant dense<0.000000e+00> : vector<8x256xf32>
    %2 = tpu.matmul %0, %1, %cst {dimension_numbers = #tpu.dot_dimension_numbers<[1], [0], [0], [1], [0, 0, 1, 1], [], []>} : vector<8x80xbf16>, vector<80x256xbf16>, vector<8x256xf32> -> vector<8x256xf32>
    %c0_3 = arith.constant 0 : index
    %c0_4 = arith.constant 0 : index
    %3 = vector.load %arg3[%c0_3, %c0_4] : memref<8x1xf32, #tpu.memory_space<vmem>>, vector<8x1xf32>
    %4 = vector.broadcast %3 : vector<8x1xf32> to vector<8x256xf32>
    %5 = arith.addf %2, %4 : vector<8x256xf32>
    %cst_5 = arith.constant 0.000000e+00 : f32
    %6 = vector.broadcast %cst_5 : f32 to vector<8x256xf32>
    %7 = arith.cmpf oge, %5, %6 : vector<8x256xf32>
    %cst_6 = arith.constant 1.000000e-01 : f32
    %8 = vector.broadcast %cst_6 : f32 to vector<8x256xf32>
    %9 = arith.mulf %8, %5 : vector<8x256xf32>
    %10 = arith.select %7, %5, %9 : vector<8x256xi1>, vector<8x256xf32>
    %c0_7 = arith.constant 0 : index
    %c0_8 = arith.constant 0 : index
    %11 = vector.load %arg4[%c0_7, %c0_8] : memref<8x256xf32, #tpu.memory_space<vmem>>, vector<8x256xf32>
    tpu.vector_store %arg4[%c0_7, %c0_8], %10 {strides = array<i32>} : memref<8x256xf32, #tpu.memory_space<vmem>>, vector<8x256xf32>,
    return
  }
  func.func @transform_0(%arg0: i32) -> (i32, i32) {
    %c0_i32 = arith.constant 0 : i32
    %c0_i32_0 = arith.constant 0 : i32
    %c0_i32_1 = arith.constant 0 : i32
    return %c0_i32, %c0_i32_0 : i32, i32
  }
  func.func @transform_1(%arg0: i32) -> (i32, i32) {
    %c0_i32 = arith.constant 0 : i32
    %c0_i32_0 = arith.constant 0 : i32
    return %c0_i32, %arg0 : i32, i32
  }
  func.func @transform_2(%arg0: i32) -> (i32, i32) {
    %c0_i32 = arith.constant 0 : i32
    %c0_i32_0 = arith.constant 0 : i32
    %c0_i32_1 = arith.constant 0 : i32
    return %c0_i32, %c0_i32_0 : i32, i32
  }
  func.func @transform_3(%arg0: i32) -> (i32, i32) {
    %c0_i32 = arith.constant 0 : i32
    %c0_i32_0 = arith.constant 0 : i32
    return %c0_i32, %arg0 : i32, i32
  }
}

module attributes {stable_mosaic.version = 11 : i64} {
  func.func @_mm_bias_act_kernel(%arg0: i32, %arg1: memref<16x128xbf16, #tpu.memory_space<vmem>>, %arg2: memref<128x128xbf16, #tpu.memory_space<vmem>>, %arg3: memref<16x1xf32, #tpu.memory_space<vmem>>, %arg4: memref<16x128xf32, #tpu.memory_space<vmem>>) attributes {dimension_semantics = [#tpu.dimension_semantics<parallel>], iteration_bounds = array<i64: 1>, scalar_prefetch = 0 : i64, scratch_operands = 0 : i64, tpu.core_type = #tpu.core_type<tc>, window_params = [{pipeline_mode = #tpu.pipeline_mode<synchronous>, transform_indices = @transform_0, window_bounds = array<i64: 16, 128>}, {transform_indices = @transform_1, window_bounds = array<i64: 128, 128>}, {pipeline_mode = #tpu.pipeline_mode<synchronous>, transform_indices = @transform_2, window_bounds = array<i64: 16, 1>}, {transform_indices = @transform_3, window_bounds = array<i64: 16, 128>}]} {
    %c0 = arith.constant 0 : index
    %c0_0 = arith.constant 0 : index
    %0 = vector.load %arg1[%c0, %c0_0] : memref<16x128xbf16, #tpu.memory_space<vmem>>, vector<16x128xbf16>
    %c0_1 = arith.constant 0 : index
    %c0_2 = arith.constant 0 : index
    %1 = vector.load %arg2[%c0_1, %c0_2] : memref<128x128xbf16, #tpu.memory_space<vmem>>, vector<128x128xbf16>
    %cst = arith.constant dense<0.000000e+00> : vector<16x128xf32>
    %2 = tpu.matmul %0, %1, %cst {dimension_numbers = #tpu.dot_dimension_numbers<[1], [0], [0], [1], [0, 0, 1, 1], [], []>} : vector<16x128xbf16>, vector<128x128xbf16>, vector<16x128xf32> -> vector<16x128xf32>
    %c0_3 = arith.constant 0 : index
    %c0_4 = arith.constant 0 : index
    %3 = vector.load %arg3[%c0_3, %c0_4] : memref<16x1xf32, #tpu.memory_space<vmem>>, vector<16x1xf32>
    %4 = vector.broadcast %3 : vector<16x1xf32> to vector<16x128xf32>
    %5 = arith.addf %2, %4 : vector<16x128xf32>
    %cst_5 = arith.constant 0.000000e+00 : f32
    %6 = vector.broadcast %cst_5 : f32 to vector<16x128xf32>
    %7 = arith.cmpf oge, %5, %6 : vector<16x128xf32>
    %cst_6 = arith.constant 1.000000e-01 : f32
    %8 = vector.broadcast %cst_6 : f32 to vector<16x128xf32>
    %9 = arith.mulf %8, %5 : vector<16x128xf32>
    %10 = arith.select %7, %5, %9 : vector<16x128xi1>, vector<16x128xf32>
    %c0_7 = arith.constant 0 : index
    %c0_8 = arith.constant 0 : index
    %11 = vector.load %arg4[%c0_7, %c0_8] : memref<16x128xf32, #tpu.memory_space<vmem>>, vector<16x128xf32>
    tpu.vector_store %arg4[%c0_7, %c0_8], %10 {strides = array<i32>} : memref<16x128xf32, #tpu.memory_space<vmem>>, vector<16x128xf32>,
    return
  }
  func.func @transform_0(%arg0: i32) -> (i32, i32) {
    %c0_i32 = arith.constant 0 : i32
    %c0_i32_0 = arith.constant 0 : i32
    %c0_i32_1 = arith.constant 0 : i32
    return %c0_i32, %c0_i32_0 : i32, i32
  }
  func.func @transform_1(%arg0: i32) -> (i32, i32) {
    %c0_i32 = arith.constant 0 : i32
    %c0_i32_0 = arith.constant 0 : i32
    return %c0_i32, %arg0 : i32, i32
  }
  func.func @transform_2(%arg0: i32) -> (i32, i32) {
    %c0_i32 = arith.constant 0 : i32
    %c0_i32_0 = arith.constant 0 : i32
    %c0_i32_1 = arith.constant 0 : i32
    return %c0_i32, %c0_i32_0 : i32, i32
  }
  func.func @transform_3(%arg0: i32) -> (i32, i32) {
    %c0_i32 = arith.constant 0 : i32
    %c0_i32_0 = arith.constant 0 : i32
    return %c0_i32, %arg0 : i32, i32
  }
}

module attributes {stable_mosaic.version = 11 : i64} {
  func.func @_mm_bias_act_kernel(%arg0: i32, %arg1: memref<8x144xbf16, #tpu.memory_space<vmem>>, %arg2: memref<144x128xbf16, #tpu.memory_space<vmem>>, %arg3: memref<8x1xf32, #tpu.memory_space<vmem>>, %arg4: memref<8x128xf32, #tpu.memory_space<vmem>>) attributes {dimension_semantics = [#tpu.dimension_semantics<parallel>], iteration_bounds = array<i64: 1>, scalar_prefetch = 0 : i64, scratch_operands = 0 : i64, tpu.core_type = #tpu.core_type<tc>, window_params = [{pipeline_mode = #tpu.pipeline_mode<synchronous>, transform_indices = @transform_0, window_bounds = array<i64: 8, 144>}, {transform_indices = @transform_1, window_bounds = array<i64: 144, 128>}, {pipeline_mode = #tpu.pipeline_mode<synchronous>, transform_indices = @transform_2, window_bounds = array<i64: 8, 1>}, {transform_indices = @transform_3, window_bounds = array<i64: 8, 128>}]} {
    %c0 = arith.constant 0 : index
    %c0_0 = arith.constant 0 : index
    %0 = vector.load %arg1[%c0, %c0_0] : memref<8x144xbf16, #tpu.memory_space<vmem>>, vector<8x144xbf16>
    %c0_1 = arith.constant 0 : index
    %c0_2 = arith.constant 0 : index
    %1 = vector.load %arg2[%c0_1, %c0_2] : memref<144x128xbf16, #tpu.memory_space<vmem>>, vector<144x128xbf16>
    %cst = arith.constant dense<0.000000e+00> : vector<8x128xf32>
    %2 = tpu.matmul %0, %1, %cst {dimension_numbers = #tpu.dot_dimension_numbers<[1], [0], [0], [1], [0, 0, 1, 1], [], []>} : vector<8x144xbf16>, vector<144x128xbf16>, vector<8x128xf32> -> vector<8x128xf32>
    %c0_3 = arith.constant 0 : index
    %c0_4 = arith.constant 0 : index
    %3 = vector.load %arg3[%c0_3, %c0_4] : memref<8x1xf32, #tpu.memory_space<vmem>>, vector<8x1xf32>
    %4 = vector.broadcast %3 : vector<8x1xf32> to vector<8x128xf32>
    %5 = arith.addf %2, %4 : vector<8x128xf32>
    %cst_5 = arith.constant 0.000000e+00 : f32
    %6 = vector.broadcast %cst_5 : f32 to vector<8x128xf32>
    %7 = arith.cmpf oge, %5, %6 : vector<8x128xf32>
    %cst_6 = arith.constant 1.000000e-01 : f32
    %8 = vector.broadcast %cst_6 : f32 to vector<8x128xf32>
    %9 = arith.mulf %8, %5 : vector<8x128xf32>
    %10 = arith.select %7, %5, %9 : vector<8x128xi1>, vector<8x128xf32>
    %c0_7 = arith.constant 0 : index
    %c0_8 = arith.constant 0 : index
    %11 = vector.load %arg4[%c0_7, %c0_8] : memref<8x128xf32, #tpu.memory_space<vmem>>, vector<8x128xf32>
    tpu.vector_store %arg4[%c0_7, %c0_8], %10 {strides = array<i32>} : memref<8x128xf32, #tpu.memory_space<vmem>>, vector<8x128xf32>,
    return
  }
  func.func @transform_0(%arg0: i32) -> (i32, i32) {
    %c0_i32 = arith.constant 0 : i32
    %c0_i32_0 = arith.constant 0 : i32
    %c0_i32_1 = arith.constant 0 : i32
    return %c0_i32, %c0_i32_0 : i32, i32
  }
  func.func @transform_1(%arg0: i32) -> (i32, i32) {
    %c0_i32 = arith.constant 0 : i32
    %c0_i32_0 = arith.constant 0 : i32
    return %c0_i32, %arg0 : i32, i32
  }
  func.func @transform_2(%arg0: i32) -> (i32, i32) {
    %c0_i32 = arith.constant 0 : i32
    %c0_i32_0 = arith.constant 0 : i32
    %c0_i32_1 = arith.constant 0 : i32
    return %c0_i32, %c0_i32_0 : i32, i32
  }
  func.func @transform_3(%arg0: i32) -> (i32, i32) {
    %c0_i32 = arith.constant 0 : i32
    %c0_i32_0 = arith.constant 0 : i32
    return %c0_i32, %arg0 : i32, i32
  }
}

module attributes {stable_mosaic.version = 11 : i64} {
  func.func @_mm_bias_act_kernel(%arg0: i32, %arg1: memref<8x80xbf16, #tpu.memory_space<vmem>>, %arg2: memref<80x128xbf16, #tpu.memory_space<vmem>>, %arg3: memref<8x1xf32, #tpu.memory_space<vmem>>, %arg4: memref<8x128xf32, #tpu.memory_space<vmem>>) attributes {dimension_semantics = [#tpu.dimension_semantics<parallel>], iteration_bounds = array<i64: 1>, scalar_prefetch = 0 : i64, scratch_operands = 0 : i64, tpu.core_type = #tpu.core_type<tc>, window_params = [{pipeline_mode = #tpu.pipeline_mode<synchronous>, transform_indices = @transform_0, window_bounds = array<i64: 8, 80>}, {transform_indices = @transform_1, window_bounds = array<i64: 80, 128>}, {pipeline_mode = #tpu.pipeline_mode<synchronous>, transform_indices = @transform_2, window_bounds = array<i64: 8, 1>}, {transform_indices = @transform_3, window_bounds = array<i64: 8, 128>}]} {
    %c0 = arith.constant 0 : index
    %c0_0 = arith.constant 0 : index
    %0 = vector.load %arg1[%c0, %c0_0] : memref<8x80xbf16, #tpu.memory_space<vmem>>, vector<8x80xbf16>
    %c0_1 = arith.constant 0 : index
    %c0_2 = arith.constant 0 : index
    %1 = vector.load %arg2[%c0_1, %c0_2] : memref<80x128xbf16, #tpu.memory_space<vmem>>, vector<80x128xbf16>
    %cst = arith.constant dense<0.000000e+00> : vector<8x128xf32>
    %2 = tpu.matmul %0, %1, %cst {dimension_numbers = #tpu.dot_dimension_numbers<[1], [0], [0], [1], [0, 0, 1, 1], [], []>} : vector<8x80xbf16>, vector<80x128xbf16>, vector<8x128xf32> -> vector<8x128xf32>
    %c0_3 = arith.constant 0 : index
    %c0_4 = arith.constant 0 : index
    %3 = vector.load %arg3[%c0_3, %c0_4] : memref<8x1xf32, #tpu.memory_space<vmem>>, vector<8x1xf32>
    %4 = vector.broadcast %3 : vector<8x1xf32> to vector<8x128xf32>
    %5 = arith.addf %2, %4 : vector<8x128xf32>
    %cst_5 = arith.constant 0.000000e+00 : f32
    %6 = vector.broadcast %cst_5 : f32 to vector<8x128xf32>
    %7 = arith.cmpf oge, %5, %6 : vector<8x128xf32>
    %cst_6 = arith.constant 1.000000e-01 : f32
    %8 = vector.broadcast %cst_6 : f32 to vector<8x128xf32>
    %9 = arith.mulf %8, %5 : vector<8x128xf32>
    %10 = arith.select %7, %5, %9 : vector<8x128xi1>, vector<8x128xf32>
    %c0_7 = arith.constant 0 : index
    %c0_8 = arith.constant 0 : index
    %11 = vector.load %arg4[%c0_7, %c0_8] : memref<8x128xf32, #tpu.memory_space<vmem>>, vector<8x128xf32>
    tpu.vector_store %arg4[%c0_7, %c0_8], %10 {strides = array<i32>} : memref<8x128xf32, #tpu.memory_space<vmem>>, vector<8x128xf32>,
    return
  }
  func.func @transform_0(%arg0: i32) -> (i32, i32) {
    %c0_i32 = arith.constant 0 : i32
    %c0_i32_0 = arith.constant 0 : i32
    %c0_i32_1 = arith.constant 0 : i32
    return %c0_i32, %c0_i32_0 : i32, i32
  }
  func.func @transform_1(%arg0: i32) -> (i32, i32) {
    %c0_i32 = arith.constant 0 : i32
    %c0_i32_0 = arith.constant 0 : i32
    return %c0_i32, %arg0 : i32, i32
  }
  func.func @transform_2(%arg0: i32) -> (i32, i32) {
    %c0_i32 = arith.constant 0 : i32
    %c0_i32_0 = arith.constant 0 : i32
    %c0_i32_1 = arith.constant 0 : i32
    return %c0_i32, %c0_i32_0 : i32, i32
  }
  func.func @transform_3(%arg0: i32) -> (i32, i32) {
    %c0_i32 = arith.constant 0 : i32
    %c0_i32_0 = arith.constant 0 : i32
    return %c0_i32, %arg0 : i32, i32
  }
}

module attributes {stable_mosaic.version = 11 : i64} {
  func.func @_mm_bias_act_kernel(%arg0: i32, %arg1: memref<8x256xbf16, #tpu.memory_space<vmem>>, %arg2: memref<256x128xbf16, #tpu.memory_space<vmem>>, %arg3: memref<8x1xf32, #tpu.memory_space<vmem>>, %arg4: memref<8x128xf32, #tpu.memory_space<vmem>>) attributes {dimension_semantics = [#tpu.dimension_semantics<parallel>], iteration_bounds = array<i64: 1>, scalar_prefetch = 0 : i64, scratch_operands = 0 : i64, tpu.core_type = #tpu.core_type<tc>, window_params = [{pipeline_mode = #tpu.pipeline_mode<synchronous>, transform_indices = @transform_0, window_bounds = array<i64: 8, 256>}, {transform_indices = @transform_1, window_bounds = array<i64: 256, 128>}, {pipeline_mode = #tpu.pipeline_mode<synchronous>, transform_indices = @transform_2, window_bounds = array<i64: 8, 1>}, {transform_indices = @transform_3, window_bounds = array<i64: 8, 128>}]} {
    %c0 = arith.constant 0 : index
    %c0_0 = arith.constant 0 : index
    %0 = vector.load %arg1[%c0, %c0_0] : memref<8x256xbf16, #tpu.memory_space<vmem>>, vector<8x256xbf16>
    %c0_1 = arith.constant 0 : index
    %c0_2 = arith.constant 0 : index
    %1 = vector.load %arg2[%c0_1, %c0_2] : memref<256x128xbf16, #tpu.memory_space<vmem>>, vector<256x128xbf16>
    %cst = arith.constant dense<0.000000e+00> : vector<8x128xf32>
    %2 = tpu.matmul %0, %1, %cst {dimension_numbers = #tpu.dot_dimension_numbers<[1], [0], [0], [1], [0, 0, 1, 1], [], []>} : vector<8x256xbf16>, vector<256x128xbf16>, vector<8x128xf32> -> vector<8x128xf32>
    %c0_3 = arith.constant 0 : index
    %c0_4 = arith.constant 0 : index
    %3 = vector.load %arg3[%c0_3, %c0_4] : memref<8x1xf32, #tpu.memory_space<vmem>>, vector<8x1xf32>
    %4 = vector.broadcast %3 : vector<8x1xf32> to vector<8x128xf32>
    %5 = arith.addf %2, %4 : vector<8x128xf32>
    %c0_5 = arith.constant 0 : index
    %c0_6 = arith.constant 0 : index
    %6 = vector.load %arg4[%c0_5, %c0_6] : memref<8x128xf32, #tpu.memory_space<vmem>>, vector<8x128xf32>
    tpu.vector_store %arg4[%c0_5, %c0_6], %5 {strides = array<i32>} : memref<8x128xf32, #tpu.memory_space<vmem>>, vector<8x128xf32>,
    return
  }
  func.func @transform_0(%arg0: i32) -> (i32, i32) {
    %c0_i32 = arith.constant 0 : i32
    %c0_i32_0 = arith.constant 0 : i32
    %c0_i32_1 = arith.constant 0 : i32
    return %c0_i32, %c0_i32_0 : i32, i32
  }
  func.func @transform_1(%arg0: i32) -> (i32, i32) {
    %c0_i32 = arith.constant 0 : i32
    %c0_i32_0 = arith.constant 0 : i32
    return %c0_i32, %arg0 : i32, i32
  }
  func.func @transform_2(%arg0: i32) -> (i32, i32) {
    %c0_i32 = arith.constant 0 : i32
    %c0_i32_0 = arith.constant 0 : i32
    %c0_i32_1 = arith.constant 0 : i32
    return %c0_i32, %c0_i32_0 : i32, i32
  }
  func.func @transform_3(%arg0: i32) -> (i32, i32) {
    %c0_i32 = arith.constant 0 : i32
    %c0_i32_0 = arith.constant 0 : i32
    return %c0_i32, %arg0 : i32, i32
  }
}

module attributes {stable_mosaic.version = 11 : i64} {
  func.func @_mm_bias_act_kernel(%arg0: i32, %arg1: memref<8x512xbf16, #tpu.memory_space<vmem>>, %arg2: memref<512x128xbf16, #tpu.memory_space<vmem>>, %arg3: memref<8x1xf32, #tpu.memory_space<vmem>>, %arg4: memref<8x128xf32, #tpu.memory_space<vmem>>) attributes {dimension_semantics = [#tpu.dimension_semantics<parallel>], iteration_bounds = array<i64: 1>, scalar_prefetch = 0 : i64, scratch_operands = 0 : i64, tpu.core_type = #tpu.core_type<tc>, window_params = [{pipeline_mode = #tpu.pipeline_mode<synchronous>, transform_indices = @transform_0, window_bounds = array<i64: 8, 512>}, {transform_indices = @transform_1, window_bounds = array<i64: 512, 128>}, {pipeline_mode = #tpu.pipeline_mode<synchronous>, transform_indices = @transform_2, window_bounds = array<i64: 8, 1>}, {transform_indices = @transform_3, window_bounds = array<i64: 8, 128>}]} {
    %c0 = arith.constant 0 : index
    %c0_0 = arith.constant 0 : index
    %0 = vector.load %arg1[%c0, %c0_0] : memref<8x512xbf16, #tpu.memory_space<vmem>>, vector<8x512xbf16>
    %c0_1 = arith.constant 0 : index
    %c0_2 = arith.constant 0 : index
    %1 = vector.load %arg2[%c0_1, %c0_2] : memref<512x128xbf16, #tpu.memory_space<vmem>>, vector<512x128xbf16>
    %cst = arith.constant dense<0.000000e+00> : vector<8x128xf32>
    %2 = tpu.matmul %0, %1, %cst {dimension_numbers = #tpu.dot_dimension_numbers<[1], [0], [0], [1], [0, 0, 1, 1], [], []>} : vector<8x512xbf16>, vector<512x128xbf16>, vector<8x128xf32> -> vector<8x128xf32>
    %c0_3 = arith.constant 0 : index
    %c0_4 = arith.constant 0 : index
    %3 = vector.load %arg3[%c0_3, %c0_4] : memref<8x1xf32, #tpu.memory_space<vmem>>, vector<8x1xf32>
    %4 = vector.broadcast %3 : vector<8x1xf32> to vector<8x128xf32>
    %5 = arith.addf %2, %4 : vector<8x128xf32>
    %cst_5 = arith.constant 0.000000e+00 : f32
    %6 = vector.broadcast %cst_5 : f32 to vector<8x128xf32>
    %7 = arith.cmpf oge, %5, %6 : vector<8x128xf32>
    %cst_6 = arith.constant 1.000000e-01 : f32
    %8 = vector.broadcast %cst_6 : f32 to vector<8x128xf32>
    %9 = arith.mulf %8, %5 : vector<8x128xf32>
    %10 = arith.select %7, %5, %9 : vector<8x128xi1>, vector<8x128xf32>
    %c0_7 = arith.constant 0 : index
    %c0_8 = arith.constant 0 : index
    %11 = vector.load %arg4[%c0_7, %c0_8] : memref<8x128xf32, #tpu.memory_space<vmem>>, vector<8x128xf32>
    tpu.vector_store %arg4[%c0_7, %c0_8], %10 {strides = array<i32>} : memref<8x128xf32, #tpu.memory_space<vmem>>, vector<8x128xf32>,
    return
  }
  func.func @transform_0(%arg0: i32) -> (i32, i32) {
    %c0_i32 = arith.constant 0 : i32
    %c0_i32_0 = arith.constant 0 : i32
    %c0_i32_1 = arith.constant 0 : i32
    return %c0_i32, %c0_i32_0 : i32, i32
  }
  func.func @transform_1(%arg0: i32) -> (i32, i32) {
    %c0_i32 = arith.constant 0 : i32
    %c0_i32_0 = arith.constant 0 : i32
    return %c0_i32, %arg0 : i32, i32
  }
  func.func @transform_2(%arg0: i32) -> (i32, i32) {
    %c0_i32 = arith.constant 0 : i32
    %c0_i32_0 = arith.constant 0 : i32
    %c0_i32_1 = arith.constant 0 : i32
    return %c0_i32, %c0_i32_0 : i32, i32
  }
  func.func @transform_3(%arg0: i32) -> (i32, i32) {
    %c0_i32 = arith.constant 0 : i32
    %c0_i32_0 = arith.constant 0 : i32
    return %c0_i32, %arg0 : i32, i32
  }
}

module attributes {stable_mosaic.version = 11 : i64} {
  func.func @_mm_bias_act_kernel(%arg0: i32, %arg1: memref<8x48xbf16, #tpu.memory_space<vmem>>, %arg2: memref<48x128xbf16, #tpu.memory_space<vmem>>, %arg3: memref<8x1xf32, #tpu.memory_space<vmem>>, %arg4: memref<8x128xf32, #tpu.memory_space<vmem>>) attributes {dimension_semantics = [#tpu.dimension_semantics<parallel>], iteration_bounds = array<i64: 1>, scalar_prefetch = 0 : i64, scratch_operands = 0 : i64, tpu.core_type = #tpu.core_type<tc>, window_params = [{pipeline_mode = #tpu.pipeline_mode<synchronous>, transform_indices = @transform_0, window_bounds = array<i64: 8, 48>}, {transform_indices = @transform_1, window_bounds = array<i64: 48, 128>}, {pipeline_mode = #tpu.pipeline_mode<synchronous>, transform_indices = @transform_2, window_bounds = array<i64: 8, 1>}, {transform_indices = @transform_3, window_bounds = array<i64: 8, 128>}]} {
    %c0 = arith.constant 0 : index
    %c0_0 = arith.constant 0 : index
    %0 = vector.load %arg1[%c0, %c0_0] : memref<8x48xbf16, #tpu.memory_space<vmem>>, vector<8x48xbf16>
    %c0_1 = arith.constant 0 : index
    %c0_2 = arith.constant 0 : index
    %1 = vector.load %arg2[%c0_1, %c0_2] : memref<48x128xbf16, #tpu.memory_space<vmem>>, vector<48x128xbf16>
    %cst = arith.constant dense<0.000000e+00> : vector<8x128xf32>
    %2 = tpu.matmul %0, %1, %cst {dimension_numbers = #tpu.dot_dimension_numbers<[1], [0], [0], [1], [0, 0, 1, 1], [], []>} : vector<8x48xbf16>, vector<48x128xbf16>, vector<8x128xf32> -> vector<8x128xf32>
    %c0_3 = arith.constant 0 : index
    %c0_4 = arith.constant 0 : index
    %3 = vector.load %arg3[%c0_3, %c0_4] : memref<8x1xf32, #tpu.memory_space<vmem>>, vector<8x1xf32>
    %4 = vector.broadcast %3 : vector<8x1xf32> to vector<8x128xf32>
    %5 = arith.addf %2, %4 : vector<8x128xf32>
    %cst_5 = arith.constant 0.000000e+00 : f32
    %6 = vector.broadcast %cst_5 : f32 to vector<8x128xf32>
    %7 = arith.cmpf oge, %5, %6 : vector<8x128xf32>
    %cst_6 = arith.constant 1.000000e-01 : f32
    %8 = vector.broadcast %cst_6 : f32 to vector<8x128xf32>
    %9 = arith.mulf %8, %5 : vector<8x128xf32>
    %10 = arith.select %7, %5, %9 : vector<8x128xi1>, vector<8x128xf32>
    %c0_7 = arith.constant 0 : index
    %c0_8 = arith.constant 0 : index
    %11 = vector.load %arg4[%c0_7, %c0_8] : memref<8x128xf32, #tpu.memory_space<vmem>>, vector<8x128xf32>
    tpu.vector_store %arg4[%c0_7, %c0_8], %10 {strides = array<i32>} : memref<8x128xf32, #tpu.memory_space<vmem>>, vector<8x128xf32>,
    return
  }
  func.func @transform_0(%arg0: i32) -> (i32, i32) {
    %c0_i32 = arith.constant 0 : i32
    %c0_i32_0 = arith.constant 0 : i32
    %c0_i32_1 = arith.constant 0 : i32
    return %c0_i32, %c0_i32_0 : i32, i32
  }
  func.func @transform_1(%arg0: i32) -> (i32, i32) {
    %c0_i32 = arith.constant 0 : i32
    %c0_i32_0 = arith.constant 0 : i32
    return %c0_i32, %arg0 : i32, i32
  }
  func.func @transform_2(%arg0: i32) -> (i32, i32) {
    %c0_i32 = arith.constant 0 : i32
    %c0_i32_0 = arith.constant 0 : i32
    %c0_i32_1 = arith.constant 0 : i32
    return %c0_i32, %c0_i32_0 : i32, i32
  }
  func.func @transform_3(%arg0: i32) -> (i32, i32) {
    %c0_i32 = arith.constant 0 : i32
    %c0_i32_0 = arith.constant 0 : i32
    return %c0_i32, %arg0 : i32, i32
  }
}

module attributes {stable_mosaic.version = 11 : i64} {
  func.func @_mm_bias_act_kernel(%arg0: i32, %arg1: memref<16x80xbf16, #tpu.memory_space<vmem>>, %arg2: memref<80x128xbf16, #tpu.memory_space<vmem>>, %arg3: memref<16x1xf32, #tpu.memory_space<vmem>>, %arg4: memref<16x128xf32, #tpu.memory_space<vmem>>) attributes {dimension_semantics = [#tpu.dimension_semantics<parallel>], iteration_bounds = array<i64: 1>, scalar_prefetch = 0 : i64, scratch_operands = 0 : i64, tpu.core_type = #tpu.core_type<tc>, window_params = [{pipeline_mode = #tpu.pipeline_mode<synchronous>, transform_indices = @transform_0, window_bounds = array<i64: 16, 80>}, {transform_indices = @transform_1, window_bounds = array<i64: 80, 128>}, {pipeline_mode = #tpu.pipeline_mode<synchronous>, transform_indices = @transform_2, window_bounds = array<i64: 16, 1>}, {transform_indices = @transform_3, window_bounds = array<i64: 16, 128>}]} {
    %c0 = arith.constant 0 : index
    %c0_0 = arith.constant 0 : index
    %0 = vector.load %arg1[%c0, %c0_0] : memref<16x80xbf16, #tpu.memory_space<vmem>>, vector<16x80xbf16>
    %c0_1 = arith.constant 0 : index
    %c0_2 = arith.constant 0 : index
    %1 = vector.load %arg2[%c0_1, %c0_2] : memref<80x128xbf16, #tpu.memory_space<vmem>>, vector<80x128xbf16>
    %cst = arith.constant dense<0.000000e+00> : vector<16x128xf32>
    %2 = tpu.matmul %0, %1, %cst {dimension_numbers = #tpu.dot_dimension_numbers<[1], [0], [0], [1], [0, 0, 1, 1], [], []>} : vector<16x80xbf16>, vector<80x128xbf16>, vector<16x128xf32> -> vector<16x128xf32>
    %c0_3 = arith.constant 0 : index
    %c0_4 = arith.constant 0 : index
    %3 = vector.load %arg3[%c0_3, %c0_4] : memref<16x1xf32, #tpu.memory_space<vmem>>, vector<16x1xf32>
    %4 = vector.broadcast %3 : vector<16x1xf32> to vector<16x128xf32>
    %5 = arith.addf %2, %4 : vector<16x128xf32>
    %cst_5 = arith.constant 0.000000e+00 : f32
    %6 = vector.broadcast %cst_5 : f32 to vector<16x128xf32>
    %7 = arith.cmpf oge, %5, %6 : vector<16x128xf32>
    %cst_6 = arith.constant 1.000000e-01 : f32
    %8 = vector.broadcast %cst_6 : f32 to vector<16x128xf32>
    %9 = arith.mulf %8, %5 : vector<16x128xf32>
    %10 = arith.select %7, %5, %9 : vector<16x128xi1>, vector<16x128xf32>
    %c0_7 = arith.constant 0 : index
    %c0_8 = arith.constant 0 : index
    %11 = vector.load %arg4[%c0_7, %c0_8] : memref<16x128xf32, #tpu.memory_space<vmem>>, vector<16x128xf32>
    tpu.vector_store %arg4[%c0_7, %c0_8], %10 {strides = array<i32>} : memref<16x128xf32, #tpu.memory_space<vmem>>, vector<16x128xf32>,
    return
  }
  func.func @transform_0(%arg0: i32) -> (i32, i32) {
    %c0_i32 = arith.constant 0 : i32
    %c0_i32_0 = arith.constant 0 : i32
    %c0_i32_1 = arith.constant 0 : i32
    return %c0_i32, %c0_i32_0 : i32, i32
  }
  func.func @transform_1(%arg0: i32) -> (i32, i32) {
    %c0_i32 = arith.constant 0 : i32
    %c0_i32_0 = arith.constant 0 : i32
    return %c0_i32, %arg0 : i32, i32
  }
  func.func @transform_2(%arg0: i32) -> (i32, i32) {
    %c0_i32 = arith.constant 0 : i32
    %c0_i32_0 = arith.constant 0 : i32
    %c0_i32_1 = arith.constant 0 : i32
    return %c0_i32, %c0_i32_0 : i32, i32
  }
  func.func @transform_3(%arg0: i32) -> (i32, i32) {
    %c0_i32 = arith.constant 0 : i32
    %c0_i32_0 = arith.constant 0 : i32
    return %c0_i32, %arg0 : i32, i32
  }
}

module attributes {stable_mosaic.version = 11 : i64} {
  func.func @_mm_bias_act_kernel(%arg0: i32, %arg1: memref<32x144xbf16, #tpu.memory_space<vmem>>, %arg2: memref<144x128xbf16, #tpu.memory_space<vmem>>, %arg3: memref<32x1xf32, #tpu.memory_space<vmem>>, %arg4: memref<32x128xf32, #tpu.memory_space<vmem>>) attributes {dimension_semantics = [#tpu.dimension_semantics<parallel>], iteration_bounds = array<i64: 1>, scalar_prefetch = 0 : i64, scratch_operands = 0 : i64, tpu.core_type = #tpu.core_type<tc>, window_params = [{pipeline_mode = #tpu.pipeline_mode<synchronous>, transform_indices = @transform_0, window_bounds = array<i64: 32, 144>}, {transform_indices = @transform_1, window_bounds = array<i64: 144, 128>}, {pipeline_mode = #tpu.pipeline_mode<synchronous>, transform_indices = @transform_2, window_bounds = array<i64: 32, 1>}, {transform_indices = @transform_3, window_bounds = array<i64: 32, 128>}]} {
    %c0 = arith.constant 0 : index
    %c0_0 = arith.constant 0 : index
    %0 = vector.load %arg1[%c0, %c0_0] : memref<32x144xbf16, #tpu.memory_space<vmem>>, vector<32x144xbf16>
    %c0_1 = arith.constant 0 : index
    %c0_2 = arith.constant 0 : index
    %1 = vector.load %arg2[%c0_1, %c0_2] : memref<144x128xbf16, #tpu.memory_space<vmem>>, vector<144x128xbf16>
    %cst = arith.constant dense<0.000000e+00> : vector<32x128xf32>
    %2 = tpu.matmul %0, %1, %cst {dimension_numbers = #tpu.dot_dimension_numbers<[1], [0], [0], [1], [0, 0, 1, 1], [], []>} : vector<32x144xbf16>, vector<144x128xbf16>, vector<32x128xf32> -> vector<32x128xf32>
    %c0_3 = arith.constant 0 : index
    %c0_4 = arith.constant 0 : index
    %3 = vector.load %arg3[%c0_3, %c0_4] : memref<32x1xf32, #tpu.memory_space<vmem>>, vector<32x1xf32>
    %4 = vector.broadcast %3 : vector<32x1xf32> to vector<32x128xf32>
    %5 = arith.addf %2, %4 : vector<32x128xf32>
    %cst_5 = arith.constant 0.000000e+00 : f32
    %6 = vector.broadcast %cst_5 : f32 to vector<32x128xf32>
    %7 = arith.cmpf oge, %5, %6 : vector<32x128xf32>
    %cst_6 = arith.constant 1.000000e-01 : f32
    %8 = vector.broadcast %cst_6 : f32 to vector<32x128xf32>
    %9 = arith.mulf %8, %5 : vector<32x128xf32>
    %10 = arith.select %7, %5, %9 : vector<32x128xi1>, vector<32x128xf32>
    %c0_7 = arith.constant 0 : index
    %c0_8 = arith.constant 0 : index
    %11 = vector.load %arg4[%c0_7, %c0_8] : memref<32x128xf32, #tpu.memory_space<vmem>>, vector<32x128xf32>
    tpu.vector_store %arg4[%c0_7, %c0_8], %10 {strides = array<i32>} : memref<32x128xf32, #tpu.memory_space<vmem>>, vector<32x128xf32>,
    return
  }
  func.func @transform_0(%arg0: i32) -> (i32, i32) {
    %c0_i32 = arith.constant 0 : i32
    %c0_i32_0 = arith.constant 0 : i32
    %c0_i32_1 = arith.constant 0 : i32
    return %c0_i32, %c0_i32_0 : i32, i32
  }
  func.func @transform_1(%arg0: i32) -> (i32, i32) {
    %c0_i32 = arith.constant 0 : i32
    %c0_i32_0 = arith.constant 0 : i32
    return %c0_i32, %arg0 : i32, i32
  }
  func.func @transform_2(%arg0: i32) -> (i32, i32) {
    %c0_i32 = arith.constant 0 : i32
    %c0_i32_0 = arith.constant 0 : i32
    %c0_i32_1 = arith.constant 0 : i32
    return %c0_i32, %c0_i32_0 : i32, i32
  }
  func.func @transform_3(%arg0: i32) -> (i32, i32) {
    %c0_i32 = arith.constant 0 : i32
    %c0_i32_0 = arith.constant 0 : i32
    return %c0_i32, %arg0 : i32, i32
  }
}

module attributes {stable_mosaic.version = 11 : i64} {
  func.func @_mm_bias_act_kernel(%arg0: i32, %arg1: memref<16x80xbf16, #tpu.memory_space<vmem>>, %arg2: memref<80x256xbf16, #tpu.memory_space<vmem>>, %arg3: memref<16x1xf32, #tpu.memory_space<vmem>>, %arg4: memref<16x256xf32, #tpu.memory_space<vmem>>) attributes {dimension_semantics = [#tpu.dimension_semantics<parallel>], iteration_bounds = array<i64: 2>, scalar_prefetch = 0 : i64, scratch_operands = 0 : i64, tpu.core_type = #tpu.core_type<tc>, window_params = [{pipeline_mode = #tpu.pipeline_mode<synchronous>, transform_indices = @transform_0, window_bounds = array<i64: 16, 80>}, {transform_indices = @transform_1, window_bounds = array<i64: 80, 256>}, {pipeline_mode = #tpu.pipeline_mode<synchronous>, transform_indices = @transform_2, window_bounds = array<i64: 16, 1>}, {transform_indices = @transform_3, window_bounds = array<i64: 16, 256>}]} {
    %c0 = arith.constant 0 : index
    %c0_0 = arith.constant 0 : index
    %0 = vector.load %arg1[%c0, %c0_0] : memref<16x80xbf16, #tpu.memory_space<vmem>>, vector<16x80xbf16>
    %c0_1 = arith.constant 0 : index
    %c0_2 = arith.constant 0 : index
    %1 = vector.load %arg2[%c0_1, %c0_2] : memref<80x256xbf16, #tpu.memory_space<vmem>>, vector<80x256xbf16>
    %cst = arith.constant dense<0.000000e+00> : vector<16x256xf32>
    %2 = tpu.matmul %0, %1, %cst {dimension_numbers = #tpu.dot_dimension_numbers<[1], [0], [0], [1], [0, 0, 1, 1], [], []>} : vector<16x80xbf16>, vector<80x256xbf16>, vector<16x256xf32> -> vector<16x256xf32>
    %c0_3 = arith.constant 0 : index
    %c0_4 = arith.constant 0 : index
    %3 = vector.load %arg3[%c0_3, %c0_4] : memref<16x1xf32, #tpu.memory_space<vmem>>, vector<16x1xf32>
    %4 = vector.broadcast %3 : vector<16x1xf32> to vector<16x256xf32>
    %5 = arith.addf %2, %4 : vector<16x256xf32>
    %cst_5 = arith.constant 0.000000e+00 : f32
    %6 = vector.broadcast %cst_5 : f32 to vector<16x256xf32>
    %7 = arith.cmpf oge, %5, %6 : vector<16x256xf32>
    %cst_6 = arith.constant 1.000000e-01 : f32
    %8 = vector.broadcast %cst_6 : f32 to vector<16x256xf32>
    %9 = arith.mulf %8, %5 : vector<16x256xf32>
    %10 = arith.select %7, %5, %9 : vector<16x256xi1>, vector<16x256xf32>
    %c0_7 = arith.constant 0 : index
    %c0_8 = arith.constant 0 : index
    %11 = vector.load %arg4[%c0_7, %c0_8] : memref<16x256xf32, #tpu.memory_space<vmem>>, vector<16x256xf32>
    tpu.vector_store %arg4[%c0_7, %c0_8], %10 {strides = array<i32>} : memref<16x256xf32, #tpu.memory_space<vmem>>, vector<16x256xf32>,
    return
  }
  func.func @transform_0(%arg0: i32) -> (i32, i32) {
    %c0_i32 = arith.constant 0 : i32
    %c0_i32_0 = arith.constant 0 : i32
    %c0_i32_1 = arith.constant 0 : i32
    return %c0_i32, %c0_i32_0 : i32, i32
  }
  func.func @transform_1(%arg0: i32) -> (i32, i32) {
    %c0_i32 = arith.constant 0 : i32
    %c0_i32_0 = arith.constant 0 : i32
    return %c0_i32, %arg0 : i32, i32
  }
  func.func @transform_2(%arg0: i32) -> (i32, i32) {
    %c0_i32 = arith.constant 0 : i32
    %c0_i32_0 = arith.constant 0 : i32
    %c0_i32_1 = arith.constant 0 : i32
    return %c0_i32, %c0_i32_0 : i32, i32
  }
  func.func @transform_3(%arg0: i32) -> (i32, i32) {
    %c0_i32 = arith.constant 0 : i32
    %c0_i32_0 = arith.constant 0 : i32
    return %c0_i32, %arg0 : i32, i32
  }
}

module attributes {stable_mosaic.version = 11 : i64} {
  func.func @_mm_bias_act_kernel(%arg0: i32, %arg1: memref<16x48xbf16, #tpu.memory_space<vmem>>, %arg2: memref<48x1024xbf16, #tpu.memory_space<vmem>>, %arg3: memref<16x1xf32, #tpu.memory_space<vmem>>, %arg4: memref<16x1024xf32, #tpu.memory_space<vmem>>) attributes {dimension_semantics = [#tpu.dimension_semantics<parallel>], iteration_bounds = array<i64: 2>, scalar_prefetch = 0 : i64, scratch_operands = 0 : i64, tpu.core_type = #tpu.core_type<tc>, window_params = [{pipeline_mode = #tpu.pipeline_mode<synchronous>, transform_indices = @transform_0, window_bounds = array<i64: 16, 48>}, {transform_indices = @transform_1, window_bounds = array<i64: 48, 1024>}, {pipeline_mode = #tpu.pipeline_mode<synchronous>, transform_indices = @transform_2, window_bounds = array<i64: 16, 1>}, {transform_indices = @transform_3, window_bounds = array<i64: 16, 1024>}]} {
    %c0 = arith.constant 0 : index
    %c0_0 = arith.constant 0 : index
    %0 = vector.load %arg1[%c0, %c0_0] : memref<16x48xbf16, #tpu.memory_space<vmem>>, vector<16x48xbf16>
    %c0_1 = arith.constant 0 : index
    %c0_2 = arith.constant 0 : index
    %1 = vector.load %arg2[%c0_1, %c0_2] : memref<48x1024xbf16, #tpu.memory_space<vmem>>, vector<48x1024xbf16>
    %cst = arith.constant dense<0.000000e+00> : vector<16x1024xf32>
    %2 = tpu.matmul %0, %1, %cst {dimension_numbers = #tpu.dot_dimension_numbers<[1], [0], [0], [1], [0, 0, 1, 1], [], []>} : vector<16x48xbf16>, vector<48x1024xbf16>, vector<16x1024xf32> -> vector<16x1024xf32>
    %c0_3 = arith.constant 0 : index
    %c0_4 = arith.constant 0 : index
    %3 = vector.load %arg3[%c0_3, %c0_4] : memref<16x1xf32, #tpu.memory_space<vmem>>, vector<16x1xf32>
    %4 = vector.broadcast %3 : vector<16x1xf32> to vector<16x1024xf32>
    %5 = arith.addf %2, %4 : vector<16x1024xf32>
    %cst_5 = arith.constant 0.000000e+00 : f32
    %6 = vector.broadcast %cst_5 : f32 to vector<16x1024xf32>
    %7 = arith.cmpf oge, %5, %6 : vector<16x1024xf32>
    %cst_6 = arith.constant 1.000000e-01 : f32
    %8 = vector.broadcast %cst_6 : f32 to vector<16x1024xf32>
    %9 = arith.mulf %8, %5 : vector<16x1024xf32>
    %10 = arith.select %7, %5, %9 : vector<16x1024xi1>, vector<16x1024xf32>
    %c0_7 = arith.constant 0 : index
    %c0_8 = arith.constant 0 : index
    %11 = vector.load %arg4[%c0_7, %c0_8] : memref<16x1024xf32, #tpu.memory_space<vmem>>, vector<16x1024xf32>
    tpu.vector_store %arg4[%c0_7, %c0_8], %10 {strides = array<i32>} : memref<16x1024xf32, #tpu.memory_space<vmem>>, vector<16x1024xf32>,
    return
  }
  func.func @transform_0(%arg0: i32) -> (i32, i32) {
    %c0_i32 = arith.constant 0 : i32
    %c0_i32_0 = arith.constant 0 : i32
    %c0_i32_1 = arith.constant 0 : i32
    return %c0_i32, %c0_i32_0 : i32, i32
  }
  func.func @transform_1(%arg0: i32) -> (i32, i32) {
    %c0_i32 = arith.constant 0 : i32
    %c0_i32_0 = arith.constant 0 : i32
    return %c0_i32, %arg0 : i32, i32
  }
  func.func @transform_2(%arg0: i32) -> (i32, i32) {
    %c0_i32 = arith.constant 0 : i32
    %c0_i32_0 = arith.constant 0 : i32
    %c0_i32_1 = arith.constant 0 : i32
    return %c0_i32, %c0_i32_0 : i32, i32
  }
  func.func @transform_3(%arg0: i32) -> (i32, i32) {
    %c0_i32 = arith.constant 0 : i32
    %c0_i32_0 = arith.constant 0 : i32
    return %c0_i32, %arg0 : i32, i32
  }
}

module attributes {stable_mosaic.version = 11 : i64} {
  func.func @_mm_bias_act_kernel(%arg0: i32, %arg1: memref<8x48xbf16, #tpu.memory_space<vmem>>, %arg2: memref<48x2048xbf16, #tpu.memory_space<vmem>>, %arg3: memref<8x1xf32, #tpu.memory_space<vmem>>, %arg4: memref<8x2048xf32, #tpu.memory_space<vmem>>) attributes {dimension_semantics = [#tpu.dimension_semantics<parallel>], iteration_bounds = array<i64: 4>, scalar_prefetch = 0 : i64, scratch_operands = 0 : i64, tpu.core_type = #tpu.core_type<tc>, window_params = [{pipeline_mode = #tpu.pipeline_mode<synchronous>, transform_indices = @transform_0, window_bounds = array<i64: 8, 48>}, {transform_indices = @transform_1, window_bounds = array<i64: 48, 2048>}, {pipeline_mode = #tpu.pipeline_mode<synchronous>, transform_indices = @transform_2, window_bounds = array<i64: 8, 1>}, {transform_indices = @transform_3, window_bounds = array<i64: 8, 2048>}]} {
    %c0 = arith.constant 0 : index
    %c0_0 = arith.constant 0 : index
    %0 = vector.load %arg1[%c0, %c0_0] : memref<8x48xbf16, #tpu.memory_space<vmem>>, vector<8x48xbf16>
    %c0_1 = arith.constant 0 : index
    %c0_2 = arith.constant 0 : index
    %1 = vector.load %arg2[%c0_1, %c0_2] : memref<48x2048xbf16, #tpu.memory_space<vmem>>, vector<48x2048xbf16>
    %cst = arith.constant dense<0.000000e+00> : vector<8x2048xf32>
    %2 = tpu.matmul %0, %1, %cst {dimension_numbers = #tpu.dot_dimension_numbers<[1], [0], [0], [1], [0, 0, 1, 1], [], []>} : vector<8x48xbf16>, vector<48x2048xbf16>, vector<8x2048xf32> -> vector<8x2048xf32>
    %c0_3 = arith.constant 0 : index
    %c0_4 = arith.constant 0 : index
    %3 = vector.load %arg3[%c0_3, %c0_4] : memref<8x1xf32, #tpu.memory_space<vmem>>, vector<8x1xf32>
    %4 = vector.broadcast %3 : vector<8x1xf32> to vector<8x2048xf32>
    %5 = arith.addf %2, %4 : vector<8x2048xf32>
    %6 = arith.negf %5 : vector<8x2048xf32>
    %7 = math.exp %6 : vector<8x2048xf32>
    %cst_5 = arith.constant 1.000000e+00 : f32
    %8 = vector.broadcast %cst_5 : f32 to vector<8x2048xf32>
    %9 = arith.addf %8, %7 : vector<8x2048xf32>
    %10 = arith.divf %8, %9 : vector<8x2048xf32>
    %c0_6 = arith.constant 0 : index
    %c0_7 = arith.constant 0 : index
    %11 = vector.load %arg4[%c0_6, %c0_7] : memref<8x2048xf32, #tpu.memory_space<vmem>>, vector<8x2048xf32>
    tpu.vector_store %arg4[%c0_6, %c0_7], %10 {strides = array<i32>} : memref<8x2048xf32, #tpu.memory_space<vmem>>, vector<8x2048xf32>,
    return
  }
  func.func @transform_0(%arg0: i32) -> (i32, i32) {
    %c0_i32 = arith.constant 0 : i32
    %c0_i32_0 = arith.constant 0 : i32
    %c0_i32_1 = arith.constant 0 : i32
    return %c0_i32, %c0_i32_0 : i32, i32
  }
  func.func @transform_1(%arg0: i32) -> (i32, i32) {
    %c0_i32 = arith.constant 0 : i32
    %c0_i32_0 = arith.constant 0 : i32
    return %c0_i32, %arg0 : i32, i32
  }
  func.func @transform_2(%arg0: i32) -> (i32, i32) {
    %c0_i32 = arith.constant 0 : i32
    %c0_i32_0 = arith.constant 0 : i32
    %c0_i32_1 = arith.constant 0 : i32
    return %c0_i32, %c0_i32_0 : i32, i32
  }
  func.func @transform_3(%arg0: i32) -> (i32, i32) {
    %c0_i32 = arith.constant 0 : i32
    %c0_i32_0 = arith.constant 0 : i32
    return %c0_i32, %arg0 : i32, i32
  }
}

</mosaic_0001>

<llo_original>
// kernel: conv_ae_forward.18
$region0: #{conv_ae_forward.18}
  #allocation0 [shape = 'u32[]', space=smem, size = 0x4, offset = 0x4, fixed_abs, tag = 'smem constant byte address 0x4 - core index']
  #allocation1 [shape = 'u32[144,128]{1,0:T(1,128)}', space=vmem, size = 0x12000, scoped, tag = 'internal scratch']
  %s0 = inlined_call_operand.vmem [shape: bf16[8,16], index: 0, kind: input, shape index: {}]
  %s1 = inlined_call_operand.vmem [shape: bf16[16,8192], index: 1, kind: input, shape index: {}]
  %s2 = inlined_call_operand.vmem [shape: f32[8,1], index: 2, kind: input, shape index: {}]
  %s3 = inlined_call_operand.vmem [shape: f32[8,8192], index: 3, kind: output, shape index: {}]
  %s4 = sld [smem:[#allocation0]]
  $region68: #{conv_ae_forward.18} parent=0
    _
  %s6 = ssub.s32 1, %s4
  %s7 = scalar_select 0, %s6, %s4
  $region1: #{conv_ae_forward.18} parent=0
    #allocation2 [shape = 'u8[131072]{0}', space=vmem, size = 0x20000, scoped, tag = 'input window, operand 1']
    loop: start=0, step=1, limit=6
    $region2: #{conv_ae_forward.18} parent=1 // loop_pre_header
      _
    $region3: #{conv_ae_forward.18} parent=1 // loop_header
      %s9 = sphi 0, %s13
      %p10 = scmp.ge.s32.totalorder %s9, 6
      %s17 = sphi 0, %s17
      %s19 = sphi 0, %s17
      %s20 = sphi 0, %s19
      %s34 = sphi 0, %s20
      %s40 = sphi 0, %s42
      %s43 = sphi 0, %s40
      %s44 = sphi 0, %s43
      %s60 = sphi 0, %s44
      %s64 = sphi 0, %s64
      %s66 = sphi 0, %s64
      %s67 = sphi 0, %s66
      %s81 = sphi 0, %s67
      %s87 = sphi 0, %s89
      %s90 = sphi 0, %s87
      %s91 = sphi 0, %s90
      %s107 = sphi 0, %s91
    $region4: #{conv_ae_forward.18} parent=1 // loop_header_branch
      %12 = sbr.rel (%p10) target = $region8
    $region5: #{conv_ae_forward.18} parent=1 // loop_body
      %s14 = ssub.s32 %s9, 1
      %s15 = ssub.s32 %s9, 2
      %s16 = sadd.s32 %s9, 1
      %s18 = sadd.s32 %s17, 1
      %p21 = scmp.eq.s32.totalorder %s9, 3
      %p22 = scmp.ne.s32.totalorder %s17, %s19
      %p23 = scmp.eq.s32.totalorder %s9, 0
      %p24 = por %p22, %p23
      %p25 = scmp.ne.s32.totalorder %s17, %s19
      %p26 = scmp.eq.s32.totalorder %s14, 3
      %p27 = por %p25, %p26
      %p28 = scmp.ne.s32.totalorder %s19, %s20
      %p29 = scmp.eq.s32.totalorder %s14, 0
      %p30 = por %p28, %p29
      %p31 = scmp.ne.s32.totalorder %s19, %s20
      %p32 = scmp.eq.s32.totalorder %s15, 3
      %p33 = por %p31, %p32
      %p35 = scmp.ne.s32.totalorder %s20, %s34
      %p36 = scmp.eq.s32.totalorder %s15, 0
      %p37 = por %p35, %p36
      %s38 = ssub.s32 %s9, %s16
      %p39 = scmp.eq.s32.totalorder %s38, 0
      %s41 = sadd.s32 %s40, 1
      %s42 = scalar_select %p39, %s40, %s41
      %p45 = pneg %p39
      %p46 = scmp.eq.s32.totalorder %s9, 3
      %p47 = por %p45, %p46
      %p48 = scmp.ne.s32.totalorder %s40, %s43
      %p49 = scmp.eq.s32.totalorder %s9, 0
      %p50 = por %p48, %p49
      %p51 = scmp.ne.s32.totalorder %s40, %s43
      %p52 = scmp.eq.s32.totalorder %s14, 3
      %p53 = por %p51, %p52
      %p54 = scmp.ne.s32.totalorder %s43, %s44
      %p55 = scmp.eq.s32.totalorder %s14, 0
      %p56 = por %p54, %p55
      %p57 = scmp.ne.s32.totalorder %s43, %s44
      %p58 = scmp.eq.s32.totalorder %s15, 3
      %p59 = por %p57, %p58
      %p61 = scmp.ne.s32.totalorder %s44, %s60
      %p62 = scmp.eq.s32.totalorder %s15, 0
      %p63 = por %p61, %p62
      %s65 = sadd.s32 %s64, 1
      %p68 = scmp.eq.s32.totalorder %s9, 3
      %p69 = scmp.ne.s32.totalorder %s64, %s66
      %p70 = scmp.eq.s32.totalorder %s9, 0
      %p71 = por %p69, %p70
      %p72 = scmp.ne.s32.totalorder %s64, %s66
      %p73 = scmp.eq.s32.totalorder %s14, 3
      %p74 = por %p72, %p73
      %p75 = scmp.ne.s32.totalorder %s66, %s67
      %p76 = scmp.eq.s32.totalorder %s14, 0
      %p77 = por %p75, %p76
      %p78 = scmp.ne.s32.totalorder %s66, %s67
      %p79 = scmp.eq.s32.totalorder %s15, 3
      %p80 = por %p78, %p79
      %p82 = scmp.ne.s32.totalorder %s67, %s81
      %p83 = scmp.eq.s32.totalorder %s15, 0
      %p84 = por %p82, %p83
      %s85 = ssub.s32 %s9, %s16
      %p86 = scmp.eq.s32.totalorder %s85, 0
      %s88 = sadd.s32 %s87, 1
      %s89 = scalar_select %p86, %s87, %s88
      %p92 = pneg %p86
      %p93 = scmp.eq.s32.totalorder %s9, 3
      %p94 = por %p92, %p93
      %p95 = scmp.ne.s32.totalorder %s87, %s90
      %p96 = scmp.eq.s32.totalorder %s9, 0
      %p97 = por %p95, %p96
      %p98 = scmp.ne.s32.totalorder %s87, %s90
      %p99 = scmp.eq.s32.totalorder %s14, 3
      %p100 = por %p98, %p99
      %p101 = scmp.ne.s32.totalorder %s90, %s91
      %p102 = scmp.eq.s32.totalorder %s14, 0
      %p103 = por %p101, %p102
      %p104 = scmp.ne.s32.totalorder %s90, %s91
      %p105 = scmp.eq.s32.totalorder %s15, 3
      %p106 = por %p104, %p105
      %p108 = scmp.ne.s32.totalorder %s91, %s107
      %p109 = scmp.eq.s32.totalorder %s15, 0
      %p110 = por %p108, %p109
      %p111 = scmp.le.s32.totalorder 1, %s9
      %p112 = scmp.lt.s32.totalorder %s9, 5
      %p113 = pnand %p111, %p112
      %p114 = pneg %p113
      // Predicated region
      $region9: #{conv_ae_forward.18} parent=5 // pred_check
        _
      $region10: #{conv_ae_forward.18} parent=5 // pred_check_branch
        %116 = sbr.rel (%p113) target = $region12
      $region11: #{conv_ae_forward.18} parent=5 // pred_region
        %s117 = ssub.s32 %s9, 1
        // Predicated region
        $region13: #{conv_ae_forward.18} parent=11 // pred_check
          %p118 = pneg %p30
        $region14: #{conv_ae_forward.18} parent=11 // pred_check_branch
          %120 = sbr.rel (%p118) target = $region16
        $region15: #{conv_ae_forward.18} parent=11 // pred_region
          _
        $region16: #{conv_ae_forward.18} parent=11 // pred_fallthru
          _
        // Predicated region
        $region17: #{conv_ae_forward.18} parent=11 // pred_check
          %p121 = pneg %p77
        $region18: #{conv_ae_forward.18} parent=11 // pred_check_branch
          %123 = sbr.rel (%p121) target = $region20
        $region19: #{conv_ae_forward.18} parent=11 // pred_region
          _
        $region20: #{conv_ae_forward.18} parent=11 // pred_fallthru
          _
      $region12: #{conv_ae_forward.18} parent=5 // pred_fallthru
        _
      %p124 = scmp.lt.s32.totalorder %s9, 4
      // Predicated region
      $region21: #{conv_ae_forward.18} parent=5 // pred_check
        %p125 = pneg %p124
      $region22: #{conv_ae_forward.18} parent=5 // pred_check_branch
        %127 = sbr.rel (%p125) target = $region24
      $region23: #{conv_ae_forward.18} parent=5 // pred_region
        // Predicated region
        $region25: #{conv_ae_forward.18} parent=23 // pred_check
          %p128 = pneg %p50
        $region26: #{conv_ae_forward.18} parent=23 // pred_check_branch
          %130 = sbr.rel (%p128) target = $region28
        $region27: #{conv_ae_forward.18} parent=23 // pred_region
          %s131 = sand.u32 %s40, 1
          %s132 = sand.u32 %s40, 1
          %s133 = smul.addr %s132, 128
          %s134 = scalar_lea.vmem [#allocation2], %s133
          %s135 = smul.u32 16, %s9
          %s136 = smul.addr %s135, 4
          %s137 = scalar_lea.vmem %s1, %s136
          // Predicated region
          $region29: #{conv_ae_forward.18} parent=27 // pred_check
            _
          $region30: #{conv_ae_forward.18} parent=27 // pred_check_branch
            %139 = sbr.rel (0) target = $region32
          $region31: #{conv_ae_forward.18} parent=27 // pred_region
            // Predicated region
            $region33: #{conv_ae_forward.18} parent=31 // pred_check
              _
            $region34: #{conv_ae_forward.18} parent=31 // pred_check_branch
              %141 = sbr.rel (0) target = $region36
            $region35: #{conv_ae_forward.18} parent=31 // pred_region
              loop: start=0, step=1, limit=1
              $region37: #{conv_ae_forward.18} parent=35 // loop_pre_header
                _
              $region38: #{conv_ae_forward.18} parent=35 // loop_header
                %s143 = sphi 0, %s147
                %p144 = scmp.ge.s32.totalorder %s143, 1
                %s148 = sphi %s137, %s137
                %s149 = sphi %s134, %s134
              $region39: #{conv_ae_forward.18} parent=35 // loop_header_branch
                %146 = sbr.rel (%p144) target = $region43
              $region40: #{conv_ae_forward.18} parent=35 // loop_body
                %v150 = vld [vmem:[%s148] sm:$0xff]
                %151 = vst [vmem:[%s149] sm:$0xff] %v150
                %v152 = vld [vmem:[%s148 + $0x8] sm:$0xff]
                %153 = vst [vmem:[%s149 + $0x8] sm:$0xff] %v152
                %v154 = vld [vmem:[%s148 + $0x10] sm:$0xff]
                %155 = vst [vmem:[%s149 + $0x10] sm:$0xff] %v154
                %v156 = vld [vmem:[%s148 + $0x18] sm:$0xff]
                %157 = vst [vmem:[%s149 + $0x18] sm:$0xff] %v156
                %v158 = vld [vmem:[%s148 + $0x20] sm:$0xff]
                %159 = vst [vmem:[%s149 + $0x20] sm:$0xff] %v158
                %v160 = vld [vmem:[%s148 + $0x28] sm:$0xff]
                %161 = vst [vmem:[%s149 + $0x28] sm:$0xff] %v160
                %v162 = vld [vmem:[%s148 + $0x30] sm:$0xff]
                %163 = vst [vmem:[%s149 + $0x30] sm:$0xff] %v162
                %v164 = vld [vmem:[%s148 + $0x38] sm:$0xff]
                %165 = vst [vmem:[%s149 + $0x38] sm:$0xff] %v164
                %v166 = vld [vmem:[%s148 + $0x100] sm:$0xff]
                %167 = vst [vmem:[%s149 + $0x40] sm:$0xff] %v166
                %v168 = vld [vmem:[%s148 + $0x108] sm:$0xff]
                %169 = vst [vmem:[%s149 + $0x48] sm:$0xff] %v168
                %v170 = vld [vmem:[%s148 + $0x110] sm:$0xff]
                %171 = vst [vmem:[%s149 + $0x50] sm:$0xff] %v170
                %v172 = vld [vmem:[%s148 + $0x118] sm:$0xff]
                %173 = vst [vmem:[%s149 + $0x58] sm:$0xff] %v172
                %v174 = vld [vmem:[%s148 + $0x120] sm:$0xff]
                %175 = vst [vmem:[%s149 + $0x60] sm:$0xff] %v174
                %v176 = vld [vmem:[%s148 + $0x128] sm:$0xff]
                %177 = vst [vmem:[%s149 + $0x68] sm:$0xff] %v176
                %v178 = vld [vmem:[%s148 + $0x130] sm:$0xff]
                %179 = vst [vmem:[%s149 + $0x70] sm:$0xff] %v178
                %v180 = vld [vmem:[%s148 + $0x138] sm:$0xff]
                %181 = vst [vmem:[%s149 + $0x78] sm:$0xff] %v180
              $region41: #{conv_ae_forward.18} parent=35 // loop_footer
                %s147 = sadd.s32 1, %s143
              $region42: #{conv_ae_forward.18} parent=35 // loop_footer_branch
                %142 = sbr.rel target = $region38
              $region43: #{conv_ae_forward.18} parent=35 // loop_exit
                _
            $region36: #{conv_ae_forward.18} parent=31 // pred_fallthru
              _
            // Predicated region
            $region44: #{conv_ae_forward.18} parent=31 // pred_check
              _
            $region45: #{conv_ae_forward.18} parent=31 // pred_check_branch
              %183 = sbr.rel target = $region47
            $region46: #{conv_ae_forward.18} parent=31 // pred_region
              _
            $region47: #{conv_ae_forward.18} parent=31 // pred_fallthru
              _
          $region32: #{conv_ae_forward.18} parent=27 // pred_fallthru
            _
          %184 = vnop
        $region28: #{conv_ae_forward.18} parent=23 // pred_fallthru
          _
      $region24: #{conv_ae_forward.18} parent=5 // pred_fallthru
        _
      %p185 = scmp.le.s32.totalorder 1, %s9
      %p186 = scmp.lt.s32.totalorder %s9, 5
      %p187 = pnand %p185, %p186
      %p188 = pneg %p187
      // Predicated region
      $region48: #{conv_ae_forward.18} parent=5 // pred_check
        _
      $region49: #{conv_ae_forward.18} parent=5 // pred_check_branch
        %190 = sbr.rel (%p187) target = $region51
      $region50: #{conv_ae_forward.18} parent=5 // pred_region
        %s191 = ssub.s32 %s9, 1
        %s192 = sand.u32 %s43, 1
        %s193 = sand.u32 %s43, 1
        %s194 = smul.addr %s193, 128
        %s195 = scalar_lea.vmem [#allocation2], %s194
        // Predicated region
        $region52: #{conv_ae_forward.18} parent=50 // pred_check
          %p196 = pneg %p56
        $region53: #{conv_ae_forward.18} parent=50 // pred_check_branch
          %198 = sbr.rel (%p196) target = $region55
        $region54: #{conv_ae_forward.18} parent=50 // pred_region
          _
        $region55: #{conv_ae_forward.18} parent=50 // pred_fallthru
          _
        %p199 = pneg %p30
        %p200 = pneg %p27
        %s201 = sand.u32 %s43, 1
        %s202 = sand.u32 %s43, 1
        %s203 = smul.addr %s202, 128
        %s204 = scalar_lea.vmem [#allocation2], %s203
        %p205 = pneg %p56
        %p206 = pneg %p53
        %p207 = pneg %p77
        %p208 = pneg %p74
        %p209 = pneg %p103
        %p210 = pneg %p100
        %s211 = smul.u32 16, %s14
        %p212 = scmp.lt.s32.totalorder %s211, 63
        %s213 = scalar_select %p212, %s211, 63
        %s214 = smul.addr %s213, 8
        %s215 = scalar_lea.vmem %s3, %s214
        %s216 = smul.u32 16, %s14
        %s217 = smul.u32 16, %s14
        %p218 = scmp.lt.s32.totalorder %s217, 63
        %s219 = scalar_select %p218, %s217, 63
        %s220 = smul.addr %s219, 8
        %s221 = scalar_lea.vmem %s3, %s220
        %s222 = smul.u32 16, %s14
        %v224 = vld [vmem:[%s0] sm:$0xf]
        %v225 = vld [vmem:[%s195] sm:$0xff]
        %v226 = vld [vmem:[%s195 + $0x8] sm:$0xff]
        %v227 = vld [vmem:[%s195 + $0x10] sm:$0xff]
        %v228 = vld [vmem:[%s195 + $0x18] sm:$0xff]
        %v229 = vld [vmem:[%s195 + $0x20] sm:$0xff]
        %v230 = vld [vmem:[%s195 + $0x28] sm:$0xff]
        %v231 = vld [vmem:[%s195 + $0x30] sm:$0xff]
        %v232 = vld [vmem:[%s195 + $0x38] sm:$0xff]
        %v233 = vld [vmem:[%s195 + $0x40] sm:$0xff]
        %v234 = vld [vmem:[%s195 + $0x48] sm:$0xff]
        %v235 = vld [vmem:[%s195 + $0x50] sm:$0xff]
        %v236 = vld [vmem:[%s195 + $0x58] sm:$0xff]
        %v237 = vld [vmem:[%s195 + $0x60] sm:$0xff]
        %v238 = vld [vmem:[%s195 + $0x68] sm:$0xff]
        %v239 = vld [vmem:[%s195 + $0x70] sm:$0xff]
        %v240 = vld [vmem:[%s195 + $0x78] sm:$0xff]
        %v241 = vld [vmem:[%s2] sm:$0xff]
        %243 = vset.pattern.permute.xlu0 0
        %244 = vperm.xlu0 %243, %v241
        %v245 = vpop.permute.xlu0 %244
        %v263 = vunpack.c.l.b16 %v225
        %v264 = vunpack.c.h.b16 %v225
        %v265 = vunpack.c.l.b16 %v226
        %v266 = vunpack.c.h.b16 %v226
        %v267 = vunpack.c.l.b16 %v227
        %v268 = vunpack.c.h.b16 %v227
        %v269 = vunpack.c.l.b16 %v228
        %v270 = vunpack.c.h.b16 %v228
        %v271 = vunpack.c.l.b16 %v229
        %v272 = vunpack.c.h.b16 %v229
        %v273 = vunpack.c.l.b16 %v230
        %v274 = vunpack.c.h.b16 %v230
        %v275 = vunpack.c.l.b16 %v231
        %v276 = vunpack.c.h.b16 %v231
        %v277 = vunpack.c.l.b16 %v232
        %v278 = vunpack.c.h.b16 %v232
        %v279 = vunpack.c.l.b16 %v233
        %v280 = vunpack.c.h.b16 %v233
        %v281 = vunpack.c.l.b16 %v234
        %v282 = vunpack.c.h.b16 %v234
        %v283 = vunpack.c.l.b16 %v235
        %v284 = vunpack.c.h.b16 %v235
        %v285 = vunpack.c.l.b16 %v236
        %v286 = vunpack.c.h.b16 %v236
        %v287 = vunpack.c.l.b16 %v237
        %v288 = vunpack.c.h.b16 %v237
        %v289 = vunpack.c.l.b16 %v238
        %v290 = vunpack.c.h.b16 %v238
        %v291 = vunpack.c.l.b16 %v239
        %v292 = vunpack.c.h.b16 %v239
        %v293 = vunpack.c.l.b16 %v240
        %v294 = vunpack.c.h.b16 %v240
        %v295 = vpack.c.b16 %v279, %v263
        %v296 = vpack.c.b16 %v280, %v264
        %v297 = vpack.c.b16 %v281, %v265
        %v298 = vpack.c.b16 %v282, %v266
        %v299 = vpack.c.b16 %v283, %v267
        %v300 = vpack.c.b16 %v284, %v268
        %v301 = vpack.c.b16 %v285, %v269
        %v302 = vpack.c.b16 %v286, %v270
        %v303 = vpack.c.b16 %v287, %v271
        %v304 = vpack.c.b16 %v288, %v272
        %v305 = vpack.c.b16 %v289, %v273
        %v306 = vpack.c.b16 %v290, %v274
        %v307 = vpack.c.b16 %v291, %v275
        %v308 = vpack.c.b16 %v292, %v276
        %v309 = vpack.c.b16 %v293, %v277
        %v310 = vpack.c.b16 %v294, %v278
        %vm327 = vcmask 130048
        %v329 = vsel %vm327, %v224, 0
        %331 = vmatprep.subr.bf16.mxu0 %v296
        %332 = vmatpush1.bf16.msra.mxu0 %v295
        %333 = vmatprep.subr.bf16.mxu0 0
        %334 = vmatpush1.bf16.msra.mxu0 0
        %335 = vmatprep.subr.bf16.mxu0 0
        %336 = vmatpush1.bf16.msra.mxu0 0
        %337 = vmatprep.subr.bf16.mxu0 0
        %338 = vmatpush1.bf16.msra.mxu0 0
        %339 = vmatprep.subr.bf16.mxu0 0
        %340 = vmatpush1.bf16.msra.mxu0 0
        %341 = vmatprep.subr.bf16.mxu0 0
        %342 = vmatpush1.bf16.msra.mxu0 0
        %343 = vmatprep.subr.bf16.mxu0 0
        %344 = vmatpush1.bf16.msra.mxu0 0
        %345 = vmatprep.subr.bf16.mxu0 0
        %346 = vmatpush1.bf16.msra.mxu0 0
        %347 = vmatprep.subr.bf16.mxu0 0
        %348 = vmatpush1.bf16.msra.mxu0 0
        %349 = vmatprep.subr.bf16.mxu0 0
        %350 = vmatpush1.bf16.msra.mxu0 0
        %351 = vmatprep.subr.bf16.mxu0 0
        %352 = vmatpush1.bf16.msra.mxu0 0
        %353 = vmatprep.subr.bf16.mxu0 0
        %354 = vmatpush1.bf16.msra.mxu0 0
        %355 = vmatprep.subr.bf16.mxu0 0
        %356 = vmatpush1.bf16.msra.mxu0 0
        %357 = vmatprep.subr.bf16.mxu0 0
        %358 = vmatpush1.bf16.msra.mxu0 0
        %359 = vmatprep.subr.bf16.mxu0 0
        %360 = vmatpush1.bf16.msra.mxu0 0
        %361 = vmatprep.subr.bf16.mxu0 0
        %362 = vmatpush1.bf16.msra.mxu0 0
        %363 = vmatprep.mubr.bf16.mxu0 0
        %364 = vmatmul.mubr.bf16.gmra.mrb[0].mxu0 %v329
        %v365 = vpop.f32.mrb[0].mxu0
        %v366 = vadd.f32 %v245, %v365
        %v367 = vpop.f32.mrb[0].mxu0
        %v368 = vadd.f32 %v245, %v367
        %v369 = vpop.f32.mrb[0].mxu0
        %v370 = vpop.f32.mrb[0].mxu0
        %371 = vdwg.mxu0
        %372 = vmatprep.subr.bf16.mxu0 %v298
        %373 = vmatpush1.bf16.msra.mxu0 %v297
        %374 = vmatprep.subr.bf16.mxu0 0
        %375 = vmatpush1.bf16.msra.mxu0 0
        %376 = vmatprep.subr.bf16.mxu0 0
        %377 = vmatpush1.bf16.msra.mxu0 0
        %378 = vmatprep.subr.bf16.mxu0 0
        %379 = vmatpush1.bf16.msra.mxu0 0
        %380 = vmatprep.subr.bf16.mxu0 0
        %381 = vmatpush1.bf16.msra.mxu0 0
        %382 = vmatprep.subr.bf16.mxu0 0
        %383 = vmatpush1.bf16.msra.mxu0 0
        %384 = vmatprep.subr.bf16.mxu0 0
        %385 = vmatpush1.bf16.msra.mxu0 0
        %386 = vmatprep.subr.bf16.mxu0 0
        %387 = vmatpush1.bf16.msra.mxu0 0
        %388 = vmatprep.subr.bf16.mxu0 0
        %389 = vmatpush1.bf16.msra.mxu0 0
        %390 = vmatprep.subr.bf16.mxu0 0
        %391 = vmatpush1.bf16.msra.mxu0 0
        %392 = vmatprep.subr.bf16.mxu0 0
        %393 = vmatpush1.bf16.msra.mxu0 0
        %394 = vmatprep.subr.bf16.mxu0 0
        %395 = vmatpush1.bf16.msra.mxu0 0
        %396 = vmatprep.subr.bf16.mxu0 0
        %397 = vmatpush1.bf16.msra.mxu0 0
        %398 = vmatprep.subr.bf16.mxu0 0
        %399 = vmatpush1.bf16.msra.mxu0 0
        %400 = vmatprep.subr.bf16.mxu0 0
        %401 = vmatpush1.bf16.msra.mxu0 0
        %402 = vmatprep.subr.bf16.mxu0 0
        %403 = vmatpush1.bf16.msra.mxu0 0
        %404 = vmatprep.mubr.bf16.mxu0 0
        %405 = vmatmul.mubr.bf16.gmra.mrb[0].mxu0 %v329
        %v406 = vpop.f32.mrb[0].mxu0
        %v407 = vadd.f32 %v245, %v406
        %v408 = vpop.f32.mrb[0].mxu0
        %v409 = vadd.f32 %v245, %v408
        %v410 = vpop.f32.mrb[0].mxu0
        %v411 = vpop.f32.mrb[0].mxu0
        %412 = vdwg.mxu0
        %413 = vmatprep.subr.bf16.mxu0 %v300
        %414 = vmatpush1.bf16.msra.mxu0 %v299
        %415 = vmatprep.subr.bf16.mxu0 0
        %416 = vmatpush1.bf16.msra.mxu0 0
        %417 = vmatprep.subr.bf16.mxu0 0
        %418 = vmatpush1.bf16.msra.mxu0 0
        %419 = vmatprep.subr.bf16.mxu0 0
        %420 = vmatpush1.bf16.msra.mxu0 0
        %421 = vmatprep.subr.bf16.mxu0 0
        %422 = vmatpush1.bf16.msra.mxu0 0
        %423 = vmatprep.subr.bf16.mxu0 0
        %424 = vmatpush1.bf16.msra.mxu0 0
        %425 = vmatprep.subr.bf16.mxu0 0
        %426 = vmatpush1.bf16.msra.mxu0 0
        %427 = vmatprep.subr.bf16.mxu0 0
        %428 = vmatpush1.bf16.msra.mxu0 0
        %429 = vmatprep.subr.bf16.mxu0 0
        %430 = vmatpush1.bf16.msra.mxu0 0
        %431 = vmatprep.subr.bf16.mxu0 0
        %432 = vmatpush1.bf16.msra.mxu0 0
        %433 = vmatprep.subr.bf16.mxu0 0
        %434 = vmatpush1.bf16.msra.mxu0 0
        %435 = vmatprep.subr.bf16.mxu0 0
        %436 = vmatpush1.bf16.msra.mxu0 0
        %437 = vmatprep.subr.bf16.mxu0 0
        %438 = vmatpush1.bf16.msra.mxu0 0
        %439 = vmatprep.subr.bf16.mxu0 0
        %440 = vmatpush1.bf16.msra.mxu0 0
        %441 = vmatprep.subr.bf16.mxu0 0
        %442 = vmatpush1.bf16.msra.mxu0 0
        %443 = vmatprep.subr.bf16.mxu0 0
        %444 = vmatpush1.bf16.msra.mxu0 0
        %445 = vmatprep.mubr.bf16.mxu0 0
        %446 = vmatmul.mubr.bf16.gmra.mrb[0].mxu0 %v329
        %v447 = vpop.f32.mrb[0].mxu0
        %v448 = vadd.f32 %v245, %v447
        %v449 = vpop.f32.mrb[0].mxu0
        %v450 = vadd.f32 %v245, %v449
        %v451 = vpop.f32.mrb[0].mxu0
        %v452 = vpop.f32.mrb[0].mxu0
        %453 = vdwg.mxu0
        %454 = vmatprep.subr.bf16.mxu0 %v302
        %455 = vmatpush1.bf16.msra.mxu0 %v301
        %456 = vmatprep.subr.bf16.mxu0 0
        %457 = vmatpush1.bf16.msra.mxu0 0
        %458 = vmatprep.subr.bf16.mxu0 0
        %459 = vmatpush1.bf16.msra.mxu0 0
        %460 = vmatprep.subr.bf16.mxu0 0
        %461 = vmatpush1.bf16.msra.mxu0 0
        %462 = vmatprep.subr.bf16.mxu0 0
        %463 = vmatpush1.bf16.msra.mxu0 0
        %464 = vmatprep.subr.bf16.mxu0 0
        %465 = vmatpush1.bf16.msra.mxu0 0
        %466 = vmatprep.subr.bf16.mxu0 0
        %467 = vmatpush1.bf16.msra.mxu0 0
        %468 = vmatprep.subr.bf16.mxu0 0
        %469 = vmatpush1.bf16.msra.mxu0 0
        %470 = vmatprep.subr.bf16.mxu0 0
        %471 = vmatpush1.bf16.msra.mxu0 0
        %472 = vmatprep.subr.bf16.mxu0 0
        %473 = vmatpush1.bf16.msra.mxu0 0
        %474 = vmatprep.subr.bf16.mxu0 0
        %475 = vmatpush1.bf16.msra.mxu0 0
        %476 = vmatprep.subr.bf16.mxu0 0
        %477 = vmatpush1.bf16.msra.mxu0 0
        %478 = vmatprep.subr.bf16.mxu0 0
        %479 = vmatpush1.bf16.msra.mxu0 0
        %480 = vmatprep.subr.bf16.mxu0 0
        %481 = vmatpush1.bf16.msra.mxu0 0
        %482 = vmatprep.subr.bf16.mxu0 0
        %483 = vmatpush1.bf16.msra.mxu0 0
        %484 = vmatprep.subr.bf16.mxu0 0
        %485 = vmatpush1.bf16.msra.mxu0 0
        %486 = vmatprep.mubr.bf16.mxu0 0
        %487 = vmatmul.mubr.bf16.gmra.mrb[0].mxu0 %v329
        %v488 = vpop.f32.mrb[0].mxu0
        %v489 = vadd.f32 %v245, %v488
        %v490 = vpop.f32.mrb[0].mxu0
        %v491 = vadd.f32 %v245, %v490
        %v492 = vpop.f32.mrb[0].mxu0
        %v493 = vpop.f32.mrb[0].mxu0
        %494 = vdwg.mxu0
        %495 = vmatprep.subr.bf16.mxu0 %v304
        %496 = vmatpush1.bf16.msra.mxu0 %v303
        %497 = vmatprep.subr.bf16.mxu0 0
        %498 = vmatpush1.bf16.msra.mxu0 0
        %499 = vmatprep.subr.bf16.mxu0 0
        %500 = vmatpush1.bf16.msra.mxu0 0
        %501 = vmatprep.subr.bf16.mxu0 0
        %502 = vmatpush1.bf16.msra.mxu0 0
        %503 = vmatprep.subr.bf16.mxu0 0
        %504 = vmatpush1.bf16.msra.mxu0 0
        %505 = vmatprep.subr.bf16.mxu0 0
        %506 = vmatpush1.bf16.msra.mxu0 0
        %507 = vmatprep.subr.bf16.mxu0 0
        %508 = vmatpush1.bf16.msra.mxu0 0
        %509 = vmatprep.subr.bf16.mxu0 0
        %510 = vmatpush1.bf16.msra.mxu0 0
        %511 = vmatprep.subr.bf16.mxu0 0
        %512 = vmatpush1.bf16.msra.mxu0 0
        %513 = vmatprep.subr.bf16.mxu0 0
        %514 = vmatpush1.bf16.msra.mxu0 0
        %515 = vmatprep.subr.bf16.mxu0 0
        %516 = vmatpush1.bf16.msra.mxu0 0
        %517 = vmatprep.subr.bf16.mxu0 0
        %518 = vmatpush1.bf16.msra.mxu0 0
        %519 = vmatprep.subr.bf16.mxu0 0
        %520 = vmatpush1.bf16.msra.mxu0 0
        %521 = vmatprep.subr.bf16.mxu0 0
        %522 = vmatpush1.bf16.msra.mxu0 0
        %523 = vmatprep.subr.bf16.mxu0 0
        %524 = vmatpush1.bf16.msra.mxu0 0
        %525 = vmatprep.subr.bf16.mxu0 0
        %526 = vmatpush1.bf16.msra.mxu0 0
        %527 = vmatprep.mubr.bf16.mxu0 0
        %528 = vmatmul.mubr.bf16.gmra.mrb[0].mxu0 %v329
        %v529 = vpop.f32.mrb[0].mxu0
        %v530 = vadd.f32 %v245, %v529
        %v531 = vpop.f32.mrb[0].mxu0
        %v532 = vadd.f32 %v245, %v531
        %v533 = vpop.f32.mrb[0].mxu0
        %v534 = vpop.f32.mrb[0].mxu0
        %535 = vdwg.mxu0
        %536 = vmatprep.subr.bf16.mxu0 %v306
        %537 = vmatpush1.bf16.msra.mxu0 %v305
        %538 = vmatprep.subr.bf16.mxu0 0
        %539 = vmatpush1.bf16.msra.mxu0 0
        %540 = vmatprep.subr.bf16.mxu0 0
        %541 = vmatpush1.bf16.msra.mxu0 0
        %542 = vmatprep.subr.bf16.mxu0 0
        %543 = vmatpush1.bf16.msra.mxu0 0
        %544 = vmatprep.subr.bf16.mxu0 0
        %545 = vmatpush1.bf16.msra.mxu0 0
        %546 = vmatprep.subr.bf16.mxu0 0
        %547 = vmatpush1.bf16.msra.mxu0 0
        %548 = vmatprep.subr.bf16.mxu0 0
        %549 = vmatpush1.bf16.msra.mxu0 0
        %550 = vmatprep.subr.bf16.mxu0 0
        %551 = vmatpush1.bf16.msra.mxu0 0
        %552 = vmatprep.subr.bf16.mxu0 0
        %553 = vmatpush1.bf16.msra.mxu0 0
        %554 = vmatprep.subr.bf16.mxu0 0
        %555 = vmatpush1.bf16.msra.mxu0 0
        %556 = vmatprep.subr.bf16.mxu0 0
        %557 = vmatpush1.bf16.msra.mxu0 0
        %558 = vmatprep.subr.bf16.mxu0 0
        %559 = vmatpush1.bf16.msra.mxu0 0
        %560 = vmatprep.subr.bf16.mxu0 0
        %561 = vmatpush1.bf16.msra.mxu0 0
        %562 = vmatprep.subr.bf16.mxu0 0
        %563 = vmatpush1.bf16.msra.mxu0 0
        %564 = vmatprep.subr.bf16.mxu0 0
        %565 = vmatpush1.bf16.msra.mxu0 0
        %566 = vmatprep.subr.bf16.mxu0 0
        %567 = vmatpush1.bf16.msra.mxu0 0
        %568 = vmatprep.mubr.bf16.mxu0 0
        %569 = vmatmul.mubr.bf16.gmra.mrb[0].mxu0 %v329
        %v570 = vpop.f32.mrb[0].mxu0
        %v571 = vadd.f32 %v245, %v570
        %v572 = vpop.f32.mrb[0].mxu0
        %v573 = vadd.f32 %v245, %v572
        %v574 = vpop.f32.mrb[0].mxu0
        %v575 = vpop.f32.mrb[0].mxu0
        %576 = vdwg.mxu0
        %577 = vmatprep.subr.bf16.mxu0 %v308
        %578 = vmatpush1.bf16.msra.mxu0 %v307
        %579 = vmatprep.subr.bf16.mxu0 0
        %580 = vmatpush1.bf16.msra.mxu0 0
        %581 = vmatprep.subr.bf16.mxu0 0
        %582 = vmatpush1.bf16.msra.mxu0 0
        %583 = vmatprep.subr.bf16.mxu0 0
        %584 = vmatpush1.bf16.msra.mxu0 0
        %585 = vmatprep.subr.bf16.mxu0 0
        %586 = vmatpush1.bf16.msra.mxu0 0
        %587 = vmatprep.subr.bf16.mxu0 0
        %588 = vmatpush1.bf16.msra.mxu0 0
        %589 = vmatprep.subr.bf16.mxu0 0
        %590 = vmatpush1.bf16.msra.mxu0 0
        %591 = vmatprep.subr.bf16.mxu0 0
        %592 = vmatpush1.bf16.msra.mxu0 0
        %593 = vmatprep.subr.bf16.mxu0 0
        %594 = vmatpush1.bf16.msra.mxu0 0
        %595 = vmatprep.subr.bf16.mxu0 0
        %596 = vmatpush1.bf16.msra.mxu0 0
        %597 = vmatprep.subr.bf16.mxu0 0
        %598 = vmatpush1.bf16.msra.mxu0 0
        %599 = vmatprep.subr.bf16.mxu0 0
        %600 = vmatpush1.bf16.msra.mxu0 0
        %601 = vmatprep.subr.bf16.mxu0 0
        %602 = vmatpush1.bf16.msra.mxu0 0
        %603 = vmatprep.subr.bf16.mxu0 0
        %604 = vmatpush1.bf16.msra.mxu0 0
        %605 = vmatprep.subr.bf16.mxu0 0
        %606 = vmatpush1.bf16.msra.mxu0 0
        %607 = vmatprep.subr.bf16.mxu0 0
        %608 = vmatpush1.bf16.msra.mxu0 0
        %609 = vmatprep.mubr.bf16.mxu0 0
        %610 = vmatmul.mubr.bf16.gmra.mrb[0].mxu0 %v329
        %v611 = vpop.f32.mrb[0].mxu0
        %v612 = vadd.f32 %v245, %v611
        %v613 = vpop.f32.mrb[0].mxu0
        %v614 = vadd.f32 %v245, %v613
        %v615 = vpop.f32.mrb[0].mxu0
        %v616 = vpop.f32.mrb[0].mxu0
        %617 = vdwg.mxu0
        %618 = vmatprep.subr.bf16.mxu0 %v310
        %619 = vmatpush1.bf16.msra.mxu0 %v309
        %620 = vmatprep.subr.bf16.mxu0 0
        %621 = vmatpush1.bf16.msra.mxu0 0
        %622 = vmatprep.subr.bf16.mxu0 0
        %623 = vmatpush1.bf16.msra.mxu0 0
        %624 = vmatprep.subr.bf16.mxu0 0
        %625 = vmatpush1.bf16.msra.mxu0 0
        %626 = vmatprep.subr.bf16.mxu0 0
        %627 = vmatpush1.bf16.msra.mxu0 0
        %628 = vmatprep.subr.bf16.mxu0 0
        %629 = vmatpush1.bf16.msra.mxu0 0
        %630 = vmatprep.subr.bf16.mxu0 0
        %631 = vmatpush1.bf16.msra.mxu0 0
        %632 = vmatprep.subr.bf16.mxu0 0
        %633 = vmatpush1.bf16.msra.mxu0 0
        %634 = vmatprep.subr.bf16.mxu0 0
        %635 = vmatpush1.bf16.msra.mxu0 0
        %636 = vmatprep.subr.bf16.mxu0 0
        %637 = vmatpush1.bf16.msra.mxu0 0
        %638 = vmatprep.subr.bf16.mxu0 0
        %639 = vmatpush1.bf16.msra.mxu0 0
        %640 = vmatprep.subr.bf16.mxu0 0
        %641 = vmatpush1.bf16.msra.mxu0 0
        %642 = vmatprep.subr.bf16.mxu0 0
        %643 = vmatpush1.bf16.msra.mxu0 0
        %644 = vmatprep.subr.bf16.mxu0 0
        %645 = vmatpush1.bf16.msra.mxu0 0
        %646 = vmatprep.subr.bf16.mxu0 0
        %647 = vmatpush1.bf16.msra.mxu0 0
        %648 = vmatprep.subr.bf16.mxu0 0
        %649 = vmatpush1.bf16.msra.mxu0 0
        %650 = vmatprep.mubr.bf16.mxu0 0
        %651 = vmatmul.mubr.bf16.gmra.mrb[0].mxu0 %v329
        %v652 = vpop.f32.mrb[0].mxu0
        %v653 = vadd.f32 %v245, %v652
        %v654 = vpop.f32.mrb[0].mxu0
        %v655 = vadd.f32 %v245, %v654
        %v656 = vpop.f32.mrb[0].mxu0
        %v657 = vpop.f32.mrb[0].mxu0
        %658 = vdwg.mxu0
        %vm659 = vcmp.ge.f32.partialorder %v366, 0.0
        %vm660 = vcmp.ge.f32.partialorder %v368, 0.0
        %vm661 = vcmp.ge.f32.partialorder %v407, 0.0
        %vm662 = vcmp.ge.f32.partialorder %v409, 0.0
        %vm663 = vcmp.ge.f32.partialorder %v448, 0.0
        %vm664 = vcmp.ge.f32.partialorder %v450, 0.0
        %vm665 = vcmp.ge.f32.partialorder %v489, 0.0
        %vm666 = vcmp.ge.f32.partialorder %v491, 0.0
        %vm667 = vcmp.ge.f32.partialorder %v530, 0.0
        %vm668 = vcmp.ge.f32.partialorder %v532, 0.0
        %vm669 = vcmp.ge.f32.partialorder %v571, 0.0
        %vm670 = vcmp.ge.f32.partialorder %v573, 0.0
        %vm671 = vcmp.ge.f32.partialorder %v612, 0.0
        %vm672 = vcmp.ge.f32.partialorder %v614, 0.0
        %vm673 = vcmp.ge.f32.partialorder %v653, 0.0
        %vm674 = vcmp.ge.f32.partialorder %v655, 0.0
        %v675 = vmul.f32 %v366, 0.1
        %v676 = vmul.f32 %v368, 0.1
        %v677 = vmul.f32 %v407, 0.1
        %v678 = vmul.f32 %v409, 0.1
        %v679 = vmul.f32 %v448, 0.1
        %v680 = vmul.f32 %v450, 0.1
        %v681 = vmul.f32 %v489, 0.1
        %v682 = vmul.f32 %v491, 0.1
        %v683 = vmul.f32 %v530, 0.1
        %v684 = vmul.f32 %v532, 0.1
        %v685 = vmul.f32 %v571, 0.1
        %v686 = vmul.f32 %v573, 0.1
        %v687 = vmul.f32 %v612, 0.1
        %v688 = vmul.f32 %v614, 0.1
        %v689 = vmul.f32 %v653, 0.1
        %v690 = vmul.f32 %v655, 0.1
        %v691 = vsel %vm659, %v366, %v675
        %v692 = vsel %vm660, %v368, %v676
        %v693 = vsel %vm661, %v407, %v677
        %v694 = vsel %vm662, %v409, %v678
        %v695 = vsel %vm663, %v448, %v679
        %v696 = vsel %vm664, %v450, %v680
        %v697 = vsel %vm665, %v489, %v681
        %v698 = vsel %vm666, %v491, %v682
        %v699 = vsel %vm667, %v530, %v683
        %v700 = vsel %vm668, %v532, %v684
        %v701 = vsel %vm669, %v571, %v685
        %v702 = vsel %vm670, %v573, %v686
        %v703 = vsel %vm671, %v612, %v687
        %v704 = vsel %vm672, %v614, %v688
        %v705 = vsel %vm673, %v653, %v689
        %v706 = vsel %vm674, %v655, %v690
        %707 = vst [vmem:[%s221] sm:$0xff] %v691
        %708 = vst [vmem:[%s221 + $0x8] sm:$0xff] %v692
        %709 = vst [vmem:[%s221 + $0x10] sm:$0xff] %v693
        %710 = vst [vmem:[%s221 + $0x18] sm:$0xff] %v694
        %711 = vst [vmem:[%s221 + $0x20] sm:$0xff] %v695
        %712 = vst [vmem:[%s221 + $0x28] sm:$0xff] %v696
        %713 = vst [vmem:[%s221 + $0x30] sm:$0xff] %v697
        %714 = vst [vmem:[%s221 + $0x38] sm:$0xff] %v698
        %715 = vst [vmem:[%s221 + $0x40] sm:$0xff] %v699
        %716 = vst [vmem:[%s221 + $0x48] sm:$0xff] %v700
        %717 = vst [vmem:[%s221 + $0x50] sm:$0xff] %v701
        %718 = vst [vmem:[%s221 + $0x58] sm:$0xff] %v702
        %719 = vst [vmem:[%s221 + $0x60] sm:$0xff] %v703
        %720 = vst [vmem:[%s221 + $0x68] sm:$0xff] %v704
        %721 = vst [vmem:[%s221 + $0x70] sm:$0xff] %v705
        %722 = vst [vmem:[%s221 + $0x78] sm:$0xff] %v706
        %s723 = smul.u32 16, %s14
        %p724 = scmp.lt.s32.totalorder %s723, 63
        %s725 = scalar_select %p724, %s723, 63
        %s726 = smul.addr %s725, 8
        %s727 = scalar_lea.vmem %s3, %s726
        // Predicated region
        $region56: #{conv_ae_forward.18} parent=50 // pred_check
          %p728 = pneg %p100
        $region57: #{conv_ae_forward.18} parent=50 // pred_check_branch
          %730 = sbr.rel (%p728) target = $region59
        $region58: #{conv_ae_forward.18} parent=50 // pred_region
          %s731 = smul.u32 16, %s14
        $region59: #{conv_ae_forward.18} parent=50 // pred_fallthru
          _
      $region51: #{conv_ae_forward.18} parent=5 // pred_fallthru
        _
      %p732 = scmp.le.s32.totalorder 2, %s9
      // Predicated region
      $region60: #{conv_ae_forward.18} parent=5 // pred_check
        %p733 = pneg %p732
      $region61: #{conv_ae_forward.18} parent=5 // pred_check_branch
        %735 = sbr.rel (%p733) target = $region63
      $region62: #{conv_ae_forward.18} parent=5 // pred_region
        %s736 = ssub.s32 %s9, 2
        // Predicated region
        $region64: #{conv_ae_forward.18} parent=62 // pred_check
          %p737 = pneg %p106
        $region65: #{conv_ae_forward.18} parent=62 // pred_check_branch
          %739 = sbr.rel (%p737) target = $region67
        $region66: #{conv_ae_forward.18} parent=62 // pred_region
          %s740 = smul.u32 16, %s15
          %p741 = scmp.lt.s32.totalorder %s740, 63
          %s742 = scalar_select %p741, %s740, 63
          %s743 = smul.addr %s742, 8
          %s744 = scalar_lea.vmem %s3, %s743
        $region67: #{conv_ae_forward.18} parent=62 // pred_fallthru
          _
      $region63: #{conv_ae_forward.18} parent=5 // pred_fallthru
        _
    $region6: #{conv_ae_forward.18} parent=1 // loop_footer
      %s13 = sadd.s32 1, %s9
    $region7: #{conv_ae_forward.18} parent=1 // loop_footer_branch
      %8 = sbr.rel target = $region3
    $region8: #{conv_ae_forward.18} parent=1 // loop_exit
      _

// kernel: conv_ae_forward.19
$region0: #{conv_ae_forward.19}
  #allocation0 [shape = 'u32[]', space=smem, size = 0x4, offset = 0x4, fixed_abs, tag = 'smem constant byte address 0x4 - core index']
  #allocation1 [shape = 'u32[144,128]{1,0:T(1,128)}', space=vmem, size = 0x12000, scoped, tag = 'internal scratch']
  %s0 = inlined_call_operand.vmem [shape: bf16[8,64], index: 0, kind: input, shape index: {}]
  %s1 = inlined_call_operand.vmem [shape: bf16[64,2048], index: 1, kind: input, shape index: {}]
  %s2 = inlined_call_operand.vmem [shape: f32[8,1], index: 2, kind: input, shape index: {}]
  %s3 = inlined_call_operand.vmem [shape: f32[8,2048], index: 3, kind: output, shape index: {}]
  %s4 = sld [smem:[#allocation0]]
  $region68: #{conv_ae_forward.19} parent=0
    _
  %s6 = ssub.s32 1, %s4
  %s7 = scalar_select 0, %s6, %s4
  $region1: #{conv_ae_forward.19} parent=0
    #allocation2 [shape = 'u8[262144]{0}', space=vmem, size = 0x40000, scoped, tag = 'input window, operand 1']
    loop: start=0, step=1, limit=4
    $region2: #{conv_ae_forward.19} parent=1 // loop_pre_header
      _
    $region3: #{conv_ae_forward.19} parent=1 // loop_header
      %s9 = sphi 0, %s13
      %p10 = scmp.ge.s32.totalorder %s9, 4
      %s17 = sphi 0, %s17
      %s19 = sphi 0, %s17
      %s20 = sphi 0, %s19
      %s34 = sphi 0, %s20
      %s40 = sphi 0, %s42
      %s43 = sphi 0, %s40
      %s44 = sphi 0, %s43
      %s60 = sphi 0, %s44
      %s64 = sphi 0, %s64
      %s66 = sphi 0, %s64
      %s67 = sphi 0, %s66
      %s81 = sphi 0, %s67
      %s87 = sphi 0, %s89
      %s90 = sphi 0, %s87
      %s91 = sphi 0, %s90
      %s107 = sphi 0, %s91
    $region4: #{conv_ae_forward.19} parent=1 // loop_header_branch
      %12 = sbr.rel (%p10) target = $region8
    $region5: #{conv_ae_forward.19} parent=1 // loop_body
      %s14 = ssub.s32 %s9, 1
      %s15 = ssub.s32 %s9, 2
      %s16 = sadd.s32 %s9, 1
      %s18 = sadd.s32 %s17, 1
      %p21 = scmp.eq.s32.totalorder %s9, 1
      %p22 = scmp.ne.s32.totalorder %s17, %s19
      %p23 = scmp.eq.s32.totalorder %s9, 0
      %p24 = por %p22, %p23
      %p25 = scmp.ne.s32.totalorder %s17, %s19
      %p26 = scmp.eq.s32.totalorder %s14, 1
      %p27 = por %p25, %p26
      %p28 = scmp.ne.s32.totalorder %s19, %s20
      %p29 = scmp.eq.s32.totalorder %s14, 0
      %p30 = por %p28, %p29
      %p31 = scmp.ne.s32.totalorder %s19, %s20
      %p32 = scmp.eq.s32.totalorder %s15, 1
      %p33 = por %p31, %p32
      %p35 = scmp.ne.s32.totalorder %s20, %s34
      %p36 = scmp.eq.s32.totalorder %s15, 0
      %p37 = por %p35, %p36
      %s38 = ssub.s32 %s9, %s16
      %p39 = scmp.eq.s32.totalorder %s38, 0
      %s41 = sadd.s32 %s40, 1
      %s42 = scalar_select %p39, %s40, %s41
      %p45 = pneg %p39
      %p46 = scmp.eq.s32.totalorder %s9, 1
      %p47 = por %p45, %p46
      %p48 = scmp.ne.s32.totalorder %s40, %s43
      %p49 = scmp.eq.s32.totalorder %s9, 0
      %p50 = por %p48, %p49
      %p51 = scmp.ne.s32.totalorder %s40, %s43
      %p52 = scmp.eq.s32.totalorder %s14, 1
      %p53 = por %p51, %p52
      %p54 = scmp.ne.s32.totalorder %s43, %s44
      %p55 = scmp.eq.s32.totalorder %s14, 0
      %p56 = por %p54, %p55
      %p57 = scmp.ne.s32.totalorder %s43, %s44
      %p58 = scmp.eq.s32.totalorder %s15, 1
      %p59 = por %p57, %p58
      %p61 = scmp.ne.s32.totalorder %s44, %s60
      %p62 = scmp.eq.s32.totalorder %s15, 0
      %p63 = por %p61, %p62
      %s65 = sadd.s32 %s64, 1
      %p68 = scmp.eq.s32.totalorder %s9, 1
      %p69 = scmp.ne.s32.totalorder %s64, %s66
      %p70 = scmp.eq.s32.totalorder %s9, 0
      %p71 = por %p69, %p70
      %p72 = scmp.ne.s32.totalorder %s64, %s66
      %p73 = scmp.eq.s32.totalorder %s14, 1
      %p74 = por %p72, %p73
      %p75 = scmp.ne.s32.totalorder %s66, %s67
      %p76 = scmp.eq.s32.totalorder %s14, 0
      %p77 = por %p75, %p76
      %p78 = scmp.ne.s32.totalorder %s66, %s67
      %p79 = scmp.eq.s32.totalorder %s15, 1
      %p80 = por %p78, %p79
      %p82 = scmp.ne.s32.totalorder %s67, %s81
      %p83 = scmp.eq.s32.totalorder %s15, 0
      %p84 = por %p82, %p83
      %s85 = ssub.s32 %s9, %s16
      %p86 = scmp.eq.s32.totalorder %s85, 0
      %s88 = sadd.s32 %s87, 1
      %s89 = scalar_select %p86, %s87, %s88
      %p92 = pneg %p86
      %p93 = scmp.eq.s32.totalorder %s9, 1
      %p94 = por %p92, %p93
      %p95 = scmp.ne.s32.totalorder %s87, %s90
      %p96 = scmp.eq.s32.totalorder %s9, 0
      %p97 = por %p95, %p96
      %p98 = scmp.ne.s32.totalorder %s87, %s90
      %p99 = scmp.eq.s32.totalorder %s14, 1
      %p100 = por %p98, %p99
      %p101 = scmp.ne.s32.totalorder %s90, %s91
      %p102 = scmp.eq.s32.totalorder %s14, 0
      %p103 = por %p101, %p102
      %p104 = scmp.ne.s32.totalorder %s90, %s91
      %p105 = scmp.eq.s32.totalorder %s15, 1
      %p106 = por %p104, %p105
      %p108 = scmp.ne.s32.totalorder %s91, %s107
      %p109 = scmp.eq.s32.totalorder %s15, 0
      %p110 = por %p108, %p109
      %p111 = scmp.le.s32.totalorder 1, %s9
      %p112 = scmp.lt.s32.totalorder %s9, 3
      %p113 = pnand %p111, %p112
      %p114 = pneg %p113
      // Predicated region
      $region9: #{conv_ae_forward.19} parent=5 // pred_check
        _
      $region10: #{conv_ae_forward.19} parent=5 // pred_check_branch
        %116 = sbr.rel (%p113) target = $region12
      $region11: #{conv_ae_forward.19} parent=5 // pred_region
        %s117 = ssub.s32 %s9, 1
        // Predicated region
        $region13: #{conv_ae_forward.19} parent=11 // pred_check
          %p118 = pneg %p30
        $region14: #{conv_ae_forward.19} parent=11 // pred_check_branch
          %120 = sbr.rel (%p118) target = $region16
        $region15: #{conv_ae_forward.19} parent=11 // pred_region
          _
        $region16: #{conv_ae_forward.19} parent=11 // pred_fallthru
          _
        // Predicated region
        $region17: #{conv_ae_forward.19} parent=11 // pred_check
          %p121 = pneg %p77
        $region18: #{conv_ae_forward.19} parent=11 // pred_check_branch
          %123 = sbr.rel (%p121) target = $region20
        $region19: #{conv_ae_forward.19} parent=11 // pred_region
          _
        $region20: #{conv_ae_forward.19} parent=11 // pred_fallthru
          _
      $region12: #{conv_ae_forward.19} parent=5 // pred_fallthru
        _
      %p124 = scmp.lt.s32.totalorder %s9, 2
      // Predicated region
      $region21: #{conv_ae_forward.19} parent=5 // pred_check
        %p125 = pneg %p124
      $region22: #{conv_ae_forward.19} parent=5 // pred_check_branch
        %127 = sbr.rel (%p125) target = $region24
      $region23: #{conv_ae_forward.19} parent=5 // pred_region
        // Predicated region
        $region25: #{conv_ae_forward.19} parent=23 // pred_check
          %p128 = pneg %p50
        $region26: #{conv_ae_forward.19} parent=23 // pred_check_branch
          %130 = sbr.rel (%p128) target = $region28
        $region27: #{conv_ae_forward.19} parent=23 // pred_region
          %s131 = sand.u32 %s40, 1
          %s132 = sand.u32 %s40, 1
          %s133 = smul.addr %s132, 256
          %s134 = scalar_lea.vmem [#allocation2], %s133
          %s135 = smul.u32 8, %s9
          %s136 = smul.addr %s135, 4
          %s137 = scalar_lea.vmem %s1, %s136
          // Predicated region
          $region29: #{conv_ae_forward.19} parent=27 // pred_check
            _
          $region30: #{conv_ae_forward.19} parent=27 // pred_check_branch
            %139 = sbr.rel (0) target = $region32
          $region31: #{conv_ae_forward.19} parent=27 // pred_region
            // Predicated region
            $region33: #{conv_ae_forward.19} parent=31 // pred_check
              _
            $region34: #{conv_ae_forward.19} parent=31 // pred_check_branch
              %141 = sbr.rel (0) target = $region36
            $region35: #{conv_ae_forward.19} parent=31 // pred_region
              loop: start=0, step=1, limit=1
              $region37: #{conv_ae_forward.19} parent=35 // loop_pre_header
                _
              $region38: #{conv_ae_forward.19} parent=35 // loop_header
                %s143 = sphi 0, %s147
                %p144 = scmp.ge.s32.totalorder %s143, 1
                %s148 = sphi %s137, %s137
                %s149 = sphi %s134, %s134
              $region39: #{conv_ae_forward.19} parent=35 // loop_header_branch
                %146 = sbr.rel (%p144) target = $region43
              $region40: #{conv_ae_forward.19} parent=35 // loop_body
                %v150 = vld [vmem:[%s148] sm:$0xff]
                %151 = vst [vmem:[%s149] sm:$0xff] %v150
                %v152 = vld [vmem:[%s148 + $0x8] sm:$0xff]
                %153 = vst [vmem:[%s149 + $0x8] sm:$0xff] %v152
                %v154 = vld [vmem:[%s148 + $0x10] sm:$0xff]
                %155 = vst [vmem:[%s149 + $0x10] sm:$0xff] %v154
                %v156 = vld [vmem:[%s148 + $0x18] sm:$0xff]
                %157 = vst [vmem:[%s149 + $0x18] sm:$0xff] %v156
                %v158 = vld [vmem:[%s148 + $0x40] sm:$0xff]
                %159 = vst [vmem:[%s149 + $0x20] sm:$0xff] %v158
                %v160 = vld [vmem:[%s148 + $0x48] sm:$0xff]
                %161 = vst [vmem:[%s149 + $0x28] sm:$0xff] %v160
                %v162 = vld [vmem:[%s148 + $0x50] sm:$0xff]
                %163 = vst [vmem:[%s149 + $0x30] sm:$0xff] %v162
                %v164 = vld [vmem:[%s148 + $0x58] sm:$0xff]
                %165 = vst [vmem:[%s149 + $0x38] sm:$0xff] %v164
                %v166 = vld [vmem:[%s148 + $0x80] sm:$0xff]
                %167 = vst [vmem:[%s149 + $0x40] sm:$0xff] %v166
                %v168 = vld [vmem:[%s148 + $0x88] sm:$0xff]
                %169 = vst [vmem:[%s149 + $0x48] sm:$0xff] %v168
                %v170 = vld [vmem:[%s148 + $0x90] sm:$0xff]
                %171 = vst [vmem:[%s149 + $0x50] sm:$0xff] %v170
                %v172 = vld [vmem:[%s148 + $0x98] sm:$0xff]
                %173 = vst [vmem:[%s149 + $0x58] sm:$0xff] %v172
                %v174 = vld [vmem:[%s148 + $0xc0] sm:$0xff]
                %175 = vst [vmem:[%s149 + $0x60] sm:$0xff] %v174
                %v176 = vld [vmem:[%s148 + $0xc8] sm:$0xff]
                %177 = vst [vmem:[%s149 + $0x68] sm:$0xff] %v176
                %v178 = vld [vmem:[%s148 + $0xd0] sm:$0xff]
                %179 = vst [vmem:[%s149 + $0x70] sm:$0xff] %v178
                %v180 = vld [vmem:[%s148 + $0xd8] sm:$0xff]
                %181 = vst [vmem:[%s149 + $0x78] sm:$0xff] %v180
                %v182 = vld [vmem:[%s148 + $0x100] sm:$0xff]
                %183 = vst [vmem:[%s149 + $0x80] sm:$0xff] %v182
                %v184 = vld [vmem:[%s148 + $0x108] sm:$0xff]
                %185 = vst [vmem:[%s149 + $0x88] sm:$0xff] %v184
                %v186 = vld [vmem:[%s148 + $0x110] sm:$0xff]
                %187 = vst [vmem:[%s149 + $0x90] sm:$0xff] %v186
                %v188 = vld [vmem:[%s148 + $0x118] sm:$0xff]
                %189 = vst [vmem:[%s149 + $0x98] sm:$0xff] %v188
                %v190 = vld [vmem:[%s148 + $0x140] sm:$0xff]
                %191 = vst [vmem:[%s149 + $0xa0] sm:$0xff] %v190
                %v192 = vld [vmem:[%s148 + $0x148] sm:$0xff]
                %193 = vst [vmem:[%s149 + $0xa8] sm:$0xff] %v192
                %v194 = vld [vmem:[%s148 + $0x150] sm:$0xff]
                %195 = vst [vmem:[%s149 + $0xb0] sm:$0xff] %v194
                %v196 = vld [vmem:[%s148 + $0x158] sm:$0xff]
                %197 = vst [vmem:[%s149 + $0xb8] sm:$0xff] %v196
                %v198 = vld [vmem:[%s148 + $0x180] sm:$0xff]
                %199 = vst [vmem:[%s149 + $0xc0] sm:$0xff] %v198
                %v200 = vld [vmem:[%s148 + $0x188] sm:$0xff]
                %201 = vst [vmem:[%s149 + $0xc8] sm:$0xff] %v200
                %v202 = vld [vmem:[%s148 + $0x190] sm:$0xff]
                %203 = vst [vmem:[%s149 + $0xd0] sm:$0xff] %v202
                %v204 = vld [vmem:[%s148 + $0x198] sm:$0xff]
                %205 = vst [vmem:[%s149 + $0xd8] sm:$0xff] %v204
                %v206 = vld [vmem:[%s148 + $0x1c0] sm:$0xff]
                %207 = vst [vmem:[%s149 + $0xe0] sm:$0xff] %v206
                %v208 = vld [vmem:[%s148 + $0x1c8] sm:$0xff]
                %209 = vst [vmem:[%s149 + $0xe8] sm:$0xff] %v208
                %v210 = vld [vmem:[%s148 + $0x1d0] sm:$0xff]
                %211 = vst [vmem:[%s149 + $0xf0] sm:$0xff] %v210
                %v212 = vld [vmem:[%s148 + $0x1d8] sm:$0xff]
                %213 = vst [vmem:[%s149 + $0xf8] sm:$0xff] %v212
              $region41: #{conv_ae_forward.19} parent=35 // loop_footer
                %s147 = sadd.s32 1, %s143
              $region42: #{conv_ae_forward.19} parent=35 // loop_footer_branch
                %142 = sbr.rel target = $region38
              $region43: #{conv_ae_forward.19} parent=35 // loop_exit
                _
            $region36: #{conv_ae_forward.19} parent=31 // pred_fallthru
              _
            // Predicated region
            $region44: #{conv_ae_forward.19} parent=31 // pred_check
              _
            $region45: #{conv_ae_forward.19} parent=31 // pred_check_branch
              %215 = sbr.rel target = $region47
            $region46: #{conv_ae_forward.19} parent=31 // pred_region
              _
            $region47: #{conv_ae_forward.19} parent=31 // pred_fallthru
              _
          $region32: #{conv_ae_forward.19} parent=27 // pred_fallthru
            _
          %216 = vnop
        $region28: #{conv_ae_forward.19} parent=23 // pred_fallthru
          _
      $region24: #{conv_ae_forward.19} parent=5 // pred_fallthru
        _
      %p217 = scmp.le.s32.totalorder 1, %s9
      %p218 = scmp.lt.s32.totalorder %s9, 3
      %p219 = pnand %p217, %p218
      %p220 = pneg %p219
      // Predicated region
      $region48: #{conv_ae_forward.19} parent=5 // pred_check
        _
      $region49: #{conv_ae_forward.19} parent=5 // pred_check_branch
        %222 = sbr.rel (%p219) target = $region51
      $region50: #{conv_ae_forward.19} parent=5 // pred_region
        %s223 = ssub.s32 %s9, 1
        %s224 = sand.u32 %s43, 1
        %s225 = sand.u32 %s43, 1
        %s226 = smul.addr %s225, 256
        %s227 = scalar_lea.vmem [#allocation2], %s226
        // Predicated region
        $region52: #{conv_ae_forward.19} parent=50 // pred_check
          %p228 = pneg %p56
        $region53: #{conv_ae_forward.19} parent=50 // pred_check_branch
          %230 = sbr.rel (%p228) target = $region55
        $region54: #{conv_ae_forward.19} parent=50 // pred_region
          _
        $region55: #{conv_ae_forward.19} parent=50 // pred_fallthru
          _
        %p231 = pneg %p30
        %p232 = pneg %p27
        %s233 = sand.u32 %s43, 1
        %s234 = sand.u32 %s43, 1
        %s235 = smul.addr %s234, 256
        %s236 = scalar_lea.vmem [#allocation2], %s235
        %p237 = pneg %p56
        %p238 = pneg %p53
        %p239 = pneg %p77
        %p240 = pneg %p74
        %p241 = pneg %p103
        %p242 = pneg %p100
        %s243 = smul.u32 8, %s14
        %p244 = scmp.lt.s32.totalorder %s243, 15
        %s245 = scalar_select %p244, %s243, 15
        %s246 = smul.addr %s245, 8
        %s247 = scalar_lea.vmem %s3, %s246
        %s248 = smul.u32 8, %s14
        %s249 = smul.u32 8, %s14
        %p250 = scmp.lt.s32.totalorder %s249, 15
        %s251 = scalar_select %p250, %s249, 15
        %s252 = smul.addr %s251, 8
        %s253 = scalar_lea.vmem %s3, %s252
        %s254 = smul.u32 8, %s14
        %v256 = vld [vmem:[%s0] sm:$0xf]
        %v257 = vld [vmem:[%s227] sm:$0xff]
        %v258 = vld [vmem:[%s227 + $0x8] sm:$0xff]
        %v259 = vld [vmem:[%s227 + $0x10] sm:$0xff]
        %v260 = vld [vmem:[%s227 + $0x18] sm:$0xff]
        %v261 = vld [vmem:[%s227 + $0x20] sm:$0xff]
        %v262 = vld [vmem:[%s227 + $0x28] sm:$0xff]
        %v263 = vld [vmem:[%s227 + $0x30] sm:$0xff]
        %v264 = vld [vmem:[%s227 + $0x38] sm:$0xff]
        %v265 = vld [vmem:[%s227 + $0x40] sm:$0xff]
        %v266 = vld [vmem:[%s227 + $0x48] sm:$0xff]
        %v267 = vld [vmem:[%s227 + $0x50] sm:$0xff]
        %v268 = vld [vmem:[%s227 + $0x58] sm:$0xff]
        %v269 = vld [vmem:[%s227 + $0x60] sm:$0xff]
        %v270 = vld [vmem:[%s227 + $0x68] sm:$0xff]
        %v271 = vld [vmem:[%s227 + $0x70] sm:$0xff]
        %v272 = vld [vmem:[%s227 + $0x78] sm:$0xff]
        %v273 = vld [vmem:[%s227 + $0x80] sm:$0xff]
        %v274 = vld [vmem:[%s227 + $0x88] sm:$0xff]
        %v275 = vld [vmem:[%s227 + $0x90] sm:$0xff]
        %v276 = vld [vmem:[%s227 + $0x98] sm:$0xff]
        %v277 = vld [vmem:[%s227 + $0xa0] sm:$0xff]
        %v278 = vld [vmem:[%s227 + $0xa8] sm:$0xff]
        %v279 = vld [vmem:[%s227 + $0xb0] sm:$0xff]
        %v280 = vld [vmem:[%s227 + $0xb8] sm:$0xff]
        %v281 = vld [vmem:[%s227 + $0xc0] sm:$0xff]
        %v282 = vld [vmem:[%s227 + $0xc8] sm:$0xff]
        %v283 = vld [vmem:[%s227 + $0xd0] sm:$0xff]
        %v284 = vld [vmem:[%s227 + $0xd8] sm:$0xff]
        %v285 = vld [vmem:[%s227 + $0xe0] sm:$0xff]
        %v286 = vld [vmem:[%s227 + $0xe8] sm:$0xff]
        %v287 = vld [vmem:[%s227 + $0xf0] sm:$0xff]
        %v288 = vld [vmem:[%s227 + $0xf8] sm:$0xff]
        %v289 = vld [vmem:[%s2] sm:$0xff]
        %291 = vset.pattern.permute.xlu0 0
        %292 = vperm.xlu0 %291, %v289
        %v293 = vpop.permute.xlu0 %292
        %v327 = vunpack.c.l.b16 %v257
        %v328 = vunpack.c.h.b16 %v257
        %v329 = vunpack.c.l.b16 %v258
        %v330 = vunpack.c.h.b16 %v258
        %v331 = vunpack.c.l.b16 %v259
        %v332 = vunpack.c.h.b16 %v259
        %v333 = vunpack.c.l.b16 %v260
        %v334 = vunpack.c.h.b16 %v260
        %v335 = vunpack.c.l.b16 %v261
        %v336 = vunpack.c.h.b16 %v261
        %v337 = vunpack.c.l.b16 %v262
        %v338 = vunpack.c.h.b16 %v262
        %v339 = vunpack.c.l.b16 %v263
        %v340 = vunpack.c.h.b16 %v263
        %v341 = vunpack.c.l.b16 %v264
        %v342 = vunpack.c.h.b16 %v264
        %v343 = vunpack.c.l.b16 %v265
        %v344 = vunpack.c.h.b16 %v265
        %v345 = vunpack.c.l.b16 %v266
        %v346 = vunpack.c.h.b16 %v266
        %v347 = vunpack.c.l.b16 %v267
        %v348 = vunpack.c.h.b16 %v267
        %v349 = vunpack.c.l.b16 %v268
        %v350 = vunpack.c.h.b16 %v268
        %v351 = vunpack.c.l.b16 %v269
        %v352 = vunpack.c.h.b16 %v269
        %v353 = vunpack.c.l.b16 %v270
        %v354 = vunpack.c.h.b16 %v270
        %v355 = vunpack.c.l.b16 %v271
        %v356 = vunpack.c.h.b16 %v271
        %v357 = vunpack.c.l.b16 %v272
        %v358 = vunpack.c.h.b16 %v272
        %v359 = vunpack.c.l.b16 %v273
        %v360 = vunpack.c.h.b16 %v273
        %v361 = vunpack.c.l.b16 %v274
        %v362 = vunpack.c.h.b16 %v274
        %v363 = vunpack.c.l.b16 %v275
        %v364 = vunpack.c.h.b16 %v275
        %v365 = vunpack.c.l.b16 %v276
        %v366 = vunpack.c.h.b16 %v276
        %v367 = vunpack.c.l.b16 %v277
        %v368 = vunpack.c.h.b16 %v277
        %v369 = vunpack.c.l.b16 %v278
        %v370 = vunpack.c.h.b16 %v278
        %v371 = vunpack.c.l.b16 %v279
        %v372 = vunpack.c.h.b16 %v279
        %v373 = vunpack.c.l.b16 %v280
        %v374 = vunpack.c.h.b16 %v280
        %v375 = vunpack.c.l.b16 %v281
        %v376 = vunpack.c.h.b16 %v281
        %v377 = vunpack.c.l.b16 %v282
        %v378 = vunpack.c.h.b16 %v282
        %v379 = vunpack.c.l.b16 %v283
        %v380 = vunpack.c.h.b16 %v283
        %v381 = vunpack.c.l.b16 %v284
        %v382 = vunpack.c.h.b16 %v284
        %v383 = vunpack.c.l.b16 %v285
        %v384 = vunpack.c.h.b16 %v285
        %v385 = vunpack.c.l.b16 %v286
        %v386 = vunpack.c.h.b16 %v286
        %v387 = vunpack.c.l.b16 %v287
        %v388 = vunpack.c.h.b16 %v287
        %v389 = vunpack.c.l.b16 %v288
        %v390 = vunpack.c.h.b16 %v288
        %v391 = vpack.c.b16 %v335, %v327
        %v392 = vpack.c.b16 %v336, %v328
        %v393 = vpack.c.b16 %v337, %v329
        %v394 = vpack.c.b16 %v338, %v330
        %v395 = vpack.c.b16 %v339, %v331
        %v396 = vpack.c.b16 %v340, %v332
        %v397 = vpack.c.b16 %v341, %v333
        %v398 = vpack.c.b16 %v342, %v334
        %v399 = vpack.c.b16 %v351, %v343
        %v400 = vpack.c.b16 %v352, %v344
        %v401 = vpack.c.b16 %v353, %v345
        %v402 = vpack.c.b16 %v354, %v346
        %v403 = vpack.c.b16 %v355, %v347
        %v404 = vpack.c.b16 %v356, %v348
        %v405 = vpack.c.b16 %v357, %v349
        %v406 = vpack.c.b16 %v358, %v350
        %v407 = vpack.c.b16 %v367, %v359
        %v408 = vpack.c.b16 %v368, %v360
        %v409 = vpack.c.b16 %v369, %v361
        %v410 = vpack.c.b16 %v370, %v362
        %v411 = vpack.c.b16 %v371, %v363
        %v412 = vpack.c.b16 %v372, %v364
        %v413 = vpack.c.b16 %v373, %v365
        %v414 = vpack.c.b16 %v374, %v366
        %v415 = vpack.c.b16 %v383, %v375
        %v416 = vpack.c.b16 %v384, %v376
        %v417 = vpack.c.b16 %v385, %v377
        %v418 = vpack.c.b16 %v386, %v378
        %v419 = vpack.c.b16 %v387, %v379
        %v420 = vpack.c.b16 %v388, %v380
        %v421 = vpack.c.b16 %v389, %v381
        %v422 = vpack.c.b16 %v390, %v382
        %vm455 = vcmask 523264
        %v457 = vsel %vm455, %v256, 0
        %459 = vmatprep.subr.bf16.mxu0 %v392
        %460 = vmatpush1.bf16.msra.mxu0 %v391
        %461 = vmatprep.subr.bf16.mxu0 %v400
        %462 = vmatpush1.bf16.msra.mxu0 %v399
        %463 = vmatprep.subr.bf16.mxu0 %v408
        %464 = vmatpush1.bf16.msra.mxu0 %v407
        %465 = vmatprep.subr.bf16.mxu0 %v416
        %466 = vmatpush1.bf16.msra.mxu0 %v415
        %467 = vmatprep.subr.bf16.mxu0 0
        %468 = vmatpush1.bf16.msra.mxu0 0
        %469 = vmatprep.subr.bf16.mxu0 0
        %470 = vmatpush1.bf16.msra.mxu0 0
        %471 = vmatprep.subr.bf16.mxu0 0
        %472 = vmatpush1.bf16.msra.mxu0 0
        %473 = vmatprep.subr.bf16.mxu0 0
        %474 = vmatpush1.bf16.msra.mxu0 0
        %475 = vmatprep.subr.bf16.mxu0 0
        %476 = vmatpush1.bf16.msra.mxu0 0
        %477 = vmatprep.subr.bf16.mxu0 0
        %478 = vmatpush1.bf16.msra.mxu0 0
        %479 = vmatprep.subr.bf16.mxu0 0
        %480 = vmatpush1.bf16.msra.mxu0 0
        %481 = vmatprep.subr.bf16.mxu0 0
        %482 = vmatpush1.bf16.msra.mxu0 0
        %483 = vmatprep.subr.bf16.mxu0 0
        %484 = vmatpush1.bf16.msra.mxu0 0
        %485 = vmatprep.subr.bf16.mxu0 0
        %486 = vmatpush1.bf16.msra.mxu0 0
        %487 = vmatprep.subr.bf16.mxu0 0
        %488 = vmatpush1.bf16.msra.mxu0 0
        %489 = vmatprep.subr.bf16.mxu0 0
        %490 = vmatpush1.bf16.msra.mxu0 0
        %491 = vmatprep.mubr.bf16.mxu0 0
        %492 = vmatmul.mubr.bf16.gmra.mrb[0].mxu0 %v457
        %v493 = vpop.f32.mrb[0].mxu0
        %v494 = vadd.f32 %v293, %v493
        %v495 = vpop.f32.mrb[0].mxu0
        %v496 = vadd.f32 %v293, %v495
        %v497 = vpop.f32.mrb[0].mxu0
        %v498 = vpop.f32.mrb[0].mxu0
        %499 = vdwg.mxu0
        %500 = vmatprep.subr.bf16.mxu0 %v394
        %501 = vmatpush1.bf16.msra.mxu0 %v393
        %502 = vmatprep.subr.bf16.mxu0 %v402
        %503 = vmatpush1.bf16.msra.mxu0 %v401
        %504 = vmatprep.subr.bf16.mxu0 %v410
        %505 = vmatpush1.bf16.msra.mxu0 %v409
        %506 = vmatprep.subr.bf16.mxu0 %v418
        %507 = vmatpush1.bf16.msra.mxu0 %v417
        %508 = vmatprep.subr.bf16.mxu0 0
        %509 = vmatpush1.bf16.msra.mxu0 0
        %510 = vmatprep.subr.bf16.mxu0 0
        %511 = vmatpush1.bf16.msra.mxu0 0
        %512 = vmatprep.subr.bf16.mxu0 0
        %513 = vmatpush1.bf16.msra.mxu0 0
        %514 = vmatprep.subr.bf16.mxu0 0
        %515 = vmatpush1.bf16.msra.mxu0 0
        %516 = vmatprep.subr.bf16.mxu0 0
        %517 = vmatpush1.bf16.msra.mxu0 0
        %518 = vmatprep.subr.bf16.mxu0 0
        %519 = vmatpush1.bf16.msra.mxu0 0
        %520 = vmatprep.subr.bf16.mxu0 0
        %521 = vmatpush1.bf16.msra.mxu0 0
        %522 = vmatprep.subr.bf16.mxu0 0
        %523 = vmatpush1.bf16.msra.mxu0 0
        %524 = vmatprep.subr.bf16.mxu0 0
        %525 = vmatpush1.bf16.msra.mxu0 0
        %526 = vmatprep.subr.bf16.mxu0 0
        %527 = vmatpush1.bf16.msra.mxu0 0
        %528 = vmatprep.subr.bf16.mxu0 0
        %529 = vmatpush1.bf16.msra.mxu0 0
        %530 = vmatprep.subr.bf16.mxu0 0
        %531 = vmatpush1.bf16.msra.mxu0 0
        %532 = vmatprep.mubr.bf16.mxu0 0
        %533 = vmatmul.mubr.bf16.gmra.mrb[0].mxu0 %v457
        %v534 = vpop.f32.mrb[0].mxu0
        %v535 = vadd.f32 %v293, %v534
        %v536 = vpop.f32.mrb[0].mxu0
        %v537 = vadd.f32 %v293, %v536
        %v538 = vpop.f32.mrb[0].mxu0
        %v539 = vpop.f32.mrb[0].mxu0
        %540 = vdwg.mxu0
        %541 = vmatprep.subr.bf16.mxu0 %v396
        %542 = vmatpush1.bf16.msra.mxu0 %v395
        %543 = vmatprep.subr.bf16.mxu0 %v404
        %544 = vmatpush1.bf16.msra.mxu0 %v403
        %545 = vmatprep.subr.bf16.mxu0 %v412
        %546 = vmatpush1.bf16.msra.mxu0 %v411
        %547 = vmatprep.subr.bf16.mxu0 %v420
        %548 = vmatpush1.bf16.msra.mxu0 %v419
        %549 = vmatprep.subr.bf16.mxu0 0
        %550 = vmatpush1.bf16.msra.mxu0 0
        %551 = vmatprep.subr.bf16.mxu0 0
        %552 = vmatpush1.bf16.msra.mxu0 0
        %553 = vmatprep.subr.bf16.mxu0 0
        %554 = vmatpush1.bf16.msra.mxu0 0
        %555 = vmatprep.subr.bf16.mxu0 0
        %556 = vmatpush1.bf16.msra.mxu0 0
        %557 = vmatprep.subr.bf16.mxu0 0
        %558 = vmatpush1.bf16.msra.mxu0 0
        %559 = vmatprep.subr.bf16.mxu0 0
        %560 = vmatpush1.bf16.msra.mxu0 0
        %561 = vmatprep.subr.bf16.mxu0 0
        %562 = vmatpush1.bf16.msra.mxu0 0
        %563 = vmatprep.subr.bf16.mxu0 0
        %564 = vmatpush1.bf16.msra.mxu0 0
        %565 = vmatprep.subr.bf16.mxu0 0
        %566 = vmatpush1.bf16.msra.mxu0 0
        %567 = vmatprep.subr.bf16.mxu0 0
        %568 = vmatpush1.bf16.msra.mxu0 0
        %569 = vmatprep.subr.bf16.mxu0 0
        %570 = vmatpush1.bf16.msra.mxu0 0
        %571 = vmatprep.subr.bf16.mxu0 0
        %572 = vmatpush1.bf16.msra.mxu0 0
        %573 = vmatprep.mubr.bf16.mxu0 0
        %574 = vmatmul.mubr.bf16.gmra.mrb[0].mxu0 %v457
        %v575 = vpop.f32.mrb[0].mxu0
        %v576 = vadd.f32 %v293, %v575
        %v577 = vpop.f32.mrb[0].mxu0
        %v578 = vadd.f32 %v293, %v577
        %v579 = vpop.f32.mrb[0].mxu0
        %v580 = vpop.f32.mrb[0].mxu0
        %581 = vdwg.mxu0
        %582 = vmatprep.subr.bf16.mxu0 %v398
        %583 = vmatpush1.bf16.msra.mxu0 %v397
        %584 = vmatprep.subr.bf16.mxu0 %v406
        %585 = vmatpush1.bf16.msra.mxu0 %v405
        %586 = vmatprep.subr.bf16.mxu0 %v414
        %587 = vmatpush1.bf16.msra.mxu0 %v413
        %588 = vmatprep.subr.bf16.mxu0 %v422
        %589 = vmatpush1.bf16.msra.mxu0 %v421
        %590 = vmatprep.subr.bf16.mxu0 0
        %591 = vmatpush1.bf16.msra.mxu0 0
        %592 = vmatprep.subr.bf16.mxu0 0
        %593 = vmatpush1.bf16.msra.mxu0 0
        %594 = vmatprep.subr.bf16.mxu0 0
        %595 = vmatpush1.bf16.msra.mxu0 0
        %596 = vmatprep.subr.bf16.mxu0 0
        %597 = vmatpush1.bf16.msra.mxu0 0
        %598 = vmatprep.subr.bf16.mxu0 0
        %599 = vmatpush1.bf16.msra.mxu0 0
        %600 = vmatprep.subr.bf16.mxu0 0
        %601 = vmatpush1.bf16.msra.mxu0 0
        %602 = vmatprep.subr.bf16.mxu0 0
        %603 = vmatpush1.bf16.msra.mxu0 0
        %604 = vmatprep.subr.bf16.mxu0 0
        %605 = vmatpush1.bf16.msra.mxu0 0
        %606 = vmatprep.subr.bf16.mxu0 0
        %607 = vmatpush1.bf16.msra.mxu0 0
        %608 = vmatprep.subr.bf16.mxu0 0
        %609 = vmatpush1.bf16.msra.mxu0 0
        %610 = vmatprep.subr.bf16.mxu0 0
        %611 = vmatpush1.bf16.msra.mxu0 0
        %612 = vmatprep.subr.bf16.mxu0 0
        %613 = vmatpush1.bf16.msra.mxu0 0
        %614 = vmatprep.mubr.bf16.mxu0 0
        %615 = vmatmul.mubr.bf16.gmra.mrb[0].mxu0 %v457
        %v616 = vpop.f32.mrb[0].mxu0
        %v617 = vadd.f32 %v293, %v616
        %v618 = vpop.f32.mrb[0].mxu0
        %v619 = vadd.f32 %v293, %v618
        %v620 = vpop.f32.mrb[0].mxu0
        %v621 = vpop.f32.mrb[0].mxu0
        %622 = vdwg.mxu0
        %vm623 = vcmp.ge.f32.partialorder %v494, 0.0
        %vm624 = vcmp.ge.f32.partialorder %v496, 0.0
        %vm625 = vcmp.ge.f32.partialorder %v535, 0.0
        %vm626 = vcmp.ge.f32.partialorder %v537, 0.0
        %vm627 = vcmp.ge.f32.partialorder %v576, 0.0
        %vm628 = vcmp.ge.f32.partialorder %v578, 0.0
        %vm629 = vcmp.ge.f32.partialorder %v617, 0.0
        %vm630 = vcmp.ge.f32.partialorder %v619, 0.0
        %v631 = vmul.f32 %v494, 0.1
        %v632 = vmul.f32 %v496, 0.1
        %v633 = vmul.f32 %v535, 0.1
        %v634 = vmul.f32 %v537, 0.1
        %v635 = vmul.f32 %v576, 0.1
        %v636 = vmul.f32 %v578, 0.1
        %v637 = vmul.f32 %v617, 0.1
        %v638 = vmul.f32 %v619, 0.1
        %v639 = vsel %vm623, %v494, %v631
        %v640 = vsel %vm624, %v496, %v632
        %v641 = vsel %vm625, %v535, %v633
        %v642 = vsel %vm626, %v537, %v634
        %v643 = vsel %vm627, %v576, %v635
        %v644 = vsel %vm628, %v578, %v636
        %v645 = vsel %vm629, %v617, %v637
        %v646 = vsel %vm630, %v619, %v638
        %647 = vst [vmem:[%s253] sm:$0xff] %v639
        %648 = vst [vmem:[%s253 + $0x8] sm:$0xff] %v640
        %649 = vst [vmem:[%s253 + $0x10] sm:$0xff] %v641
        %650 = vst [vmem:[%s253 + $0x18] sm:$0xff] %v642
        %651 = vst [vmem:[%s253 + $0x20] sm:$0xff] %v643
        %652 = vst [vmem:[%s253 + $0x28] sm:$0xff] %v644
        %653 = vst [vmem:[%s253 + $0x30] sm:$0xff] %v645
        %654 = vst [vmem:[%s253 + $0x38] sm:$0xff] %v646
        %s655 = smul.u32 8, %s14
        %p656 = scmp.lt.s32.totalorder %s655, 15
        %s657 = scalar_select %p656, %s655, 15
        %s658 = smul.addr %s657, 8
        %s659 = scalar_lea.vmem %s3, %s658
        // Predicated region
        $region56: #{conv_ae_forward.19} parent=50 // pred_check
          %p660 = pneg %p100
        $region57: #{conv_ae_forward.19} parent=50 // pred_check_branch
          %662 = sbr.rel (%p660) target = $region59
        $region58: #{conv_ae_forward.19} parent=50 // pred_region
          %s663 = smul.u32 8, %s14
        $region59: #{conv_ae_forward.19} parent=50 // pred_fallthru
          _
      $region51: #{conv_ae_forward.19} parent=5 // pred_fallthru
        _
      %p664 = scmp.le.s32.totalorder 2, %s9
      // Predicated region
      $region60: #{conv_ae_forward.19} parent=5 // pred_check
        %p665 = pneg %p664
      $region61: #{conv_ae_forward.19} parent=5 // pred_check_branch
        %667 = sbr.rel (%p665) target = $region63
      $region62: #{conv_ae_forward.19} parent=5 // pred_region
        %s668 = ssub.s32 %s9, 2
        // Predicated region
        $region64: #{conv_ae_forward.19} parent=62 // pred_check
          %p669 = pneg %p106
        $region65: #{conv_ae_forward.19} parent=62 // pred_check_branch
          %671 = sbr.rel (%p669) target = $region67
        $region66: #{conv_ae_forward.19} parent=62 // pred_region
          %s672 = smul.u32 8, %s15
          %p673 = scmp.lt.s32.totalorder %s672, 15
          %s674 = scalar_select %p673, %s672, 15
          %s675 = smul.addr %s674, 8
          %s676 = scalar_lea.vmem %s3, %s675
        $region67: #{conv_ae_forward.19} parent=62 // pred_fallthru
          _
      $region63: #{conv_ae_forward.19} parent=5 // pred_fallthru
        _
    $region6: #{conv_ae_forward.19} parent=1 // loop_footer
      %s13 = sadd.s32 1, %s9
    $region7: #{conv_ae_forward.19} parent=1 // loop_footer_branch
      %8 = sbr.rel target = $region3
    $region8: #{conv_ae_forward.19} parent=1 // loop_exit
      _

// kernel: conv_ae_forward.20
$region0: #{conv_ae_forward.20}
  #allocation0 [shape = 'u32[]', space=smem, size = 0x4, offset = 0x4, fixed_abs, tag = 'smem constant byte address 0x4 - core index']
  #allocation1 [shape = 'u32[144,128]{1,0:T(1,128)}', space=vmem, size = 0x12000, scoped, tag = 'internal scratch']
  %s0 = inlined_call_operand.vmem [shape: bf16[8,48], index: 0, kind: input, shape index: {}]
  %s1 = inlined_call_operand.vmem [shape: bf16[48,2048], index: 1, kind: input, shape index: {}]
  %s2 = inlined_call_operand.vmem [shape: f32[8,1], index: 2, kind: input, shape index: {}]
  %s3 = inlined_call_operand.vmem [shape: f32[8,2048], index: 3, kind: output, shape index: {}]
  %s4 = sld [smem:[#allocation0]]
  $region68: #{conv_ae_forward.20} parent=0
    _
  %s6 = ssub.s32 1, %s4
  %s7 = scalar_select 0, %s6, %s4
  $region1: #{conv_ae_forward.20} parent=0
    #allocation2 [shape = 'u8[196608]{0}', space=vmem, size = 0x30000, scoped, tag = 'input window, operand 1']
    loop: start=0, step=1, limit=4
    $region2: #{conv_ae_forward.20} parent=1 // loop_pre_header
      _
    $region3: #{conv_ae_forward.20} parent=1 // loop_header
      %s9 = sphi 0, %s13
      %p10 = scmp.ge.s32.totalorder %s9, 4
      %s17 = sphi 0, %s17
      %s19 = sphi 0, %s17
      %s20 = sphi 0, %s19
      %s34 = sphi 0, %s20
      %s40 = sphi 0, %s42
      %s43 = sphi 0, %s40
      %s44 = sphi 0, %s43
      %s60 = sphi 0, %s44
      %s64 = sphi 0, %s64
      %s66 = sphi 0, %s64
      %s67 = sphi 0, %s66
      %s81 = sphi 0, %s67
      %s87 = sphi 0, %s89
      %s90 = sphi 0, %s87
      %s91 = sphi 0, %s90
      %s107 = sphi 0, %s91
    $region4: #{conv_ae_forward.20} parent=1 // loop_header_branch
      %12 = sbr.rel (%p10) target = $region8
    $region5: #{conv_ae_forward.20} parent=1 // loop_body
      %s14 = ssub.s32 %s9, 1
      %s15 = ssub.s32 %s9, 2
      %s16 = sadd.s32 %s9, 1
      %s18 = sadd.s32 %s17, 1
      %p21 = scmp.eq.s32.totalorder %s9, 1
      %p22 = scmp.ne.s32.totalorder %s17, %s19
      %p23 = scmp.eq.s32.totalorder %s9, 0
      %p24 = por %p22, %p23
      %p25 = scmp.ne.s32.totalorder %s17, %s19
      %p26 = scmp.eq.s32.totalorder %s14, 1
      %p27 = por %p25, %p26
      %p28 = scmp.ne.s32.totalorder %s19, %s20
      %p29 = scmp.eq.s32.totalorder %s14, 0
      %p30 = por %p28, %p29
      %p31 = scmp.ne.s32.totalorder %s19, %s20
      %p32 = scmp.eq.s32.totalorder %s15, 1
      %p33 = por %p31, %p32
      %p35 = scmp.ne.s32.totalorder %s20, %s34
      %p36 = scmp.eq.s32.totalorder %s15, 0
      %p37 = por %p35, %p36
      %s38 = ssub.s32 %s9, %s16
      %p39 = scmp.eq.s32.totalorder %s38, 0
      %s41 = sadd.s32 %s40, 1
      %s42 = scalar_select %p39, %s40, %s41
      %p45 = pneg %p39
      %p46 = scmp.eq.s32.totalorder %s9, 1
      %p47 = por %p45, %p46
      %p48 = scmp.ne.s32.totalorder %s40, %s43
      %p49 = scmp.eq.s32.totalorder %s9, 0
      %p50 = por %p48, %p49
      %p51 = scmp.ne.s32.totalorder %s40, %s43
      %p52 = scmp.eq.s32.totalorder %s14, 1
      %p53 = por %p51, %p52
      %p54 = scmp.ne.s32.totalorder %s43, %s44
      %p55 = scmp.eq.s32.totalorder %s14, 0
      %p56 = por %p54, %p55
      %p57 = scmp.ne.s32.totalorder %s43, %s44
      %p58 = scmp.eq.s32.totalorder %s15, 1
      %p59 = por %p57, %p58
      %p61 = scmp.ne.s32.totalorder %s44, %s60
      %p62 = scmp.eq.s32.totalorder %s15, 0
      %p63 = por %p61, %p62
      %s65 = sadd.s32 %s64, 1
      %p68 = scmp.eq.s32.totalorder %s9, 1
      %p69 = scmp.ne.s32.totalorder %s64, %s66
      %p70 = scmp.eq.s32.totalorder %s9, 0
      %p71 = por %p69, %p70
      %p72 = scmp.ne.s32.totalorder %s64, %s66
      %p73 = scmp.eq.s32.totalorder %s14, 1
      %p74 = por %p72, %p73
      %p75 = scmp.ne.s32.totalorder %s66, %s67
      %p76 = scmp.eq.s32.totalorder %s14, 0
      %p77 = por %p75, %p76
      %p78 = scmp.ne.s32.totalorder %s66, %s67
      %p79 = scmp.eq.s32.totalorder %s15, 1
      %p80 = por %p78, %p79
      %p82 = scmp.ne.s32.totalorder %s67, %s81
      %p83 = scmp.eq.s32.totalorder %s15, 0
      %p84 = por %p82, %p83
      %s85 = ssub.s32 %s9, %s16
      %p86 = scmp.eq.s32.totalorder %s85, 0
      %s88 = sadd.s32 %s87, 1
      %s89 = scalar_select %p86, %s87, %s88
      %p92 = pneg %p86
      %p93 = scmp.eq.s32.totalorder %s9, 1
      %p94 = por %p92, %p93
      %p95 = scmp.ne.s32.totalorder %s87, %s90
      %p96 = scmp.eq.s32.totalorder %s9, 0
      %p97 = por %p95, %p96
      %p98 = scmp.ne.s32.totalorder %s87, %s90
      %p99 = scmp.eq.s32.totalorder %s14, 1
      %p100 = por %p98, %p99
      %p101 = scmp.ne.s32.totalorder %s90, %s91
      %p102 = scmp.eq.s32.totalorder %s14, 0
      %p103 = por %p101, %p102
      %p104 = scmp.ne.s32.totalorder %s90, %s91
      %p105 = scmp.eq.s32.totalorder %s15, 1
      %p106 = por %p104, %p105
      %p108 = scmp.ne.s32.totalorder %s91, %s107
      %p109 = scmp.eq.s32.totalorder %s15, 0
      %p110 = por %p108, %p109
      %p111 = scmp.le.s32.totalorder 1, %s9
      %p112 = scmp.lt.s32.totalorder %s9, 3
      %p113 = pnand %p111, %p112
      %p114 = pneg %p113
      // Predicated region
      $region9: #{conv_ae_forward.20} parent=5 // pred_check
        _
      $region10: #{conv_ae_forward.20} parent=5 // pred_check_branch
        %116 = sbr.rel (%p113) target = $region12
      $region11: #{conv_ae_forward.20} parent=5 // pred_region
        %s117 = ssub.s32 %s9, 1
        // Predicated region
        $region13: #{conv_ae_forward.20} parent=11 // pred_check
          %p118 = pneg %p30
        $region14: #{conv_ae_forward.20} parent=11 // pred_check_branch
          %120 = sbr.rel (%p118) target = $region16
        $region15: #{conv_ae_forward.20} parent=11 // pred_region
          _
        $region16: #{conv_ae_forward.20} parent=11 // pred_fallthru
          _
        // Predicated region
        $region17: #{conv_ae_forward.20} parent=11 // pred_check
          %p121 = pneg %p77
        $region18: #{conv_ae_forward.20} parent=11 // pred_check_branch
          %123 = sbr.rel (%p121) target = $region20
        $region19: #{conv_ae_forward.20} parent=11 // pred_region
          _
        $region20: #{conv_ae_forward.20} parent=11 // pred_fallthru
          _
      $region12: #{conv_ae_forward.20} parent=5 // pred_fallthru
        _
      %p124 = scmp.lt.s32.totalorder %s9, 2
      // Predicated region
      $region21: #{conv_ae_forward.20} parent=5 // pred_check
        %p125 = pneg %p124
      $region22: #{conv_ae_forward.20} parent=5 // pred_check_branch
        %127 = sbr.rel (%p125) target = $region24
      $region23: #{conv_ae_forward.20} parent=5 // pred_region
        // Predicated region
        $region25: #{conv_ae_forward.20} parent=23 // pred_check
          %p128 = pneg %p50
        $region26: #{conv_ae_forward.20} parent=23 // pred_check_branch
          %130 = sbr.rel (%p128) target = $region28
        $region27: #{conv_ae_forward.20} parent=23 // pred_region
          %s131 = sand.u32 %s40, 1
          %s132 = sand.u32 %s40, 1
          %s133 = smul.addr %s132, 192
          %s134 = scalar_lea.vmem [#allocation2], %s133
          %s135 = smul.u32 8, %s9
          %s136 = smul.addr %s135, 4
          %s137 = scalar_lea.vmem %s1, %s136
          // Predicated region
          $region29: #{conv_ae_forward.20} parent=27 // pred_check
            _
          $region30: #{conv_ae_forward.20} parent=27 // pred_check_branch
            %139 = sbr.rel (0) target = $region32
          $region31: #{conv_ae_forward.20} parent=27 // pred_region
            // Predicated region
            $region33: #{conv_ae_forward.20} parent=31 // pred_check
              _
            $region34: #{conv_ae_forward.20} parent=31 // pred_check_branch
              %141 = sbr.rel (0) target = $region36
            $region35: #{conv_ae_forward.20} parent=31 // pred_region
              loop: start=0, step=1, limit=1
              $region37: #{conv_ae_forward.20} parent=35 // loop_pre_header
                _
              $region38: #{conv_ae_forward.20} parent=35 // loop_header
                %s143 = sphi 0, %s147
                %p144 = scmp.ge.s32.totalorder %s143, 1
                %s148 = sphi %s137, %s137
                %s149 = sphi %s134, %s134
              $region39: #{conv_ae_forward.20} parent=35 // loop_header_branch
                %146 = sbr.rel (%p144) target = $region43
              $region40: #{conv_ae_forward.20} parent=35 // loop_body
                %v150 = vld [vmem:[%s148] sm:$0xff]
                %151 = vst [vmem:[%s149] sm:$0xff] %v150
                %v152 = vld [vmem:[%s148 + $0x8] sm:$0xff]
                %153 = vst [vmem:[%s149 + $0x8] sm:$0xff] %v152
                %v154 = vld [vmem:[%s148 + $0x10] sm:$0xff]
                %155 = vst [vmem:[%s149 + $0x10] sm:$0xff] %v154
                %v156 = vld [vmem:[%s148 + $0x18] sm:$0xff]
                %157 = vst [vmem:[%s149 + $0x18] sm:$0xff] %v156
                %v158 = vld [vmem:[%s148 + $0x40] sm:$0xff]
                %159 = vst [vmem:[%s149 + $0x20] sm:$0xff] %v158
                %v160 = vld [vmem:[%s148 + $0x48] sm:$0xff]
                %161 = vst [vmem:[%s149 + $0x28] sm:$0xff] %v160
                %v162 = vld [vmem:[%s148 + $0x50] sm:$0xff]
                %163 = vst [vmem:[%s149 + $0x30] sm:$0xff] %v162
                %v164 = vld [vmem:[%s148 + $0x58] sm:$0xff]
                %165 = vst [vmem:[%s149 + $0x38] sm:$0xff] %v164
                %v166 = vld [vmem:[%s148 + $0x80] sm:$0xff]
                %167 = vst [vmem:[%s149 + $0x40] sm:$0xff] %v166
                %v168 = vld [vmem:[%s148 + $0x88] sm:$0xff]
                %169 = vst [vmem:[%s149 + $0x48] sm:$0xff] %v168
                %v170 = vld [vmem:[%s148 + $0x90] sm:$0xff]
                %171 = vst [vmem:[%s149 + $0x50] sm:$0xff] %v170
                %v172 = vld [vmem:[%s148 + $0x98] sm:$0xff]
                %173 = vst [vmem:[%s149 + $0x58] sm:$0xff] %v172
                %v174 = vld [vmem:[%s148 + $0xc0] sm:$0xff]
                %175 = vst [vmem:[%s149 + $0x60] sm:$0xff] %v174
                %v176 = vld [vmem:[%s148 + $0xc8] sm:$0xff]
                %177 = vst [vmem:[%s149 + $0x68] sm:$0xff] %v176
                %v178 = vld [vmem:[%s148 + $0xd0] sm:$0xff]
                %179 = vst [vmem:[%s149 + $0x70] sm:$0xff] %v178
                %v180 = vld [vmem:[%s148 + $0xd8] sm:$0xff]
                %181 = vst [vmem:[%s149 + $0x78] sm:$0xff] %v180
                %v182 = vld [vmem:[%s148 + $0x100] sm:$0xff]
                %183 = vst [vmem:[%s149 + $0x80] sm:$0xff] %v182
                %v184 = vld [vmem:[%s148 + $0x108] sm:$0xff]
                %185 = vst [vmem:[%s149 + $0x88] sm:$0xff] %v184
                %v186 = vld [vmem:[%s148 + $0x110] sm:$0xff]
                %187 = vst [vmem:[%s149 + $0x90] sm:$0xff] %v186
                %v188 = vld [vmem:[%s148 + $0x118] sm:$0xff]
                %189 = vst [vmem:[%s149 + $0x98] sm:$0xff] %v188
                %v190 = vld [vmem:[%s148 + $0x140] sm:$0xff]
                %191 = vst [vmem:[%s149 + $0xa0] sm:$0xff] %v190
                %v192 = vld [vmem:[%s148 + $0x148] sm:$0xff]
                %193 = vst [vmem:[%s149 + $0xa8] sm:$0xff] %v192
                %v194 = vld [vmem:[%s148 + $0x150] sm:$0xff]
                %195 = vst [vmem:[%s149 + $0xb0] sm:$0xff] %v194
                %v196 = vld [vmem:[%s148 + $0x158] sm:$0xff]
                %197 = vst [vmem:[%s149 + $0xb8] sm:$0xff] %v196
              $region41: #{conv_ae_forward.20} parent=35 // loop_footer
                %s147 = sadd.s32 1, %s143
              $region42: #{conv_ae_forward.20} parent=35 // loop_footer_branch
                %142 = sbr.rel target = $region38
              $region43: #{conv_ae_forward.20} parent=35 // loop_exit
                _
            $region36: #{conv_ae_forward.20} parent=31 // pred_fallthru
              _
            // Predicated region
            $region44: #{conv_ae_forward.20} parent=31 // pred_check
              _
            $region45: #{conv_ae_forward.20} parent=31 // pred_check_branch
              %199 = sbr.rel target = $region47
            $region46: #{conv_ae_forward.20} parent=31 // pred_region
              _
            $region47: #{conv_ae_forward.20} parent=31 // pred_fallthru
              _
          $region32: #{conv_ae_forward.20} parent=27 // pred_fallthru
            _
          %200 = vnop
        $region28: #{conv_ae_forward.20} parent=23 // pred_fallthru
          _
      $region24: #{conv_ae_forward.20} parent=5 // pred_fallthru
        _
      %p201 = scmp.le.s32.totalorder 1, %s9
      %p202 = scmp.lt.s32.totalorder %s9, 3
      %p203 = pnand %p201, %p202
      %p204 = pneg %p203
      // Predicated region
      $region48: #{conv_ae_forward.20} parent=5 // pred_check
        _
      $region49: #{conv_ae_forward.20} parent=5 // pred_check_branch
        %206 = sbr.rel (%p203) target = $region51
      $region50: #{conv_ae_forward.20} parent=5 // pred_region
        %s207 = ssub.s32 %s9, 1
        %s208 = sand.u32 %s43, 1
        %s209 = sand.u32 %s43, 1
        %s210 = smul.addr %s209, 192
        %s211 = scalar_lea.vmem [#allocation2], %s210
        // Predicated region
        $region52: #{conv_ae_forward.20} parent=50 // pred_check
          %p212 = pneg %p56
        $region53: #{conv_ae_forward.20} parent=50 // pred_check_branch
          %214 = sbr.rel (%p212) target = $region55
        $region54: #{conv_ae_forward.20} parent=50 // pred_region
          _
        $region55: #{conv_ae_forward.20} parent=50 // pred_fallthru
          _
        %p215 = pneg %p30
        %p216 = pneg %p27
        %s217 = sand.u32 %s43, 1
        %s218 = sand.u32 %s43, 1
        %s219 = smul.addr %s218, 192
        %s220 = scalar_lea.vmem [#allocation2], %s219
        %p221 = pneg %p56
        %p222 = pneg %p53
        %p223 = pneg %p77
        %p224 = pneg %p74
        %p225 = pneg %p103
        %p226 = pneg %p100
        %s227 = smul.u32 8, %s14
        %p228 = scmp.lt.s32.totalorder %s227, 15
        %s229 = scalar_select %p228, %s227, 15
        %s230 = smul.addr %s229, 8
        %s231 = scalar_lea.vmem %s3, %s230
        %s232 = smul.u32 8, %s14
        %s233 = smul.u32 8, %s14
        %p234 = scmp.lt.s32.totalorder %s233, 15
        %s235 = scalar_select %p234, %s233, 15
        %s236 = smul.addr %s235, 8
        %s237 = scalar_lea.vmem %s3, %s236
        %s238 = smul.u32 8, %s14
        %v240 = vld [vmem:[%s0] sm:$0xf]
        %v241 = vld [vmem:[%s211] sm:$0xff]
        %v242 = vld [vmem:[%s211 + $0x8] sm:$0xff]
        %v243 = vld [vmem:[%s211 + $0x10] sm:$0xff]
        %v244 = vld [vmem:[%s211 + $0x18] sm:$0xff]
        %v245 = vld [vmem:[%s211 + $0x20] sm:$0xff]
        %v246 = vld [vmem:[%s211 + $0x28] sm:$0xff]
        %v247 = vld [vmem:[%s211 + $0x30] sm:$0xff]
        %v248 = vld [vmem:[%s211 + $0x38] sm:$0xff]
        %v249 = vld [vmem:[%s211 + $0x40] sm:$0xff]
        %v250 = vld [vmem:[%s211 + $0x48] sm:$0xff]
        %v251 = vld [vmem:[%s211 + $0x50] sm:$0xff]
        %v252 = vld [vmem:[%s211 + $0x58] sm:$0xff]
        %v253 = vld [vmem:[%s211 + $0x60] sm:$0xff]
        %v254 = vld [vmem:[%s211 + $0x68] sm:$0xff]
        %v255 = vld [vmem:[%s211 + $0x70] sm:$0xff]
        %v256 = vld [vmem:[%s211 + $0x78] sm:$0xff]
        %v257 = vld [vmem:[%s211 + $0x80] sm:$0xff]
        %v258 = vld [vmem:[%s211 + $0x88] sm:$0xff]
        %v259 = vld [vmem:[%s211 + $0x90] sm:$0xff]
        %v260 = vld [vmem:[%s211 + $0x98] sm:$0xff]
        %v261 = vld [vmem:[%s211 + $0xa0] sm:$0xff]
        %v262 = vld [vmem:[%s211 + $0xa8] sm:$0xff]
        %v263 = vld [vmem:[%s211 + $0xb0] sm:$0xff]
        %v264 = vld [vmem:[%s211 + $0xb8] sm:$0xff]
        %v265 = vld [vmem:[%s2] sm:$0xff]
        %267 = vset.pattern.permute.xlu0 0
        %268 = vperm.xlu0 %267, %v265
        %v269 = vpop.permute.xlu0 %268
        %v295 = vunpack.c.l.b16 %v241
        %v296 = vunpack.c.h.b16 %v241
        %v297 = vunpack.c.l.b16 %v242
        %v298 = vunpack.c.h.b16 %v242
        %v299 = vunpack.c.l.b16 %v243
        %v300 = vunpack.c.h.b16 %v243
        %v301 = vunpack.c.l.b16 %v244
        %v302 = vunpack.c.h.b16 %v244
        %v303 = vunpack.c.l.b16 %v245
        %v304 = vunpack.c.h.b16 %v245
        %v305 = vunpack.c.l.b16 %v246
        %v306 = vunpack.c.h.b16 %v246
        %v307 = vunpack.c.l.b16 %v247
        %v308 = vunpack.c.h.b16 %v247
        %v309 = vunpack.c.l.b16 %v248
        %v310 = vunpack.c.h.b16 %v248
        %v311 = vunpack.c.l.b16 %v249
        %v312 = vunpack.c.h.b16 %v249
        %v313 = vunpack.c.l.b16 %v250
        %v314 = vunpack.c.h.b16 %v250
        %v315 = vunpack.c.l.b16 %v251
        %v316 = vunpack.c.h.b16 %v251
        %v317 = vunpack.c.l.b16 %v252
        %v318 = vunpack.c.h.b16 %v252
        %v319 = vunpack.c.l.b16 %v253
        %v320 = vunpack.c.h.b16 %v253
        %v321 = vunpack.c.l.b16 %v254
        %v322 = vunpack.c.h.b16 %v254
        %v323 = vunpack.c.l.b16 %v255
        %v324 = vunpack.c.h.b16 %v255
        %v325 = vunpack.c.l.b16 %v256
        %v326 = vunpack.c.h.b16 %v256
        %v327 = vunpack.c.l.b16 %v257
        %v328 = vunpack.c.h.b16 %v257
        %v329 = vunpack.c.l.b16 %v258
        %v330 = vunpack.c.h.b16 %v258
        %v331 = vunpack.c.l.b16 %v259
        %v332 = vunpack.c.h.b16 %v259
        %v333 = vunpack.c.l.b16 %v260
        %v334 = vunpack.c.h.b16 %v260
        %v335 = vunpack.c.l.b16 %v261
        %v336 = vunpack.c.h.b16 %v261
        %v337 = vunpack.c.l.b16 %v262
        %v338 = vunpack.c.h.b16 %v262
        %v339 = vunpack.c.l.b16 %v263
        %v340 = vunpack.c.h.b16 %v263
        %v341 = vunpack.c.l.b16 %v264
        %v342 = vunpack.c.h.b16 %v264
        %v343 = vpack.c.b16 %v303, %v295
        %v344 = vpack.c.b16 %v304, %v296
        %v345 = vpack.c.b16 %v305, %v297
        %v346 = vpack.c.b16 %v306, %v298
        %v347 = vpack.c.b16 %v307, %v299
        %v348 = vpack.c.b16 %v308, %v300
        %v349 = vpack.c.b16 %v309, %v301
        %v350 = vpack.c.b16 %v310, %v302
        %v351 = vpack.c.b16 %v319, %v311
        %v352 = vpack.c.b16 %v320, %v312
        %v353 = vpack.c.b16 %v321, %v313
        %v354 = vpack.c.b16 %v322, %v314
        %v355 = vpack.c.b16 %v323, %v315
        %v356 = vpack.c.b16 %v324, %v316
        %v357 = vpack.c.b16 %v325, %v317
        %v358 = vpack.c.b16 %v326, %v318
        %v359 = vpack.c.b16 %v335, %v327
        %v360 = vpack.c.b16 %v336, %v328
        %v361 = vpack.c.b16 %v337, %v329
        %v362 = vpack.c.b16 %v338, %v330
        %v363 = vpack.c.b16 %v339, %v331
        %v364 = vpack.c.b16 %v340, %v332
        %v365 = vpack.c.b16 %v341, %v333
        %v366 = vpack.c.b16 %v342, %v334
        %vm391 = vcmask 392192
        %v393 = vsel %vm391, %v240, 0
        %395 = vmatprep.subr.bf16.mxu0 %v344
        %396 = vmatpush1.bf16.msra.mxu0 %v343
        %397 = vmatprep.subr.bf16.mxu0 %v352
        %398 = vmatpush1.bf16.msra.mxu0 %v351
        %399 = vmatprep.subr.bf16.mxu0 %v360
        %400 = vmatpush1.bf16.msra.mxu0 %v359
        %401 = vmatprep.subr.bf16.mxu0 0
        %402 = vmatpush1.bf16.msra.mxu0 0
        %403 = vmatprep.subr.bf16.mxu0 0
        %404 = vmatpush1.bf16.msra.mxu0 0
        %405 = vmatprep.subr.bf16.mxu0 0
        %406 = vmatpush1.bf16.msra.mxu0 0
        %407 = vmatprep.subr.bf16.mxu0 0
        %408 = vmatpush1.bf16.msra.mxu0 0
        %409 = vmatprep.subr.bf16.mxu0 0
        %410 = vmatpush1.bf16.msra.mxu0 0
        %411 = vmatprep.subr.bf16.mxu0 0
        %412 = vmatpush1.bf16.msra.mxu0 0
        %413 = vmatprep.subr.bf16.mxu0 0
        %414 = vmatpush1.bf16.msra.mxu0 0
        %415 = vmatprep.subr.bf16.mxu0 0
        %416 = vmatpush1.bf16.msra.mxu0 0
        %417 = vmatprep.subr.bf16.mxu0 0
        %418 = vmatpush1.bf16.msra.mxu0 0
        %419 = vmatprep.subr.bf16.mxu0 0
        %420 = vmatpush1.bf16.msra.mxu0 0
        %421 = vmatprep.subr.bf16.mxu0 0
        %422 = vmatpush1.bf16.msra.mxu0 0
        %423 = vmatprep.subr.bf16.mxu0 0
        %424 = vmatpush1.bf16.msra.mxu0 0
        %425 = vmatprep.subr.bf16.mxu0 0
        %426 = vmatpush1.bf16.msra.mxu0 0
        %427 = vmatprep.mubr.bf16.mxu0 0
        %428 = vmatmul.mubr.bf16.gmra.mrb[0].mxu0 %v393
        %v429 = vpop.f32.mrb[0].mxu0
        %v430 = vadd.f32 %v269, %v429
        %v431 = vpop.f32.mrb[0].mxu0
        %v432 = vadd.f32 %v269, %v431
        %v433 = vpop.f32.mrb[0].mxu0
        %v434 = vpop.f32.mrb[0].mxu0
        %435 = vdwg.mxu0
        %436 = vmatprep.subr.bf16.mxu0 %v346
        %437 = vmatpush1.bf16.msra.mxu0 %v345
        %438 = vmatprep.subr.bf16.mxu0 %v354
        %439 = vmatpush1.bf16.msra.mxu0 %v353
        %440 = vmatprep.subr.bf16.mxu0 %v362
        %441 = vmatpush1.bf16.msra.mxu0 %v361
        %442 = vmatprep.subr.bf16.mxu0 0
        %443 = vmatpush1.bf16.msra.mxu0 0
        %444 = vmatprep.subr.bf16.mxu0 0
        %445 = vmatpush1.bf16.msra.mxu0 0
        %446 = vmatprep.subr.bf16.mxu0 0
        %447 = vmatpush1.bf16.msra.mxu0 0
        %448 = vmatprep.subr.bf16.mxu0 0
        %449 = vmatpush1.bf16.msra.mxu0 0
        %450 = vmatprep.subr.bf16.mxu0 0
        %451 = vmatpush1.bf16.msra.mxu0 0
        %452 = vmatprep.subr.bf16.mxu0 0
        %453 = vmatpush1.bf16.msra.mxu0 0
        %454 = vmatprep.subr.bf16.mxu0 0
        %455 = vmatpush1.bf16.msra.mxu0 0
        %456 = vmatprep.subr.bf16.mxu0 0
        %457 = vmatpush1.bf16.msra.mxu0 0
        %458 = vmatprep.subr.bf16.mxu0 0
        %459 = vmatpush1.bf16.msra.mxu0 0
        %460 = vmatprep.subr.bf16.mxu0 0
        %461 = vmatpush1.bf16.msra.mxu0 0
        %462 = vmatprep.subr.bf16.mxu0 0
        %463 = vmatpush1.bf16.msra.mxu0 0
        %464 = vmatprep.subr.bf16.mxu0 0
        %465 = vmatpush1.bf16.msra.mxu0 0
        %466 = vmatprep.subr.bf16.mxu0 0
        %467 = vmatpush1.bf16.msra.mxu0 0
        %468 = vmatprep.mubr.bf16.mxu0 0
        %469 = vmatmul.mubr.bf16.gmra.mrb[0].mxu0 %v393
        %v470 = vpop.f32.mrb[0].mxu0
        %v471 = vadd.f32 %v269, %v470
        %v472 = vpop.f32.mrb[0].mxu0
        %v473 = vadd.f32 %v269, %v472
        %v474 = vpop.f32.mrb[0].mxu0
        %v475 = vpop.f32.mrb[0].mxu0
        %476 = vdwg.mxu0
        %477 = vmatprep.subr.bf16.mxu0 %v348
        %478 = vmatpush1.bf16.msra.mxu0 %v347
        %479 = vmatprep.subr.bf16.mxu0 %v356
        %480 = vmatpush1.bf16.msra.mxu0 %v355
        %481 = vmatprep.subr.bf16.mxu0 %v364
        %482 = vmatpush1.bf16.msra.mxu0 %v363
        %483 = vmatprep.subr.bf16.mxu0 0
        %484 = vmatpush1.bf16.msra.mxu0 0
        %485 = vmatprep.subr.bf16.mxu0 0
        %486 = vmatpush1.bf16.msra.mxu0 0
        %487 = vmatprep.subr.bf16.mxu0 0
        %488 = vmatpush1.bf16.msra.mxu0 0
        %489 = vmatprep.subr.bf16.mxu0 0
        %490 = vmatpush1.bf16.msra.mxu0 0
        %491 = vmatprep.subr.bf16.mxu0 0
        %492 = vmatpush1.bf16.msra.mxu0 0
        %493 = vmatprep.subr.bf16.mxu0 0
        %494 = vmatpush1.bf16.msra.mxu0 0
        %495 = vmatprep.subr.bf16.mxu0 0
        %496 = vmatpush1.bf16.msra.mxu0 0
        %497 = vmatprep.subr.bf16.mxu0 0
        %498 = vmatpush1.bf16.msra.mxu0 0
        %499 = vmatprep.subr.bf16.mxu0 0
        %500 = vmatpush1.bf16.msra.mxu0 0
        %501 = vmatprep.subr.bf16.mxu0 0
        %502 = vmatpush1.bf16.msra.mxu0 0
        %503 = vmatprep.subr.bf16.mxu0 0
        %504 = vmatpush1.bf16.msra.mxu0 0
        %505 = vmatprep.subr.bf16.mxu0 0
        %506 = vmatpush1.bf16.msra.mxu0 0
        %507 = vmatprep.subr.bf16.mxu0 0
        %508 = vmatpush1.bf16.msra.mxu0 0
        %509 = vmatprep.mubr.bf16.mxu0 0
        %510 = vmatmul.mubr.bf16.gmra.mrb[0].mxu0 %v393
        %v511 = vpop.f32.mrb[0].mxu0
        %v512 = vadd.f32 %v269, %v511
        %v513 = vpop.f32.mrb[0].mxu0
        %v514 = vadd.f32 %v269, %v513
        %v515 = vpop.f32.mrb[0].mxu0
        %v516 = vpop.f32.mrb[0].mxu0
        %517 = vdwg.mxu0
        %518 = vmatprep.subr.bf16.mxu0 %v350
        %519 = vmatpush1.bf16.msra.mxu0 %v349
        %520 = vmatprep.subr.bf16.mxu0 %v358
        %521 = vmatpush1.bf16.msra.mxu0 %v357
        %522 = vmatprep.subr.bf16.mxu0 %v366
        %523 = vmatpush1.bf16.msra.mxu0 %v365
        %524 = vmatprep.subr.bf16.mxu0 0
        %525 = vmatpush1.bf16.msra.mxu0 0
        %526 = vmatprep.subr.bf16.mxu0 0
        %527 = vmatpush1.bf16.msra.mxu0 0
        %528 = vmatprep.subr.bf16.mxu0 0
        %529 = vmatpush1.bf16.msra.mxu0 0
        %530 = vmatprep.subr.bf16.mxu0 0
        %531 = vmatpush1.bf16.msra.mxu0 0
        %532 = vmatprep.subr.bf16.mxu0 0
        %533 = vmatpush1.bf16.msra.mxu0 0
        %534 = vmatprep.subr.bf16.mxu0 0
        %535 = vmatpush1.bf16.msra.mxu0 0
        %536 = vmatprep.subr.bf16.mxu0 0
        %537 = vmatpush1.bf16.msra.mxu0 0
        %538 = vmatprep.subr.bf16.mxu0 0
        %539 = vmatpush1.bf16.msra.mxu0 0
        %540 = vmatprep.subr.bf16.mxu0 0
        %541 = vmatpush1.bf16.msra.mxu0 0
        %542 = vmatprep.subr.bf16.mxu0 0
        %543 = vmatpush1.bf16.msra.mxu0 0
        %544 = vmatprep.subr.bf16.mxu0 0
        %545 = vmatpush1.bf16.msra.mxu0 0
        %546 = vmatprep.subr.bf16.mxu0 0
        %547 = vmatpush1.bf16.msra.mxu0 0
        %548 = vmatprep.subr.bf16.mxu0 0
        %549 = vmatpush1.bf16.msra.mxu0 0
        %550 = vmatprep.mubr.bf16.mxu0 0
        %551 = vmatmul.mubr.bf16.gmra.mrb[0].mxu0 %v393
        %v552 = vpop.f32.mrb[0].mxu0
        %v553 = vadd.f32 %v269, %v552
        %v554 = vpop.f32.mrb[0].mxu0
        %v555 = vadd.f32 %v269, %v554
        %v556 = vpop.f32.mrb[0].mxu0
        %v557 = vpop.f32.mrb[0].mxu0
        %558 = vdwg.mxu0
        %vm559 = vcmp.ge.f32.partialorder %v430, 0.0
        %vm560 = vcmp.ge.f32.partialorder %v432, 0.0
        %vm561 = vcmp.ge.f32.partialorder %v471, 0.0
        %vm562 = vcmp.ge.f32.partialorder %v473, 0.0
        %vm563 = vcmp.ge.f32.partialorder %v512, 0.0
        %vm564 = vcmp.ge.f32.partialorder %v514, 0.0
        %vm565 = vcmp.ge.f32.partialorder %v553, 0.0
        %vm566 = vcmp.ge.f32.partialorder %v555, 0.0
        %v567 = vmul.f32 %v430, 0.1
        %v568 = vmul.f32 %v432, 0.1
        %v569 = vmul.f32 %v471, 0.1
        %v570 = vmul.f32 %v473, 0.1
        %v571 = vmul.f32 %v512, 0.1
        %v572 = vmul.f32 %v514, 0.1
        %v573 = vmul.f32 %v553, 0.1
        %v574 = vmul.f32 %v555, 0.1
        %v575 = vsel %vm559, %v430, %v567
        %v576 = vsel %vm560, %v432, %v568
        %v577 = vsel %vm561, %v471, %v569
        %v578 = vsel %vm562, %v473, %v570
        %v579 = vsel %vm563, %v512, %v571
        %v580 = vsel %vm564, %v514, %v572
        %v581 = vsel %vm565, %v553, %v573
        %v582 = vsel %vm566, %v555, %v574
        %583 = vst [vmem:[%s237] sm:$0xff] %v575
        %584 = vst [vmem:[%s237 + $0x8] sm:$0xff] %v576
        %585 = vst [vmem:[%s237 + $0x10] sm:$0xff] %v577
        %586 = vst [vmem:[%s237 + $0x18] sm:$0xff] %v578
        %587 = vst [vmem:[%s237 + $0x20] sm:$0xff] %v579
        %588 = vst [vmem:[%s237 + $0x28] sm:$0xff] %v580
        %589 = vst [vmem:[%s237 + $0x30] sm:$0xff] %v581
        %590 = vst [vmem:[%s237 + $0x38] sm:$0xff] %v582
        %s591 = smul.u32 8, %s14
        %p592 = scmp.lt.s32.totalorder %s591, 15
        %s593 = scalar_select %p592, %s591, 15
        %s594 = smul.addr %s593, 8
        %s595 = scalar_lea.vmem %s3, %s594
        // Predicated region
        $region56: #{conv_ae_forward.20} parent=50 // pred_check
          %p596 = pneg %p100
        $region57: #{conv_ae_forward.20} parent=50 // pred_check_branch
          %598 = sbr.rel (%p596) target = $region59
        $region58: #{conv_ae_forward.20} parent=50 // pred_region
          %s599 = smul.u32 8, %s14
        $region59: #{conv_ae_forward.20} parent=50 // pred_fallthru
          _
      $region51: #{conv_ae_forward.20} parent=5 // pred_fallthru
        _
      %p600 = scmp.le.s32.totalorder 2, %s9
      // Predicated region
      $region60: #{conv_ae_forward.20} parent=5 // pred_check
        %p601 = pneg %p600
      $region61: #{conv_ae_forward.20} parent=5 // pred_check_branch
        %603 = sbr.rel (%p601) target = $region63
      $region62: #{conv_ae_forward.20} parent=5 // pred_region
        %s604 = ssub.s32 %s9, 2
        // Predicated region
        $region64: #{conv_ae_forward.20} parent=62 // pred_check
          %p605 = pneg %p106
        $region65: #{conv_ae_forward.20} parent=62 // pred_check_branch
          %607 = sbr.rel (%p605) target = $region67
        $region66: #{conv_ae_forward.20} parent=62 // pred_region
          %s608 = smul.u32 8, %s15
          %p609 = scmp.lt.s32.totalorder %s608, 15
          %s610 = scalar_select %p609, %s608, 15
          %s611 = smul.addr %s610, 8
          %s612 = scalar_lea.vmem %s3, %s611
        $region67: #{conv_ae_forward.20} parent=62 // pred_fallthru
          _
      $region63: #{conv_ae_forward.20} parent=5 // pred_fallthru
        _
    $region6: #{conv_ae_forward.20} parent=1 // loop_footer
      %s13 = sadd.s32 1, %s9
    $region7: #{conv_ae_forward.20} parent=1 // loop_footer_branch
      %8 = sbr.rel target = $region3
    $region8: #{conv_ae_forward.20} parent=1 // loop_exit
      _

// kernel: conv_ae_forward.21
$region0: #{conv_ae_forward.21}
  #allocation0 [shape = 'u32[]', space=smem, size = 0x4, offset = 0x4, fixed_abs, tag = 'smem constant byte address 0x4 - core index']
  #allocation1 [shape = 'u32[144,128]{1,0:T(1,128)}', space=vmem, size = 0x12000, scoped, tag = 'internal scratch']
  %s0 = inlined_call_operand.vmem [shape: bf16[8,64], index: 0, kind: input, shape index: {}]
  %s1 = inlined_call_operand.vmem [shape: bf16[64,512], index: 1, kind: input, shape index: {}]
  %s2 = inlined_call_operand.vmem [shape: f32[8,1], index: 2, kind: input, shape index: {}]
  %s3 = inlined_call_operand.vmem [shape: f32[8,512], index: 3, kind: output, shape index: {}]
  %s4 = sld [smem:[#allocation0]]
  $region83: #{conv_ae_forward.21} parent=0
    _
  %s6 = ssub.s32 1, %s4
  %s7 = scalar_select 0, %s6, %s4
  $region1: #{conv_ae_forward.21} parent=0
    #allocation2 [shape = 'u8[65536]{0}', space=vmem, size = 0x10000, scoped, tag = 'input window, operand 1']
    loop: start=0, step=1, limit=4
    $region2: #{conv_ae_forward.21} parent=1 // loop_pre_header
      _
    $region3: #{conv_ae_forward.21} parent=1 // loop_header
      %s9 = sphi 0, %s13
      %p10 = scmp.ge.s32.totalorder %s9, 4
      %s17 = sphi 0, %s17
      %s19 = sphi 0, %s17
      %s20 = sphi 0, %s19
      %s34 = sphi 0, %s20
      %s40 = sphi 0, %s42
      %s43 = sphi 0, %s40
      %s44 = sphi 0, %s43
      %s60 = sphi 0, %s44
      %s64 = sphi 0, %s64
      %s66 = sphi 0, %s64
      %s67 = sphi 0, %s66
      %s81 = sphi 0, %s67
      %s87 = sphi 0, %s89
      %s90 = sphi 0, %s87
      %s91 = sphi 0, %s90
      %s107 = sphi 0, %s91
    $region4: #{conv_ae_forward.21} parent=1 // loop_header_branch
      %12 = sbr.rel (%p10) target = $region8
    $region5: #{conv_ae_forward.21} parent=1 // loop_body
      %s14 = ssub.s32 %s9, 1
      %s15 = ssub.s32 %s9, 2
      %s16 = sadd.s32 %s9, 1
      %s18 = sadd.s32 %s17, 1
      %p21 = scmp.eq.s32.totalorder %s9, 1
      %p22 = scmp.ne.s32.totalorder %s17, %s19
      %p23 = scmp.eq.s32.totalorder %s9, 0
      %p24 = por %p22, %p23
      %p25 = scmp.ne.s32.totalorder %s17, %s19
      %p26 = scmp.eq.s32.totalorder %s14, 1
      %p27 = por %p25, %p26
      %p28 = scmp.ne.s32.totalorder %s19, %s20
      %p29 = scmp.eq.s32.totalorder %s14, 0
      %p30 = por %p28, %p29
      %p31 = scmp.ne.s32.totalorder %s19, %s20
      %p32 = scmp.eq.s32.totalorder %s15, 1
      %p33 = por %p31, %p32
      %p35 = scmp.ne.s32.totalorder %s20, %s34
      %p36 = scmp.eq.s32.totalorder %s15, 0
      %p37 = por %p35, %p36
      %s38 = ssub.s32 %s9, %s16
      %p39 = scmp.eq.s32.totalorder %s38, 0
      %s41 = sadd.s32 %s40, 1
      %s42 = scalar_select %p39, %s40, %s41
      %p45 = pneg %p39
      %p46 = scmp.eq.s32.totalorder %s9, 1
      %p47 = por %p45, %p46
      %p48 = scmp.ne.s32.totalorder %s40, %s43
      %p49 = scmp.eq.s32.totalorder %s9, 0
      %p50 = por %p48, %p49
      %p51 = scmp.ne.s32.totalorder %s40, %s43
      %p52 = scmp.eq.s32.totalorder %s14, 1
      %p53 = por %p51, %p52
      %p54 = scmp.ne.s32.totalorder %s43, %s44
      %p55 = scmp.eq.s32.totalorder %s14, 0
      %p56 = por %p54, %p55
      %p57 = scmp.ne.s32.totalorder %s43, %s44
      %p58 = scmp.eq.s32.totalorder %s15, 1
      %p59 = por %p57, %p58
      %p61 = scmp.ne.s32.totalorder %s44, %s60
      %p62 = scmp.eq.s32.totalorder %s15, 0
      %p63 = por %p61, %p62
      %s65 = sadd.s32 %s64, 1
      %p68 = scmp.eq.s32.totalorder %s9, 1
      %p69 = scmp.ne.s32.totalorder %s64, %s66
      %p70 = scmp.eq.s32.totalorder %s9, 0
      %p71 = por %p69, %p70
      %p72 = scmp.ne.s32.totalorder %s64, %s66
      %p73 = scmp.eq.s32.totalorder %s14, 1
      %p74 = por %p72, %p73
      %p75 = scmp.ne.s32.totalorder %s66, %s67
      %p76 = scmp.eq.s32.totalorder %s14, 0
      %p77 = por %p75, %p76
      %p78 = scmp.ne.s32.totalorder %s66, %s67
      %p79 = scmp.eq.s32.totalorder %s15, 1
      %p80 = por %p78, %p79
      %p82 = scmp.ne.s32.totalorder %s67, %s81
      %p83 = scmp.eq.s32.totalorder %s15, 0
      %p84 = por %p82, %p83
      %s85 = ssub.s32 %s9, %s16
      %p86 = scmp.eq.s32.totalorder %s85, 0
      %s88 = sadd.s32 %s87, 1
      %s89 = scalar_select %p86, %s87, %s88
      %p92 = pneg %p86
      %p93 = scmp.eq.s32.totalorder %s9, 1
      %p94 = por %p92, %p93
      %p95 = scmp.ne.s32.totalorder %s87, %s90
      %p96 = scmp.eq.s32.totalorder %s9, 0
      %p97 = por %p95, %p96
      %p98 = scmp.ne.s32.totalorder %s87, %s90
      %p99 = scmp.eq.s32.totalorder %s14, 1
      %p100 = por %p98, %p99
      %p101 = scmp.ne.s32.totalorder %s90, %s91
      %p102 = scmp.eq.s32.totalorder %s14, 0
      %p103 = por %p101, %p102
      %p104 = scmp.ne.s32.totalorder %s90, %s91
      %p105 = scmp.eq.s32.totalorder %s15, 1
      %p106 = por %p104, %p105
      %p108 = scmp.ne.s32.totalorder %s91, %s107
      %p109 = scmp.eq.s32.totalorder %s15, 0
      %p110 = por %p108, %p109
      %p111 = scmp.le.s32.totalorder 1, %s9
      %p112 = scmp.lt.s32.totalorder %s9, 3
      %p113 = pnand %p111, %p112
      %p114 = pneg %p113
      // Predicated region
      $region9: #{conv_ae_forward.21} parent=5 // pred_check
        _
      $region10: #{conv_ae_forward.21} parent=5 // pred_check_branch
        %116 = sbr.rel (%p113) target = $region12
      $region11: #{conv_ae_forward.21} parent=5 // pred_region
        %s117 = ssub.s32 %s9, 1
        // Predicated region
        $region13: #{conv_ae_forward.21} parent=11 // pred_check
          %p118 = pneg %p30
        $region14: #{conv_ae_forward.21} parent=11 // pred_check_branch
          %120 = sbr.rel (%p118) target = $region16
        $region15: #{conv_ae_forward.21} parent=11 // pred_region
          _
        $region16: #{conv_ae_forward.21} parent=11 // pred_fallthru
          _
        // Predicated region
        $region17: #{conv_ae_forward.21} parent=11 // pred_check
          %p121 = pneg %p77
        $region18: #{conv_ae_forward.21} parent=11 // pred_check_branch
          %123 = sbr.rel (%p121) target = $region20
        $region19: #{conv_ae_forward.21} parent=11 // pred_region
          _
        $region20: #{conv_ae_forward.21} parent=11 // pred_fallthru
          _
      $region12: #{conv_ae_forward.21} parent=5 // pred_fallthru
        _
      %p124 = scmp.lt.s32.totalorder %s9, 2
      // Predicated region
      $region21: #{conv_ae_forward.21} parent=5 // pred_check
        %p125 = pneg %p124
      $region22: #{conv_ae_forward.21} parent=5 // pred_check_branch
        %127 = sbr.rel (%p125) target = $region24
      $region23: #{conv_ae_forward.21} parent=5 // pred_region
        // Predicated region
        $region25: #{conv_ae_forward.21} parent=23 // pred_check
          %p128 = pneg %p50
        $region26: #{conv_ae_forward.21} parent=23 // pred_check_branch
          %130 = sbr.rel (%p128) target = $region28
        $region27: #{conv_ae_forward.21} parent=23 // pred_region
          %s131 = sand.u32 %s40, 1
          %s132 = sand.u32 %s40, 1
          %s133 = smul.addr %s132, 64
          %s134 = scalar_lea.vmem [#allocation2], %s133
          %s135 = smul.u32 2, %s9
          %s136 = smul.addr %s135, 4
          %s137 = scalar_lea.vmem %s1, %s136
          // Predicated region
          $region29: #{conv_ae_forward.21} parent=27 // pred_check
            _
          $region30: #{conv_ae_forward.21} parent=27 // pred_check_branch
            %139 = sbr.rel (0) target = $region32
          $region31: #{conv_ae_forward.21} parent=27 // pred_region
            // Predicated region
            $region33: #{conv_ae_forward.21} parent=31 // pred_check
              _
            $region34: #{conv_ae_forward.21} parent=31 // pred_check_branch
              %141 = sbr.rel (0) target = $region36
            $region35: #{conv_ae_forward.21} parent=31 // pred_region
              // Predicated region
              $region48: #{conv_ae_forward.21} parent=35 // pred_check
                _
              $region49: #{conv_ae_forward.21} parent=35 // pred_check_branch
                %170 = sbr.rel (0) target = $region51
              $region50: #{conv_ae_forward.21} parent=35 // pred_region
                loop: start=0, step=1, limit=1
                $region52: #{conv_ae_forward.21} parent=50 // loop_pre_header
                  _
                $region53: #{conv_ae_forward.21} parent=50 // loop_header
                  %s172 = sphi 0, %s176
                  %p173 = scmp.ge.s32.totalorder %s172, 1
                  %s177 = sphi %s137, %s137
                  %s178 = sphi %s134, %s134
                $region54: #{conv_ae_forward.21} parent=50 // loop_header_branch
                  %175 = sbr.rel (%p173) target = $region58
                $region55: #{conv_ae_forward.21} parent=50 // loop_body
                  %v179 = vld [vmem:[%s177] sm:$0xff]
                  %180 = vst [vmem:[%s178] sm:$0xff] %v179
                  %v181 = vld [vmem:[%s177 + $0x10] sm:$0xff]
                  %182 = vst [vmem:[%s178 + $0x8] sm:$0xff] %v181
                  %v183 = vld [vmem:[%s177 + $0x20] sm:$0xff]
                  %184 = vst [vmem:[%s178 + $0x10] sm:$0xff] %v183
                  %v185 = vld [vmem:[%s177 + $0x30] sm:$0xff]
                  %186 = vst [vmem:[%s178 + $0x18] sm:$0xff] %v185
                  %v187 = vld [vmem:[%s177 + $0x40] sm:$0xff]
                  %188 = vst [vmem:[%s178 + $0x20] sm:$0xff] %v187
                  %v189 = vld [vmem:[%s177 + $0x50] sm:$0xff]
                  %190 = vst [vmem:[%s178 + $0x28] sm:$0xff] %v189
                  %v191 = vld [vmem:[%s177 + $0x60] sm:$0xff]
                  %192 = vst [vmem:[%s178 + $0x30] sm:$0xff] %v191
                  %v193 = vld [vmem:[%s177 + $0x70] sm:$0xff]
                  %194 = vst [vmem:[%s178 + $0x38] sm:$0xff] %v193
                $region56: #{conv_ae_forward.21} parent=50 // loop_footer
                  %s176 = sadd.s32 1, %s172
                $region57: #{conv_ae_forward.21} parent=50 // loop_footer_branch
                  %171 = sbr.rel target = $region53
                $region58: #{conv_ae_forward.21} parent=50 // loop_exit
                  _
              $region51: #{conv_ae_forward.21} parent=35 // pred_fallthru
                _
              // Predicated region
              $region59: #{conv_ae_forward.21} parent=35 // pred_check
                _
              $region60: #{conv_ae_forward.21} parent=35 // pred_check_branch
                %196 = sbr.rel target = $region62
              $region61: #{conv_ae_forward.21} parent=35 // pred_region
                _
              $region62: #{conv_ae_forward.21} parent=35 // pred_fallthru
                _
            $region36: #{conv_ae_forward.21} parent=31 // pred_fallthru
              _
            // Predicated region
            $region37: #{conv_ae_forward.21} parent=31 // pred_check
              _
            $region38: #{conv_ae_forward.21} parent=31 // pred_check_branch
              %143 = sbr.rel target = $region40
            $region39: #{conv_ae_forward.21} parent=31 // pred_region
              loop: start=0, step=1, limit=1
              $region41: #{conv_ae_forward.21} parent=39 // loop_pre_header
                _
              $region42: #{conv_ae_forward.21} parent=39 // loop_header
                %s146 = sphi 0, %s150
                %p147 = scmp.ge.s32.totalorder %s146, 1
                %s151 = sphi %s137, %s137
                %s152 = sphi %s134, %s134
              $region43: #{conv_ae_forward.21} parent=39 // loop_header_branch
                %149 = sbr.rel (%p147) target = $region47
              $region44: #{conv_ae_forward.21} parent=39 // loop_body
                %v153 = vld [vmem:[%s151] sm:$0xff]
                %154 = vst [vmem:[%s152] sm:$0xff] %v153
                %v155 = vld [vmem:[%s151 + $0x10] sm:$0xff]
                %156 = vst [vmem:[%s152 + $0x8] sm:$0xff] %v155
                %v157 = vld [vmem:[%s151 + $0x20] sm:$0xff]
                %158 = vst [vmem:[%s152 + $0x10] sm:$0xff] %v157
                %v159 = vld [vmem:[%s151 + $0x30] sm:$0xff]
                %160 = vst [vmem:[%s152 + $0x18] sm:$0xff] %v159
                %v161 = vld [vmem:[%s151 + $0x40] sm:$0xff]
                %162 = vst [vmem:[%s152 + $0x20] sm:$0xff] %v161
                %v163 = vld [vmem:[%s151 + $0x50] sm:$0xff]
                %164 = vst [vmem:[%s152 + $0x28] sm:$0xff] %v163
                %v165 = vld [vmem:[%s151 + $0x60] sm:$0xff]
                %166 = vst [vmem:[%s152 + $0x30] sm:$0xff] %v165
                %v167 = vld [vmem:[%s151 + $0x70] sm:$0xff]
                %168 = vst [vmem:[%s152 + $0x38] sm:$0xff] %v167
              $region45: #{conv_ae_forward.21} parent=39 // loop_footer
                %s150 = sadd.s32 1, %s146
              $region46: #{conv_ae_forward.21} parent=39 // loop_footer_branch
                %145 = sbr.rel target = $region42
              $region47: #{conv_ae_forward.21} parent=39 // loop_exit
                _
            $region40: #{conv_ae_forward.21} parent=31 // pred_fallthru
              _
          $region32: #{conv_ae_forward.21} parent=27 // pred_fallthru
            _
          %197 = vnop
        $region28: #{conv_ae_forward.21} parent=23 // pred_fallthru
          _
      $region24: #{conv_ae_forward.21} parent=5 // pred_fallthru
        _
      %p198 = scmp.le.s32.totalorder 1, %s9
      %p199 = scmp.lt.s32.totalorder %s9, 3
      %p200 = pnand %p198, %p199
      %p201 = pneg %p200
      // Predicated region
      $region63: #{conv_ae_forward.21} parent=5 // pred_check
        _
      $region64: #{conv_ae_forward.21} parent=5 // pred_check_branch
        %203 = sbr.rel (%p200) target = $region66
      $region65: #{conv_ae_forward.21} parent=5 // pred_region
        %s204 = ssub.s32 %s9, 1
        %s205 = sand.u32 %s43, 1
        %s206 = sand.u32 %s43, 1
        %s207 = smul.addr %s206, 64
        %s208 = scalar_lea.vmem [#allocation2], %s207
        // Predicated region
        $region67: #{conv_ae_forward.21} parent=65 // pred_check
          %p209 = pneg %p56
        $region68: #{conv_ae_forward.21} parent=65 // pred_check_branch
          %211 = sbr.rel (%p209) target = $region70
        $region69: #{conv_ae_forward.21} parent=65 // pred_region
          _
        $region70: #{conv_ae_forward.21} parent=65 // pred_fallthru
          _
        %p212 = pneg %p30
        %p213 = pneg %p27
        %s214 = sand.u32 %s43, 1
        %s215 = sand.u32 %s43, 1
        %s216 = smul.addr %s215, 64
        %s217 = scalar_lea.vmem [#allocation2], %s216
        %p218 = pneg %p56
        %p219 = pneg %p53
        %p220 = pneg %p77
        %p221 = pneg %p74
        %p222 = pneg %p103
        %p223 = pneg %p100
        %s224 = smul.u32 2, %s14
        %p225 = scmp.lt.s32.totalorder %s224, 3
        %s226 = scalar_select %p225, %s224, 3
        %s227 = smul.addr %s226, 8
        %s228 = scalar_lea.vmem %s3, %s227
        %s229 = smul.u32 2, %s14
        %s230 = smul.u32 2, %s14
        %p231 = scmp.lt.s32.totalorder %s230, 3
        %s232 = scalar_select %p231, %s230, 3
        %s233 = smul.addr %s232, 8
        %s234 = scalar_lea.vmem %s3, %s233
        %s235 = smul.u32 2, %s14
        %v237 = vld [vmem:[%s0] sm:$0xf]
        %v238 = vld [vmem:[%s208] sm:$0xff]
        %v239 = vld [vmem:[%s208 + $0x8] sm:$0xff]
        %v240 = vld [vmem:[%s208 + $0x10] sm:$0xff]
        %v241 = vld [vmem:[%s208 + $0x18] sm:$0xff]
        %v242 = vld [vmem:[%s208 + $0x20] sm:$0xff]
        %v243 = vld [vmem:[%s208 + $0x28] sm:$0xff]
        %v244 = vld [vmem:[%s208 + $0x30] sm:$0xff]
        %v245 = vld [vmem:[%s208 + $0x38] sm:$0xff]
        %v246 = vld [vmem:[%s2] sm:$0xff]
        %248 = vset.pattern.permute.xlu0 0
        %249 = vperm.xlu0 %248, %v246
        %v250 = vpop.permute.xlu0 %249
        %v260 = vunpack.c.l.b16 %v238
        %v261 = vunpack.c.h.b16 %v238
        %v262 = vunpack.c.l.b16 %v239
        %v263 = vunpack.c.h.b16 %v239
        %v264 = vunpack.c.l.b16 %v240
        %v265 = vunpack.c.h.b16 %v240
        %v266 = vunpack.c.l.b16 %v241
        %v267 = vunpack.c.h.b16 %v241
        %v268 = vunpack.c.l.b16 %v242
        %v269 = vunpack.c.h.b16 %v242
        %v270 = vunpack.c.l.b16 %v243
        %v271 = vunpack.c.h.b16 %v243
        %v272 = vunpack.c.l.b16 %v244
        %v273 = vunpack.c.h.b16 %v244
        %v274 = vunpack.c.l.b16 %v245
        %v275 = vunpack.c.h.b16 %v245
        %v276 = vpack.c.b16 %v262, %v260
        %v277 = vpack.c.b16 %v263, %v261
        %v278 = vpack.c.b16 %v266, %v264
        %v279 = vpack.c.b16 %v267, %v265
        %v280 = vpack.c.b16 %v270, %v268
        %v281 = vpack.c.b16 %v271, %v269
        %v282 = vpack.c.b16 %v274, %v272
        %v283 = vpack.c.b16 %v275, %v273
        %vm292 = vcmask 523264
        %v294 = vsel %vm292, %v237, 0
        %296 = vmatprep.subr.bf16.mxu0 %v277
        %297 = vmatpush1.bf16.msra.mxu0 %v276
        %298 = vmatprep.subr.bf16.mxu0 %v279
        %299 = vmatpush1.bf16.msra.mxu0 %v278
        %300 = vmatprep.subr.bf16.mxu0 %v281
        %301 = vmatpush1.bf16.msra.mxu0 %v280
        %302 = vmatprep.subr.bf16.mxu0 %v283
        %303 = vmatpush1.bf16.msra.mxu0 %v282
        %304 = vmatprep.subr.bf16.mxu0 0
        %305 = vmatpush1.bf16.msra.mxu0 0
        %306 = vmatprep.subr.bf16.mxu0 0
        %307 = vmatpush1.bf16.msra.mxu0 0
        %308 = vmatprep.subr.bf16.mxu0 0
        %309 = vmatpush1.bf16.msra.mxu0 0
        %310 = vmatprep.subr.bf16.mxu0 0
        %311 = vmatpush1.bf16.msra.mxu0 0
        %312 = vmatprep.subr.bf16.mxu0 0
        %313 = vmatpush1.bf16.msra.mxu0 0
        %314 = vmatprep.subr.bf16.mxu0 0
        %315 = vmatpush1.bf16.msra.mxu0 0
        %316 = vmatprep.subr.bf16.mxu0 0
        %317 = vmatpush1.bf16.msra.mxu0 0
        %318 = vmatprep.subr.bf16.mxu0 0
        %319 = vmatpush1.bf16.msra.mxu0 0
        %320 = vmatprep.subr.bf16.mxu0 0
        %321 = vmatpush1.bf16.msra.mxu0 0
        %322 = vmatprep.subr.bf16.mxu0 0
        %323 = vmatpush1.bf16.msra.mxu0 0
        %324 = vmatprep.subr.bf16.mxu0 0
        %325 = vmatpush1.bf16.msra.mxu0 0
        %326 = vmatprep.subr.bf16.mxu0 0
        %327 = vmatpush1.bf16.msra.mxu0 0
        %328 = vmatprep.mubr.bf16.mxu0 0
        %329 = vmatmul.mubr.bf16.gmra.mrb[0].mxu0 %v294
        %v330 = vpop.f32.mrb[0].mxu0
        %v331 = vadd.f32 %v250, %v330
        %v332 = vpop.f32.mrb[0].mxu0
        %v333 = vadd.f32 %v250, %v332
        %v334 = vpop.f32.mrb[0].mxu0
        %v335 = vpop.f32.mrb[0].mxu0
        %336 = vdwg.mxu0
        %vm337 = vcmp.ge.f32.partialorder %v331, 0.0
        %vm338 = vcmp.ge.f32.partialorder %v333, 0.0
        %v339 = vmul.f32 %v331, 0.1
        %v340 = vmul.f32 %v333, 0.1
        %v341 = vsel %vm337, %v331, %v339
        %v342 = vsel %vm338, %v333, %v340
        %343 = vst [vmem:[%s234] sm:$0xff] %v341
        %344 = vst [vmem:[%s234 + $0x8] sm:$0xff] %v342
        %s345 = smul.u32 2, %s14
        %p346 = scmp.lt.s32.totalorder %s345, 3
        %s347 = scalar_select %p346, %s345, 3
        %s348 = smul.addr %s347, 8
        %s349 = scalar_lea.vmem %s3, %s348
        // Predicated region
        $region71: #{conv_ae_forward.21} parent=65 // pred_check
          %p350 = pneg %p100
        $region72: #{conv_ae_forward.21} parent=65 // pred_check_branch
          %352 = sbr.rel (%p350) target = $region74
        $region73: #{conv_ae_forward.21} parent=65 // pred_region
          %s353 = smul.u32 2, %s14
        $region74: #{conv_ae_forward.21} parent=65 // pred_fallthru
          _
      $region66: #{conv_ae_forward.21} parent=5 // pred_fallthru
        _
      %p354 = scmp.le.s32.totalorder 2, %s9
      // Predicated region
      $region75: #{conv_ae_forward.21} parent=5 // pred_check
        %p355 = pneg %p354
      $region76: #{conv_ae_forward.21} parent=5 // pred_check_branch
        %357 = sbr.rel (%p355) target = $region78
      $region77: #{conv_ae_forward.21} parent=5 // pred_region
        %s358 = ssub.s32 %s9, 2
        // Predicated region
        $region79: #{conv_ae_forward.21} parent=77 // pred_check
          %p359 = pneg %p106
        $region80: #{conv_ae_forward.21} parent=77 // pred_check_branch
          %361 = sbr.rel (%p359) target = $region82
        $region81: #{conv_ae_forward.21} parent=77 // pred_region
          %s362 = smul.u32 2, %s15
          %p363 = scmp.lt.s32.totalorder %s362, 3
          %s364 = scalar_select %p363, %s362, 3
          %s365 = smul.addr %s364, 8
          %s366 = scalar_lea.vmem %s3, %s365
        $region82: #{conv_ae_forward.21} parent=77 // pred_fallthru
          _
      $region78: #{conv_ae_forward.21} parent=5 // pred_fallthru
        _
    $region6: #{conv_ae_forward.21} parent=1 // loop_footer
      %s13 = sadd.s32 1, %s9
    $region7: #{conv_ae_forward.21} parent=1 // loop_footer_branch
      %8 = sbr.rel target = $region3
    $region8: #{conv_ae_forward.21} parent=1 // loop_exit
      _

// kernel: conv_ae_forward.22
$region0: #{conv_ae_forward.22}
  #allocation0 [shape = 'u32[]', space=smem, size = 0x4, offset = 0x4, fixed_abs, tag = 'smem constant byte address 0x4 - core index']
  #allocation1 [shape = 'u32[144,128]{1,0:T(1,128)}', space=vmem, size = 0x12000, scoped, tag = 'internal scratch']
  %s0 = inlined_call_operand.vmem [shape: bf16[8,80], index: 0, kind: input, shape index: {}]
  %s1 = inlined_call_operand.vmem [shape: bf16[80,512], index: 1, kind: input, shape index: {}]
  %s2 = inlined_call_operand.vmem [shape: f32[8,1], index: 2, kind: input, shape index: {}]
  %s3 = inlined_call_operand.vmem [shape: f32[8,512], index: 3, kind: output, shape index: {}]
  %s4 = sld [smem:[#allocation0]]
  $region83: #{conv_ae_forward.22} parent=0
    _
  %s6 = ssub.s32 1, %s4
  %s7 = scalar_select 0, %s6, %s4
  $region1: #{conv_ae_forward.22} parent=0
    #allocation2 [shape = 'u8[81920]{0}', space=vmem, size = 0x14000, scoped, tag = 'input window, operand 1']
    loop: start=0, step=1, limit=4
    $region2: #{conv_ae_forward.22} parent=1 // loop_pre_header
      _
    $region3: #{conv_ae_forward.22} parent=1 // loop_header
      %s9 = sphi 0, %s13
      %p10 = scmp.ge.s32.totalorder %s9, 4
      %s17 = sphi 0, %s17
      %s19 = sphi 0, %s17
      %s20 = sphi 0, %s19
      %s34 = sphi 0, %s20
      %s40 = sphi 0, %s42
      %s43 = sphi 0, %s40
      %s44 = sphi 0, %s43
      %s60 = sphi 0, %s44
      %s64 = sphi 0, %s64
      %s66 = sphi 0, %s64
      %s67 = sphi 0, %s66
      %s81 = sphi 0, %s67
      %s87 = sphi 0, %s89
      %s90 = sphi 0, %s87
      %s91 = sphi 0, %s90
      %s107 = sphi 0, %s91
    $region4: #{conv_ae_forward.22} parent=1 // loop_header_branch
      %12 = sbr.rel (%p10) target = $region8
    $region5: #{conv_ae_forward.22} parent=1 // loop_body
      %s14 = ssub.s32 %s9, 1
      %s15 = ssub.s32 %s9, 2
      %s16 = sadd.s32 %s9, 1
      %s18 = sadd.s32 %s17, 1
      %p21 = scmp.eq.s32.totalorder %s9, 1
      %p22 = scmp.ne.s32.totalorder %s17, %s19
      %p23 = scmp.eq.s32.totalorder %s9, 0
      %p24 = por %p22, %p23
      %p25 = scmp.ne.s32.totalorder %s17, %s19
      %p26 = scmp.eq.s32.totalorder %s14, 1
      %p27 = por %p25, %p26
      %p28 = scmp.ne.s32.totalorder %s19, %s20
      %p29 = scmp.eq.s32.totalorder %s14, 0
      %p30 = por %p28, %p29
      %p31 = scmp.ne.s32.totalorder %s19, %s20
      %p32 = scmp.eq.s32.totalorder %s15, 1
      %p33 = por %p31, %p32
      %p35 = scmp.ne.s32.totalorder %s20, %s34
      %p36 = scmp.eq.s32.totalorder %s15, 0
      %p37 = por %p35, %p36
      %s38 = ssub.s32 %s9, %s16
      %p39 = scmp.eq.s32.totalorder %s38, 0
      %s41 = sadd.s32 %s40, 1
      %s42 = scalar_select %p39, %s40, %s41
      %p45 = pneg %p39
      %p46 = scmp.eq.s32.totalorder %s9, 1
      %p47 = por %p45, %p46
      %p48 = scmp.ne.s32.totalorder %s40, %s43
      %p49 = scmp.eq.s32.totalorder %s9, 0
      %p50 = por %p48, %p49
      %p51 = scmp.ne.s32.totalorder %s40, %s43
      %p52 = scmp.eq.s32.totalorder %s14, 1
      %p53 = por %p51, %p52
      %p54 = scmp.ne.s32.totalorder %s43, %s44
      %p55 = scmp.eq.s32.totalorder %s14, 0
      %p56 = por %p54, %p55
      %p57 = scmp.ne.s32.totalorder %s43, %s44
      %p58 = scmp.eq.s32.totalorder %s15, 1
      %p59 = por %p57, %p58
      %p61 = scmp.ne.s32.totalorder %s44, %s60
      %p62 = scmp.eq.s32.totalorder %s15, 0
      %p63 = por %p61, %p62
      %s65 = sadd.s32 %s64, 1
      %p68 = scmp.eq.s32.totalorder %s9, 1
      %p69 = scmp.ne.s32.totalorder %s64, %s66
      %p70 = scmp.eq.s32.totalorder %s9, 0
      %p71 = por %p69, %p70
      %p72 = scmp.ne.s32.totalorder %s64, %s66
      %p73 = scmp.eq.s32.totalorder %s14, 1
      %p74 = por %p72, %p73
      %p75 = scmp.ne.s32.totalorder %s66, %s67
      %p76 = scmp.eq.s32.totalorder %s14, 0
      %p77 = por %p75, %p76
      %p78 = scmp.ne.s32.totalorder %s66, %s67
      %p79 = scmp.eq.s32.totalorder %s15, 1
      %p80 = por %p78, %p79
      %p82 = scmp.ne.s32.totalorder %s67, %s81
      %p83 = scmp.eq.s32.totalorder %s15, 0
      %p84 = por %p82, %p83
      %s85 = ssub.s32 %s9, %s16
      %p86 = scmp.eq.s32.totalorder %s85, 0
      %s88 = sadd.s32 %s87, 1
      %s89 = scalar_select %p86, %s87, %s88
      %p92 = pneg %p86
      %p93 = scmp.eq.s32.totalorder %s9, 1
      %p94 = por %p92, %p93
      %p95 = scmp.ne.s32.totalorder %s87, %s90
      %p96 = scmp.eq.s32.totalorder %s9, 0
      %p97 = por %p95, %p96
      %p98 = scmp.ne.s32.totalorder %s87, %s90
      %p99 = scmp.eq.s32.totalorder %s14, 1
      %p100 = por %p98, %p99
      %p101 = scmp.ne.s32.totalorder %s90, %s91
      %p102 = scmp.eq.s32.totalorder %s14, 0
      %p103 = por %p101, %p102
      %p104 = scmp.ne.s32.totalorder %s90, %s91
      %p105 = scmp.eq.s32.totalorder %s15, 1
      %p106 = por %p104, %p105
      %p108 = scmp.ne.s32.totalorder %s91, %s107
      %p109 = scmp.eq.s32.totalorder %s15, 0
      %p110 = por %p108, %p109
      %p111 = scmp.le.s32.totalorder 1, %s9
      %p112 = scmp.lt.s32.totalorder %s9, 3
      %p113 = pnand %p111, %p112
      %p114 = pneg %p113
      // Predicated region
      $region9: #{conv_ae_forward.22} parent=5 // pred_check
        _
      $region10: #{conv_ae_forward.22} parent=5 // pred_check_branch
        %116 = sbr.rel (%p113) target = $region12
      $region11: #{conv_ae_forward.22} parent=5 // pred_region
        %s117 = ssub.s32 %s9, 1
        // Predicated region
        $region13: #{conv_ae_forward.22} parent=11 // pred_check
          %p118 = pneg %p30
        $region14: #{conv_ae_forward.22} parent=11 // pred_check_branch
          %120 = sbr.rel (%p118) target = $region16
        $region15: #{conv_ae_forward.22} parent=11 // pred_region
          _
        $region16: #{conv_ae_forward.22} parent=11 // pred_fallthru
          _
        // Predicated region
        $region17: #{conv_ae_forward.22} parent=11 // pred_check
          %p121 = pneg %p77
        $region18: #{conv_ae_forward.22} parent=11 // pred_check_branch
          %123 = sbr.rel (%p121) target = $region20
        $region19: #{conv_ae_forward.22} parent=11 // pred_region
          _
        $region20: #{conv_ae_forward.22} parent=11 // pred_fallthru
          _
      $region12: #{conv_ae_forward.22} parent=5 // pred_fallthru
        _
      %p124 = scmp.lt.s32.totalorder %s9, 2
      // Predicated region
      $region21: #{conv_ae_forward.22} parent=5 // pred_check
        %p125 = pneg %p124
      $region22: #{conv_ae_forward.22} parent=5 // pred_check_branch
        %127 = sbr.rel (%p125) target = $region24
      $region23: #{conv_ae_forward.22} parent=5 // pred_region
        // Predicated region
        $region25: #{conv_ae_forward.22} parent=23 // pred_check
          %p128 = pneg %p50
        $region26: #{conv_ae_forward.22} parent=23 // pred_check_branch
          %130 = sbr.rel (%p128) target = $region28
        $region27: #{conv_ae_forward.22} parent=23 // pred_region
          %s131 = sand.u32 %s40, 1
          %s132 = sand.u32 %s40, 1
          %s133 = smul.addr %s132, 80
          %s134 = scalar_lea.vmem [#allocation2], %s133
          %s135 = smul.u32 2, %s9
          %s136 = smul.addr %s135, 4
          %s137 = scalar_lea.vmem %s1, %s136
          // Predicated region
          $region29: #{conv_ae_forward.22} parent=27 // pred_check
            _
          $region30: #{conv_ae_forward.22} parent=27 // pred_check_branch
            %139 = sbr.rel (0) target = $region32
          $region31: #{conv_ae_forward.22} parent=27 // pred_region
            // Predicated region
            $region33: #{conv_ae_forward.22} parent=31 // pred_check
              _
            $region34: #{conv_ae_forward.22} parent=31 // pred_check_branch
              %141 = sbr.rel (0) target = $region36
            $region35: #{conv_ae_forward.22} parent=31 // pred_region
              // Predicated region
              $region48: #{conv_ae_forward.22} parent=35 // pred_check
                _
              $region49: #{conv_ae_forward.22} parent=35 // pred_check_branch
                %174 = sbr.rel (0) target = $region51
              $region50: #{conv_ae_forward.22} parent=35 // pred_region
                loop: start=0, step=1, limit=1
                $region52: #{conv_ae_forward.22} parent=50 // loop_pre_header
                  _
                $region53: #{conv_ae_forward.22} parent=50 // loop_header
                  %s176 = sphi 0, %s180
                  %p177 = scmp.ge.s32.totalorder %s176, 1
                  %s181 = sphi %s137, %s137
                  %s182 = sphi %s134, %s134
                $region54: #{conv_ae_forward.22} parent=50 // loop_header_branch
                  %179 = sbr.rel (%p177) target = $region58
                $region55: #{conv_ae_forward.22} parent=50 // loop_body
                  %v183 = vld [vmem:[%s181] sm:$0xff]
                  %184 = vst [vmem:[%s182] sm:$0xff] %v183
                  %v185 = vld [vmem:[%s181 + $0x10] sm:$0xff]
                  %186 = vst [vmem:[%s182 + $0x8] sm:$0xff] %v185
                  %v187 = vld [vmem:[%s181 + $0x20] sm:$0xff]
                  %188 = vst [vmem:[%s182 + $0x10] sm:$0xff] %v187
                  %v189 = vld [vmem:[%s181 + $0x30] sm:$0xff]
                  %190 = vst [vmem:[%s182 + $0x18] sm:$0xff] %v189
                  %v191 = vld [vmem:[%s181 + $0x40] sm:$0xff]
                  %192 = vst [vmem:[%s182 + $0x20] sm:$0xff] %v191
                  %v193 = vld [vmem:[%s181 + $0x50] sm:$0xff]
                  %194 = vst [vmem:[%s182 + $0x28] sm:$0xff] %v193
                  %v195 = vld [vmem:[%s181 + $0x60] sm:$0xff]
                  %196 = vst [vmem:[%s182 + $0x30] sm:$0xff] %v195
                  %v197 = vld [vmem:[%s181 + $0x70] sm:$0xff]
                  %198 = vst [vmem:[%s182 + $0x38] sm:$0xff] %v197
                  %v199 = vld [vmem:[%s181 + $0x80] sm:$0xff]
                  %200 = vst [vmem:[%s182 + $0x40] sm:$0xff] %v199
                  %v201 = vld [vmem:[%s181 + $0x90] sm:$0xff]
                  %202 = vst [vmem:[%s182 + $0x48] sm:$0xff] %v201
                $region56: #{conv_ae_forward.22} parent=50 // loop_footer
                  %s180 = sadd.s32 1, %s176
                $region57: #{conv_ae_forward.22} parent=50 // loop_footer_branch
                  %175 = sbr.rel target = $region53
                $region58: #{conv_ae_forward.22} parent=50 // loop_exit
                  _
              $region51: #{conv_ae_forward.22} parent=35 // pred_fallthru
                _
              // Predicated region
              $region59: #{conv_ae_forward.22} parent=35 // pred_check
                _
              $region60: #{conv_ae_forward.22} parent=35 // pred_check_branch
                %204 = sbr.rel target = $region62
              $region61: #{conv_ae_forward.22} parent=35 // pred_region
                _
              $region62: #{conv_ae_forward.22} parent=35 // pred_fallthru
                _
            $region36: #{conv_ae_forward.22} parent=31 // pred_fallthru
              _
            // Predicated region
            $region37: #{conv_ae_forward.22} parent=31 // pred_check
              _
            $region38: #{conv_ae_forward.22} parent=31 // pred_check_branch
              %143 = sbr.rel target = $region40
            $region39: #{conv_ae_forward.22} parent=31 // pred_region
              loop: start=0, step=1, limit=1
              $region41: #{conv_ae_forward.22} parent=39 // loop_pre_header
                _
              $region42: #{conv_ae_forward.22} parent=39 // loop_header
                %s146 = sphi 0, %s150
                %p147 = scmp.ge.s32.totalorder %s146, 1
                %s151 = sphi %s137, %s137
                %s152 = sphi %s134, %s134
              $region43: #{conv_ae_forward.22} parent=39 // loop_header_branch
                %149 = sbr.rel (%p147) target = $region47
              $region44: #{conv_ae_forward.22} parent=39 // loop_body
                %v153 = vld [vmem:[%s151] sm:$0xff]
                %154 = vst [vmem:[%s152] sm:$0xff] %v153
                %v155 = vld [vmem:[%s151 + $0x10] sm:$0xff]
                %156 = vst [vmem:[%s152 + $0x8] sm:$0xff] %v155
                %v157 = vld [vmem:[%s151 + $0x20] sm:$0xff]
                %158 = vst [vmem:[%s152 + $0x10] sm:$0xff] %v157
                %v159 = vld [vmem:[%s151 + $0x30] sm:$0xff]
                %160 = vst [vmem:[%s152 + $0x18] sm:$0xff] %v159
                %v161 = vld [vmem:[%s151 + $0x40] sm:$0xff]
                %162 = vst [vmem:[%s152 + $0x20] sm:$0xff] %v161
                %v163 = vld [vmem:[%s151 + $0x50] sm:$0xff]
                %164 = vst [vmem:[%s152 + $0x28] sm:$0xff] %v163
                %v165 = vld [vmem:[%s151 + $0x60] sm:$0xff]
                %166 = vst [vmem:[%s152 + $0x30] sm:$0xff] %v165
                %v167 = vld [vmem:[%s151 + $0x70] sm:$0xff]
                %168 = vst [vmem:[%s152 + $0x38] sm:$0xff] %v167
                %v169 = vld [vmem:[%s151 + $0x80] sm:$0xff]
                %170 = vst [vmem:[%s152 + $0x40] sm:$0xff] %v169
                %v171 = vld [vmem:[%s151 + $0x90] sm:$0xff]
                %172 = vst [vmem:[%s152 + $0x48] sm:$0xff] %v171
              $region45: #{conv_ae_forward.22} parent=39 // loop_footer
                %s150 = sadd.s32 1, %s146
              $region46: #{conv_ae_forward.22} parent=39 // loop_footer_branch
                %145 = sbr.rel target = $region42
              $region47: #{conv_ae_forward.22} parent=39 // loop_exit
                _
            $region40: #{conv_ae_forward.22} parent=31 // pred_fallthru
              _
          $region32: #{conv_ae_forward.22} parent=27 // pred_fallthru
            _
          %205 = vnop
        $region28: #{conv_ae_forward.22} parent=23 // pred_fallthru
          _
      $region24: #{conv_ae_forward.22} parent=5 // pred_fallthru
        _
      %p206 = scmp.le.s32.totalorder 1, %s9
      %p207 = scmp.lt.s32.totalorder %s9, 3
      %p208 = pnand %p206, %p207
      %p209 = pneg %p208
      // Predicated region
      $region63: #{conv_ae_forward.22} parent=5 // pred_check
        _
      $region64: #{conv_ae_forward.22} parent=5 // pred_check_branch
        %211 = sbr.rel (%p208) target = $region66
      $region65: #{conv_ae_forward.22} parent=5 // pred_region
        %s212 = ssub.s32 %s9, 1
        %s213 = sand.u32 %s43, 1
        %s214 = sand.u32 %s43, 1
        %s215 = smul.addr %s214, 80
        %s216 = scalar_lea.vmem [#allocation2], %s215
        // Predicated region
        $region67: #{conv_ae_forward.22} parent=65 // pred_check
          %p217 = pneg %p56
        $region68: #{conv_ae_forward.22} parent=65 // pred_check_branch
          %219 = sbr.rel (%p217) target = $region70
        $region69: #{conv_ae_forward.22} parent=65 // pred_region
          _
        $region70: #{conv_ae_forward.22} parent=65 // pred_fallthru
          _
        %p220 = pneg %p30
        %p221 = pneg %p27
        %s222 = sand.u32 %s43, 1
        %s223 = sand.u32 %s43, 1
        %s224 = smul.addr %s223, 80
        %s225 = scalar_lea.vmem [#allocation2], %s224
        %p226 = pneg %p56
        %p227 = pneg %p53
        %p228 = pneg %p77
        %p229 = pneg %p74
        %p230 = pneg %p103
        %p231 = pneg %p100
        %s232 = smul.u32 2, %s14
        %p233 = scmp.lt.s32.totalorder %s232, 3
        %s234 = scalar_select %p233, %s232, 3
        %s235 = smul.addr %s234, 8
        %s236 = scalar_lea.vmem %s3, %s235
        %s237 = smul.u32 2, %s14
        %s238 = smul.u32 2, %s14
        %p239 = scmp.lt.s32.totalorder %s238, 3
        %s240 = scalar_select %p239, %s238, 3
        %s241 = smul.addr %s240, 8
        %s242 = scalar_lea.vmem %s3, %s241
        %s243 = smul.u32 2, %s14
        %v245 = vld [vmem:[%s0] sm:$0xf]
        %v246 = vld [vmem:[%s216] sm:$0xff]
        %v247 = vld [vmem:[%s216 + $0x8] sm:$0xff]
        %v248 = vld [vmem:[%s216 + $0x10] sm:$0xff]
        %v249 = vld [vmem:[%s216 + $0x18] sm:$0xff]
        %v250 = vld [vmem:[%s216 + $0x20] sm:$0xff]
        %v251 = vld [vmem:[%s216 + $0x28] sm:$0xff]
        %v252 = vld [vmem:[%s216 + $0x30] sm:$0xff]
        %v253 = vld [vmem:[%s216 + $0x38] sm:$0xff]
        %v254 = vld [vmem:[%s216 + $0x40] sm:$0xff]
        %v255 = vld [vmem:[%s216 + $0x48] sm:$0xff]
        %v256 = vld [vmem:[%s2] sm:$0xff]
        %258 = vset.pattern.permute.xlu0 0
        %259 = vperm.xlu0 %258, %v256
        %v260 = vpop.permute.xlu0 %259
        %v272 = vunpack.c.l.b16 %v246
        %v273 = vunpack.c.h.b16 %v246
        %v274 = vunpack.c.l.b16 %v247
        %v275 = vunpack.c.h.b16 %v247
        %v276 = vunpack.c.l.b16 %v248
        %v277 = vunpack.c.h.b16 %v248
        %v278 = vunpack.c.l.b16 %v249
        %v279 = vunpack.c.h.b16 %v249
        %v280 = vunpack.c.l.b16 %v250
        %v281 = vunpack.c.h.b16 %v250
        %v282 = vunpack.c.l.b16 %v251
        %v283 = vunpack.c.h.b16 %v251
        %v284 = vunpack.c.l.b16 %v252
        %v285 = vunpack.c.h.b16 %v252
        %v286 = vunpack.c.l.b16 %v253
        %v287 = vunpack.c.h.b16 %v253
        %v288 = vunpack.c.l.b16 %v254
        %v289 = vunpack.c.h.b16 %v254
        %v290 = vunpack.c.l.b16 %v255
        %v291 = vunpack.c.h.b16 %v255
        %v292 = vpack.c.b16 %v274, %v272
        %v293 = vpack.c.b16 %v275, %v273
        %v294 = vpack.c.b16 %v278, %v276
        %v295 = vpack.c.b16 %v279, %v277
        %v296 = vpack.c.b16 %v282, %v280
        %v297 = vpack.c.b16 %v283, %v281
        %v298 = vpack.c.b16 %v286, %v284
        %v299 = vpack.c.b16 %v287, %v285
        %v300 = vpack.c.b16 %v290, %v288
        %v301 = vpack.c.b16 %v291, %v289
        %vm312 = vcmask 654336
        %v314 = vsel %vm312, %v245, 0
        %316 = vmatprep.subr.bf16.mxu0 %v293
        %317 = vmatpush1.bf16.msra.mxu0 %v292
        %318 = vmatprep.subr.bf16.mxu0 %v295
        %319 = vmatpush1.bf16.msra.mxu0 %v294
        %320 = vmatprep.subr.bf16.mxu0 %v297
        %321 = vmatpush1.bf16.msra.mxu0 %v296
        %322 = vmatprep.subr.bf16.mxu0 %v299
        %323 = vmatpush1.bf16.msra.mxu0 %v298
        %324 = vmatprep.subr.bf16.mxu0 %v301
        %325 = vmatpush1.bf16.msra.mxu0 %v300
        %326 = vmatprep.subr.bf16.mxu0 0
        %327 = vmatpush1.bf16.msra.mxu0 0
        %328 = vmatprep.subr.bf16.mxu0 0
        %329 = vmatpush1.bf16.msra.mxu0 0
        %330 = vmatprep.subr.bf16.mxu0 0
        %331 = vmatpush1.bf16.msra.mxu0 0
        %332 = vmatprep.subr.bf16.mxu0 0
        %333 = vmatpush1.bf16.msra.mxu0 0
        %334 = vmatprep.subr.bf16.mxu0 0
        %335 = vmatpush1.bf16.msra.mxu0 0
        %336 = vmatprep.subr.bf16.mxu0 0
        %337 = vmatpush1.bf16.msra.mxu0 0
        %338 = vmatprep.subr.bf16.mxu0 0
        %339 = vmatpush1.bf16.msra.mxu0 0
        %340 = vmatprep.subr.bf16.mxu0 0
        %341 = vmatpush1.bf16.msra.mxu0 0
        %342 = vmatprep.subr.bf16.mxu0 0
        %343 = vmatpush1.bf16.msra.mxu0 0
        %344 = vmatprep.subr.bf16.mxu0 0
        %345 = vmatpush1.bf16.msra.mxu0 0
        %346 = vmatprep.subr.bf16.mxu0 0
        %347 = vmatpush1.bf16.msra.mxu0 0
        %348 = vmatprep.mubr.bf16.mxu0 0
        %349 = vmatmul.mubr.bf16.gmra.mrb[0].mxu0 %v314
        %v350 = vpop.f32.mrb[0].mxu0
        %v351 = vadd.f32 %v260, %v350
        %v352 = vpop.f32.mrb[0].mxu0
        %v353 = vadd.f32 %v260, %v352
        %v354 = vpop.f32.mrb[0].mxu0
        %v355 = vpop.f32.mrb[0].mxu0
        %356 = vdwg.mxu0
        %vm357 = vcmp.ge.f32.partialorder %v351, 0.0
        %vm358 = vcmp.ge.f32.partialorder %v353, 0.0
        %v359 = vmul.f32 %v351, 0.1
        %v360 = vmul.f32 %v353, 0.1
        %v361 = vsel %vm357, %v351, %v359
        %v362 = vsel %vm358, %v353, %v360
        %363 = vst [vmem:[%s242] sm:$0xff] %v361
        %364 = vst [vmem:[%s242 + $0x8] sm:$0xff] %v362
        %s365 = smul.u32 2, %s14
        %p366 = scmp.lt.s32.totalorder %s365, 3
        %s367 = scalar_select %p366, %s365, 3
        %s368 = smul.addr %s367, 8
        %s369 = scalar_lea.vmem %s3, %s368
        // Predicated region
        $region71: #{conv_ae_forward.22} parent=65 // pred_check
          %p370 = pneg %p100
        $region72: #{conv_ae_forward.22} parent=65 // pred_check_branch
          %372 = sbr.rel (%p370) target = $region74
        $region73: #{conv_ae_forward.22} parent=65 // pred_region
          %s373 = smul.u32 2, %s14
        $region74: #{conv_ae_forward.22} parent=65 // pred_fallthru
          _
      $region66: #{conv_ae_forward.22} parent=5 // pred_fallthru
        _
      %p374 = scmp.le.s32.totalorder 2, %s9
      // Predicated region
      $region75: #{conv_ae_forward.22} parent=5 // pred_check
        %p375 = pneg %p374
      $region76: #{conv_ae_forward.22} parent=5 // pred_check_branch
        %377 = sbr.rel (%p375) target = $region78
      $region77: #{conv_ae_forward.22} parent=5 // pred_region
        %s378 = ssub.s32 %s9, 2
        // Predicated region
        $region79: #{conv_ae_forward.22} parent=77 // pred_check
          %p379 = pneg %p106
        $region80: #{conv_ae_forward.22} parent=77 // pred_check_branch
          %381 = sbr.rel (%p379) target = $region82
        $region81: #{conv_ae_forward.22} parent=77 // pred_region
          %s382 = smul.u32 2, %s15
          %p383 = scmp.lt.s32.totalorder %s382, 3
          %s384 = scalar_select %p383, %s382, 3
          %s385 = smul.addr %s384, 8
          %s386 = scalar_lea.vmem %s3, %s385
        $region82: #{conv_ae_forward.22} parent=77 // pred_fallthru
          _
      $region78: #{conv_ae_forward.22} parent=5 // pred_fallthru
        _
    $region6: #{conv_ae_forward.22} parent=1 // loop_footer
      %s13 = sadd.s32 1, %s9
    $region7: #{conv_ae_forward.22} parent=1 // loop_footer_branch
      %8 = sbr.rel target = $region3
    $region8: #{conv_ae_forward.22} parent=1 // loop_exit
      _

// kernel: conv_ae_forward.23
$region0: #{conv_ae_forward.23}
  #allocation0 [shape = 'u32[]', space=smem, size = 0x4, offset = 0x4, fixed_abs, tag = 'smem constant byte address 0x4 - core index']
  #allocation1 [shape = 'u32[144,128]{1,0:T(1,128)}', space=vmem, size = 0x12000, scoped, tag = 'internal scratch']
  %s0 = inlined_call_operand.vmem [shape: bf16[16,128], index: 0, kind: input, shape index: {}]
  %s1 = inlined_call_operand.vmem [shape: bf16[128,128], index: 1, kind: input, shape index: {}]
  %s2 = inlined_call_operand.vmem [shape: f32[16,1], index: 2, kind: input, shape index: {}]
  %s3 = inlined_call_operand.vmem [shape: f32[16,128], index: 3, kind: output, shape index: {}]
  %s4 = sld [smem:[#allocation0]]
  $region22: #{conv_ae_forward.23} parent=0
    _
  %s6 = ssub.s32 1, %s4
  %s7 = scalar_select 0, %s6, %s4
  // Predicated region
  $region2: #{conv_ae_forward.23} parent=0 // pred_check
    _
  $region3: #{conv_ae_forward.23} parent=0 // pred_check_branch
    %9 = sbr.rel (0) target = $region5
  $region4: #{conv_ae_forward.23} parent=0 // pred_region
    _
  $region5: #{conv_ae_forward.23} parent=0 // pred_fallthru
    _
  // Predicated region
  $region6: #{conv_ae_forward.23} parent=0 // pred_check
    _
  $region7: #{conv_ae_forward.23} parent=0 // pred_check_branch
    %11 = sbr.rel (0) target = $region9
  $region8: #{conv_ae_forward.23} parent=0 // pred_region
    _
  $region9: #{conv_ae_forward.23} parent=0 // pred_fallthru
    _
  // Predicated region
  $region10: #{conv_ae_forward.23} parent=0 // pred_check
    _
  $region11: #{conv_ae_forward.23} parent=0 // pred_check_branch
    %13 = sbr.rel (0) target = $region13
  $region12: #{conv_ae_forward.23} parent=0 // pred_region
    _
  $region13: #{conv_ae_forward.23} parent=0 // pred_fallthru
    _
  %v15 = vld [vmem:[%s0] sm:$0xf]
  %v16 = vld [vmem:[%s0 + $0x4] sm:$0xf]
  %v17 = vld [vmem:[%s1] sm:$0xf]
  %v18 = vld [vmem:[%s1 + $0x4] sm:$0xf]
  %v19 = vld [vmem:[%s1 + $0x8] sm:$0xf]
  %v20 = vld [vmem:[%s1 + $0xc] sm:$0xf]
  %v21 = vld [vmem:[%s1 + $0x10] sm:$0xf]
  %v22 = vld [vmem:[%s1 + $0x14] sm:$0xf]
  %v23 = vld [vmem:[%s1 + $0x18] sm:$0xf]
  %v24 = vld [vmem:[%s1 + $0x1c] sm:$0xf]
  %v25 = vld [vmem:[%s1 + $0x20] sm:$0xf]
  %v26 = vld [vmem:[%s1 + $0x24] sm:$0xf]
  %v27 = vld [vmem:[%s1 + $0x28] sm:$0xf]
  %v28 = vld [vmem:[%s1 + $0x2c] sm:$0xf]
  %v29 = vld [vmem:[%s1 + $0x30] sm:$0xf]
  %v30 = vld [vmem:[%s1 + $0x34] sm:$0xf]
  %v31 = vld [vmem:[%s1 + $0x38] sm:$0xf]
  %v32 = vld [vmem:[%s1 + $0x3c] sm:$0xf]
  %v33 = vld [vmem:[%s2] sm:$0xff]
  %v34 = vld [vmem:[%s2 + $0x8] sm:$0xff]
  %36 = vset.pattern.permute.xlu0 0
  %37 = vperm.xlu0 %36, %v33
  %v38 = vpop.permute.xlu0 %37
  %41 = vset.pattern.permute.xlu0 0
  %42 = vperm.xlu0 %41, %v34
  %v43 = vpop.permute.xlu0 %42
  %v47 = vunpack.c.l.b16 %v15
  %v48 = vunpack.c.l.b16 %v16
  %v49 = vpack.c.b16 %v48, %v47
  %v67 = vunpack.c.l.b16 %v17
  %v68 = vunpack.c.l.b16 %v18
  %v69 = vunpack.c.l.b16 %v19
  %v70 = vunpack.c.l.b16 %v20
  %v71 = vunpack.c.l.b16 %v21
  %v72 = vunpack.c.l.b16 %v22
  %v73 = vunpack.c.l.b16 %v23
  %v74 = vunpack.c.l.b16 %v24
  %v75 = vunpack.c.l.b16 %v25
  %v76 = vunpack.c.l.b16 %v26
  %v77 = vunpack.c.l.b16 %v27
  %v78 = vunpack.c.l.b16 %v28
  %v79 = vunpack.c.l.b16 %v29
  %v80 = vunpack.c.l.b16 %v30
  %v81 = vunpack.c.l.b16 %v31
  %v82 = vunpack.c.l.b16 %v32
  %v83 = vpack.c.b16 %v68, %v67
  %v84 = vpack.c.b16 %v70, %v69
  %v85 = vpack.c.b16 %v72, %v71
  %v86 = vpack.c.b16 %v74, %v73
  %v87 = vpack.c.b16 %v76, %v75
  %v88 = vpack.c.b16 %v78, %v77
  %v89 = vpack.c.b16 %v80, %v79
  %v90 = vpack.c.b16 %v82, %v81
  %99 = vmatprep.subr.bf16.mxu0 0
  %100 = vmatpush1.bf16.msra.mxu0 %v83
  %101 = vmatprep.subr.bf16.mxu0 0
  %102 = vmatpush1.bf16.msra.mxu0 %v84
  %103 = vmatprep.subr.bf16.mxu0 0
  %104 = vmatpush1.bf16.msra.mxu0 %v85
  %105 = vmatprep.subr.bf16.mxu0 0
  %106 = vmatpush1.bf16.msra.mxu0 %v86
  %107 = vmatprep.subr.bf16.mxu0 0
  %108 = vmatpush1.bf16.msra.mxu0 %v87
  %109 = vmatprep.subr.bf16.mxu0 0
  %110 = vmatpush1.bf16.msra.mxu0 %v88
  %111 = vmatprep.subr.bf16.mxu0 0
  %112 = vmatpush1.bf16.msra.mxu0 %v89
  %113 = vmatprep.subr.bf16.mxu0 0
  %114 = vmatpush1.bf16.msra.mxu0 %v90
  %115 = vmatprep.subr.bf16.mxu0 0
  %116 = vmatpush1.bf16.msra.mxu0 0
  %117 = vmatprep.subr.bf16.mxu0 0
  %118 = vmatpush1.bf16.msra.mxu0 0
  %119 = vmatprep.subr.bf16.mxu0 0
  %120 = vmatpush1.bf16.msra.mxu0 0
  %121 = vmatprep.subr.bf16.mxu0 0
  %122 = vmatpush1.bf16.msra.mxu0 0
  %123 = vmatprep.subr.bf16.mxu0 0
  %124 = vmatpush1.bf16.msra.mxu0 0
  %125 = vmatprep.subr.bf16.mxu0 0
  %126 = vmatpush1.bf16.msra.mxu0 0
  %127 = vmatprep.subr.bf16.mxu0 0
  %128 = vmatpush1.bf16.msra.mxu0 0
  %129 = vmatprep.subr.bf16.mxu0 0
  %130 = vmatpush1.bf16.msra.mxu0 0
  %131 = vmatprep.mubr.bf16.mxu0 0
  %132 = vmatmul.mubr.bf16.gmra.mrb[0].mxu0 %v49
  %v133 = vpop.f32.mrb[0].mxu0
  %v134 = vadd.f32 %v38, %v133
  %v135 = vpop.f32.mrb[0].mxu0
  %v136 = vpop.f32.mrb[0].mxu0
  %v137 = vadd.f32 %v43, %v136
  %v138 = vpop.f32.mrb[0].mxu0
  %139 = vdwg.mxu0
  %vm140 = vcmp.ge.f32.partialorder %v134, 0.0
  %vm141 = vcmp.ge.f32.partialorder %v137, 0.0
  %v142 = vmul.f32 %v134, 0.1
  %v143 = vmul.f32 %v137, 0.1
  %v144 = vsel %vm140, %v134, %v142
  %v145 = vsel %vm141, %v137, %v143
  %146 = vst [vmem:[%s3] sm:$0xff] %v144
  %147 = vst [vmem:[%s3 + $0x8] sm:$0xff] %v145
  // Predicated region
  $region14: #{conv_ae_forward.23} parent=0 // pred_check
    _
  $region15: #{conv_ae_forward.23} parent=0 // pred_check_branch
    %149 = sbr.rel (0) target = $region17
  $region16: #{conv_ae_forward.23} parent=0 // pred_region
    _
  $region17: #{conv_ae_forward.23} parent=0 // pred_fallthru
    _
  // Predicated region
  $region18: #{conv_ae_forward.23} parent=0 // pred_check
    _
  $region19: #{conv_ae_forward.23} parent=0 // pred_check_branch
    %151 = sbr.rel (0) target = $region21
  $region20: #{conv_ae_forward.23} parent=0 // pred_region
    _
  $region21: #{conv_ae_forward.23} parent=0 // pred_fallthru
    _

// kernel: conv_ae_forward.24
$region0: #{conv_ae_forward.24}
  #allocation0 [shape = 'u32[]', space=smem, size = 0x4, offset = 0x4, fixed_abs, tag = 'smem constant byte address 0x4 - core index']
  #allocation1 [shape = 'u32[144,128]{1,0:T(1,128)}', space=vmem, size = 0x12000, scoped, tag = 'internal scratch']
  %s0 = inlined_call_operand.vmem [shape: bf16[8,144], index: 0, kind: input, shape index: {}]
  %s1 = inlined_call_operand.vmem [shape: bf16[144,128], index: 1, kind: input, shape index: {}]
  %s2 = inlined_call_operand.vmem [shape: f32[8,1], index: 2, kind: input, shape index: {}]
  %s3 = inlined_call_operand.vmem [shape: f32[8,128], index: 3, kind: output, shape index: {}]
  %s4 = sld [smem:[#allocation0]]
  $region22: #{conv_ae_forward.24} parent=0
    _
  %s6 = ssub.s32 1, %s4
  %s7 = scalar_select 0, %s6, %s4
  // Predicated region
  $region2: #{conv_ae_forward.24} parent=0 // pred_check
    _
  $region3: #{conv_ae_forward.24} parent=0 // pred_check_branch
    %9 = sbr.rel (0) target = $region5
  $region4: #{conv_ae_forward.24} parent=0 // pred_region
    _
  $region5: #{conv_ae_forward.24} parent=0 // pred_fallthru
    _
  // Predicated region
  $region6: #{conv_ae_forward.24} parent=0 // pred_check
    _
  $region7: #{conv_ae_forward.24} parent=0 // pred_check_branch
    %11 = sbr.rel (0) target = $region9
  $region8: #{conv_ae_forward.24} parent=0 // pred_region
    _
  $region9: #{conv_ae_forward.24} parent=0 // pred_fallthru
    _
  // Predicated region
  $region10: #{conv_ae_forward.24} parent=0 // pred_check
    _
  $region11: #{conv_ae_forward.24} parent=0 // pred_check_branch
    %13 = sbr.rel (0) target = $region13
  $region12: #{conv_ae_forward.24} parent=0 // pred_region
    _
  $region13: #{conv_ae_forward.24} parent=0 // pred_fallthru
    _
  %v15 = vld [vmem:[%s0] sm:$0xff]
  %v16 = vld [vmem:[%s1] sm:$0xf]
  %v17 = vld [vmem:[%s1 + $0x4] sm:$0xf]
  %v18 = vld [vmem:[%s1 + $0x8] sm:$0xf]
  %v19 = vld [vmem:[%s1 + $0xc] sm:$0xf]
  %v20 = vld [vmem:[%s1 + $0x10] sm:$0xf]
  %v21 = vld [vmem:[%s1 + $0x14] sm:$0xf]
  %v22 = vld [vmem:[%s1 + $0x18] sm:$0xf]
  %v23 = vld [vmem:[%s1 + $0x1c] sm:$0xf]
  %v24 = vld [vmem:[%s1 + $0x20] sm:$0xf]
  %v25 = vld [vmem:[%s1 + $0x24] sm:$0xf]
  %v26 = vld [vmem:[%s1 + $0x28] sm:$0xf]
  %v27 = vld [vmem:[%s1 + $0x2c] sm:$0xf]
  %v28 = vld [vmem:[%s1 + $0x30] sm:$0xf]
  %v29 = vld [vmem:[%s1 + $0x34] sm:$0xf]
  %v30 = vld [vmem:[%s1 + $0x38] sm:$0xf]
  %v31 = vld [vmem:[%s1 + $0x3c] sm:$0xf]
  %v32 = vld [vmem:[%s1 + $0x40] sm:$0xf]
  %v33 = vld [vmem:[%s1 + $0x44] sm:$0xf]
  %v34 = vld [vmem:[%s2] sm:$0xff]
  %36 = vset.pattern.permute.xlu0 0
  %37 = vperm.xlu0 %36, %v34
  %v38 = vpop.permute.xlu0 %37
  %v41 = vunpack.c.l.b16 %v15
  %v42 = vunpack.c.h.b16 %v15
  %v43 = vpack.c.b16 %v41, %v41
  %v44 = vpack.c.b16 %v42, %v42
  %v64 = vunpack.c.l.b16 %v16
  %v65 = vunpack.c.l.b16 %v17
  %v66 = vunpack.c.l.b16 %v18
  %v67 = vunpack.c.l.b16 %v19
  %v68 = vunpack.c.l.b16 %v20
  %v69 = vunpack.c.l.b16 %v21
  %v70 = vunpack.c.l.b16 %v22
  %v71 = vunpack.c.l.b16 %v23
  %v72 = vunpack.c.l.b16 %v24
  %v73 = vunpack.c.l.b16 %v25
  %v74 = vunpack.c.l.b16 %v26
  %v75 = vunpack.c.l.b16 %v27
  %v76 = vunpack.c.l.b16 %v28
  %v77 = vunpack.c.l.b16 %v29
  %v78 = vunpack.c.l.b16 %v30
  %v79 = vunpack.c.l.b16 %v31
  %v80 = vunpack.c.l.b16 %v32
  %v81 = vunpack.c.l.b16 %v33
  %v82 = vpack.c.b16 %v65, %v64
  %v83 = vpack.c.b16 %v67, %v66
  %v84 = vpack.c.b16 %v69, %v68
  %v85 = vpack.c.b16 %v71, %v70
  %v86 = vpack.c.b16 %v73, %v72
  %v87 = vpack.c.b16 %v75, %v74
  %v88 = vpack.c.b16 %v77, %v76
  %v89 = vpack.c.b16 %v79, %v78
  %v90 = vpack.c.b16 %v81, %v80
  %vm100 = vcmask 130048
  %v102 = vsel %vm100, %v44, 0
  %104 = vmatprep.subr.bf16.mxu0 0
  %105 = vmatpush1.bf16.msra.mxu0 %v82
  %106 = vmatprep.subr.bf16.mxu0 0
  %107 = vmatpush1.bf16.msra.mxu0 %v83
  %108 = vmatprep.subr.bf16.mxu0 0
  %109 = vmatpush1.bf16.msra.mxu0 %v84
  %110 = vmatprep.subr.bf16.mxu0 0
  %111 = vmatpush1.bf16.msra.mxu0 %v85
  %112 = vmatprep.subr.bf16.mxu0 0
  %113 = vmatpush1.bf16.msra.mxu0 %v86
  %114 = vmatprep.subr.bf16.mxu0 0
  %115 = vmatpush1.bf16.msra.mxu0 %v87
  %116 = vmatprep.subr.bf16.mxu0 0
  %117 = vmatpush1.bf16.msra.mxu0 %v88
  %118 = vmatprep.subr.bf16.mxu0 0
  %119 = vmatpush1.bf16.msra.mxu0 %v89
  %120 = vmatprep.subr.bf16.mxu0 0
  %121 = vmatpush1.bf16.msra.mxu0 %v90
  %122 = vmatprep.subr.bf16.mxu0 0
  %123 = vmatpush1.bf16.msra.mxu0 0
  %124 = vmatprep.subr.bf16.mxu0 0
  %125 = vmatpush1.bf16.msra.mxu0 0
  %126 = vmatprep.subr.bf16.mxu0 0
  %127 = vmatpush1.bf16.msra.mxu0 0
  %128 = vmatprep.subr.bf16.mxu0 0
  %129 = vmatpush1.bf16.msra.mxu0 0
  %130 = vmatprep.subr.bf16.mxu0 0
  %131 = vmatpush1.bf16.msra.mxu0 0
  %132 = vmatprep.subr.bf16.mxu0 0
  %133 = vmatpush1.bf16.msra.mxu0 0
  %134 = vmatprep.subr.bf16.mxu0 0
  %135 = vmatpush1.bf16.msra.mxu0 0
  %136 = vmatprep.mubr.bf16.mxu0 %v102
  %137 = vmatmul.mubr.bf16.gmra.mrb[0].mxu0 %v43
  %v138 = vpop.f32.mrb[0].mxu0
  %v139 = vadd.f32 %v38, %v138
  %v140 = vpop.f32.mrb[0].mxu0
  %v141 = vpop.f32.mrb[0].mxu0
  %v142 = vpop.f32.mrb[0].mxu0
  %143 = vdwg.mxu0
  %vm144 = vcmp.ge.f32.partialorder %v139, 0.0
  %v145 = vmul.f32 %v139, 0.1
  %v146 = vsel %vm144, %v139, %v145
  %147 = vst [vmem:[%s3] sm:$0xff] %v146
  // Predicated region
  $region14: #{conv_ae_forward.24} parent=0 // pred_check
    _
  $region15: #{conv_ae_forward.24} parent=0 // pred_check_branch
    %149 = sbr.rel (0) target = $region17
  $region16: #{conv_ae_forward.24} parent=0 // pred_region
    _
  $region17: #{conv_ae_forward.24} parent=0 // pred_fallthru
    _
  // Predicated region
  $region18: #{conv_ae_forward.24} parent=0 // pred_check
    _
  $region19: #{conv_ae_forward.24} parent=0 // pred_check_branch
    %151 = sbr.rel (0) target = $region21
  $region20: #{conv_ae_forward.24} parent=0 // pred_region
    _
  $region21: #{conv_ae_forward.24} parent=0 // pred_fallthru
    _

// kernel: conv_ae_forward.25
$region0: #{conv_ae_forward.25}
  #allocation0 [shape = 'u32[]', space=smem, size = 0x4, offset = 0x4, fixed_abs, tag = 'smem constant byte address 0x4 - core index']
  #allocation1 [shape = 'u32[144,128]{1,0:T(1,128)}', space=vmem, size = 0x12000, scoped, tag = 'internal scratch']
  %s0 = inlined_call_operand.vmem [shape: bf16[8,80], index: 0, kind: input, shape index: {}]
  %s1 = inlined_call_operand.vmem [shape: bf16[80,128], index: 1, kind: input, shape index: {}]
  %s2 = inlined_call_operand.vmem [shape: f32[8,1], index: 2, kind: input, shape index: {}]
  %s3 = inlined_call_operand.vmem [shape: f32[8,128], index: 3, kind: output, shape index: {}]
  %s4 = sld [smem:[#allocation0]]
  $region22: #{conv_ae_forward.25} parent=0
    _
  %s6 = ssub.s32 1, %s4
  %s7 = scalar_select 0, %s6, %s4
  // Predicated region
  $region2: #{conv_ae_forward.25} parent=0 // pred_check
    _
  $region3: #{conv_ae_forward.25} parent=0 // pred_check_branch
    %9 = sbr.rel (0) target = $region5
  $region4: #{conv_ae_forward.25} parent=0 // pred_region
    _
  $region5: #{conv_ae_forward.25} parent=0 // pred_fallthru
    _
  // Predicated region
  $region6: #{conv_ae_forward.25} parent=0 // pred_check
    _
  $region7: #{conv_ae_forward.25} parent=0 // pred_check_branch
    %11 = sbr.rel (0) target = $region9
  $region8: #{conv_ae_forward.25} parent=0 // pred_region
    _
  $region9: #{conv_ae_forward.25} parent=0 // pred_fallthru
    _
  // Predicated region
  $region10: #{conv_ae_forward.25} parent=0 // pred_check
    _
  $region11: #{conv_ae_forward.25} parent=0 // pred_check_branch
    %13 = sbr.rel (0) target = $region13
  $region12: #{conv_ae_forward.25} parent=0 // pred_region
    _
  $region13: #{conv_ae_forward.25} parent=0 // pred_fallthru
    _
  %v15 = vld [vmem:[%s0] sm:$0xf]
  %v16 = vld [vmem:[%s1] sm:$0xf]
  %v17 = vld [vmem:[%s1 + $0x4] sm:$0xf]
  %v18 = vld [vmem:[%s1 + $0x8] sm:$0xf]
  %v19 = vld [vmem:[%s1 + $0xc] sm:$0xf]
  %v20 = vld [vmem:[%s1 + $0x10] sm:$0xf]
  %v21 = vld [vmem:[%s1 + $0x14] sm:$0xf]
  %v22 = vld [vmem:[%s1 + $0x18] sm:$0xf]
  %v23 = vld [vmem:[%s1 + $0x1c] sm:$0xf]
  %v24 = vld [vmem:[%s1 + $0x20] sm:$0xf]
  %v25 = vld [vmem:[%s1 + $0x24] sm:$0xf]
  %v26 = vld [vmem:[%s2] sm:$0xff]
  %28 = vset.pattern.permute.xlu0 0
  %29 = vperm.xlu0 %28, %v26
  %v30 = vpop.permute.xlu0 %29
  %v42 = vunpack.c.l.b16 %v16
  %v43 = vunpack.c.l.b16 %v17
  %v44 = vunpack.c.l.b16 %v18
  %v45 = vunpack.c.l.b16 %v19
  %v46 = vunpack.c.l.b16 %v20
  %v47 = vunpack.c.l.b16 %v21
  %v48 = vunpack.c.l.b16 %v22
  %v49 = vunpack.c.l.b16 %v23
  %v50 = vunpack.c.l.b16 %v24
  %v51 = vunpack.c.l.b16 %v25
  %v52 = vpack.c.b16 %v43, %v42
  %v53 = vpack.c.b16 %v45, %v44
  %v54 = vpack.c.b16 %v47, %v46
  %v55 = vpack.c.b16 %v49, %v48
  %v56 = vpack.c.b16 %v51, %v50
  %vm62 = vcmask 654336
  %v64 = vsel %vm62, %v15, 0
  %66 = vmatprep.subr.bf16.mxu0 0
  %67 = vmatpush1.bf16.msra.mxu0 %v52
  %68 = vmatprep.subr.bf16.mxu0 0
  %69 = vmatpush1.bf16.msra.mxu0 %v53
  %70 = vmatprep.subr.bf16.mxu0 0
  %71 = vmatpush1.bf16.msra.mxu0 %v54
  %72 = vmatprep.subr.bf16.mxu0 0
  %73 = vmatpush1.bf16.msra.mxu0 %v55
  %74 = vmatprep.subr.bf16.mxu0 0
  %75 = vmatpush1.bf16.msra.mxu0 %v56
  %76 = vmatprep.subr.bf16.mxu0 0
  %77 = vmatpush1.bf16.msra.mxu0 0
  %78 = vmatprep.subr.bf16.mxu0 0
  %79 = vmatpush1.bf16.msra.mxu0 0
  %80 = vmatprep.subr.bf16.mxu0 0
  %81 = vmatpush1.bf16.msra.mxu0 0
  %82 = vmatprep.subr.bf16.mxu0 0
  %83 = vmatpush1.bf16.msra.mxu0 0
  %84 = vmatprep.subr.bf16.mxu0 0
  %85 = vmatpush1.bf16.msra.mxu0 0
  %86 = vmatprep.subr.bf16.mxu0 0
  %87 = vmatpush1.bf16.msra.mxu0 0
  %88 = vmatprep.subr.bf16.mxu0 0
  %89 = vmatpush1.bf16.msra.mxu0 0
  %90 = vmatprep.subr.bf16.mxu0 0
  %91 = vmatpush1.bf16.msra.mxu0 0
  %92 = vmatprep.subr.bf16.mxu0 0
  %93 = vmatpush1.bf16.msra.mxu0 0
  %94 = vmatprep.subr.bf16.mxu0 0
  %95 = vmatpush1.bf16.msra.mxu0 0
  %96 = vmatprep.subr.bf16.mxu0 0
  %97 = vmatpush1.bf16.msra.mxu0 0
  %98 = vmatprep.mubr.bf16.mxu0 0
  %99 = vmatmul.mubr.bf16.gmra.mrb[0].mxu0 %v64
  %v100 = vpop.f32.mrb[0].mxu0
  %v101 = vadd.f32 %v30, %v100
  %v102 = vpop.f32.mrb[0].mxu0
  %v103 = vpop.f32.mrb[0].mxu0
  %v104 = vpop.f32.mrb[0].mxu0
  %105 = vdwg.mxu0
  %vm106 = vcmp.ge.f32.partialorder %v101, 0.0
  %v107 = vmul.f32 %v101, 0.1
  %v108 = vsel %vm106, %v101, %v107
  %109 = vst [vmem:[%s3] sm:$0xff] %v108
  // Predicated region
  $region14: #{conv_ae_forward.25} parent=0 // pred_check
    _
  $region15: #{conv_ae_forward.25} parent=0 // pred_check_branch
    %111 = sbr.rel (0) target = $region17
  $region16: #{conv_ae_forward.25} parent=0 // pred_region
    _
  $region17: #{conv_ae_forward.25} parent=0 // pred_fallthru
    _
  // Predicated region
  $region18: #{conv_ae_forward.25} parent=0 // pred_check
    _
  $region19: #{conv_ae_forward.25} parent=0 // pred_check_branch
    %113 = sbr.rel (0) target = $region21
  $region20: #{conv_ae_forward.25} parent=0 // pred_region
    _
  $region21: #{conv_ae_forward.25} parent=0 // pred_fallthru
    _

// kernel: conv_ae_forward.26
$region0: #{conv_ae_forward.26}
  #allocation0 [shape = 'u32[]', space=smem, size = 0x4, offset = 0x4, fixed_abs, tag = 'smem constant byte address 0x4 - core index']
  #allocation1 [shape = 'u32[144,128]{1,0:T(1,128)}', space=vmem, size = 0x12000, scoped, tag = 'internal scratch']
  %s0 = inlined_call_operand.vmem [shape: bf16[8,256], index: 0, kind: input, shape index: {}]
  %s1 = inlined_call_operand.vmem [shape: bf16[256,128], index: 1, kind: input, shape index: {}]
  %s2 = inlined_call_operand.vmem [shape: f32[8,1], index: 2, kind: input, shape index: {}]
  %s3 = inlined_call_operand.vmem [shape: f32[8,128], index: 3, kind: output, shape index: {}]
  %s4 = sld [smem:[#allocation0]]
  $region22: #{conv_ae_forward.26} parent=0
    _
  %s6 = ssub.s32 1, %s4
  %s7 = scalar_select 0, %s6, %s4
  // Predicated region
  $region2: #{conv_ae_forward.26} parent=0 // pred_check
    _
  $region3: #{conv_ae_forward.26} parent=0 // pred_check_branch
    %9 = sbr.rel (0) target = $region5
  $region4: #{conv_ae_forward.26} parent=0 // pred_region
    _
  $region5: #{conv_ae_forward.26} parent=0 // pred_fallthru
    _
  // Predicated region
  $region6: #{conv_ae_forward.26} parent=0 // pred_check
    _
  $region7: #{conv_ae_forward.26} parent=0 // pred_check_branch
    %11 = sbr.rel (0) target = $region9
  $region8: #{conv_ae_forward.26} parent=0 // pred_region
    _
  $region9: #{conv_ae_forward.26} parent=0 // pred_fallthru
    _
  // Predicated region
  $region10: #{conv_ae_forward.26} parent=0 // pred_check
    _
  $region11: #{conv_ae_forward.26} parent=0 // pred_check_branch
    %13 = sbr.rel (0) target = $region13
  $region12: #{conv_ae_forward.26} parent=0 // pred_region
    _
  $region13: #{conv_ae_forward.26} parent=0 // pred_fallthru
    _
  %v15 = vld [vmem:[%s0] sm:$0xff]
  %v16 = vld [vmem:[%s1] sm:$0xf]
  %v17 = vld [vmem:[%s1 + $0x4] sm:$0xf]
  %v18 = vld [vmem:[%s1 + $0x8] sm:$0xf]
  %v19 = vld [vmem:[%s1 + $0xc] sm:$0xf]
  %v20 = vld [vmem:[%s1 + $0x10] sm:$0xf]
  %v21 = vld [vmem:[%s1 + $0x14] sm:$0xf]
  %v22 = vld [vmem:[%s1 + $0x18] sm:$0xf]
  %v23 = vld [vmem:[%s1 + $0x1c] sm:$0xf]
  %v24 = vld [vmem:[%s1 + $0x20] sm:$0xf]
  %v25 = vld [vmem:[%s1 + $0x24] sm:$0xf]
  %v26 = vld [vmem:[%s1 + $0x28] sm:$0xf]
  %v27 = vld [vmem:[%s1 + $0x2c] sm:$0xf]
  %v28 = vld [vmem:[%s1 + $0x30] sm:$0xf]
  %v29 = vld [vmem:[%s1 + $0x34] sm:$0xf]
  %v30 = vld [vmem:[%s1 + $0x38] sm:$0xf]
  %v31 = vld [vmem:[%s1 + $0x3c] sm:$0xf]
  %v32 = vld [vmem:[%s1 + $0x40] sm:$0xf]
  %v33 = vld [vmem:[%s1 + $0x44] sm:$0xf]
  %v34 = vld [vmem:[%s1 + $0x48] sm:$0xf]
  %v35 = vld [vmem:[%s1 + $0x4c] sm:$0xf]
  %v36 = vld [vmem:[%s1 + $0x50] sm:$0xf]
  %v37 = vld [vmem:[%s1 + $0x54] sm:$0xf]
  %v38 = vld [vmem:[%s1 + $0x58] sm:$0xf]
  %v39 = vld [vmem:[%s1 + $0x5c] sm:$0xf]
  %v40 = vld [vmem:[%s1 + $0x60] sm:$0xf]
  %v41 = vld [vmem:[%s1 + $0x64] sm:$0xf]
  %v42 = vld [vmem:[%s1 + $0x68] sm:$0xf]
  %v43 = vld [vmem:[%s1 + $0x6c] sm:$0xf]
  %v44 = vld [vmem:[%s1 + $0x70] sm:$0xf]
  %v45 = vld [vmem:[%s1 + $0x74] sm:$0xf]
  %v46 = vld [vmem:[%s1 + $0x78] sm:$0xf]
  %v47 = vld [vmem:[%s1 + $0x7c] sm:$0xf]
  %v48 = vld [vmem:[%s2] sm:$0xff]
  %50 = vset.pattern.permute.xlu0 0
  %51 = vperm.xlu0 %50, %v48
  %v52 = vpop.permute.xlu0 %51
  %v55 = vunpack.c.l.b16 %v15
  %v56 = vunpack.c.h.b16 %v15
  %v57 = vpack.c.b16 %v55, %v55
  %v58 = vpack.c.b16 %v56, %v56
  %v93 = vunpack.c.l.b16 %v16
  %v94 = vunpack.c.l.b16 %v17
  %v95 = vunpack.c.l.b16 %v18
  %v96 = vunpack.c.l.b16 %v19
  %v97 = vunpack.c.l.b16 %v20
  %v98 = vunpack.c.l.b16 %v21
  %v99 = vunpack.c.l.b16 %v22
  %v100 = vunpack.c.l.b16 %v23
  %v101 = vunpack.c.l.b16 %v24
  %v102 = vunpack.c.l.b16 %v25
  %v103 = vunpack.c.l.b16 %v26
  %v104 = vunpack.c.l.b16 %v27
  %v105 = vunpack.c.l.b16 %v28
  %v106 = vunpack.c.l.b16 %v29
  %v107 = vunpack.c.l.b16 %v30
  %v108 = vunpack.c.l.b16 %v31
  %v109 = vunpack.c.l.b16 %v32
  %v110 = vunpack.c.l.b16 %v33
  %v111 = vunpack.c.l.b16 %v34
  %v112 = vunpack.c.l.b16 %v35
  %v113 = vunpack.c.l.b16 %v36
  %v114 = vunpack.c.l.b16 %v37
  %v115 = vunpack.c.l.b16 %v38
  %v116 = vunpack.c.l.b16 %v39
  %v117 = vunpack.c.l.b16 %v40
  %v118 = vunpack.c.l.b16 %v41
  %v119 = vunpack.c.l.b16 %v42
  %v120 = vunpack.c.l.b16 %v43
  %v121 = vunpack.c.l.b16 %v44
  %v122 = vunpack.c.l.b16 %v45
  %v123 = vunpack.c.l.b16 %v46
  %v124 = vunpack.c.l.b16 %v47
  %v125 = vpack.c.b16 %v94, %v93
  %v126 = vpack.c.b16 %v96, %v95
  %v127 = vpack.c.b16 %v98, %v97
  %v128 = vpack.c.b16 %v100, %v99
  %v129 = vpack.c.b16 %v102, %v101
  %v130 = vpack.c.b16 %v104, %v103
  %v131 = vpack.c.b16 %v106, %v105
  %v132 = vpack.c.b16 %v108, %v107
  %v133 = vpack.c.b16 %v110, %v109
  %v134 = vpack.c.b16 %v112, %v111
  %v135 = vpack.c.b16 %v114, %v113
  %v136 = vpack.c.b16 %v116, %v115
  %v137 = vpack.c.b16 %v118, %v117
  %v138 = vpack.c.b16 %v120, %v119
  %v139 = vpack.c.b16 %v122, %v121
  %v140 = vpack.c.b16 %v124, %v123
  %157 = vmatprep.subr.bf16.mxu0 0
  %158 = vmatpush1.bf16.msra.mxu0 %v125
  %159 = vmatprep.subr.bf16.mxu0 0
  %160 = vmatpush1.bf16.msra.mxu0 %v126
  %161 = vmatprep.subr.bf16.mxu0 0
  %162 = vmatpush1.bf16.msra.mxu0 %v127
  %163 = vmatprep.subr.bf16.mxu0 0
  %164 = vmatpush1.bf16.msra.mxu0 %v128
  %165 = vmatprep.subr.bf16.mxu0 0
  %166 = vmatpush1.bf16.msra.mxu0 %v129
  %167 = vmatprep.subr.bf16.mxu0 0
  %168 = vmatpush1.bf16.msra.mxu0 %v130
  %169 = vmatprep.subr.bf16.mxu0 0
  %170 = vmatpush1.bf16.msra.mxu0 %v131
  %171 = vmatprep.subr.bf16.mxu0 0
  %172 = vmatpush1.bf16.msra.mxu0 %v132
  %173 = vmatprep.subr.bf16.mxu0 0
  %174 = vmatpush1.bf16.msra.mxu0 %v133
  %175 = vmatprep.subr.bf16.mxu0 0
  %176 = vmatpush1.bf16.msra.mxu0 %v134
  %177 = vmatprep.subr.bf16.mxu0 0
  %178 = vmatpush1.bf16.msra.mxu0 %v135
  %179 = vmatprep.subr.bf16.mxu0 0
  %180 = vmatpush1.bf16.msra.mxu0 %v136
  %181 = vmatprep.subr.bf16.mxu0 0
  %182 = vmatpush1.bf16.msra.mxu0 %v137
  %183 = vmatprep.subr.bf16.mxu0 0
  %184 = vmatpush1.bf16.msra.mxu0 %v138
  %185 = vmatprep.subr.bf16.mxu0 0
  %186 = vmatpush1.bf16.msra.mxu0 %v139
  %187 = vmatprep.subr.bf16.mxu0 0
  %188 = vmatpush1.bf16.msra.mxu0 %v140
  %189 = vmatprep.mubr.bf16.mxu0 %v58
  %190 = vmatmul.mubr.bf16.gmra.mrb[0].mxu0 %v57
  %v191 = vpop.f32.mrb[0].mxu0
  %v192 = vadd.f32 %v52, %v191
  %v193 = vpop.f32.mrb[0].mxu0
  %v194 = vpop.f32.mrb[0].mxu0
  %v195 = vpop.f32.mrb[0].mxu0
  %196 = vdwg.mxu0
  %197 = vst [vmem:[%s3] sm:$0xff] %v192
  // Predicated region
  $region14: #{conv_ae_forward.26} parent=0 // pred_check
    _
  $region15: #{conv_ae_forward.26} parent=0 // pred_check_branch
    %199 = sbr.rel (0) target = $region17
  $region16: #{conv_ae_forward.26} parent=0 // pred_region
    _
  $region17: #{conv_ae_forward.26} parent=0 // pred_fallthru
    _
  // Predicated region
  $region18: #{conv_ae_forward.26} parent=0 // pred_check
    _
  $region19: #{conv_ae_forward.26} parent=0 // pred_check_branch
    %201 = sbr.rel (0) target = $region21
  $region20: #{conv_ae_forward.26} parent=0 // pred_region
    _
  $region21: #{conv_ae_forward.26} parent=0 // pred_fallthru
    _

// kernel: conv_ae_forward.27
$region0: #{conv_ae_forward.27}
  #allocation0 [shape = 'u32[]', space=smem, size = 0x4, offset = 0x4, fixed_abs, tag = 'smem constant byte address 0x4 - core index']
  #allocation1 [shape = 'u32[144,128]{1,0:T(1,128)}', space=vmem, size = 0x12000, scoped, tag = 'internal scratch']
  %s0 = inlined_call_operand.vmem [shape: bf16[8,512], index: 0, kind: input, shape index: {}]
  %s1 = inlined_call_operand.vmem [shape: bf16[512,128], index: 1, kind: input, shape index: {}]
  %s2 = inlined_call_operand.vmem [shape: f32[8,1], index: 2, kind: input, shape index: {}]
  %s3 = inlined_call_operand.vmem [shape: f32[8,128], index: 3, kind: output, shape index: {}]
  %s4 = sld [smem:[#allocation0]]
  $region22: #{conv_ae_forward.27} parent=0
    _
  %s6 = ssub.s32 1, %s4
  %s7 = scalar_select 0, %s6, %s4
  // Predicated region
  $region2: #{conv_ae_forward.27} parent=0 // pred_check
    _
  $region3: #{conv_ae_forward.27} parent=0 // pred_check_branch
    %9 = sbr.rel (0) target = $region5
  $region4: #{conv_ae_forward.27} parent=0 // pred_region
    _
  $region5: #{conv_ae_forward.27} parent=0 // pred_fallthru
    _
  // Predicated region
  $region6: #{conv_ae_forward.27} parent=0 // pred_check
    _
  $region7: #{conv_ae_forward.27} parent=0 // pred_check_branch
    %11 = sbr.rel (0) target = $region9
  $region8: #{conv_ae_forward.27} parent=0 // pred_region
    _
  $region9: #{conv_ae_forward.27} parent=0 // pred_fallthru
    _
  // Predicated region
  $region10: #{conv_ae_forward.27} parent=0 // pred_check
    _
  $region11: #{conv_ae_forward.27} parent=0 // pred_check_branch
    %13 = sbr.rel (0) target = $region13
  $region12: #{conv_ae_forward.27} parent=0 // pred_region
    _
  $region13: #{conv_ae_forward.27} parent=0 // pred_fallthru
    _
  %v15 = vld [vmem:[%s0] sm:$0xff]
  %v16 = vld [vmem:[%s0 + $0x8] sm:$0xff]
  %v17 = vld [vmem:[%s1] sm:$0xf]
  %v18 = vld [vmem:[%s1 + $0x4] sm:$0xf]
  %v19 = vld [vmem:[%s1 + $0x8] sm:$0xf]
  %v20 = vld [vmem:[%s1 + $0xc] sm:$0xf]
  %v21 = vld [vmem:[%s1 + $0x10] sm:$0xf]
  %v22 = vld [vmem:[%s1 + $0x14] sm:$0xf]
  %v23 = vld [vmem:[%s1 + $0x18] sm:$0xf]
  %v24 = vld [vmem:[%s1 + $0x1c] sm:$0xf]
  %v25 = vld [vmem:[%s1 + $0x20] sm:$0xf]
  %v26 = vld [vmem:[%s1 + $0x24] sm:$0xf]
  %v27 = vld [vmem:[%s1 + $0x28] sm:$0xf]
  %v28 = vld [vmem:[%s1 + $0x2c] sm:$0xf]
  %v29 = vld [vmem:[%s1 + $0x30] sm:$0xf]
  %v30 = vld [vmem:[%s1 + $0x34] sm:$0xf]
  %v31 = vld [vmem:[%s1 + $0x38] sm:$0xf]
  %v32 = vld [vmem:[%s1 + $0x3c] sm:$0xf]
  %v33 = vld [vmem:[%s1 + $0x40] sm:$0xf]
  %v34 = vld [vmem:[%s1 + $0x44] sm:$0xf]
  %v35 = vld [vmem:[%s1 + $0x48] sm:$0xf]
  %v36 = vld [vmem:[%s1 + $0x4c] sm:$0xf]
  %v37 = vld [vmem:[%s1 + $0x50] sm:$0xf]
  %v38 = vld [vmem:[%s1 + $0x54] sm:$0xf]
  %v39 = vld [vmem:[%s1 + $0x58] sm:$0xf]
  %v40 = vld [vmem:[%s1 + $0x5c] sm:$0xf]
  %v41 = vld [vmem:[%s1 + $0x60] sm:$0xf]
  %v42 = vld [vmem:[%s1 + $0x64] sm:$0xf]
  %v43 = vld [vmem:[%s1 + $0x68] sm:$0xf]
  %v44 = vld [vmem:[%s1 + $0x6c] sm:$0xf]
  %v45 = vld [vmem:[%s1 + $0x70] sm:$0xf]
  %v46 = vld [vmem:[%s1 + $0x74] sm:$0xf]
  %v47 = vld [vmem:[%s1 + $0x78] sm:$0xf]
  %v48 = vld [vmem:[%s1 + $0x7c] sm:$0xf]
  %v49 = vld [vmem:[%s1 + $0x80] sm:$0xf]
  %v50 = vld [vmem:[%s1 + $0x84] sm:$0xf]
  %v51 = vld [vmem:[%s1 + $0x88] sm:$0xf]
  %v52 = vld [vmem:[%s1 + $0x8c] sm:$0xf]
  %v53 = vld [vmem:[%s1 + $0x90] sm:$0xf]
  %v54 = vld [vmem:[%s1 + $0x94] sm:$0xf]
  %v55 = vld [vmem:[%s1 + $0x98] sm:$0xf]
  %v56 = vld [vmem:[%s1 + $0x9c] sm:$0xf]
  %v57 = vld [vmem:[%s1 + $0xa0] sm:$0xf]
  %v58 = vld [vmem:[%s1 + $0xa4] sm:$0xf]
  %v59 = vld [vmem:[%s1 + $0xa8] sm:$0xf]
  %v60 = vld [vmem:[%s1 + $0xac] sm:$0xf]
  %v61 = vld [vmem:[%s1 + $0xb0] sm:$0xf]
  %v62 = vld [vmem:[%s1 + $0xb4] sm:$0xf]
  %v63 = vld [vmem:[%s1 + $0xb8] sm:$0xf]
  %v64 = vld [vmem:[%s1 + $0xbc] sm:$0xf]
  %v65 = vld [vmem:[%s1 + $0xc0] sm:$0xf]
  %v66 = vld [vmem:[%s1 + $0xc4] sm:$0xf]
  %v67 = vld [vmem:[%s1 + $0xc8] sm:$0xf]
  %v68 = vld [vmem:[%s1 + $0xcc] sm:$0xf]
  %v69 = vld [vmem:[%s1 + $0xd0] sm:$0xf]
  %v70 = vld [vmem:[%s1 + $0xd4] sm:$0xf]
  %v71 = vld [vmem:[%s1 + $0xd8] sm:$0xf]
  %v72 = vld [vmem:[%s1 + $0xdc] sm:$0xf]
  %v73 = vld [vmem:[%s1 + $0xe0] sm:$0xf]
  %v74 = vld [vmem:[%s1 + $0xe4] sm:$0xf]
  %v75 = vld [vmem:[%s1 + $0xe8] sm:$0xf]
  %v76 = vld [vmem:[%s1 + $0xec] sm:$0xf]
  %v77 = vld [vmem:[%s1 + $0xf0] sm:$0xf]
  %v78 = vld [vmem:[%s1 + $0xf4] sm:$0xf]
  %v79 = vld [vmem:[%s1 + $0xf8] sm:$0xf]
  %v80 = vld [vmem:[%s1 + $0xfc] sm:$0xf]
  %v81 = vld [vmem:[%s2] sm:$0xff]
  %83 = vset.pattern.permute.xlu0 0
  %84 = vperm.xlu0 %83, %v81
  %v85 = vpop.permute.xlu0 %84
  %v89 = vunpack.c.l.b16 %v15
  %v90 = vunpack.c.h.b16 %v15
  %v91 = vunpack.c.l.b16 %v16
  %v92 = vunpack.c.h.b16 %v16
  %v93 = vpack.c.b16 %v89, %v89
  %v94 = vpack.c.b16 %v90, %v90
  %v95 = vpack.c.b16 %v91, %v91
  %v96 = vpack.c.b16 %v92, %v92
  %v165 = vunpack.c.l.b16 %v17
  %v166 = vunpack.c.l.b16 %v18
  %v167 = vunpack.c.l.b16 %v19
  %v168 = vunpack.c.l.b16 %v20
  %v169 = vunpack.c.l.b16 %v21
  %v170 = vunpack.c.l.b16 %v22
  %v171 = vunpack.c.l.b16 %v23
  %v172 = vunpack.c.l.b16 %v24
  %v173 = vunpack.c.l.b16 %v25
  %v174 = vunpack.c.l.b16 %v26
  %v175 = vunpack.c.l.b16 %v27
  %v176 = vunpack.c.l.b16 %v28
  %v177 = vunpack.c.l.b16 %v29
  %v178 = vunpack.c.l.b16 %v30
  %v179 = vunpack.c.l.b16 %v31
  %v180 = vunpack.c.l.b16 %v32
  %v181 = vunpack.c.l.b16 %v33
  %v182 = vunpack.c.l.b16 %v34
  %v183 = vunpack.c.l.b16 %v35
  %v184 = vunpack.c.l.b16 %v36
  %v185 = vunpack.c.l.b16 %v37
  %v186 = vunpack.c.l.b16 %v38
  %v187 = vunpack.c.l.b16 %v39
  %v188 = vunpack.c.l.b16 %v40
  %v189 = vunpack.c.l.b16 %v41
  %v190 = vunpack.c.l.b16 %v42
  %v191 = vunpack.c.l.b16 %v43
  %v192 = vunpack.c.l.b16 %v44
  %v193 = vunpack.c.l.b16 %v45
  %v194 = vunpack.c.l.b16 %v46
  %v195 = vunpack.c.l.b16 %v47
  %v196 = vunpack.c.l.b16 %v48
  %v197 = vunpack.c.l.b16 %v49
  %v198 = vunpack.c.l.b16 %v50
  %v199 = vunpack.c.l.b16 %v51
  %v200 = vunpack.c.l.b16 %v52
  %v201 = vunpack.c.l.b16 %v53
  %v202 = vunpack.c.l.b16 %v54
  %v203 = vunpack.c.l.b16 %v55
  %v204 = vunpack.c.l.b16 %v56
  %v205 = vunpack.c.l.b16 %v57
  %v206 = vunpack.c.l.b16 %v58
  %v207 = vunpack.c.l.b16 %v59
  %v208 = vunpack.c.l.b16 %v60
  %v209 = vunpack.c.l.b16 %v61
  %v210 = vunpack.c.l.b16 %v62
  %v211 = vunpack.c.l.b16 %v63
  %v212 = vunpack.c.l.b16 %v64
  %v213 = vunpack.c.l.b16 %v65
  %v214 = vunpack.c.l.b16 %v66
  %v215 = vunpack.c.l.b16 %v67
  %v216 = vunpack.c.l.b16 %v68
  %v217 = vunpack.c.l.b16 %v69
  %v218 = vunpack.c.l.b16 %v70
  %v219 = vunpack.c.l.b16 %v71
  %v220 = vunpack.c.l.b16 %v72
  %v221 = vunpack.c.l.b16 %v73
  %v222 = vunpack.c.l.b16 %v74
  %v223 = vunpack.c.l.b16 %v75
  %v224 = vunpack.c.l.b16 %v76
  %v225 = vunpack.c.l.b16 %v77
  %v226 = vunpack.c.l.b16 %v78
  %v227 = vunpack.c.l.b16 %v79
  %v228 = vunpack.c.l.b16 %v80
  %v229 = vpack.c.b16 %v166, %v165
  %v230 = vpack.c.b16 %v168, %v167
  %v231 = vpack.c.b16 %v170, %v169
  %v232 = vpack.c.b16 %v172, %v171
  %v233 = vpack.c.b16 %v174, %v173
  %v234 = vpack.c.b16 %v176, %v175
  %v235 = vpack.c.b16 %v178, %v177
  %v236 = vpack.c.b16 %v180, %v179
  %v237 = vpack.c.b16 %v182, %v181
  %v238 = vpack.c.b16 %v184, %v183
  %v239 = vpack.c.b16 %v186, %v185
  %v240 = vpack.c.b16 %v188, %v187
  %v241 = vpack.c.b16 %v190, %v189
  %v242 = vpack.c.b16 %v192, %v191
  %v243 = vpack.c.b16 %v194, %v193
  %v244 = vpack.c.b16 %v196, %v195
  %v245 = vpack.c.b16 %v198, %v197
  %v246 = vpack.c.b16 %v200, %v199
  %v247 = vpack.c.b16 %v202, %v201
  %v248 = vpack.c.b16 %v204, %v203
  %v249 = vpack.c.b16 %v206, %v205
  %v250 = vpack.c.b16 %v208, %v207
  %v251 = vpack.c.b16 %v210, %v209
  %v252 = vpack.c.b16 %v212, %v211
  %v253 = vpack.c.b16 %v214, %v213
  %v254 = vpack.c.b16 %v216, %v215
  %v255 = vpack.c.b16 %v218, %v217
  %v256 = vpack.c.b16 %v220, %v219
  %v257 = vpack.c.b16 %v222, %v221
  %v258 = vpack.c.b16 %v224, %v223
  %v259 = vpack.c.b16 %v226, %v225
  %v260 = vpack.c.b16 %v228, %v227
  %293 = vmatprep.subr.bf16.mxu0 0
  %294 = vmatpush1.bf16.msra.mxu0 %v229
  %295 = vmatprep.subr.bf16.mxu0 0
  %296 = vmatpush1.bf16.msra.mxu0 %v230
  %297 = vmatprep.subr.bf16.mxu0 0
  %298 = vmatpush1.bf16.msra.mxu0 %v231
  %299 = vmatprep.subr.bf16.mxu0 0
  %300 = vmatpush1.bf16.msra.mxu0 %v232
  %301 = vmatprep.subr.bf16.mxu0 0
  %302 = vmatpush1.bf16.msra.mxu0 %v233
  %303 = vmatprep.subr.bf16.mxu0 0
  %304 = vmatpush1.bf16.msra.mxu0 %v234
  %305 = vmatprep.subr.bf16.mxu0 0
  %306 = vmatpush1.bf16.msra.mxu0 %v235
  %307 = vmatprep.subr.bf16.mxu0 0
  %308 = vmatpush1.bf16.msra.mxu0 %v236
  %309 = vmatprep.subr.bf16.mxu0 0
  %310 = vmatpush1.bf16.msra.mxu0 %v237
  %311 = vmatprep.subr.bf16.mxu0 0
  %312 = vmatpush1.bf16.msra.mxu0 %v238
  %313 = vmatprep.subr.bf16.mxu0 0
  %314 = vmatpush1.bf16.msra.mxu0 %v239
  %315 = vmatprep.subr.bf16.mxu0 0
  %316 = vmatpush1.bf16.msra.mxu0 %v240
  %317 = vmatprep.subr.bf16.mxu0 0
  %318 = vmatpush1.bf16.msra.mxu0 %v241
  %319 = vmatprep.subr.bf16.mxu0 0
  %320 = vmatpush1.bf16.msra.mxu0 %v242
  %321 = vmatprep.subr.bf16.mxu0 0
  %322 = vmatpush1.bf16.msra.mxu0 %v243
  %323 = vmatprep.subr.bf16.mxu0 0
  %324 = vmatpush1.bf16.msra.mxu0 %v244
  %325 = vmatprep.mubr.bf16.mxu0 %v94
  %326 = vmatmul.mubr.bf16.gmra.mrb[0].mxu0 %v93
  %v327 = vpop.f32.mrb[0].mxu0
  %v328 = vadd.f32 %v85, %v327
  %v329 = vpop.f32.mrb[0].mxu0
  %v330 = vpop.f32.mrb[0].mxu0
  %v331 = vpop.f32.mrb[0].mxu0
  %332 = vdwg.mxu0
  %333 = vmatprep.subr.bf16.mxu0 0
  %334 = vmatpush1.bf16.msra.mxu0 %v245
  %335 = vmatprep.subr.bf16.mxu0 0
  %336 = vmatpush1.bf16.msra.mxu0 %v246
  %337 = vmatprep.subr.bf16.mxu0 0
  %338 = vmatpush1.bf16.msra.mxu0 %v247
  %339 = vmatprep.subr.bf16.mxu0 0
  %340 = vmatpush1.bf16.msra.mxu0 %v248
  %341 = vmatprep.subr.bf16.mxu0 0
  %342 = vmatpush1.bf16.msra.mxu0 %v249
  %343 = vmatprep.subr.bf16.mxu0 0
  %344 = vmatpush1.bf16.msra.mxu0 %v250
  %345 = vmatprep.subr.bf16.mxu0 0
  %346 = vmatpush1.bf16.msra.mxu0 %v251
  %347 = vmatprep.subr.bf16.mxu0 0
  %348 = vmatpush1.bf16.msra.mxu0 %v252
  %349 = vmatprep.subr.bf16.mxu0 0
  %350 = vmatpush1.bf16.msra.mxu0 %v253
  %351 = vmatprep.subr.bf16.mxu0 0
  %352 = vmatpush1.bf16.msra.mxu0 %v254
  %353 = vmatprep.subr.bf16.mxu0 0
  %354 = vmatpush1.bf16.msra.mxu0 %v255
  %355 = vmatprep.subr.bf16.mxu0 0
  %356 = vmatpush1.bf16.msra.mxu0 %v256
  %357 = vmatprep.subr.bf16.mxu0 0
  %358 = vmatpush1.bf16.msra.mxu0 %v257
  %359 = vmatprep.subr.bf16.mxu0 0
  %360 = vmatpush1.bf16.msra.mxu0 %v258
  %361 = vmatprep.subr.bf16.mxu0 0
  %362 = vmatpush1.bf16.msra.mxu0 %v259
  %363 = vmatprep.subr.bf16.mxu0 0
  %364 = vmatpush1.bf16.msra.mxu0 %v260
  %365 = vmatprep.mubr.bf16.mxu0 %v96
  %366 = vmatmul.mubr.bf16.gmra.mrb[0].mxu0 %v95
  %v367 = vpop.f32.mrb[0].mxu0
  %v368 = vadd.f32 %v328, %v367
  %v369 = vpop.f32.mrb[0].mxu0
  %v370 = vpop.f32.mrb[0].mxu0
  %v371 = vpop.f32.mrb[0].mxu0
  %372 = vdwg.mxu0
  %vm373 = vcmp.ge.f32.partialorder %v368, 0.0
  %v374 = vmul.f32 %v368, 0.1
  %v375 = vsel %vm373, %v368, %v374
  %376 = vst [vmem:[%s3] sm:$0xff] %v375
  // Predicated region
  $region14: #{conv_ae_forward.27} parent=0 // pred_check
    _
  $region15: #{conv_ae_forward.27} parent=0 // pred_check_branch
    %378 = sbr.rel (0) target = $region17
  $region16: #{conv_ae_forward.27} parent=0 // pred_region
    _
  $region17: #{conv_ae_forward.27} parent=0 // pred_fallthru
    _
  // Predicated region
  $region18: #{conv_ae_forward.27} parent=0 // pred_check
    _
  $region19: #{conv_ae_forward.27} parent=0 // pred_check_branch
    %380 = sbr.rel (0) target = $region21
  $region20: #{conv_ae_forward.27} parent=0 // pred_region
    _
  $region21: #{conv_ae_forward.27} parent=0 // pred_fallthru
    _

// kernel: conv_ae_forward.28
$region0: #{conv_ae_forward.28}
  #allocation0 [shape = 'u32[]', space=smem, size = 0x4, offset = 0x4, fixed_abs, tag = 'smem constant byte address 0x4 - core index']
  #allocation1 [shape = 'u32[144,128]{1,0:T(1,128)}', space=vmem, size = 0x12000, scoped, tag = 'internal scratch']
  %s0 = inlined_call_operand.vmem [shape: bf16[8,48], index: 0, kind: input, shape index: {}]
  %s1 = inlined_call_operand.vmem [shape: bf16[48,128], index: 1, kind: input, shape index: {}]
  %s2 = inlined_call_operand.vmem [shape: f32[8,1], index: 2, kind: input, shape index: {}]
  %s3 = inlined_call_operand.vmem [shape: f32[8,128], index: 3, kind: output, shape index: {}]
  %s4 = sld [smem:[#allocation0]]
  $region22: #{conv_ae_forward.28} parent=0
    _
  %s6 = ssub.s32 1, %s4
  %s7 = scalar_select 0, %s6, %s4
  // Predicated region
  $region2: #{conv_ae_forward.28} parent=0 // pred_check
    _
  $region3: #{conv_ae_forward.28} parent=0 // pred_check_branch
    %9 = sbr.rel (0) target = $region5
  $region4: #{conv_ae_forward.28} parent=0 // pred_region
    _
  $region5: #{conv_ae_forward.28} parent=0 // pred_fallthru
    _
  // Predicated region
  $region6: #{conv_ae_forward.28} parent=0 // pred_check
    _
  $region7: #{conv_ae_forward.28} parent=0 // pred_check_branch
    %11 = sbr.rel (0) target = $region9
  $region8: #{conv_ae_forward.28} parent=0 // pred_region
    _
  $region9: #{conv_ae_forward.28} parent=0 // pred_fallthru
    _
  // Predicated region
  $region10: #{conv_ae_forward.28} parent=0 // pred_check
    _
  $region11: #{conv_ae_forward.28} parent=0 // pred_check_branch
    %13 = sbr.rel (0) target = $region13
  $region12: #{conv_ae_forward.28} parent=0 // pred_region
    _
  $region13: #{conv_ae_forward.28} parent=0 // pred_fallthru
    _
  %v15 = vld [vmem:[%s0] sm:$0xf]
  %v16 = vld [vmem:[%s1] sm:$0xf]
  %v17 = vld [vmem:[%s1 + $0x4] sm:$0xf]
  %v18 = vld [vmem:[%s1 + $0x8] sm:$0xf]
  %v19 = vld [vmem:[%s1 + $0xc] sm:$0xf]
  %v20 = vld [vmem:[%s1 + $0x10] sm:$0xf]
  %v21 = vld [vmem:[%s1 + $0x14] sm:$0xf]
  %v22 = vld [vmem:[%s2] sm:$0xff]
  %24 = vset.pattern.permute.xlu0 0
  %25 = vperm.xlu0 %24, %v22
  %v26 = vpop.permute.xlu0 %25
  %v34 = vunpack.c.l.b16 %v16
  %v35 = vunpack.c.l.b16 %v17
  %v36 = vunpack.c.l.b16 %v18
  %v37 = vunpack.c.l.b16 %v19
  %v38 = vunpack.c.l.b16 %v20
  %v39 = vunpack.c.l.b16 %v21
  %v40 = vpack.c.b16 %v35, %v34
  %v41 = vpack.c.b16 %v37, %v36
  %v42 = vpack.c.b16 %v39, %v38
  %vm46 = vcmask 392192
  %v48 = vsel %vm46, %v15, 0
  %50 = vmatprep.subr.bf16.mxu0 0
  %51 = vmatpush1.bf16.msra.mxu0 %v40
  %52 = vmatprep.subr.bf16.mxu0 0
  %53 = vmatpush1.bf16.msra.mxu0 %v41
  %54 = vmatprep.subr.bf16.mxu0 0
  %55 = vmatpush1.bf16.msra.mxu0 %v42
  %56 = vmatprep.subr.bf16.mxu0 0
  %57 = vmatpush1.bf16.msra.mxu0 0
  %58 = vmatprep.subr.bf16.mxu0 0
  %59 = vmatpush1.bf16.msra.mxu0 0
  %60 = vmatprep.subr.bf16.mxu0 0
  %61 = vmatpush1.bf16.msra.mxu0 0
  %62 = vmatprep.subr.bf16.mxu0 0
  %63 = vmatpush1.bf16.msra.mxu0 0
  %64 = vmatprep.subr.bf16.mxu0 0
  %65 = vmatpush1.bf16.msra.mxu0 0
  %66 = vmatprep.subr.bf16.mxu0 0
  %67 = vmatpush1.bf16.msra.mxu0 0
  %68 = vmatprep.subr.bf16.mxu0 0
  %69 = vmatpush1.bf16.msra.mxu0 0
  %70 = vmatprep.subr.bf16.mxu0 0
  %71 = vmatpush1.bf16.msra.mxu0 0
  %72 = vmatprep.subr.bf16.mxu0 0
  %73 = vmatpush1.bf16.msra.mxu0 0
  %74 = vmatprep.subr.bf16.mxu0 0
  %75 = vmatpush1.bf16.msra.mxu0 0
  %76 = vmatprep.subr.bf16.mxu0 0
  %77 = vmatpush1.bf16.msra.mxu0 0
  %78 = vmatprep.subr.bf16.mxu0 0
  %79 = vmatpush1.bf16.msra.mxu0 0
  %80 = vmatprep.subr.bf16.mxu0 0
  %81 = vmatpush1.bf16.msra.mxu0 0
  %82 = vmatprep.mubr.bf16.mxu0 0
  %83 = vmatmul.mubr.bf16.gmra.mrb[0].mxu0 %v48
  %v84 = vpop.f32.mrb[0].mxu0
  %v85 = vadd.f32 %v26, %v84
  %v86 = vpop.f32.mrb[0].mxu0
  %v87 = vpop.f32.mrb[0].mxu0
  %v88 = vpop.f32.mrb[0].mxu0
  %89 = vdwg.mxu0
  %vm90 = vcmp.ge.f32.partialorder %v85, 0.0
  %v91 = vmul.f32 %v85, 0.1
  %v92 = vsel %vm90, %v85, %v91
  %93 = vst [vmem:[%s3] sm:$0xff] %v92
  // Predicated region
  $region14: #{conv_ae_forward.28} parent=0 // pred_check
    _
  $region15: #{conv_ae_forward.28} parent=0 // pred_check_branch
    %95 = sbr.rel (0) target = $region17
  $region16: #{conv_ae_forward.28} parent=0 // pred_region
    _
  $region17: #{conv_ae_forward.28} parent=0 // pred_fallthru
    _
  // Predicated region
  $region18: #{conv_ae_forward.28} parent=0 // pred_check
    _
  $region19: #{conv_ae_forward.28} parent=0 // pred_check_branch
    %97 = sbr.rel (0) target = $region21
  $region20: #{conv_ae_forward.28} parent=0 // pred_region
    _
  $region21: #{conv_ae_forward.28} parent=0 // pred_fallthru
    _

// kernel: conv_ae_forward.29
$region0: #{conv_ae_forward.29}
  #allocation0 [shape = 'u32[]', space=smem, size = 0x4, offset = 0x4, fixed_abs, tag = 'smem constant byte address 0x4 - core index']
  #allocation1 [shape = 'u32[144,128]{1,0:T(1,128)}', space=vmem, size = 0x12000, scoped, tag = 'internal scratch']
  %s0 = inlined_call_operand.vmem [shape: bf16[16,80], index: 0, kind: input, shape index: {}]
  %s1 = inlined_call_operand.vmem [shape: bf16[80,128], index: 1, kind: input, shape index: {}]
  %s2 = inlined_call_operand.vmem [shape: f32[16,1], index: 2, kind: input, shape index: {}]
  %s3 = inlined_call_operand.vmem [shape: f32[16,128], index: 3, kind: output, shape index: {}]
  %s4 = sld [smem:[#allocation0]]
  $region22: #{conv_ae_forward.29} parent=0
    _
  %s6 = ssub.s32 1, %s4
  %s7 = scalar_select 0, %s6, %s4
  // Predicated region
  $region2: #{conv_ae_forward.29} parent=0 // pred_check
    _
  $region3: #{conv_ae_forward.29} parent=0 // pred_check_branch
    %9 = sbr.rel (0) target = $region5
  $region4: #{conv_ae_forward.29} parent=0 // pred_region
    _
  $region5: #{conv_ae_forward.29} parent=0 // pred_fallthru
    _
  // Predicated region
  $region6: #{conv_ae_forward.29} parent=0 // pred_check
    _
  $region7: #{conv_ae_forward.29} parent=0 // pred_check_branch
    %11 = sbr.rel (0) target = $region9
  $region8: #{conv_ae_forward.29} parent=0 // pred_region
    _
  $region9: #{conv_ae_forward.29} parent=0 // pred_fallthru
    _
  // Predicated region
  $region10: #{conv_ae_forward.29} parent=0 // pred_check
    _
  $region11: #{conv_ae_forward.29} parent=0 // pred_check_branch
    %13 = sbr.rel (0) target = $region13
  $region12: #{conv_ae_forward.29} parent=0 // pred_region
    _
  $region13: #{conv_ae_forward.29} parent=0 // pred_fallthru
    _
  %v15 = vld [vmem:[%s0] sm:$0xf]
  %v16 = vld [vmem:[%s0 + $0x4] sm:$0xf]
  %v17 = vld [vmem:[%s1] sm:$0xf]
  %v18 = vld [vmem:[%s1 + $0x4] sm:$0xf]
  %v19 = vld [vmem:[%s1 + $0x8] sm:$0xf]
  %v20 = vld [vmem:[%s1 + $0xc] sm:$0xf]
  %v21 = vld [vmem:[%s1 + $0x10] sm:$0xf]
  %v22 = vld [vmem:[%s1 + $0x14] sm:$0xf]
  %v23 = vld [vmem:[%s1 + $0x18] sm:$0xf]
  %v24 = vld [vmem:[%s1 + $0x1c] sm:$0xf]
  %v25 = vld [vmem:[%s1 + $0x20] sm:$0xf]
  %v26 = vld [vmem:[%s1 + $0x24] sm:$0xf]
  %v27 = vld [vmem:[%s2] sm:$0xff]
  %v28 = vld [vmem:[%s2 + $0x8] sm:$0xff]
  %30 = vset.pattern.permute.xlu0 0
  %31 = vperm.xlu0 %30, %v27
  %v32 = vpop.permute.xlu0 %31
  %35 = vset.pattern.permute.xlu0 0
  %36 = vperm.xlu0 %35, %v28
  %v37 = vpop.permute.xlu0 %36
  %v41 = vunpack.c.l.b16 %v15
  %v42 = vunpack.c.l.b16 %v16
  %v43 = vpack.c.b16 %v42, %v41
  %v54 = vunpack.c.l.b16 %v17
  %v55 = vunpack.c.l.b16 %v18
  %v56 = vunpack.c.l.b16 %v19
  %v57 = vunpack.c.l.b16 %v20
  %v58 = vunpack.c.l.b16 %v21
  %v59 = vunpack.c.l.b16 %v22
  %v60 = vunpack.c.l.b16 %v23
  %v61 = vunpack.c.l.b16 %v24
  %v62 = vunpack.c.l.b16 %v25
  %v63 = vunpack.c.l.b16 %v26
  %v64 = vpack.c.b16 %v55, %v54
  %v65 = vpack.c.b16 %v57, %v56
  %v66 = vpack.c.b16 %v59, %v58
  %v67 = vpack.c.b16 %v61, %v60
  %v68 = vpack.c.b16 %v63, %v62
  %vm74 = vcmask 654336
  %v76 = vsel %vm74, %v43, 0
  %78 = vmatprep.subr.bf16.mxu0 0
  %79 = vmatpush1.bf16.msra.mxu0 %v64
  %80 = vmatprep.subr.bf16.mxu0 0
  %81 = vmatpush1.bf16.msra.mxu0 %v65
  %82 = vmatprep.subr.bf16.mxu0 0
  %83 = vmatpush1.bf16.msra.mxu0 %v66
  %84 = vmatprep.subr.bf16.mxu0 0
  %85 = vmatpush1.bf16.msra.mxu0 %v67
  %86 = vmatprep.subr.bf16.mxu0 0
  %87 = vmatpush1.bf16.msra.mxu0 %v68
  %88 = vmatprep.subr.bf16.mxu0 0
  %89 = vmatpush1.bf16.msra.mxu0 0
  %90 = vmatprep.subr.bf16.mxu0 0
  %91 = vmatpush1.bf16.msra.mxu0 0
  %92 = vmatprep.subr.bf16.mxu0 0
  %93 = vmatpush1.bf16.msra.mxu0 0
  %94 = vmatprep.subr.bf16.mxu0 0
  %95 = vmatpush1.bf16.msra.mxu0 0
  %96 = vmatprep.subr.bf16.mxu0 0
  %97 = vmatpush1.bf16.msra.mxu0 0
  %98 = vmatprep.subr.bf16.mxu0 0
  %99 = vmatpush1.bf16.msra.mxu0 0
  %100 = vmatprep.subr.bf16.mxu0 0
  %101 = vmatpush1.bf16.msra.mxu0 0
  %102 = vmatprep.subr.bf16.mxu0 0
  %103 = vmatpush1.bf16.msra.mxu0 0
  %104 = vmatprep.subr.bf16.mxu0 0
  %105 = vmatpush1.bf16.msra.mxu0 0
  %106 = vmatprep.subr.bf16.mxu0 0
  %107 = vmatpush1.bf16.msra.mxu0 0
  %108 = vmatprep.subr.bf16.mxu0 0
  %109 = vmatpush1.bf16.msra.mxu0 0
  %110 = vmatprep.mubr.bf16.mxu0 0
  %111 = vmatmul.mubr.bf16.gmra.mrb[0].mxu0 %v76
  %v112 = vpop.f32.mrb[0].mxu0
  %v113 = vadd.f32 %v32, %v112
  %v114 = vpop.f32.mrb[0].mxu0
  %v115 = vpop.f32.mrb[0].mxu0
  %v116 = vadd.f32 %v37, %v115
  %v117 = vpop.f32.mrb[0].mxu0
  %118 = vdwg.mxu0
  %vm119 = vcmp.ge.f32.partialorder %v113, 0.0
  %vm120 = vcmp.ge.f32.partialorder %v116, 0.0
  %v121 = vmul.f32 %v113, 0.1
  %v122 = vmul.f32 %v116, 0.1
  %v123 = vsel %vm119, %v113, %v121
  %v124 = vsel %vm120, %v116, %v122
  %125 = vst [vmem:[%s3] sm:$0xff] %v123
  %126 = vst [vmem:[%s3 + $0x8] sm:$0xff] %v124
  // Predicated region
  $region14: #{conv_ae_forward.29} parent=0 // pred_check
    _
  $region15: #{conv_ae_forward.29} parent=0 // pred_check_branch
    %128 = sbr.rel (0) target = $region17
  $region16: #{conv_ae_forward.29} parent=0 // pred_region
    _
  $region17: #{conv_ae_forward.29} parent=0 // pred_fallthru
    _
  // Predicated region
  $region18: #{conv_ae_forward.29} parent=0 // pred_check
    _
  $region19: #{conv_ae_forward.29} parent=0 // pred_check_branch
    %130 = sbr.rel (0) target = $region21
  $region20: #{conv_ae_forward.29} parent=0 // pred_region
    _
  $region21: #{conv_ae_forward.29} parent=0 // pred_fallthru
    _

// kernel: conv_ae_forward.30
$region0: #{conv_ae_forward.30}
  #allocation0 [shape = 'u32[]', space=smem, size = 0x4, offset = 0x4, fixed_abs, tag = 'smem constant byte address 0x4 - core index']
  #allocation1 [shape = 'u32[144,128]{1,0:T(1,128)}', space=vmem, size = 0x12000, scoped, tag = 'internal scratch']
  %s0 = inlined_call_operand.vmem [shape: bf16[32,144], index: 0, kind: input, shape index: {}]
  %s1 = inlined_call_operand.vmem [shape: bf16[144,128], index: 1, kind: input, shape index: {}]
  %s2 = inlined_call_operand.vmem [shape: f32[32,1], index: 2, kind: input, shape index: {}]
  %s3 = inlined_call_operand.vmem [shape: f32[32,128], index: 3, kind: output, shape index: {}]
  %s4 = sld [smem:[#allocation0]]
  $region22: #{conv_ae_forward.30} parent=0
    _
  %s6 = ssub.s32 1, %s4
  %s7 = scalar_select 0, %s6, %s4
  // Predicated region
  $region2: #{conv_ae_forward.30} parent=0 // pred_check
    _
  $region3: #{conv_ae_forward.30} parent=0 // pred_check_branch
    %9 = sbr.rel (0) target = $region5
  $region4: #{conv_ae_forward.30} parent=0 // pred_region
    _
  $region5: #{conv_ae_forward.30} parent=0 // pred_fallthru
    _
  // Predicated region
  $region6: #{conv_ae_forward.30} parent=0 // pred_check
    _
  $region7: #{conv_ae_forward.30} parent=0 // pred_check_branch
    %11 = sbr.rel (0) target = $region9
  $region8: #{conv_ae_forward.30} parent=0 // pred_region
    _
  $region9: #{conv_ae_forward.30} parent=0 // pred_fallthru
    _
  // Predicated region
  $region10: #{conv_ae_forward.30} parent=0 // pred_check
    _
  $region11: #{conv_ae_forward.30} parent=0 // pred_check_branch
    %13 = sbr.rel (0) target = $region13
  $region12: #{conv_ae_forward.30} parent=0 // pred_region
    _
  $region13: #{conv_ae_forward.30} parent=0 // pred_fallthru
    _
  %v15 = vld [vmem:[%s0] sm:$0xff]
  %v16 = vld [vmem:[%s0 + $0x8] sm:$0xff]
  %v17 = vld [vmem:[%s0 + $0x10] sm:$0xff]
  %v18 = vld [vmem:[%s0 + $0x18] sm:$0xff]
  %v19 = vld [vmem:[%s1] sm:$0xf]
  %v20 = vld [vmem:[%s1 + $0x4] sm:$0xf]
  %v21 = vld [vmem:[%s1 + $0x8] sm:$0xf]
  %v22 = vld [vmem:[%s1 + $0xc] sm:$0xf]
  %v23 = vld [vmem:[%s1 + $0x10] sm:$0xf]
  %v24 = vld [vmem:[%s1 + $0x14] sm:$0xf]
  %v25 = vld [vmem:[%s1 + $0x18] sm:$0xf]
  %v26 = vld [vmem:[%s1 + $0x1c] sm:$0xf]
  %v27 = vld [vmem:[%s1 + $0x20] sm:$0xf]
  %v28 = vld [vmem:[%s1 + $0x24] sm:$0xf]
  %v29 = vld [vmem:[%s1 + $0x28] sm:$0xf]
  %v30 = vld [vmem:[%s1 + $0x2c] sm:$0xf]
  %v31 = vld [vmem:[%s1 + $0x30] sm:$0xf]
  %v32 = vld [vmem:[%s1 + $0x34] sm:$0xf]
  %v33 = vld [vmem:[%s1 + $0x38] sm:$0xf]
  %v34 = vld [vmem:[%s1 + $0x3c] sm:$0xf]
  %v35 = vld [vmem:[%s1 + $0x40] sm:$0xf]
  %v36 = vld [vmem:[%s1 + $0x44] sm:$0xf]
  %v37 = vld [vmem:[%s2] sm:$0xff]
  %v38 = vld [vmem:[%s2 + $0x8] sm:$0xff]
  %v39 = vld [vmem:[%s2 + $0x10] sm:$0xff]
  %v40 = vld [vmem:[%s2 + $0x18] sm:$0xff]
  %42 = vset.pattern.permute.xlu0 0
  %43 = vperm.xlu0 %42, %v37
  %v44 = vpop.permute.xlu0 %43
  %47 = vset.pattern.permute.xlu0 0
  %48 = vperm.xlu0 %47, %v38
  %v49 = vpop.permute.xlu0 %48
  %52 = vset.pattern.permute.xlu0 0
  %53 = vperm.xlu0 %52, %v39
  %v54 = vpop.permute.xlu0 %53
  %57 = vset.pattern.permute.xlu0 0
  %58 = vperm.xlu0 %57, %v40
  %v59 = vpop.permute.xlu0 %58
  %v65 = vunpack.c.l.b16 %v15
  %v66 = vunpack.c.h.b16 %v15
  %v67 = vunpack.c.l.b16 %v16
  %v68 = vunpack.c.h.b16 %v16
  %v69 = vunpack.c.l.b16 %v17
  %v70 = vunpack.c.h.b16 %v17
  %v71 = vunpack.c.l.b16 %v18
  %v72 = vunpack.c.h.b16 %v18
  %v73 = vpack.c.b16 %v67, %v65
  %v74 = vpack.c.b16 %v68, %v66
  %v75 = vpack.c.b16 %v71, %v69
  %v76 = vpack.c.b16 %v72, %v70
  %v97 = vunpack.c.l.b16 %v19
  %v98 = vunpack.c.l.b16 %v20
  %v99 = vunpack.c.l.b16 %v21
  %v100 = vunpack.c.l.b16 %v22
  %v101 = vunpack.c.l.b16 %v23
  %v102 = vunpack.c.l.b16 %v24
  %v103 = vunpack.c.l.b16 %v25
  %v104 = vunpack.c.l.b16 %v26
  %v105 = vunpack.c.l.b16 %v27
  %v106 = vunpack.c.l.b16 %v28
  %v107 = vunpack.c.l.b16 %v29
  %v108 = vunpack.c.l.b16 %v30
  %v109 = vunpack.c.l.b16 %v31
  %v110 = vunpack.c.l.b16 %v32
  %v111 = vunpack.c.l.b16 %v33
  %v112 = vunpack.c.l.b16 %v34
  %v113 = vunpack.c.l.b16 %v35
  %v114 = vunpack.c.l.b16 %v36
  %v115 = vpack.c.b16 %v98, %v97
  %v116 = vpack.c.b16 %v100, %v99
  %v117 = vpack.c.b16 %v102, %v101
  %v118 = vpack.c.b16 %v104, %v103
  %v119 = vpack.c.b16 %v106, %v105
  %v120 = vpack.c.b16 %v108, %v107
  %v121 = vpack.c.b16 %v110, %v109
  %v122 = vpack.c.b16 %v112, %v111
  %v123 = vpack.c.b16 %v114, %v113
  %vm133 = vcmask 130048
  %v135 = vsel %vm133, %v74, 0
  %v138 = vsel %vm133, %v76, 0
  %140 = vmatprep.subr.bf16.mxu0 0
  %141 = vmatpush1.bf16.msra.mxu0 %v115
  %142 = vmatprep.subr.bf16.mxu0 0
  %143 = vmatpush1.bf16.msra.mxu0 %v116
  %144 = vmatprep.subr.bf16.mxu0 0
  %145 = vmatpush1.bf16.msra.mxu0 %v117
  %146 = vmatprep.subr.bf16.mxu0 0
  %147 = vmatpush1.bf16.msra.mxu0 %v118
  %148 = vmatprep.subr.bf16.mxu0 0
  %149 = vmatpush1.bf16.msra.mxu0 %v119
  %150 = vmatprep.subr.bf16.mxu0 0
  %151 = vmatpush1.bf16.msra.mxu0 %v120
  %152 = vmatprep.subr.bf16.mxu0 0
  %153 = vmatpush1.bf16.msra.mxu0 %v121
  %154 = vmatprep.subr.bf16.mxu0 0
  %155 = vmatpush1.bf16.msra.mxu0 %v122
  %156 = vmatprep.subr.bf16.mxu0 0
  %157 = vmatpush1.bf16.msra.mxu0 %v123
  %158 = vmatprep.subr.bf16.mxu0 0
  %159 = vmatpush1.bf16.msra.mxu0 0
  %160 = vmatprep.subr.bf16.mxu0 0
  %161 = vmatpush1.bf16.msra.mxu0 0
  %162 = vmatprep.subr.bf16.mxu0 0
  %163 = vmatpush1.bf16.msra.mxu0 0
  %164 = vmatprep.subr.bf16.mxu0 0
  %165 = vmatpush1.bf16.msra.mxu0 0
  %166 = vmatprep.subr.bf16.mxu0 0
  %167 = vmatpush1.bf16.msra.mxu0 0
  %168 = vmatprep.subr.bf16.mxu0 0
  %169 = vmatpush1.bf16.msra.mxu0 0
  %170 = vmatprep.subr.bf16.mxu0 0
  %171 = vmatpush1.bf16.msra.mxu0 0
  %172 = vmatprep.mubr.bf16.mxu0 %v135
  %173 = vmatmul.mubr.bf16.gmra.mrb[0].mxu0 %v73
  %v174 = vpop.f32.mrb[0].mxu0
  %v175 = vadd.f32 %v44, %v174
  %v176 = vpop.f32.mrb[0].mxu0
  %v177 = vpop.f32.mrb[0].mxu0
  %v178 = vadd.f32 %v49, %v177
  %v179 = vpop.f32.mrb[0].mxu0
  %180 = vmatprep.mubr.bf16.mxu0 %v138
  %181 = vmatmul.mubr.bf16.gmra.mrb[0].mxu0 %v75
  %v182 = vpop.f32.mrb[0].mxu0
  %v183 = vadd.f32 %v54, %v182
  %v184 = vpop.f32.mrb[0].mxu0
  %v185 = vpop.f32.mrb[0].mxu0
  %v186 = vadd.f32 %v59, %v185
  %v187 = vpop.f32.mrb[0].mxu0
  %188 = vdwg.mxu0
  %vm189 = vcmp.ge.f32.partialorder %v175, 0.0
  %vm190 = vcmp.ge.f32.partialorder %v178, 0.0
  %vm191 = vcmp.ge.f32.partialorder %v183, 0.0
  %vm192 = vcmp.ge.f32.partialorder %v186, 0.0
  %v193 = vmul.f32 %v175, 0.1
  %v194 = vmul.f32 %v178, 0.1
  %v195 = vmul.f32 %v183, 0.1
  %v196 = vmul.f32 %v186, 0.1
  %v197 = vsel %vm189, %v175, %v193
  %v198 = vsel %vm190, %v178, %v194
  %v199 = vsel %vm191, %v183, %v195
  %v200 = vsel %vm192, %v186, %v196
  %201 = vst [vmem:[%s3] sm:$0xff] %v197
  %202 = vst [vmem:[%s3 + $0x8] sm:$0xff] %v198
  %203 = vst [vmem:[%s3 + $0x10] sm:$0xff] %v199
  %204 = vst [vmem:[%s3 + $0x18] sm:$0xff] %v200
  // Predicated region
  $region14: #{conv_ae_forward.30} parent=0 // pred_check
    _
  $region15: #{conv_ae_forward.30} parent=0 // pred_check_branch
    %206 = sbr.rel (0) target = $region17
  $region16: #{conv_ae_forward.30} parent=0 // pred_region
    _
  $region17: #{conv_ae_forward.30} parent=0 // pred_fallthru
    _
  // Predicated region
  $region18: #{conv_ae_forward.30} parent=0 // pred_check
    _
  $region19: #{conv_ae_forward.30} parent=0 // pred_check_branch
    %208 = sbr.rel (0) target = $region21
  $region20: #{conv_ae_forward.30} parent=0 // pred_region
    _
  $region21: #{conv_ae_forward.30} parent=0 // pred_fallthru
    _

// kernel: conv_ae_forward.32
$region0: #{conv_ae_forward.32}
  #allocation0 [shape = 'u32[]', space=smem, size = 0x4, offset = 0x4, fixed_abs, tag = 'smem constant byte address 0x4 - core index']
  #allocation1 [shape = 'u32[144,128]{1,0:T(1,128)}', space=vmem, size = 0x12000, scoped, tag = 'internal scratch']
  %s0 = inlined_call_operand.vmem [shape: bf16[16,80], index: 0, kind: input, shape index: {}]
  %s1 = inlined_call_operand.vmem [shape: bf16[80,512], index: 1, kind: input, shape index: {}]
  %s2 = inlined_call_operand.vmem [shape: f32[16,1], index: 2, kind: input, shape index: {}]
  %s3 = inlined_call_operand.vmem [shape: f32[16,512], index: 3, kind: output, shape index: {}]
  %s4 = sld [smem:[#allocation0]]
  $region102: #{conv_ae_forward.32} parent=0
    _
  %s6 = ssub.s32 1, %s4
  %s7 = scalar_select 0, %s6, %s4
  $region1: #{conv_ae_forward.32} parent=0
    #allocation2 [shape = 'u8[81920]{0}', space=vmem, size = 0x14000, scoped, tag = 'input window, operand 1']
    #allocation3 [shape = 'u8[32768]{0}', space=vmem, size = 0x8000, scoped, tag = 'output window, operand 0']
    loop: start=0, step=1, limit=4
    $region2: #{conv_ae_forward.32} parent=1 // loop_pre_header
      _
    $region3: #{conv_ae_forward.32} parent=1 // loop_header
      %s9 = sphi 0, %s13
      %p10 = scmp.ge.s32.totalorder %s9, 4
      %s17 = sphi 0, %s17
      %s19 = sphi 0, %s17
      %s20 = sphi 0, %s19
      %s34 = sphi 0, %s20
      %s40 = sphi 0, %s42
      %s43 = sphi 0, %s40
      %s44 = sphi 0, %s43
      %s60 = sphi 0, %s44
      %s64 = sphi 0, %s64
      %s66 = sphi 0, %s64
      %s67 = sphi 0, %s66
      %s81 = sphi 0, %s67
      %s87 = sphi 0, %s89
      %s90 = sphi 0, %s87
      %s91 = sphi 0, %s90
      %s107 = sphi 0, %s91
    $region4: #{conv_ae_forward.32} parent=1 // loop_header_branch
      %12 = sbr.rel (%p10) target = $region8
    $region5: #{conv_ae_forward.32} parent=1 // loop_body
      %s14 = ssub.s32 %s9, 1
      %s15 = ssub.s32 %s9, 2
      %s16 = sadd.s32 %s9, 1
      %s18 = sadd.s32 %s17, 1
      %p21 = scmp.eq.s32.totalorder %s9, 1
      %p22 = scmp.ne.s32.totalorder %s17, %s19
      %p23 = scmp.eq.s32.totalorder %s9, 0
      %p24 = por %p22, %p23
      %p25 = scmp.ne.s32.totalorder %s17, %s19
      %p26 = scmp.eq.s32.totalorder %s14, 1
      %p27 = por %p25, %p26
      %p28 = scmp.ne.s32.totalorder %s19, %s20
      %p29 = scmp.eq.s32.totalorder %s14, 0
      %p30 = por %p28, %p29
      %p31 = scmp.ne.s32.totalorder %s19, %s20
      %p32 = scmp.eq.s32.totalorder %s15, 1
      %p33 = por %p31, %p32
      %p35 = scmp.ne.s32.totalorder %s20, %s34
      %p36 = scmp.eq.s32.totalorder %s15, 0
      %p37 = por %p35, %p36
      %s38 = ssub.s32 %s9, %s16
      %p39 = scmp.eq.s32.totalorder %s38, 0
      %s41 = sadd.s32 %s40, 1
      %s42 = scalar_select %p39, %s40, %s41
      %p45 = pneg %p39
      %p46 = scmp.eq.s32.totalorder %s9, 1
      %p47 = por %p45, %p46
      %p48 = scmp.ne.s32.totalorder %s40, %s43
      %p49 = scmp.eq.s32.totalorder %s9, 0
      %p50 = por %p48, %p49
      %p51 = scmp.ne.s32.totalorder %s40, %s43
      %p52 = scmp.eq.s32.totalorder %s14, 1
      %p53 = por %p51, %p52
      %p54 = scmp.ne.s32.totalorder %s43, %s44
      %p55 = scmp.eq.s32.totalorder %s14, 0
      %p56 = por %p54, %p55
      %p57 = scmp.ne.s32.totalorder %s43, %s44
      %p58 = scmp.eq.s32.totalorder %s15, 1
      %p59 = por %p57, %p58
      %p61 = scmp.ne.s32.totalorder %s44, %s60
      %p62 = scmp.eq.s32.totalorder %s15, 0
      %p63 = por %p61, %p62
      %s65 = sadd.s32 %s64, 1
      %p68 = scmp.eq.s32.totalorder %s9, 1
      %p69 = scmp.ne.s32.totalorder %s64, %s66
      %p70 = scmp.eq.s32.totalorder %s9, 0
      %p71 = por %p69, %p70
      %p72 = scmp.ne.s32.totalorder %s64, %s66
      %p73 = scmp.eq.s32.totalorder %s14, 1
      %p74 = por %p72, %p73
      %p75 = scmp.ne.s32.totalorder %s66, %s67
      %p76 = scmp.eq.s32.totalorder %s14, 0
      %p77 = por %p75, %p76
      %p78 = scmp.ne.s32.totalorder %s66, %s67
      %p79 = scmp.eq.s32.totalorder %s15, 1
      %p80 = por %p78, %p79
      %p82 = scmp.ne.s32.totalorder %s67, %s81
      %p83 = scmp.eq.s32.totalorder %s15, 0
      %p84 = por %p82, %p83
      %s85 = ssub.s32 %s9, %s16
      %p86 = scmp.eq.s32.totalorder %s85, 0
      %s88 = sadd.s32 %s87, 1
      %s89 = scalar_select %p86, %s87, %s88
      %p92 = pneg %p86
      %p93 = scmp.eq.s32.totalorder %s9, 1
      %p94 = por %p92, %p93
      %p95 = scmp.ne.s32.totalorder %s87, %s90
      %p96 = scmp.eq.s32.totalorder %s9, 0
      %p97 = por %p95, %p96
      %p98 = scmp.ne.s32.totalorder %s87, %s90
      %p99 = scmp.eq.s32.totalorder %s14, 1
      %p100 = por %p98, %p99
      %p101 = scmp.ne.s32.totalorder %s90, %s91
      %p102 = scmp.eq.s32.totalorder %s14, 0
      %p103 = por %p101, %p102
      %p104 = scmp.ne.s32.totalorder %s90, %s91
      %p105 = scmp.eq.s32.totalorder %s15, 1
      %p106 = por %p104, %p105
      %p108 = scmp.ne.s32.totalorder %s91, %s107
      %p109 = scmp.eq.s32.totalorder %s15, 0
      %p110 = por %p108, %p109
      %p111 = scmp.le.s32.totalorder 1, %s9
      %p112 = scmp.lt.s32.totalorder %s9, 3
      %p113 = pnand %p111, %p112
      %p114 = pneg %p113
      // Predicated region
      $region9: #{conv_ae_forward.32} parent=5 // pred_check
        _
      $region10: #{conv_ae_forward.32} parent=5 // pred_check_branch
        %116 = sbr.rel (%p113) target = $region12
      $region11: #{conv_ae_forward.32} parent=5 // pred_region
        %s117 = ssub.s32 %s9, 1
        // Predicated region
        $region13: #{conv_ae_forward.32} parent=11 // pred_check
          %p118 = pneg %p30
        $region14: #{conv_ae_forward.32} parent=11 // pred_check_branch
          %120 = sbr.rel (%p118) target = $region16
        $region15: #{conv_ae_forward.32} parent=11 // pred_region
          _
        $region16: #{conv_ae_forward.32} parent=11 // pred_fallthru
          _
        // Predicated region
        $region17: #{conv_ae_forward.32} parent=11 // pred_check
          %p121 = pneg %p77
        $region18: #{conv_ae_forward.32} parent=11 // pred_check_branch
          %123 = sbr.rel (%p121) target = $region20
        $region19: #{conv_ae_forward.32} parent=11 // pred_region
          _
        $region20: #{conv_ae_forward.32} parent=11 // pred_fallthru
          _
      $region12: #{conv_ae_forward.32} parent=5 // pred_fallthru
        _
      %p124 = scmp.lt.s32.totalorder %s9, 2
      // Predicated region
      $region21: #{conv_ae_forward.32} parent=5 // pred_check
        %p125 = pneg %p124
      $region22: #{conv_ae_forward.32} parent=5 // pred_check_branch
        %127 = sbr.rel (%p125) target = $region24
      $region23: #{conv_ae_forward.32} parent=5 // pred_region
        // Predicated region
        $region25: #{conv_ae_forward.32} parent=23 // pred_check
          %p128 = pneg %p50
        $region26: #{conv_ae_forward.32} parent=23 // pred_check_branch
          %130 = sbr.rel (%p128) target = $region28
        $region27: #{conv_ae_forward.32} parent=23 // pred_region
          %s131 = sand.u32 %s40, 1
          %s132 = sand.u32 %s40, 1
          %s133 = smul.addr %s132, 80
          %s134 = scalar_lea.vmem [#allocation2], %s133
          %s135 = smul.u32 2, %s9
          %s136 = smul.addr %s135, 4
          %s137 = scalar_lea.vmem %s1, %s136
          // Predicated region
          $region29: #{conv_ae_forward.32} parent=27 // pred_check
            _
          $region30: #{conv_ae_forward.32} parent=27 // pred_check_branch
            %139 = sbr.rel (0) target = $region32
          $region31: #{conv_ae_forward.32} parent=27 // pred_region
            // Predicated region
            $region33: #{conv_ae_forward.32} parent=31 // pred_check
              _
            $region34: #{conv_ae_forward.32} parent=31 // pred_check_branch
              %141 = sbr.rel (0) target = $region36
            $region35: #{conv_ae_forward.32} parent=31 // pred_region
              // Predicated region
              $region48: #{conv_ae_forward.32} parent=35 // pred_check
                _
              $region49: #{conv_ae_forward.32} parent=35 // pred_check_branch
                %174 = sbr.rel (0) target = $region51
              $region50: #{conv_ae_forward.32} parent=35 // pred_region
                loop: start=0, step=1, limit=1
                $region52: #{conv_ae_forward.32} parent=50 // loop_pre_header
                  _
                $region53: #{conv_ae_forward.32} parent=50 // loop_header
                  %s176 = sphi 0, %s180
                  %p177 = scmp.ge.s32.totalorder %s176, 1
                  %s181 = sphi %s137, %s137
                  %s182 = sphi %s134, %s134
                $region54: #{conv_ae_forward.32} parent=50 // loop_header_branch
                  %179 = sbr.rel (%p177) target = $region58
                $region55: #{conv_ae_forward.32} parent=50 // loop_body
                  %v183 = vld [vmem:[%s181] sm:$0xff]
                  %184 = vst [vmem:[%s182] sm:$0xff] %v183
                  %v185 = vld [vmem:[%s181 + $0x10] sm:$0xff]
                  %186 = vst [vmem:[%s182 + $0x8] sm:$0xff] %v185
                  %v187 = vld [vmem:[%s181 + $0x20] sm:$0xff]
                  %188 = vst [vmem:[%s182 + $0x10] sm:$0xff] %v187
                  %v189 = vld [vmem:[%s181 + $0x30] sm:$0xff]
                  %190 = vst [vmem:[%s182 + $0x18] sm:$0xff] %v189
                  %v191 = vld [vmem:[%s181 + $0x40] sm:$0xff]
                  %192 = vst [vmem:[%s182 + $0x20] sm:$0xff] %v191
                  %v193 = vld [vmem:[%s181 + $0x50] sm:$0xff]
                  %194 = vst [vmem:[%s182 + $0x28] sm:$0xff] %v193
                  %v195 = vld [vmem:[%s181 + $0x60] sm:$0xff]
                  %196 = vst [vmem:[%s182 + $0x30] sm:$0xff] %v195
                  %v197 = vld [vmem:[%s181 + $0x70] sm:$0xff]
                  %198 = vst [vmem:[%s182 + $0x38] sm:$0xff] %v197
                  %v199 = vld [vmem:[%s181 + $0x80] sm:$0xff]
                  %200 = vst [vmem:[%s182 + $0x40] sm:$0xff] %v199
                  %v201 = vld [vmem:[%s181 + $0x90] sm:$0xff]
                  %202 = vst [vmem:[%s182 + $0x48] sm:$0xff] %v201
                $region56: #{conv_ae_forward.32} parent=50 // loop_footer
                  %s180 = sadd.s32 1, %s176
                $region57: #{conv_ae_forward.32} parent=50 // loop_footer_branch
                  %175 = sbr.rel target = $region53
                $region58: #{conv_ae_forward.32} parent=50 // loop_exit
                  _
              $region51: #{conv_ae_forward.32} parent=35 // pred_fallthru
                _
              // Predicated region
              $region59: #{conv_ae_forward.32} parent=35 // pred_check
                _
              $region60: #{conv_ae_forward.32} parent=35 // pred_check_branch
                %204 = sbr.rel target = $region62
              $region61: #{conv_ae_forward.32} parent=35 // pred_region
                _
              $region62: #{conv_ae_forward.32} parent=35 // pred_fallthru
                _
            $region36: #{conv_ae_forward.32} parent=31 // pred_fallthru
              _
            // Predicated region
            $region37: #{conv_ae_forward.32} parent=31 // pred_check
              _
            $region38: #{conv_ae_forward.32} parent=31 // pred_check_branch
              %143 = sbr.rel target = $region40
            $region39: #{conv_ae_forward.32} parent=31 // pred_region
              loop: start=0, step=1, limit=1
              $region41: #{conv_ae_forward.32} parent=39 // loop_pre_header
                _
              $region42: #{conv_ae_forward.32} parent=39 // loop_header
                %s146 = sphi 0, %s150
                %p147 = scmp.ge.s32.totalorder %s146, 1
                %s151 = sphi %s137, %s137
                %s152 = sphi %s134, %s134
              $region43: #{conv_ae_forward.32} parent=39 // loop_header_branch
                %149 = sbr.rel (%p147) target = $region47
              $region44: #{conv_ae_forward.32} parent=39 // loop_body
                %v153 = vld [vmem:[%s151] sm:$0xff]
                %154 = vst [vmem:[%s152] sm:$0xff] %v153
                %v155 = vld [vmem:[%s151 + $0x10] sm:$0xff]
                %156 = vst [vmem:[%s152 + $0x8] sm:$0xff] %v155
                %v157 = vld [vmem:[%s151 + $0x20] sm:$0xff]
                %158 = vst [vmem:[%s152 + $0x10] sm:$0xff] %v157
                %v159 = vld [vmem:[%s151 + $0x30] sm:$0xff]
                %160 = vst [vmem:[%s152 + $0x18] sm:$0xff] %v159
                %v161 = vld [vmem:[%s151 + $0x40] sm:$0xff]
                %162 = vst [vmem:[%s152 + $0x20] sm:$0xff] %v161
                %v163 = vld [vmem:[%s151 + $0x50] sm:$0xff]
                %164 = vst [vmem:[%s152 + $0x28] sm:$0xff] %v163
                %v165 = vld [vmem:[%s151 + $0x60] sm:$0xff]
                %166 = vst [vmem:[%s152 + $0x30] sm:$0xff] %v165
                %v167 = vld [vmem:[%s151 + $0x70] sm:$0xff]
                %168 = vst [vmem:[%s152 + $0x38] sm:$0xff] %v167
                %v169 = vld [vmem:[%s151 + $0x80] sm:$0xff]
                %170 = vst [vmem:[%s152 + $0x40] sm:$0xff] %v169
                %v171 = vld [vmem:[%s151 + $0x90] sm:$0xff]
                %172 = vst [vmem:[%s152 + $0x48] sm:$0xff] %v171
              $region45: #{conv_ae_forward.32} parent=39 // loop_footer
                %s150 = sadd.s32 1, %s146
              $region46: #{conv_ae_forward.32} parent=39 // loop_footer_branch
                %145 = sbr.rel target = $region42
              $region47: #{conv_ae_forward.32} parent=39 // loop_exit
                _
            $region40: #{conv_ae_forward.32} parent=31 // pred_fallthru
              _
          $region32: #{conv_ae_forward.32} parent=27 // pred_fallthru
            _
          %205 = vnop
        $region28: #{conv_ae_forward.32} parent=23 // pred_fallthru
          _
      $region24: #{conv_ae_forward.32} parent=5 // pred_fallthru
        _
      %p206 = scmp.le.s32.totalorder 1, %s9
      %p207 = scmp.lt.s32.totalorder %s9, 3
      %p208 = pnand %p206, %p207
      %p209 = pneg %p208
      // Predicated region
      $region63: #{conv_ae_forward.32} parent=5 // pred_check
        _
      $region64: #{conv_ae_forward.32} parent=5 // pred_check_branch
        %211 = sbr.rel (%p208) target = $region66
      $region65: #{conv_ae_forward.32} parent=5 // pred_region
        %s212 = ssub.s32 %s9, 1
        %s213 = sand.u32 %s43, 1
        %s214 = sand.u32 %s43, 1
        %s215 = smul.addr %s214, 80
        %s216 = scalar_lea.vmem [#allocation2], %s215
        // Predicated region
        $region67: #{conv_ae_forward.32} parent=65 // pred_check
          %p217 = pneg %p56
        $region68: #{conv_ae_forward.32} parent=65 // pred_check_branch
          %219 = sbr.rel (%p217) target = $region70
        $region69: #{conv_ae_forward.32} parent=65 // pred_region
          _
        $region70: #{conv_ae_forward.32} parent=65 // pred_fallthru
          _
        %p220 = pneg %p30
        %p221 = pneg %p27
        %s222 = sand.u32 %s43, 1
        %s223 = sand.u32 %s43, 1
        %s224 = smul.addr %s223, 80
        %s225 = scalar_lea.vmem [#allocation2], %s224
        %p226 = pneg %p56
        %p227 = pneg %p53
        %p228 = pneg %p77
        %p229 = pneg %p74
        %p230 = pneg %p103
        %p231 = pneg %p100
        %s232 = sand.u32 %s90, 1
        %s233 = sand.u32 %s90, 1
        %s234 = smul.addr %s233, 32
        %s235 = scalar_lea.vmem [#allocation3], %s234
        %s236 = smul.u32 2, %s14
        %s237 = smul.u32 2, %s14
        %v239 = vld [vmem:[%s0] sm:$0xf]
        %v240 = vld [vmem:[%s0 + $0x4] sm:$0xf]
        %v241 = vld [vmem:[%s216] sm:$0xff]
        %v242 = vld [vmem:[%s216 + $0x8] sm:$0xff]
        %v243 = vld [vmem:[%s216 + $0x10] sm:$0xff]
        %v244 = vld [vmem:[%s216 + $0x18] sm:$0xff]
        %v245 = vld [vmem:[%s216 + $0x20] sm:$0xff]
        %v246 = vld [vmem:[%s216 + $0x28] sm:$0xff]
        %v247 = vld [vmem:[%s216 + $0x30] sm:$0xff]
        %v248 = vld [vmem:[%s216 + $0x38] sm:$0xff]
        %v249 = vld [vmem:[%s216 + $0x40] sm:$0xff]
        %v250 = vld [vmem:[%s216 + $0x48] sm:$0xff]
        %v251 = vld [vmem:[%s2] sm:$0xff]
        %v252 = vld [vmem:[%s2 + $0x8] sm:$0xff]
        %254 = vset.pattern.permute.xlu0 0
        %255 = vperm.xlu0 %254, %v251
        %v256 = vpop.permute.xlu0 %255
        %259 = vset.pattern.permute.xlu0 0
        %260 = vperm.xlu0 %259, %v252
        %v261 = vpop.permute.xlu0 %260
        %v265 = vunpack.c.l.b16 %v239
        %v266 = vunpack.c.l.b16 %v240
        %v267 = vpack.c.b16 %v266, %v265
        %v278 = vunpack.c.l.b16 %v241
        %v279 = vunpack.c.h.b16 %v241
        %v280 = vunpack.c.l.b16 %v242
        %v281 = vunpack.c.h.b16 %v242
        %v282 = vunpack.c.l.b16 %v243
        %v283 = vunpack.c.h.b16 %v243
        %v284 = vunpack.c.l.b16 %v244
        %v285 = vunpack.c.h.b16 %v244
        %v286 = vunpack.c.l.b16 %v245
        %v287 = vunpack.c.h.b16 %v245
        %v288 = vunpack.c.l.b16 %v246
        %v289 = vunpack.c.h.b16 %v246
        %v290 = vunpack.c.l.b16 %v247
        %v291 = vunpack.c.h.b16 %v247
        %v292 = vunpack.c.l.b16 %v248
        %v293 = vunpack.c.h.b16 %v248
        %v294 = vunpack.c.l.b16 %v249
        %v295 = vunpack.c.h.b16 %v249
        %v296 = vunpack.c.l.b16 %v250
        %v297 = vunpack.c.h.b16 %v250
        %v298 = vpack.c.b16 %v280, %v278
        %v299 = vpack.c.b16 %v281, %v279
        %v300 = vpack.c.b16 %v284, %v282
        %v301 = vpack.c.b16 %v285, %v283
        %v302 = vpack.c.b16 %v288, %v286
        %v303 = vpack.c.b16 %v289, %v287
        %v304 = vpack.c.b16 %v292, %v290
        %v305 = vpack.c.b16 %v293, %v291
        %v306 = vpack.c.b16 %v296, %v294
        %v307 = vpack.c.b16 %v297, %v295
        %vm318 = vcmask 654336
        %v320 = vsel %vm318, %v267, 0
        %322 = vmatprep.subr.bf16.mxu0 %v299
        %323 = vmatpush1.bf16.msra.mxu0 %v298
        %324 = vmatprep.subr.bf16.mxu0 %v301
        %325 = vmatpush1.bf16.msra.mxu0 %v300
        %326 = vmatprep.subr.bf16.mxu0 %v303
        %327 = vmatpush1.bf16.msra.mxu0 %v302
        %328 = vmatprep.subr.bf16.mxu0 %v305
        %329 = vmatpush1.bf16.msra.mxu0 %v304
        %330 = vmatprep.subr.bf16.mxu0 %v307
        %331 = vmatpush1.bf16.msra.mxu0 %v306
        %332 = vmatprep.subr.bf16.mxu0 0
        %333 = vmatpush1.bf16.msra.mxu0 0
        %334 = vmatprep.subr.bf16.mxu0 0
        %335 = vmatpush1.bf16.msra.mxu0 0
        %336 = vmatprep.subr.bf16.mxu0 0
        %337 = vmatpush1.bf16.msra.mxu0 0
        %338 = vmatprep.subr.bf16.mxu0 0
        %339 = vmatpush1.bf16.msra.mxu0 0
        %340 = vmatprep.subr.bf16.mxu0 0
        %341 = vmatpush1.bf16.msra.mxu0 0
        %342 = vmatprep.subr.bf16.mxu0 0
        %343 = vmatpush1.bf16.msra.mxu0 0
        %344 = vmatprep.subr.bf16.mxu0 0
        %345 = vmatpush1.bf16.msra.mxu0 0
        %346 = vmatprep.subr.bf16.mxu0 0
        %347 = vmatpush1.bf16.msra.mxu0 0
        %348 = vmatprep.subr.bf16.mxu0 0
        %349 = vmatpush1.bf16.msra.mxu0 0
        %350 = vmatprep.subr.bf16.mxu0 0
        %351 = vmatpush1.bf16.msra.mxu0 0
        %352 = vmatprep.subr.bf16.mxu0 0
        %353 = vmatpush1.bf16.msra.mxu0 0
        %354 = vmatprep.mubr.bf16.mxu0 0
        %355 = vmatmul.mubr.bf16.gmra.mrb[0].mxu0 %v320
        %v356 = vpop.f32.mrb[0].mxu0
        %v357 = vadd.f32 %v256, %v356
        %v358 = vpop.f32.mrb[0].mxu0
        %v359 = vadd.f32 %v256, %v358
        %v360 = vpop.f32.mrb[0].mxu0
        %v361 = vadd.f32 %v261, %v360
        %v362 = vpop.f32.mrb[0].mxu0
        %v363 = vadd.f32 %v261, %v362
        %364 = vdwg.mxu0
        %vm365 = vcmp.ge.f32.partialorder %v357, 0.0
        %vm366 = vcmp.ge.f32.partialorder %v359, 0.0
        %vm367 = vcmp.ge.f32.partialorder %v361, 0.0
        %vm368 = vcmp.ge.f32.partialorder %v363, 0.0
        %v369 = vmul.f32 %v357, 0.1
        %v370 = vmul.f32 %v359, 0.1
        %v371 = vmul.f32 %v361, 0.1
        %v372 = vmul.f32 %v363, 0.1
        %v373 = vsel %vm365, %v357, %v369
        %v374 = vsel %vm366, %v359, %v370
        %v375 = vsel %vm367, %v361, %v371
        %v376 = vsel %vm368, %v363, %v372
        %377 = vst [vmem:[%s235] sm:$0xff] %v373
        %378 = vst [vmem:[%s235 + $0x8] sm:$0xff] %v374
        %379 = vst [vmem:[%s235 + $0x10] sm:$0xff] %v375
        %380 = vst [vmem:[%s235 + $0x18] sm:$0xff] %v376
        %s381 = sand.u32 %s90, 1
        %s382 = sand.u32 %s90, 1
        %s383 = smul.addr %s382, 32
        %s384 = scalar_lea.vmem [#allocation3], %s383
        // Predicated region
        $region71: #{conv_ae_forward.32} parent=65 // pred_check
          %p385 = pneg %p100
        $region72: #{conv_ae_forward.32} parent=65 // pred_check_branch
          %387 = sbr.rel (%p385) target = $region74
        $region73: #{conv_ae_forward.32} parent=65 // pred_region
          %s388 = smul.u32 2, %s14
          %s389 = smul.addr %s388, 8
          %s390 = scalar_lea.vmem %s3, %s389
          // Predicated region
          $region75: #{conv_ae_forward.32} parent=73 // pred_check
            _
          $region76: #{conv_ae_forward.32} parent=73 // pred_check_branch
            %392 = sbr.rel (0) target = $region78
          $region77: #{conv_ae_forward.32} parent=73 // pred_region
            // Predicated region
            $region79: #{conv_ae_forward.32} parent=77 // pred_check
              _
            $region80: #{conv_ae_forward.32} parent=77 // pred_check_branch
              %394 = sbr.rel (0) target = $region82
            $region81: #{conv_ae_forward.32} parent=77 // pred_region
              loop: start=0, step=1, limit=1
              $region83: #{conv_ae_forward.32} parent=81 // loop_pre_header
                _
              $region84: #{conv_ae_forward.32} parent=81 // loop_header
                %s396 = sphi 0, %s400
                %p397 = scmp.ge.s32.totalorder %s396, 1
                %s401 = sphi %s384, %s384
                %s402 = sphi %s390, %s390
              $region85: #{conv_ae_forward.32} parent=81 // loop_header_branch
                %399 = sbr.rel (%p397) target = $region89
              $region86: #{conv_ae_forward.32} parent=81 // loop_body
                %v403 = vld [vmem:[%s401] sm:$0xff]
                %404 = vst [vmem:[%s402] sm:$0xff] %v403
                %v405 = vld [vmem:[%s401 + $0x8] sm:$0xff]
                %406 = vst [vmem:[%s402 + $0x8] sm:$0xff] %v405
                %v407 = vld [vmem:[%s401 + $0x10] sm:$0xff]
                %408 = vst [vmem:[%s402 + $0x20] sm:$0xff] %v407
                %v409 = vld [vmem:[%s401 + $0x18] sm:$0xff]
                %410 = vst [vmem:[%s402 + $0x28] sm:$0xff] %v409
              $region87: #{conv_ae_forward.32} parent=81 // loop_footer
                %s400 = sadd.s32 1, %s396
              $region88: #{conv_ae_forward.32} parent=81 // loop_footer_branch
                %395 = sbr.rel target = $region84
              $region89: #{conv_ae_forward.32} parent=81 // loop_exit
                _
            $region82: #{conv_ae_forward.32} parent=77 // pred_fallthru
              _
            // Predicated region
            $region90: #{conv_ae_forward.32} parent=77 // pred_check
              _
            $region91: #{conv_ae_forward.32} parent=77 // pred_check_branch
              %412 = sbr.rel target = $region93
            $region92: #{conv_ae_forward.32} parent=77 // pred_region
              _
            $region93: #{conv_ae_forward.32} parent=77 // pred_fallthru
              _
          $region78: #{conv_ae_forward.32} parent=73 // pred_fallthru
            _
          %413 = vnop
        $region74: #{conv_ae_forward.32} parent=65 // pred_fallthru
          _
      $region66: #{conv_ae_forward.32} parent=5 // pred_fallthru
        _
      %p414 = scmp.le.s32.totalorder 2, %s9
      // Predicated region
      $region94: #{conv_ae_forward.32} parent=5 // pred_check
        %p415 = pneg %p414
      $region95: #{conv_ae_forward.32} parent=5 // pred_check_branch
        %417 = sbr.rel (%p415) target = $region97
      $region96: #{conv_ae_forward.32} parent=5 // pred_region
        %s418 = ssub.s32 %s9, 2
        // Predicated region
        $region98: #{conv_ae_forward.32} parent=96 // pred_check
          %p419 = pneg %p106
        $region99: #{conv_ae_forward.32} parent=96 // pred_check_branch
          %421 = sbr.rel (%p419) target = $region101
        $region100: #{conv_ae_forward.32} parent=96 // pred_region
          %s422 = sand.u32 %s91, 1
          %s423 = sand.u32 %s91, 1
          %s424 = smul.addr %s423, 32
          %s425 = scalar_lea.vmem [#allocation3], %s424
        $region101: #{conv_ae_forward.32} parent=96 // pred_fallthru
          _
      $region97: #{conv_ae_forward.32} parent=5 // pred_fallthru
        _
    $region6: #{conv_ae_forward.32} parent=1 // loop_footer
      %s13 = sadd.s32 1, %s9
    $region7: #{conv_ae_forward.32} parent=1 // loop_footer_branch
      %8 = sbr.rel target = $region3
    $region8: #{conv_ae_forward.32} parent=1 // loop_exit
      _

// kernel: conv_ae_forward.34
$region0: #{conv_ae_forward.34}
  #allocation0 [shape = 'u32[]', space=smem, size = 0x4, offset = 0x4, fixed_abs, tag = 'smem constant byte address 0x4 - core index']
  #allocation1 [shape = 'u32[144,128]{1,0:T(1,128)}', space=vmem, size = 0x12000, scoped, tag = 'internal scratch']
  %s0 = inlined_call_operand.vmem [shape: bf16[16,48], index: 0, kind: input, shape index: {}]
  %s1 = inlined_call_operand.vmem [shape: bf16[48,2048], index: 1, kind: input, shape index: {}]
  %s2 = inlined_call_operand.vmem [shape: f32[16,1], index: 2, kind: input, shape index: {}]
  %s3 = inlined_call_operand.vmem [shape: f32[16,2048], index: 3, kind: output, shape index: {}]
  %s4 = sld [smem:[#allocation0]]
  $region87: #{conv_ae_forward.34} parent=0
    _
  %s6 = ssub.s32 1, %s4
  %s7 = scalar_select 0, %s6, %s4
  $region1: #{conv_ae_forward.34} parent=0
    #allocation2 [shape = 'u8[196608]{0}', space=vmem, size = 0x30000, scoped, tag = 'input window, operand 1']
    #allocation3 [shape = 'u8[131072]{0}', space=vmem, size = 0x20000, scoped, tag = 'output window, operand 0']
    loop: start=0, step=1, limit=4
    $region2: #{conv_ae_forward.34} parent=1 // loop_pre_header
      _
    $region3: #{conv_ae_forward.34} parent=1 // loop_header
      %s9 = sphi 0, %s13
      %p10 = scmp.ge.s32.totalorder %s9, 4
      %s17 = sphi 0, %s17
      %s19 = sphi 0, %s17
      %s20 = sphi 0, %s19
      %s34 = sphi 0, %s20
      %s40 = sphi 0, %s42
      %s43 = sphi 0, %s40
      %s44 = sphi 0, %s43
      %s60 = sphi 0, %s44
      %s64 = sphi 0, %s64
      %s66 = sphi 0, %s64
      %s67 = sphi 0, %s66
      %s81 = sphi 0, %s67
      %s87 = sphi 0, %s89
      %s90 = sphi 0, %s87
      %s91 = sphi 0, %s90
      %s107 = sphi 0, %s91
    $region4: #{conv_ae_forward.34} parent=1 // loop_header_branch
      %12 = sbr.rel (%p10) target = $region8
    $region5: #{conv_ae_forward.34} parent=1 // loop_body
      %s14 = ssub.s32 %s9, 1
      %s15 = ssub.s32 %s9, 2
      %s16 = sadd.s32 %s9, 1
      %s18 = sadd.s32 %s17, 1
      %p21 = scmp.eq.s32.totalorder %s9, 1
      %p22 = scmp.ne.s32.totalorder %s17, %s19
      %p23 = scmp.eq.s32.totalorder %s9, 0
      %p24 = por %p22, %p23
      %p25 = scmp.ne.s32.totalorder %s17, %s19
      %p26 = scmp.eq.s32.totalorder %s14, 1
      %p27 = por %p25, %p26
      %p28 = scmp.ne.s32.totalorder %s19, %s20
      %p29 = scmp.eq.s32.totalorder %s14, 0
      %p30 = por %p28, %p29
      %p31 = scmp.ne.s32.totalorder %s19, %s20
      %p32 = scmp.eq.s32.totalorder %s15, 1
      %p33 = por %p31, %p32
      %p35 = scmp.ne.s32.totalorder %s20, %s34
      %p36 = scmp.eq.s32.totalorder %s15, 0
      %p37 = por %p35, %p36
      %s38 = ssub.s32 %s9, %s16
      %p39 = scmp.eq.s32.totalorder %s38, 0
      %s41 = sadd.s32 %s40, 1
      %s42 = scalar_select %p39, %s40, %s41
      %p45 = pneg %p39
      %p46 = scmp.eq.s32.totalorder %s9, 1
      %p47 = por %p45, %p46
      %p48 = scmp.ne.s32.totalorder %s40, %s43
      %p49 = scmp.eq.s32.totalorder %s9, 0
      %p50 = por %p48, %p49
      %p51 = scmp.ne.s32.totalorder %s40, %s43
      %p52 = scmp.eq.s32.totalorder %s14, 1
      %p53 = por %p51, %p52
      %p54 = scmp.ne.s32.totalorder %s43, %s44
      %p55 = scmp.eq.s32.totalorder %s14, 0
      %p56 = por %p54, %p55
      %p57 = scmp.ne.s32.totalorder %s43, %s44
      %p58 = scmp.eq.s32.totalorder %s15, 1
      %p59 = por %p57, %p58
      %p61 = scmp.ne.s32.totalorder %s44, %s60
      %p62 = scmp.eq.s32.totalorder %s15, 0
      %p63 = por %p61, %p62
      %s65 = sadd.s32 %s64, 1
      %p68 = scmp.eq.s32.totalorder %s9, 1
      %p69 = scmp.ne.s32.totalorder %s64, %s66
      %p70 = scmp.eq.s32.totalorder %s9, 0
      %p71 = por %p69, %p70
      %p72 = scmp.ne.s32.totalorder %s64, %s66
      %p73 = scmp.eq.s32.totalorder %s14, 1
      %p74 = por %p72, %p73
      %p75 = scmp.ne.s32.totalorder %s66, %s67
      %p76 = scmp.eq.s32.totalorder %s14, 0
      %p77 = por %p75, %p76
      %p78 = scmp.ne.s32.totalorder %s66, %s67
      %p79 = scmp.eq.s32.totalorder %s15, 1
      %p80 = por %p78, %p79
      %p82 = scmp.ne.s32.totalorder %s67, %s81
      %p83 = scmp.eq.s32.totalorder %s15, 0
      %p84 = por %p82, %p83
      %s85 = ssub.s32 %s9, %s16
      %p86 = scmp.eq.s32.totalorder %s85, 0
      %s88 = sadd.s32 %s87, 1
      %s89 = scalar_select %p86, %s87, %s88
      %p92 = pneg %p86
      %p93 = scmp.eq.s32.totalorder %s9, 1
      %p94 = por %p92, %p93
      %p95 = scmp.ne.s32.totalorder %s87, %s90
      %p96 = scmp.eq.s32.totalorder %s9, 0
      %p97 = por %p95, %p96
      %p98 = scmp.ne.s32.totalorder %s87, %s90
      %p99 = scmp.eq.s32.totalorder %s14, 1
      %p100 = por %p98, %p99
      %p101 = scmp.ne.s32.totalorder %s90, %s91
      %p102 = scmp.eq.s32.totalorder %s14, 0
      %p103 = por %p101, %p102
      %p104 = scmp.ne.s32.totalorder %s90, %s91
      %p105 = scmp.eq.s32.totalorder %s15, 1
      %p106 = por %p104, %p105
      %p108 = scmp.ne.s32.totalorder %s91, %s107
      %p109 = scmp.eq.s32.totalorder %s15, 0
      %p110 = por %p108, %p109
      %p111 = scmp.le.s32.totalorder 1, %s9
      %p112 = scmp.lt.s32.totalorder %s9, 3
      %p113 = pnand %p111, %p112
      %p114 = pneg %p113
      // Predicated region
      $region9: #{conv_ae_forward.34} parent=5 // pred_check
        _
      $region10: #{conv_ae_forward.34} parent=5 // pred_check_branch
        %116 = sbr.rel (%p113) target = $region12
      $region11: #{conv_ae_forward.34} parent=5 // pred_region
        %s117 = ssub.s32 %s9, 1
        // Predicated region
        $region13: #{conv_ae_forward.34} parent=11 // pred_check
          %p118 = pneg %p30
        $region14: #{conv_ae_forward.34} parent=11 // pred_check_branch
          %120 = sbr.rel (%p118) target = $region16
        $region15: #{conv_ae_forward.34} parent=11 // pred_region
          _
        $region16: #{conv_ae_forward.34} parent=11 // pred_fallthru
          _
        // Predicated region
        $region17: #{conv_ae_forward.34} parent=11 // pred_check
          %p121 = pneg %p77
        $region18: #{conv_ae_forward.34} parent=11 // pred_check_branch
          %123 = sbr.rel (%p121) target = $region20
        $region19: #{conv_ae_forward.34} parent=11 // pred_region
          _
        $region20: #{conv_ae_forward.34} parent=11 // pred_fallthru
          _
      $region12: #{conv_ae_forward.34} parent=5 // pred_fallthru
        _
      %p124 = scmp.lt.s32.totalorder %s9, 2
      // Predicated region
      $region21: #{conv_ae_forward.34} parent=5 // pred_check
        %p125 = pneg %p124
      $region22: #{conv_ae_forward.34} parent=5 // pred_check_branch
        %127 = sbr.rel (%p125) target = $region24
      $region23: #{conv_ae_forward.34} parent=5 // pred_region
        // Predicated region
        $region25: #{conv_ae_forward.34} parent=23 // pred_check
          %p128 = pneg %p50
        $region26: #{conv_ae_forward.34} parent=23 // pred_check_branch
          %130 = sbr.rel (%p128) target = $region28
        $region27: #{conv_ae_forward.34} parent=23 // pred_region
          %s131 = sand.u32 %s40, 1
          %s132 = sand.u32 %s40, 1
          %s133 = smul.addr %s132, 192
          %s134 = scalar_lea.vmem [#allocation2], %s133
          %s135 = smul.u32 8, %s9
          %s136 = smul.addr %s135, 4
          %s137 = scalar_lea.vmem %s1, %s136
          // Predicated region
          $region29: #{conv_ae_forward.34} parent=27 // pred_check
            _
          $region30: #{conv_ae_forward.34} parent=27 // pred_check_branch
            %139 = sbr.rel (0) target = $region32
          $region31: #{conv_ae_forward.34} parent=27 // pred_region
            // Predicated region
            $region33: #{conv_ae_forward.34} parent=31 // pred_check
              _
            $region34: #{conv_ae_forward.34} parent=31 // pred_check_branch
              %141 = sbr.rel (0) target = $region36
            $region35: #{conv_ae_forward.34} parent=31 // pred_region
              loop: start=0, step=1, limit=1
              $region37: #{conv_ae_forward.34} parent=35 // loop_pre_header
                _
              $region38: #{conv_ae_forward.34} parent=35 // loop_header
                %s143 = sphi 0, %s147
                %p144 = scmp.ge.s32.totalorder %s143, 1
                %s148 = sphi %s137, %s137
                %s149 = sphi %s134, %s134
              $region39: #{conv_ae_forward.34} parent=35 // loop_header_branch
                %146 = sbr.rel (%p144) target = $region43
              $region40: #{conv_ae_forward.34} parent=35 // loop_body
                %v150 = vld [vmem:[%s148] sm:$0xff]
                %151 = vst [vmem:[%s149] sm:$0xff] %v150
                %v152 = vld [vmem:[%s148 + $0x8] sm:$0xff]
                %153 = vst [vmem:[%s149 + $0x8] sm:$0xff] %v152
                %v154 = vld [vmem:[%s148 + $0x10] sm:$0xff]
                %155 = vst [vmem:[%s149 + $0x10] sm:$0xff] %v154
                %v156 = vld [vmem:[%s148 + $0x18] sm:$0xff]
                %157 = vst [vmem:[%s149 + $0x18] sm:$0xff] %v156
                %v158 = vld [vmem:[%s148 + $0x40] sm:$0xff]
                %159 = vst [vmem:[%s149 + $0x20] sm:$0xff] %v158
                %v160 = vld [vmem:[%s148 + $0x48] sm:$0xff]
                %161 = vst [vmem:[%s149 + $0x28] sm:$0xff] %v160
                %v162 = vld [vmem:[%s148 + $0x50] sm:$0xff]
                %163 = vst [vmem:[%s149 + $0x30] sm:$0xff] %v162
                %v164 = vld [vmem:[%s148 + $0x58] sm:$0xff]
                %165 = vst [vmem:[%s149 + $0x38] sm:$0xff] %v164
                %v166 = vld [vmem:[%s148 + $0x80] sm:$0xff]
                %167 = vst [vmem:[%s149 + $0x40] sm:$0xff] %v166
                %v168 = vld [vmem:[%s148 + $0x88] sm:$0xff]
                %169 = vst [vmem:[%s149 + $0x48] sm:$0xff] %v168
                %v170 = vld [vmem:[%s148 + $0x90] sm:$0xff]
                %171 = vst [vmem:[%s149 + $0x50] sm:$0xff] %v170
                %v172 = vld [vmem:[%s148 + $0x98] sm:$0xff]
                %173 = vst [vmem:[%s149 + $0x58] sm:$0xff] %v172
                %v174 = vld [vmem:[%s148 + $0xc0] sm:$0xff]
                %175 = vst [vmem:[%s149 + $0x60] sm:$0xff] %v174
                %v176 = vld [vmem:[%s148 + $0xc8] sm:$0xff]
                %177 = vst [vmem:[%s149 + $0x68] sm:$0xff] %v176
                %v178 = vld [vmem:[%s148 + $0xd0] sm:$0xff]
                %179 = vst [vmem:[%s149 + $0x70] sm:$0xff] %v178
                %v180 = vld [vmem:[%s148 + $0xd8] sm:$0xff]
                %181 = vst [vmem:[%s149 + $0x78] sm:$0xff] %v180
                %v182 = vld [vmem:[%s148 + $0x100] sm:$0xff]
                %183 = vst [vmem:[%s149 + $0x80] sm:$0xff] %v182
                %v184 = vld [vmem:[%s148 + $0x108] sm:$0xff]
                %185 = vst [vmem:[%s149 + $0x88] sm:$0xff] %v184
                %v186 = vld [vmem:[%s148 + $0x110] sm:$0xff]
                %187 = vst [vmem:[%s149 + $0x90] sm:$0xff] %v186
                %v188 = vld [vmem:[%s148 + $0x118] sm:$0xff]
                %189 = vst [vmem:[%s149 + $0x98] sm:$0xff] %v188
                %v190 = vld [vmem:[%s148 + $0x140] sm:$0xff]
                %191 = vst [vmem:[%s149 + $0xa0] sm:$0xff] %v190
                %v192 = vld [vmem:[%s148 + $0x148] sm:$0xff]
                %193 = vst [vmem:[%s149 + $0xa8] sm:$0xff] %v192
                %v194 = vld [vmem:[%s148 + $0x150] sm:$0xff]
                %195 = vst [vmem:[%s149 + $0xb0] sm:$0xff] %v194
                %v196 = vld [vmem:[%s148 + $0x158] sm:$0xff]
                %197 = vst [vmem:[%s149 + $0xb8] sm:$0xff] %v196
              $region41: #{conv_ae_forward.34} parent=35 // loop_footer
                %s147 = sadd.s32 1, %s143
              $region42: #{conv_ae_forward.34} parent=35 // loop_footer_branch
                %142 = sbr.rel target = $region38
              $region43: #{conv_ae_forward.34} parent=35 // loop_exit
                _
            $region36: #{conv_ae_forward.34} parent=31 // pred_fallthru
              _
            // Predicated region
            $region44: #{conv_ae_forward.34} parent=31 // pred_check
              _
            $region45: #{conv_ae_forward.34} parent=31 // pred_check_branch
              %199 = sbr.rel target = $region47
            $region46: #{conv_ae_forward.34} parent=31 // pred_region
              _
            $region47: #{conv_ae_forward.34} parent=31 // pred_fallthru
              _
          $region32: #{conv_ae_forward.34} parent=27 // pred_fallthru
            _
          %200 = vnop
        $region28: #{conv_ae_forward.34} parent=23 // pred_fallthru
          _
      $region24: #{conv_ae_forward.34} parent=5 // pred_fallthru
        _
      %p201 = scmp.le.s32.totalorder 1, %s9
      %p202 = scmp.lt.s32.totalorder %s9, 3
      %p203 = pnand %p201, %p202
      %p204 = pneg %p203
      // Predicated region
      $region48: #{conv_ae_forward.34} parent=5 // pred_check
        _
      $region49: #{conv_ae_forward.34} parent=5 // pred_check_branch
        %206 = sbr.rel (%p203) target = $region51
      $region50: #{conv_ae_forward.34} parent=5 // pred_region
        %s207 = ssub.s32 %s9, 1
        %s208 = sand.u32 %s43, 1
        %s209 = sand.u32 %s43, 1
        %s210 = smul.addr %s209, 192
        %s211 = scalar_lea.vmem [#allocation2], %s210
        // Predicated region
        $region52: #{conv_ae_forward.34} parent=50 // pred_check
          %p212 = pneg %p56
        $region53: #{conv_ae_forward.34} parent=50 // pred_check_branch
          %214 = sbr.rel (%p212) target = $region55
        $region54: #{conv_ae_forward.34} parent=50 // pred_region
          _
        $region55: #{conv_ae_forward.34} parent=50 // pred_fallthru
          _
        %p215 = pneg %p30
        %p216 = pneg %p27
        %s217 = sand.u32 %s43, 1
        %s218 = sand.u32 %s43, 1
        %s219 = smul.addr %s218, 192
        %s220 = scalar_lea.vmem [#allocation2], %s219
        %p221 = pneg %p56
        %p222 = pneg %p53
        %p223 = pneg %p77
        %p224 = pneg %p74
        %p225 = pneg %p103
        %p226 = pneg %p100
        %s227 = sand.u32 %s90, 1
        %s228 = sand.u32 %s90, 1
        %s229 = smul.addr %s228, 128
        %s230 = scalar_lea.vmem [#allocation3], %s229
        %s231 = smul.u32 8, %s14
        %s232 = smul.u32 8, %s14
        %v234 = vld [vmem:[%s0] sm:$0xf]
        %v235 = vld [vmem:[%s0 + $0x4] sm:$0xf]
        %v236 = vld [vmem:[%s211] sm:$0xff]
        %v237 = vld [vmem:[%s211 + $0x8] sm:$0xff]
        %v238 = vld [vmem:[%s211 + $0x10] sm:$0xff]
        %v239 = vld [vmem:[%s211 + $0x18] sm:$0xff]
        %v240 = vld [vmem:[%s211 + $0x20] sm:$0xff]
        %v241 = vld [vmem:[%s211 + $0x28] sm:$0xff]
        %v242 = vld [vmem:[%s211 + $0x30] sm:$0xff]
        %v243 = vld [vmem:[%s211 + $0x38] sm:$0xff]
        %v244 = vld [vmem:[%s211 + $0x40] sm:$0xff]
        %v245 = vld [vmem:[%s211 + $0x48] sm:$0xff]
        %v246 = vld [vmem:[%s211 + $0x50] sm:$0xff]
        %v247 = vld [vmem:[%s211 + $0x58] sm:$0xff]
        %v248 = vld [vmem:[%s211 + $0x60] sm:$0xff]
        %v249 = vld [vmem:[%s211 + $0x68] sm:$0xff]
        %v250 = vld [vmem:[%s211 + $0x70] sm:$0xff]
        %v251 = vld [vmem:[%s211 + $0x78] sm:$0xff]
        %v252 = vld [vmem:[%s211 + $0x80] sm:$0xff]
        %v253 = vld [vmem:[%s211 + $0x88] sm:$0xff]
        %v254 = vld [vmem:[%s211 + $0x90] sm:$0xff]
        %v255 = vld [vmem:[%s211 + $0x98] sm:$0xff]
        %v256 = vld [vmem:[%s211 + $0xa0] sm:$0xff]
        %v257 = vld [vmem:[%s211 + $0xa8] sm:$0xff]
        %v258 = vld [vmem:[%s211 + $0xb0] sm:$0xff]
        %v259 = vld [vmem:[%s211 + $0xb8] sm:$0xff]
        %v260 = vld [vmem:[%s2] sm:$0xff]
        %v261 = vld [vmem:[%s2 + $0x8] sm:$0xff]
        %263 = vset.pattern.permute.xlu0 0
        %264 = vperm.xlu0 %263, %v260
        %v265 = vpop.permute.xlu0 %264
        %268 = vset.pattern.permute.xlu0 0
        %269 = vperm.xlu0 %268, %v261
        %v270 = vpop.permute.xlu0 %269
        %v274 = vunpack.c.l.b16 %v234
        %v275 = vunpack.c.l.b16 %v235
        %v276 = vpack.c.b16 %v275, %v274
        %v301 = vunpack.c.l.b16 %v236
        %v302 = vunpack.c.h.b16 %v236
        %v303 = vunpack.c.l.b16 %v237
        %v304 = vunpack.c.h.b16 %v237
        %v305 = vunpack.c.l.b16 %v238
        %v306 = vunpack.c.h.b16 %v238
        %v307 = vunpack.c.l.b16 %v239
        %v308 = vunpack.c.h.b16 %v239
        %v309 = vunpack.c.l.b16 %v240
        %v310 = vunpack.c.h.b16 %v240
        %v311 = vunpack.c.l.b16 %v241
        %v312 = vunpack.c.h.b16 %v241
        %v313 = vunpack.c.l.b16 %v242
        %v314 = vunpack.c.h.b16 %v242
        %v315 = vunpack.c.l.b16 %v243
        %v316 = vunpack.c.h.b16 %v243
        %v317 = vunpack.c.l.b16 %v244
        %v318 = vunpack.c.h.b16 %v244
        %v319 = vunpack.c.l.b16 %v245
        %v320 = vunpack.c.h.b16 %v245
        %v321 = vunpack.c.l.b16 %v246
        %v322 = vunpack.c.h.b16 %v246
        %v323 = vunpack.c.l.b16 %v247
        %v324 = vunpack.c.h.b16 %v247
        %v325 = vunpack.c.l.b16 %v248
        %v326 = vunpack.c.h.b16 %v248
        %v327 = vunpack.c.l.b16 %v249
        %v328 = vunpack.c.h.b16 %v249
        %v329 = vunpack.c.l.b16 %v250
        %v330 = vunpack.c.h.b16 %v250
        %v331 = vunpack.c.l.b16 %v251
        %v332 = vunpack.c.h.b16 %v251
        %v333 = vunpack.c.l.b16 %v252
        %v334 = vunpack.c.h.b16 %v252
        %v335 = vunpack.c.l.b16 %v253
        %v336 = vunpack.c.h.b16 %v253
        %v337 = vunpack.c.l.b16 %v254
        %v338 = vunpack.c.h.b16 %v254
        %v339 = vunpack.c.l.b16 %v255
        %v340 = vunpack.c.h.b16 %v255
        %v341 = vunpack.c.l.b16 %v256
        %v342 = vunpack.c.h.b16 %v256
        %v343 = vunpack.c.l.b16 %v257
        %v344 = vunpack.c.h.b16 %v257
        %v345 = vunpack.c.l.b16 %v258
        %v346 = vunpack.c.h.b16 %v258
        %v347 = vunpack.c.l.b16 %v259
        %v348 = vunpack.c.h.b16 %v259
        %v349 = vpack.c.b16 %v309, %v301
        %v350 = vpack.c.b16 %v310, %v302
        %v351 = vpack.c.b16 %v311, %v303
        %v352 = vpack.c.b16 %v312, %v304
        %v353 = vpack.c.b16 %v313, %v305
        %v354 = vpack.c.b16 %v314, %v306
        %v355 = vpack.c.b16 %v315, %v307
        %v356 = vpack.c.b16 %v316, %v308
        %v357 = vpack.c.b16 %v325, %v317
        %v358 = vpack.c.b16 %v326, %v318
        %v359 = vpack.c.b16 %v327, %v319
        %v360 = vpack.c.b16 %v328, %v320
        %v361 = vpack.c.b16 %v329, %v321
        %v362 = vpack.c.b16 %v330, %v322
        %v363 = vpack.c.b16 %v331, %v323
        %v364 = vpack.c.b16 %v332, %v324
        %v365 = vpack.c.b16 %v341, %v333
        %v366 = vpack.c.b16 %v342, %v334
        %v367 = vpack.c.b16 %v343, %v335
        %v368 = vpack.c.b16 %v344, %v336
        %v369 = vpack.c.b16 %v345, %v337
        %v370 = vpack.c.b16 %v346, %v338
        %v371 = vpack.c.b16 %v347, %v339
        %v372 = vpack.c.b16 %v348, %v340
        %vm397 = vcmask 392192
        %v399 = vsel %vm397, %v276, 0
        %401 = vmatprep.subr.bf16.mxu0 %v350
        %402 = vmatpush1.bf16.msra.mxu0 %v349
        %403 = vmatprep.subr.bf16.mxu0 %v358
        %404 = vmatpush1.bf16.msra.mxu0 %v357
        %405 = vmatprep.subr.bf16.mxu0 %v366
        %406 = vmatpush1.bf16.msra.mxu0 %v365
        %407 = vmatprep.subr.bf16.mxu0 0
        %408 = vmatpush1.bf16.msra.mxu0 0
        %409 = vmatprep.subr.bf16.mxu0 0
        %410 = vmatpush1.bf16.msra.mxu0 0
        %411 = vmatprep.subr.bf16.mxu0 0
        %412 = vmatpush1.bf16.msra.mxu0 0
        %413 = vmatprep.subr.bf16.mxu0 0
        %414 = vmatpush1.bf16.msra.mxu0 0
        %415 = vmatprep.subr.bf16.mxu0 0
        %416 = vmatpush1.bf16.msra.mxu0 0
        %417 = vmatprep.subr.bf16.mxu0 0
        %418 = vmatpush1.bf16.msra.mxu0 0
        %419 = vmatprep.subr.bf16.mxu0 0
        %420 = vmatpush1.bf16.msra.mxu0 0
        %421 = vmatprep.subr.bf16.mxu0 0
        %422 = vmatpush1.bf16.msra.mxu0 0
        %423 = vmatprep.subr.bf16.mxu0 0
        %424 = vmatpush1.bf16.msra.mxu0 0
        %425 = vmatprep.subr.bf16.mxu0 0
        %426 = vmatpush1.bf16.msra.mxu0 0
        %427 = vmatprep.subr.bf16.mxu0 0
        %428 = vmatpush1.bf16.msra.mxu0 0
        %429 = vmatprep.subr.bf16.mxu0 0
        %430 = vmatpush1.bf16.msra.mxu0 0
        %431 = vmatprep.subr.bf16.mxu0 0
        %432 = vmatpush1.bf16.msra.mxu0 0
        %433 = vmatprep.mubr.bf16.mxu0 0
        %434 = vmatmul.mubr.bf16.gmra.mrb[0].mxu0 %v399
        %v435 = vpop.f32.mrb[0].mxu0
        %v436 = vadd.f32 %v265, %v435
        %v437 = vpop.f32.mrb[0].mxu0
        %v438 = vadd.f32 %v265, %v437
        %v439 = vpop.f32.mrb[0].mxu0
        %v440 = vadd.f32 %v270, %v439
        %v441 = vpop.f32.mrb[0].mxu0
        %v442 = vadd.f32 %v270, %v441
        %443 = vdwg.mxu0
        %444 = vmatprep.subr.bf16.mxu0 %v352
        %445 = vmatpush1.bf16.msra.mxu0 %v351
        %446 = vmatprep.subr.bf16.mxu0 %v360
        %447 = vmatpush1.bf16.msra.mxu0 %v359
        %448 = vmatprep.subr.bf16.mxu0 %v368
        %449 = vmatpush1.bf16.msra.mxu0 %v367
        %450 = vmatprep.subr.bf16.mxu0 0
        %451 = vmatpush1.bf16.msra.mxu0 0
        %452 = vmatprep.subr.bf16.mxu0 0
        %453 = vmatpush1.bf16.msra.mxu0 0
        %454 = vmatprep.subr.bf16.mxu0 0
        %455 = vmatpush1.bf16.msra.mxu0 0
        %456 = vmatprep.subr.bf16.mxu0 0
        %457 = vmatpush1.bf16.msra.mxu0 0
        %458 = vmatprep.subr.bf16.mxu0 0
        %459 = vmatpush1.bf16.msra.mxu0 0
        %460 = vmatprep.subr.bf16.mxu0 0
        %461 = vmatpush1.bf16.msra.mxu0 0
        %462 = vmatprep.subr.bf16.mxu0 0
        %463 = vmatpush1.bf16.msra.mxu0 0
        %464 = vmatprep.subr.bf16.mxu0 0
        %465 = vmatpush1.bf16.msra.mxu0 0
        %466 = vmatprep.subr.bf16.mxu0 0
        %467 = vmatpush1.bf16.msra.mxu0 0
        %468 = vmatprep.subr.bf16.mxu0 0
        %469 = vmatpush1.bf16.msra.mxu0 0
        %470 = vmatprep.subr.bf16.mxu0 0
        %471 = vmatpush1.bf16.msra.mxu0 0
        %472 = vmatprep.subr.bf16.mxu0 0
        %473 = vmatpush1.bf16.msra.mxu0 0
        %474 = vmatprep.subr.bf16.mxu0 0
        %475 = vmatpush1.bf16.msra.mxu0 0
        %476 = vmatprep.mubr.bf16.mxu0 0
        %477 = vmatmul.mubr.bf16.gmra.mrb[0].mxu0 %v399
        %v478 = vpop.f32.mrb[0].mxu0
        %v479 = vadd.f32 %v265, %v478
        %v480 = vpop.f32.mrb[0].mxu0
        %v481 = vadd.f32 %v265, %v480
        %v482 = vpop.f32.mrb[0].mxu0
        %v483 = vadd.f32 %v270, %v482
        %v484 = vpop.f32.mrb[0].mxu0
        %v485 = vadd.f32 %v270, %v484
        %486 = vdwg.mxu0
        %487 = vmatprep.subr.bf16.mxu0 %v354
        %488 = vmatpush1.bf16.msra.mxu0 %v353
        %489 = vmatprep.subr.bf16.mxu0 %v362
        %490 = vmatpush1.bf16.msra.mxu0 %v361
        %491 = vmatprep.subr.bf16.mxu0 %v370
        %492 = vmatpush1.bf16.msra.mxu0 %v369
        %493 = vmatprep.subr.bf16.mxu0 0
        %494 = vmatpush1.bf16.msra.mxu0 0
        %495 = vmatprep.subr.bf16.mxu0 0
        %496 = vmatpush1.bf16.msra.mxu0 0
        %497 = vmatprep.subr.bf16.mxu0 0
        %498 = vmatpush1.bf16.msra.mxu0 0
        %499 = vmatprep.subr.bf16.mxu0 0
        %500 = vmatpush1.bf16.msra.mxu0 0
        %501 = vmatprep.subr.bf16.mxu0 0
        %502 = vmatpush1.bf16.msra.mxu0 0
        %503 = vmatprep.subr.bf16.mxu0 0
        %504 = vmatpush1.bf16.msra.mxu0 0
        %505 = vmatprep.subr.bf16.mxu0 0
        %506 = vmatpush1.bf16.msra.mxu0 0
        %507 = vmatprep.subr.bf16.mxu0 0
        %508 = vmatpush1.bf16.msra.mxu0 0
        %509 = vmatprep.subr.bf16.mxu0 0
        %510 = vmatpush1.bf16.msra.mxu0 0
        %511 = vmatprep.subr.bf16.mxu0 0
        %512 = vmatpush1.bf16.msra.mxu0 0
        %513 = vmatprep.subr.bf16.mxu0 0
        %514 = vmatpush1.bf16.msra.mxu0 0
        %515 = vmatprep.subr.bf16.mxu0 0
        %516 = vmatpush1.bf16.msra.mxu0 0
        %517 = vmatprep.subr.bf16.mxu0 0
        %518 = vmatpush1.bf16.msra.mxu0 0
        %519 = vmatprep.mubr.bf16.mxu0 0
        %520 = vmatmul.mubr.bf16.gmra.mrb[0].mxu0 %v399
        %v521 = vpop.f32.mrb[0].mxu0
        %v522 = vadd.f32 %v265, %v521
        %v523 = vpop.f32.mrb[0].mxu0
        %v524 = vadd.f32 %v265, %v523
        %v525 = vpop.f32.mrb[0].mxu0
        %v526 = vadd.f32 %v270, %v525
        %v527 = vpop.f32.mrb[0].mxu0
        %v528 = vadd.f32 %v270, %v527
        %529 = vdwg.mxu0
        %530 = vmatprep.subr.bf16.mxu0 %v356
        %531 = vmatpush1.bf16.msra.mxu0 %v355
        %532 = vmatprep.subr.bf16.mxu0 %v364
        %533 = vmatpush1.bf16.msra.mxu0 %v363
        %534 = vmatprep.subr.bf16.mxu0 %v372
        %535 = vmatpush1.bf16.msra.mxu0 %v371
        %536 = vmatprep.subr.bf16.mxu0 0
        %537 = vmatpush1.bf16.msra.mxu0 0
        %538 = vmatprep.subr.bf16.mxu0 0
        %539 = vmatpush1.bf16.msra.mxu0 0
        %540 = vmatprep.subr.bf16.mxu0 0
        %541 = vmatpush1.bf16.msra.mxu0 0
        %542 = vmatprep.subr.bf16.mxu0 0
        %543 = vmatpush1.bf16.msra.mxu0 0
        %544 = vmatprep.subr.bf16.mxu0 0
        %545 = vmatpush1.bf16.msra.mxu0 0
        %546 = vmatprep.subr.bf16.mxu0 0
        %547 = vmatpush1.bf16.msra.mxu0 0
        %548 = vmatprep.subr.bf16.mxu0 0
        %549 = vmatpush1.bf16.msra.mxu0 0
        %550 = vmatprep.subr.bf16.mxu0 0
        %551 = vmatpush1.bf16.msra.mxu0 0
        %552 = vmatprep.subr.bf16.mxu0 0
        %553 = vmatpush1.bf16.msra.mxu0 0
        %554 = vmatprep.subr.bf16.mxu0 0
        %555 = vmatpush1.bf16.msra.mxu0 0
        %556 = vmatprep.subr.bf16.mxu0 0
        %557 = vmatpush1.bf16.msra.mxu0 0
        %558 = vmatprep.subr.bf16.mxu0 0
        %559 = vmatpush1.bf16.msra.mxu0 0
        %560 = vmatprep.subr.bf16.mxu0 0
        %561 = vmatpush1.bf16.msra.mxu0 0
        %562 = vmatprep.mubr.bf16.mxu0 0
        %563 = vmatmul.mubr.bf16.gmra.mrb[0].mxu0 %v399
        %v564 = vpop.f32.mrb[0].mxu0
        %v565 = vadd.f32 %v265, %v564
        %v566 = vpop.f32.mrb[0].mxu0
        %v567 = vadd.f32 %v265, %v566
        %v568 = vpop.f32.mrb[0].mxu0
        %v569 = vadd.f32 %v270, %v568
        %v570 = vpop.f32.mrb[0].mxu0
        %v571 = vadd.f32 %v270, %v570
        %572 = vdwg.mxu0
        %vm573 = vcmp.ge.f32.partialorder %v436, 0.0
        %vm574 = vcmp.ge.f32.partialorder %v438, 0.0
        %vm575 = vcmp.ge.f32.partialorder %v479, 0.0
        %vm576 = vcmp.ge.f32.partialorder %v481, 0.0
        %vm577 = vcmp.ge.f32.partialorder %v522, 0.0
        %vm578 = vcmp.ge.f32.partialorder %v524, 0.0
        %vm579 = vcmp.ge.f32.partialorder %v565, 0.0
        %vm580 = vcmp.ge.f32.partialorder %v567, 0.0
        %vm581 = vcmp.ge.f32.partialorder %v440, 0.0
        %vm582 = vcmp.ge.f32.partialorder %v442, 0.0
        %vm583 = vcmp.ge.f32.partialorder %v483, 0.0
        %vm584 = vcmp.ge.f32.partialorder %v485, 0.0
        %vm585 = vcmp.ge.f32.partialorder %v526, 0.0
        %vm586 = vcmp.ge.f32.partialorder %v528, 0.0
        %vm587 = vcmp.ge.f32.partialorder %v569, 0.0
        %vm588 = vcmp.ge.f32.partialorder %v571, 0.0
        %v589 = vmul.f32 %v436, 0.1
        %v590 = vmul.f32 %v438, 0.1
        %v591 = vmul.f32 %v479, 0.1
        %v592 = vmul.f32 %v481, 0.1
        %v593 = vmul.f32 %v522, 0.1
        %v594 = vmul.f32 %v524, 0.1
        %v595 = vmul.f32 %v565, 0.1
        %v596 = vmul.f32 %v567, 0.1
        %v597 = vmul.f32 %v440, 0.1
        %v598 = vmul.f32 %v442, 0.1
        %v599 = vmul.f32 %v483, 0.1
        %v600 = vmul.f32 %v485, 0.1
        %v601 = vmul.f32 %v526, 0.1
        %v602 = vmul.f32 %v528, 0.1
        %v603 = vmul.f32 %v569, 0.1
        %v604 = vmul.f32 %v571, 0.1
        %v605 = vsel %vm573, %v436, %v589
        %v606 = vsel %vm574, %v438, %v590
        %v607 = vsel %vm575, %v479, %v591
        %v608 = vsel %vm576, %v481, %v592
        %v609 = vsel %vm577, %v522, %v593
        %v610 = vsel %vm578, %v524, %v594
        %v611 = vsel %vm579, %v565, %v595
        %v612 = vsel %vm580, %v567, %v596
        %v613 = vsel %vm581, %v440, %v597
        %v614 = vsel %vm582, %v442, %v598
        %v615 = vsel %vm583, %v483, %v599
        %v616 = vsel %vm584, %v485, %v600
        %v617 = vsel %vm585, %v526, %v601
        %v618 = vsel %vm586, %v528, %v602
        %v619 = vsel %vm587, %v569, %v603
        %v620 = vsel %vm588, %v571, %v604
        %621 = vst [vmem:[%s230] sm:$0xff] %v605
        %622 = vst [vmem:[%s230 + $0x8] sm:$0xff] %v606
        %623 = vst [vmem:[%s230 + $0x10] sm:$0xff] %v607
        %624 = vst [vmem:[%s230 + $0x18] sm:$0xff] %v608
        %625 = vst [vmem:[%s230 + $0x20] sm:$0xff] %v609
        %626 = vst [vmem:[%s230 + $0x28] sm:$0xff] %v610
        %627 = vst [vmem:[%s230 + $0x30] sm:$0xff] %v611
        %628 = vst [vmem:[%s230 + $0x38] sm:$0xff] %v612
        %629 = vst [vmem:[%s230 + $0x40] sm:$0xff] %v613
        %630 = vst [vmem:[%s230 + $0x48] sm:$0xff] %v614
        %631 = vst [vmem:[%s230 + $0x50] sm:$0xff] %v615
        %632 = vst [vmem:[%s230 + $0x58] sm:$0xff] %v616
        %633 = vst [vmem:[%s230 + $0x60] sm:$0xff] %v617
        %634 = vst [vmem:[%s230 + $0x68] sm:$0xff] %v618
        %635 = vst [vmem:[%s230 + $0x70] sm:$0xff] %v619
        %636 = vst [vmem:[%s230 + $0x78] sm:$0xff] %v620
        %s637 = sand.u32 %s90, 1
        %s638 = sand.u32 %s90, 1
        %s639 = smul.addr %s638, 128
        %s640 = scalar_lea.vmem [#allocation3], %s639
        // Predicated region
        $region56: #{conv_ae_forward.34} parent=50 // pred_check
          %p641 = pneg %p100
        $region57: #{conv_ae_forward.34} parent=50 // pred_check_branch
          %643 = sbr.rel (%p641) target = $region59
        $region58: #{conv_ae_forward.34} parent=50 // pred_region
          %s644 = smul.u32 8, %s14
          %s645 = smul.addr %s644, 8
          %s646 = scalar_lea.vmem %s3, %s645
          // Predicated region
          $region60: #{conv_ae_forward.34} parent=58 // pred_check
            _
          $region61: #{conv_ae_forward.34} parent=58 // pred_check_branch
            %648 = sbr.rel (0) target = $region63
          $region62: #{conv_ae_forward.34} parent=58 // pred_region
            // Predicated region
            $region64: #{conv_ae_forward.34} parent=62 // pred_check
              _
            $region65: #{conv_ae_forward.34} parent=62 // pred_check_branch
              %650 = sbr.rel (0) target = $region67
            $region66: #{conv_ae_forward.34} parent=62 // pred_region
              loop: start=0, step=1, limit=1
              $region68: #{conv_ae_forward.34} parent=66 // loop_pre_header
                _
              $region69: #{conv_ae_forward.34} parent=66 // loop_header
                %s652 = sphi 0, %s656
                %p653 = scmp.ge.s32.totalorder %s652, 1
                %s657 = sphi %s640, %s640
                %s658 = sphi %s646, %s646
              $region70: #{conv_ae_forward.34} parent=66 // loop_header_branch
                %655 = sbr.rel (%p653) target = $region74
              $region71: #{conv_ae_forward.34} parent=66 // loop_body
                %v659 = vld [vmem:[%s657] sm:$0xff]
                %660 = vst [vmem:[%s658] sm:$0xff] %v659
                %v661 = vld [vmem:[%s657 + $0x8] sm:$0xff]
                %662 = vst [vmem:[%s658 + $0x8] sm:$0xff] %v661
                %v663 = vld [vmem:[%s657 + $0x10] sm:$0xff]
                %664 = vst [vmem:[%s658 + $0x10] sm:$0xff] %v663
                %v665 = vld [vmem:[%s657 + $0x18] sm:$0xff]
                %666 = vst [vmem:[%s658 + $0x18] sm:$0xff] %v665
                %v667 = vld [vmem:[%s657 + $0x20] sm:$0xff]
                %668 = vst [vmem:[%s658 + $0x20] sm:$0xff] %v667
                %v669 = vld [vmem:[%s657 + $0x28] sm:$0xff]
                %670 = vst [vmem:[%s658 + $0x28] sm:$0xff] %v669
                %v671 = vld [vmem:[%s657 + $0x30] sm:$0xff]
                %672 = vst [vmem:[%s658 + $0x30] sm:$0xff] %v671
                %v673 = vld [vmem:[%s657 + $0x38] sm:$0xff]
                %674 = vst [vmem:[%s658 + $0x38] sm:$0xff] %v673
                %v675 = vld [vmem:[%s657 + $0x40] sm:$0xff]
                %676 = vst [vmem:[%s658 + $0x80] sm:$0xff] %v675
                %v677 = vld [vmem:[%s657 + $0x48] sm:$0xff]
                %678 = vst [vmem:[%s658 + $0x88] sm:$0xff] %v677
                %v679 = vld [vmem:[%s657 + $0x50] sm:$0xff]
                %680 = vst [vmem:[%s658 + $0x90] sm:$0xff] %v679
                %v681 = vld [vmem:[%s657 + $0x58] sm:$0xff]
                %682 = vst [vmem:[%s658 + $0x98] sm:$0xff] %v681
                %v683 = vld [vmem:[%s657 + $0x60] sm:$0xff]
                %684 = vst [vmem:[%s658 + $0xa0] sm:$0xff] %v683
                %v685 = vld [vmem:[%s657 + $0x68] sm:$0xff]
                %686 = vst [vmem:[%s658 + $0xa8] sm:$0xff] %v685
                %v687 = vld [vmem:[%s657 + $0x70] sm:$0xff]
                %688 = vst [vmem:[%s658 + $0xb0] sm:$0xff] %v687
                %v689 = vld [vmem:[%s657 + $0x78] sm:$0xff]
                %690 = vst [vmem:[%s658 + $0xb8] sm:$0xff] %v689
              $region72: #{conv_ae_forward.34} parent=66 // loop_footer
                %s656 = sadd.s32 1, %s652
              $region73: #{conv_ae_forward.34} parent=66 // loop_footer_branch
                %651 = sbr.rel target = $region69
              $region74: #{conv_ae_forward.34} parent=66 // loop_exit
                _
            $region67: #{conv_ae_forward.34} parent=62 // pred_fallthru
              _
            // Predicated region
            $region75: #{conv_ae_forward.34} parent=62 // pred_check
              _
            $region76: #{conv_ae_forward.34} parent=62 // pred_check_branch
              %692 = sbr.rel target = $region78
            $region77: #{conv_ae_forward.34} parent=62 // pred_region
              _
            $region78: #{conv_ae_forward.34} parent=62 // pred_fallthru
              _
          $region63: #{conv_ae_forward.34} parent=58 // pred_fallthru
            _
          %693 = vnop
        $region59: #{conv_ae_forward.34} parent=50 // pred_fallthru
          _
      $region51: #{conv_ae_forward.34} parent=5 // pred_fallthru
        _
      %p694 = scmp.le.s32.totalorder 2, %s9
      // Predicated region
      $region79: #{conv_ae_forward.34} parent=5 // pred_check
        %p695 = pneg %p694
      $region80: #{conv_ae_forward.34} parent=5 // pred_check_branch
        %697 = sbr.rel (%p695) target = $region82
      $region81: #{conv_ae_forward.34} parent=5 // pred_region
        %s698 = ssub.s32 %s9, 2
        // Predicated region
        $region83: #{conv_ae_forward.34} parent=81 // pred_check
          %p699 = pneg %p106
        $region84: #{conv_ae_forward.34} parent=81 // pred_check_branch
          %701 = sbr.rel (%p699) target = $region86
        $region85: #{conv_ae_forward.34} parent=81 // pred_region
          %s702 = sand.u32 %s91, 1
          %s703 = sand.u32 %s91, 1
          %s704 = smul.addr %s703, 128
          %s705 = scalar_lea.vmem [#allocation3], %s704
        $region86: #{conv_ae_forward.34} parent=81 // pred_fallthru
          _
      $region82: #{conv_ae_forward.34} parent=5 // pred_fallthru
        _
    $region6: #{conv_ae_forward.34} parent=1 // loop_footer
      %s13 = sadd.s32 1, %s9
    $region7: #{conv_ae_forward.34} parent=1 // loop_footer_branch
      %8 = sbr.rel target = $region3
    $region8: #{conv_ae_forward.34} parent=1 // loop_exit
      _

// kernel: conv_ae_forward.35
$region0: #{conv_ae_forward.35}
  #allocation0 [shape = 'u32[]', space=smem, size = 0x4, offset = 0x4, fixed_abs, tag = 'smem constant byte address 0x4 - core index']
  #allocation1 [shape = 'u32[144,128]{1,0:T(1,128)}', space=vmem, size = 0x12000, scoped, tag = 'internal scratch']
  %s0 = inlined_call_operand.vmem [shape: bf16[8,48], index: 0, kind: input, shape index: {}]
  %s1 = inlined_call_operand.vmem [shape: bf16[48,8192], index: 1, kind: input, shape index: {}]
  %s2 = inlined_call_operand.vmem [shape: f32[8,1], index: 2, kind: input, shape index: {}]
  %s3 = inlined_call_operand.vmem [shape: f32[8,8192], index: 3, kind: output, shape index: {}]
  %s4 = sld [smem:[#allocation0]]
  $region68: #{conv_ae_forward.35} parent=0
    _
  %s6 = ssub.s32 1, %s4
  %s7 = scalar_select 0, %s6, %s4
  $region1: #{conv_ae_forward.35} parent=0
    #allocation2 [shape = 'u8[393216]{0}', space=vmem, size = 0x60000, scoped, tag = 'input window, operand 1']
    loop: start=0, step=1, limit=6
    $region2: #{conv_ae_forward.35} parent=1 // loop_pre_header
      _
    $region3: #{conv_ae_forward.35} parent=1 // loop_header
      %s9 = sphi 0, %s13
      %p10 = scmp.ge.s32.totalorder %s9, 6
      %s17 = sphi 0, %s17
      %s19 = sphi 0, %s17
      %s20 = sphi 0, %s19
      %s34 = sphi 0, %s20
      %s40 = sphi 0, %s42
      %s43 = sphi 0, %s40
      %s44 = sphi 0, %s43
      %s60 = sphi 0, %s44
      %s64 = sphi 0, %s64
      %s66 = sphi 0, %s64
      %s67 = sphi 0, %s66
      %s81 = sphi 0, %s67
      %s87 = sphi 0, %s89
      %s90 = sphi 0, %s87
      %s91 = sphi 0, %s90
      %s107 = sphi 0, %s91
    $region4: #{conv_ae_forward.35} parent=1 // loop_header_branch
      %12 = sbr.rel (%p10) target = $region8
    $region5: #{conv_ae_forward.35} parent=1 // loop_body
      %s14 = ssub.s32 %s9, 1
      %s15 = ssub.s32 %s9, 2
      %s16 = sadd.s32 %s9, 1
      %s18 = sadd.s32 %s17, 1
      %p21 = scmp.eq.s32.totalorder %s9, 3
      %p22 = scmp.ne.s32.totalorder %s17, %s19
      %p23 = scmp.eq.s32.totalorder %s9, 0
      %p24 = por %p22, %p23
      %p25 = scmp.ne.s32.totalorder %s17, %s19
      %p26 = scmp.eq.s32.totalorder %s14, 3
      %p27 = por %p25, %p26
      %p28 = scmp.ne.s32.totalorder %s19, %s20
      %p29 = scmp.eq.s32.totalorder %s14, 0
      %p30 = por %p28, %p29
      %p31 = scmp.ne.s32.totalorder %s19, %s20
      %p32 = scmp.eq.s32.totalorder %s15, 3
      %p33 = por %p31, %p32
      %p35 = scmp.ne.s32.totalorder %s20, %s34
      %p36 = scmp.eq.s32.totalorder %s15, 0
      %p37 = por %p35, %p36
      %s38 = ssub.s32 %s9, %s16
      %p39 = scmp.eq.s32.totalorder %s38, 0
      %s41 = sadd.s32 %s40, 1
      %s42 = scalar_select %p39, %s40, %s41
      %p45 = pneg %p39
      %p46 = scmp.eq.s32.totalorder %s9, 3
      %p47 = por %p45, %p46
      %p48 = scmp.ne.s32.totalorder %s40, %s43
      %p49 = scmp.eq.s32.totalorder %s9, 0
      %p50 = por %p48, %p49
      %p51 = scmp.ne.s32.totalorder %s40, %s43
      %p52 = scmp.eq.s32.totalorder %s14, 3
      %p53 = por %p51, %p52
      %p54 = scmp.ne.s32.totalorder %s43, %s44
      %p55 = scmp.eq.s32.totalorder %s14, 0
      %p56 = por %p54, %p55
      %p57 = scmp.ne.s32.totalorder %s43, %s44
      %p58 = scmp.eq.s32.totalorder %s15, 3
      %p59 = por %p57, %p58
      %p61 = scmp.ne.s32.totalorder %s44, %s60
      %p62 = scmp.eq.s32.totalorder %s15, 0
      %p63 = por %p61, %p62
      %s65 = sadd.s32 %s64, 1
      %p68 = scmp.eq.s32.totalorder %s9, 3
      %p69 = scmp.ne.s32.totalorder %s64, %s66
      %p70 = scmp.eq.s32.totalorder %s9, 0
      %p71 = por %p69, %p70
      %p72 = scmp.ne.s32.totalorder %s64, %s66
      %p73 = scmp.eq.s32.totalorder %s14, 3
      %p74 = por %p72, %p73
      %p75 = scmp.ne.s32.totalorder %s66, %s67
      %p76 = scmp.eq.s32.totalorder %s14, 0
      %p77 = por %p75, %p76
      %p78 = scmp.ne.s32.totalorder %s66, %s67
      %p79 = scmp.eq.s32.totalorder %s15, 3
      %p80 = por %p78, %p79
      %p82 = scmp.ne.s32.totalorder %s67, %s81
      %p83 = scmp.eq.s32.totalorder %s15, 0
      %p84 = por %p82, %p83
      %s85 = ssub.s32 %s9, %s16
      %p86 = scmp.eq.s32.totalorder %s85, 0
      %s88 = sadd.s32 %s87, 1
      %s89 = scalar_select %p86, %s87, %s88
      %p92 = pneg %p86
      %p93 = scmp.eq.s32.totalorder %s9, 3
      %p94 = por %p92, %p93
      %p95 = scmp.ne.s32.totalorder %s87, %s90
      %p96 = scmp.eq.s32.totalorder %s9, 0
      %p97 = por %p95, %p96
      %p98 = scmp.ne.s32.totalorder %s87, %s90
      %p99 = scmp.eq.s32.totalorder %s14, 3
      %p100 = por %p98, %p99
      %p101 = scmp.ne.s32.totalorder %s90, %s91
      %p102 = scmp.eq.s32.totalorder %s14, 0
      %p103 = por %p101, %p102
      %p104 = scmp.ne.s32.totalorder %s90, %s91
      %p105 = scmp.eq.s32.totalorder %s15, 3
      %p106 = por %p104, %p105
      %p108 = scmp.ne.s32.totalorder %s91, %s107
      %p109 = scmp.eq.s32.totalorder %s15, 0
      %p110 = por %p108, %p109
      %p111 = scmp.le.s32.totalorder 1, %s9
      %p112 = scmp.lt.s32.totalorder %s9, 5
      %p113 = pnand %p111, %p112
      %p114 = pneg %p113
      // Predicated region
      $region9: #{conv_ae_forward.35} parent=5 // pred_check
        _
      $region10: #{conv_ae_forward.35} parent=5 // pred_check_branch
        %116 = sbr.rel (%p113) target = $region12
      $region11: #{conv_ae_forward.35} parent=5 // pred_region
        %s117 = ssub.s32 %s9, 1
        // Predicated region
        $region13: #{conv_ae_forward.35} parent=11 // pred_check
          %p118 = pneg %p30
        $region14: #{conv_ae_forward.35} parent=11 // pred_check_branch
          %120 = sbr.rel (%p118) target = $region16
        $region15: #{conv_ae_forward.35} parent=11 // pred_region
          _
        $region16: #{conv_ae_forward.35} parent=11 // pred_fallthru
          _
        // Predicated region
        $region17: #{conv_ae_forward.35} parent=11 // pred_check
          %p121 = pneg %p77
        $region18: #{conv_ae_forward.35} parent=11 // pred_check_branch
          %123 = sbr.rel (%p121) target = $region20
        $region19: #{conv_ae_forward.35} parent=11 // pred_region
          _
        $region20: #{conv_ae_forward.35} parent=11 // pred_fallthru
          _
      $region12: #{conv_ae_forward.35} parent=5 // pred_fallthru
        _
      %p124 = scmp.lt.s32.totalorder %s9, 4
      // Predicated region
      $region21: #{conv_ae_forward.35} parent=5 // pred_check
        %p125 = pneg %p124
      $region22: #{conv_ae_forward.35} parent=5 // pred_check_branch
        %127 = sbr.rel (%p125) target = $region24
      $region23: #{conv_ae_forward.35} parent=5 // pred_region
        // Predicated region
        $region25: #{conv_ae_forward.35} parent=23 // pred_check
          %p128 = pneg %p50
        $region26: #{conv_ae_forward.35} parent=23 // pred_check_branch
          %130 = sbr.rel (%p128) target = $region28
        $region27: #{conv_ae_forward.35} parent=23 // pred_region
          %s131 = sand.u32 %s40, 1
          %s132 = sand.u32 %s40, 1
          %s133 = smul.addr %s132, 384
          %s134 = scalar_lea.vmem [#allocation2], %s133
          %s135 = smul.u32 16, %s9
          %s136 = smul.addr %s135, 4
          %s137 = scalar_lea.vmem %s1, %s136
          // Predicated region
          $region29: #{conv_ae_forward.35} parent=27 // pred_check
            _
          $region30: #{conv_ae_forward.35} parent=27 // pred_check_branch
            %139 = sbr.rel (0) target = $region32
          $region31: #{conv_ae_forward.35} parent=27 // pred_region
            // Predicated region
            $region33: #{conv_ae_forward.35} parent=31 // pred_check
              _
            $region34: #{conv_ae_forward.35} parent=31 // pred_check_branch
              %141 = sbr.rel (0) target = $region36
            $region35: #{conv_ae_forward.35} parent=31 // pred_region
              loop: start=0, step=1, limit=1
              $region37: #{conv_ae_forward.35} parent=35 // loop_pre_header
                _
              $region38: #{conv_ae_forward.35} parent=35 // loop_header
                %s143 = sphi 0, %s147
                %p144 = scmp.ge.s32.totalorder %s143, 1
                %s148 = sphi %s137, %s137
                %s149 = sphi %s134, %s134
              $region39: #{conv_ae_forward.35} parent=35 // loop_header_branch
                %146 = sbr.rel (%p144) target = $region43
              $region40: #{conv_ae_forward.35} parent=35 // loop_body
                %v150 = vld [vmem:[%s148] sm:$0xff]
                %151 = vst [vmem:[%s149] sm:$0xff] %v150
                %v152 = vld [vmem:[%s148 + $0x8] sm:$0xff]
                %153 = vst [vmem:[%s149 + $0x8] sm:$0xff] %v152
                %v154 = vld [vmem:[%s148 + $0x10] sm:$0xff]
                %155 = vst [vmem:[%s149 + $0x10] sm:$0xff] %v154
                %v156 = vld [vmem:[%s148 + $0x18] sm:$0xff]
                %157 = vst [vmem:[%s149 + $0x18] sm:$0xff] %v156
                %v158 = vld [vmem:[%s148 + $0x20] sm:$0xff]
                %159 = vst [vmem:[%s149 + $0x20] sm:$0xff] %v158
                %v160 = vld [vmem:[%s148 + $0x28] sm:$0xff]
                %161 = vst [vmem:[%s149 + $0x28] sm:$0xff] %v160
                %v162 = vld [vmem:[%s148 + $0x30] sm:$0xff]
                %163 = vst [vmem:[%s149 + $0x30] sm:$0xff] %v162
                %v164 = vld [vmem:[%s148 + $0x38] sm:$0xff]
                %165 = vst [vmem:[%s149 + $0x38] sm:$0xff] %v164
                %v166 = vld [vmem:[%s148 + $0x100] sm:$0xff]
                %167 = vst [vmem:[%s149 + $0x40] sm:$0xff] %v166
                %v168 = vld [vmem:[%s148 + $0x108] sm:$0xff]
                %169 = vst [vmem:[%s149 + $0x48] sm:$0xff] %v168
                %v170 = vld [vmem:[%s148 + $0x110] sm:$0xff]
                %171 = vst [vmem:[%s149 + $0x50] sm:$0xff] %v170
                %v172 = vld [vmem:[%s148 + $0x118] sm:$0xff]
                %173 = vst [vmem:[%s149 + $0x58] sm:$0xff] %v172
                %v174 = vld [vmem:[%s148 + $0x120] sm:$0xff]
                %175 = vst [vmem:[%s149 + $0x60] sm:$0xff] %v174
                %v176 = vld [vmem:[%s148 + $0x128] sm:$0xff]
                %177 = vst [vmem:[%s149 + $0x68] sm:$0xff] %v176
                %v178 = vld [vmem:[%s148 + $0x130] sm:$0xff]
                %179 = vst [vmem:[%s149 + $0x70] sm:$0xff] %v178
                %v180 = vld [vmem:[%s148 + $0x138] sm:$0xff]
                %181 = vst [vmem:[%s149 + $0x78] sm:$0xff] %v180
                %v182 = vld [vmem:[%s148 + $0x200] sm:$0xff]
                %183 = vst [vmem:[%s149 + $0x80] sm:$0xff] %v182
                %v184 = vld [vmem:[%s148 + $0x208] sm:$0xff]
                %185 = vst [vmem:[%s149 + $0x88] sm:$0xff] %v184
                %v186 = vld [vmem:[%s148 + $0x210] sm:$0xff]
                %187 = vst [vmem:[%s149 + $0x90] sm:$0xff] %v186
                %v188 = vld [vmem:[%s148 + $0x218] sm:$0xff]
                %189 = vst [vmem:[%s149 + $0x98] sm:$0xff] %v188
                %v190 = vld [vmem:[%s148 + $0x220] sm:$0xff]
                %191 = vst [vmem:[%s149 + $0xa0] sm:$0xff] %v190
                %v192 = vld [vmem:[%s148 + $0x228] sm:$0xff]
                %193 = vst [vmem:[%s149 + $0xa8] sm:$0xff] %v192
                %v194 = vld [vmem:[%s148 + $0x230] sm:$0xff]
                %195 = vst [vmem:[%s149 + $0xb0] sm:$0xff] %v194
                %v196 = vld [vmem:[%s148 + $0x238] sm:$0xff]
                %197 = vst [vmem:[%s149 + $0xb8] sm:$0xff] %v196
                %v198 = vld [vmem:[%s148 + $0x300] sm:$0xff]
                %199 = vst [vmem:[%s149 + $0xc0] sm:$0xff] %v198
                %v200 = vld [vmem:[%s148 + $0x308] sm:$0xff]
                %201 = vst [vmem:[%s149 + $0xc8] sm:$0xff] %v200
                %v202 = vld [vmem:[%s148 + $0x310] sm:$0xff]
                %203 = vst [vmem:[%s149 + $0xd0] sm:$0xff] %v202
                %v204 = vld [vmem:[%s148 + $0x318] sm:$0xff]
                %205 = vst [vmem:[%s149 + $0xd8] sm:$0xff] %v204
                %v206 = vld [vmem:[%s148 + $0x320] sm:$0xff]
                %207 = vst [vmem:[%s149 + $0xe0] sm:$0xff] %v206
                %v208 = vld [vmem:[%s148 + $0x328] sm:$0xff]
                %209 = vst [vmem:[%s149 + $0xe8] sm:$0xff] %v208
                %v210 = vld [vmem:[%s148 + $0x330] sm:$0xff]
                %211 = vst [vmem:[%s149 + $0xf0] sm:$0xff] %v210
                %v212 = vld [vmem:[%s148 + $0x338] sm:$0xff]
                %213 = vst [vmem:[%s149 + $0xf8] sm:$0xff] %v212
                %v214 = vld [vmem:[%s148 + $0x400] sm:$0xff]
                %215 = vst [vmem:[%s149 + $0x100] sm:$0xff] %v214
                %v216 = vld [vmem:[%s148 + $0x408] sm:$0xff]
                %217 = vst [vmem:[%s149 + $0x108] sm:$0xff] %v216
                %v218 = vld [vmem:[%s148 + $0x410] sm:$0xff]
                %219 = vst [vmem:[%s149 + $0x110] sm:$0xff] %v218
                %v220 = vld [vmem:[%s148 + $0x418] sm:$0xff]
                %221 = vst [vmem:[%s149 + $0x118] sm:$0xff] %v220
                %v222 = vld [vmem:[%s148 + $0x420] sm:$0xff]
                %223 = vst [vmem:[%s149 + $0x120] sm:$0xff] %v222
                %v224 = vld [vmem:[%s148 + $0x428] sm:$0xff]
                %225 = vst [vmem:[%s149 + $0x128] sm:$0xff] %v224
                %v226 = vld [vmem:[%s148 + $0x430] sm:$0xff]
                %227 = vst [vmem:[%s149 + $0x130] sm:$0xff] %v226
                %v228 = vld [vmem:[%s148 + $0x438] sm:$0xff]
                %229 = vst [vmem:[%s149 + $0x138] sm:$0xff] %v228
                %v230 = vld [vmem:[%s148 + $0x500] sm:$0xff]
                %231 = vst [vmem:[%s149 + $0x140] sm:$0xff] %v230
                %v232 = vld [vmem:[%s148 + $0x508] sm:$0xff]
                %233 = vst [vmem:[%s149 + $0x148] sm:$0xff] %v232
                %v234 = vld [vmem:[%s148 + $0x510] sm:$0xff]
                %235 = vst [vmem:[%s149 + $0x150] sm:$0xff] %v234
                %v236 = vld [vmem:[%s148 + $0x518] sm:$0xff]
                %237 = vst [vmem:[%s149 + $0x158] sm:$0xff] %v236
                %v238 = vld [vmem:[%s148 + $0x520] sm:$0xff]
                %239 = vst [vmem:[%s149 + $0x160] sm:$0xff] %v238
                %v240 = vld [vmem:[%s148 + $0x528] sm:$0xff]
                %241 = vst [vmem:[%s149 + $0x168] sm:$0xff] %v240
                %v242 = vld [vmem:[%s148 + $0x530] sm:$0xff]
                %243 = vst [vmem:[%s149 + $0x170] sm:$0xff] %v242
                %v244 = vld [vmem:[%s148 + $0x538] sm:$0xff]
                %245 = vst [vmem:[%s149 + $0x178] sm:$0xff] %v244
              $region41: #{conv_ae_forward.35} parent=35 // loop_footer
                %s147 = sadd.s32 1, %s143
              $region42: #{conv_ae_forward.35} parent=35 // loop_footer_branch
                %142 = sbr.rel target = $region38
              $region43: #{conv_ae_forward.35} parent=35 // loop_exit
                _
            $region36: #{conv_ae_forward.35} parent=31 // pred_fallthru
              _
            // Predicated region
            $region44: #{conv_ae_forward.35} parent=31 // pred_check
              _
            $region45: #{conv_ae_forward.35} parent=31 // pred_check_branch
              %247 = sbr.rel target = $region47
            $region46: #{conv_ae_forward.35} parent=31 // pred_region
              _
            $region47: #{conv_ae_forward.35} parent=31 // pred_fallthru
              _
          $region32: #{conv_ae_forward.35} parent=27 // pred_fallthru
            _
          %248 = vnop
        $region28: #{conv_ae_forward.35} parent=23 // pred_fallthru
          _
      $region24: #{conv_ae_forward.35} parent=5 // pred_fallthru
        _
      %p249 = scmp.le.s32.totalorder 1, %s9
      %p250 = scmp.lt.s32.totalorder %s9, 5
      %p251 = pnand %p249, %p250
      %p252 = pneg %p251
      // Predicated region
      $region48: #{conv_ae_forward.35} parent=5 // pred_check
        _
      $region49: #{conv_ae_forward.35} parent=5 // pred_check_branch
        %254 = sbr.rel (%p251) target = $region51
      $region50: #{conv_ae_forward.35} parent=5 // pred_region
        %s255 = ssub.s32 %s9, 1
        %s256 = sand.u32 %s43, 1
        %s257 = sand.u32 %s43, 1
        %s258 = smul.addr %s257, 384
        %s259 = scalar_lea.vmem [#allocation2], %s258
        // Predicated region
        $region52: #{conv_ae_forward.35} parent=50 // pred_check
          %p260 = pneg %p56
        $region53: #{conv_ae_forward.35} parent=50 // pred_check_branch
          %262 = sbr.rel (%p260) target = $region55
        $region54: #{conv_ae_forward.35} parent=50 // pred_region
          _
        $region55: #{conv_ae_forward.35} parent=50 // pred_fallthru
          _
        %p263 = pneg %p30
        %p264 = pneg %p27
        %s265 = sand.u32 %s43, 1
        %s266 = sand.u32 %s43, 1
        %s267 = smul.addr %s266, 384
        %s268 = scalar_lea.vmem [#allocation2], %s267
        %p269 = pneg %p56
        %p270 = pneg %p53
        %p271 = pneg %p77
        %p272 = pneg %p74
        %p273 = pneg %p103
        %p274 = pneg %p100
        %s275 = smul.u32 16, %s14
        %p276 = scmp.lt.s32.totalorder %s275, 63
        %s277 = scalar_select %p276, %s275, 63
        %s278 = smul.addr %s277, 8
        %s279 = scalar_lea.vmem %s3, %s278
        %s280 = smul.u32 16, %s14
        %s281 = smul.u32 16, %s14
        %p282 = scmp.lt.s32.totalorder %s281, 63
        %s283 = scalar_select %p282, %s281, 63
        %s284 = smul.addr %s283, 8
        %s285 = scalar_lea.vmem %s3, %s284
        %s286 = smul.u32 16, %s14
        %v288 = vld [vmem:[%s0] sm:$0xf]
        %v289 = vld [vmem:[%s259] sm:$0xff]
        %v290 = vld [vmem:[%s259 + $0x8] sm:$0xff]
        %v291 = vld [vmem:[%s259 + $0x10] sm:$0xff]
        %v292 = vld [vmem:[%s259 + $0x18] sm:$0xff]
        %v293 = vld [vmem:[%s259 + $0x20] sm:$0xff]
        %v294 = vld [vmem:[%s259 + $0x28] sm:$0xff]
        %v295 = vld [vmem:[%s259 + $0x30] sm:$0xff]
        %v296 = vld [vmem:[%s259 + $0x38] sm:$0xff]
        %v297 = vld [vmem:[%s259 + $0x40] sm:$0xff]
        %v298 = vld [vmem:[%s259 + $0x48] sm:$0xff]
        %v299 = vld [vmem:[%s259 + $0x50] sm:$0xff]
        %v300 = vld [vmem:[%s259 + $0x58] sm:$0xff]
        %v301 = vld [vmem:[%s259 + $0x60] sm:$0xff]
        %v302 = vld [vmem:[%s259 + $0x68] sm:$0xff]
        %v303 = vld [vmem:[%s259 + $0x70] sm:$0xff]
        %v304 = vld [vmem:[%s259 + $0x78] sm:$0xff]
        %v305 = vld [vmem:[%s259 + $0x80] sm:$0xff]
        %v306 = vld [vmem:[%s259 + $0x88] sm:$0xff]
        %v307 = vld [vmem:[%s259 + $0x90] sm:$0xff]
        %v308 = vld [vmem:[%s259 + $0x98] sm:$0xff]
        %v309 = vld [vmem:[%s259 + $0xa0] sm:$0xff]
        %v310 = vld [vmem:[%s259 + $0xa8] sm:$0xff]
        %v311 = vld [vmem:[%s259 + $0xb0] sm:$0xff]
        %v312 = vld [vmem:[%s259 + $0xb8] sm:$0xff]
        %v313 = vld [vmem:[%s259 + $0xc0] sm:$0xff]
        %v314 = vld [vmem:[%s259 + $0xc8] sm:$0xff]
        %v315 = vld [vmem:[%s259 + $0xd0] sm:$0xff]
        %v316 = vld [vmem:[%s259 + $0xd8] sm:$0xff]
        %v317 = vld [vmem:[%s259 + $0xe0] sm:$0xff]
        %v318 = vld [vmem:[%s259 + $0xe8] sm:$0xff]
        %v319 = vld [vmem:[%s259 + $0xf0] sm:$0xff]
        %v320 = vld [vmem:[%s259 + $0xf8] sm:$0xff]
        %v321 = vld [vmem:[%s259 + $0x100] sm:$0xff]
        %v322 = vld [vmem:[%s259 + $0x108] sm:$0xff]
        %v323 = vld [vmem:[%s259 + $0x110] sm:$0xff]
        %v324 = vld [vmem:[%s259 + $0x118] sm:$0xff]
        %v325 = vld [vmem:[%s259 + $0x120] sm:$0xff]
        %v326 = vld [vmem:[%s259 + $0x128] sm:$0xff]
        %v327 = vld [vmem:[%s259 + $0x130] sm:$0xff]
        %v328 = vld [vmem:[%s259 + $0x138] sm:$0xff]
        %v329 = vld [vmem:[%s259 + $0x140] sm:$0xff]
        %v330 = vld [vmem:[%s259 + $0x148] sm:$0xff]
        %v331 = vld [vmem:[%s259 + $0x150] sm:$0xff]
        %v332 = vld [vmem:[%s259 + $0x158] sm:$0xff]
        %v333 = vld [vmem:[%s259 + $0x160] sm:$0xff]
        %v334 = vld [vmem:[%s259 + $0x168] sm:$0xff]
        %v335 = vld [vmem:[%s259 + $0x170] sm:$0xff]
        %v336 = vld [vmem:[%s259 + $0x178] sm:$0xff]
        %v337 = vld [vmem:[%s2] sm:$0xff]
        %339 = vset.pattern.permute.xlu0 0
        %340 = vperm.xlu0 %339, %v337
        %v341 = vpop.permute.xlu0 %340
        %v391 = vunpack.c.l.b16 %v289
        %v392 = vunpack.c.h.b16 %v289
        %v393 = vunpack.c.l.b16 %v290
        %v394 = vunpack.c.h.b16 %v290
        %v395 = vunpack.c.l.b16 %v291
        %v396 = vunpack.c.h.b16 %v291
        %v397 = vunpack.c.l.b16 %v292
        %v398 = vunpack.c.h.b16 %v292
        %v399 = vunpack.c.l.b16 %v293
        %v400 = vunpack.c.h.b16 %v293
        %v401 = vunpack.c.l.b16 %v294
        %v402 = vunpack.c.h.b16 %v294
        %v403 = vunpack.c.l.b16 %v295
        %v404 = vunpack.c.h.b16 %v295
        %v405 = vunpack.c.l.b16 %v296
        %v406 = vunpack.c.h.b16 %v296
        %v407 = vunpack.c.l.b16 %v297
        %v408 = vunpack.c.h.b16 %v297
        %v409 = vunpack.c.l.b16 %v298
        %v410 = vunpack.c.h.b16 %v298
        %v411 = vunpack.c.l.b16 %v299
        %v412 = vunpack.c.h.b16 %v299
        %v413 = vunpack.c.l.b16 %v300
        %v414 = vunpack.c.h.b16 %v300
        %v415 = vunpack.c.l.b16 %v301
        %v416 = vunpack.c.h.b16 %v301
        %v417 = vunpack.c.l.b16 %v302
        %v418 = vunpack.c.h.b16 %v302
        %v419 = vunpack.c.l.b16 %v303
        %v420 = vunpack.c.h.b16 %v303
        %v421 = vunpack.c.l.b16 %v304
        %v422 = vunpack.c.h.b16 %v304
        %v423 = vunpack.c.l.b16 %v305
        %v424 = vunpack.c.h.b16 %v305
        %v425 = vunpack.c.l.b16 %v306
        %v426 = vunpack.c.h.b16 %v306
        %v427 = vunpack.c.l.b16 %v307
        %v428 = vunpack.c.h.b16 %v307
        %v429 = vunpack.c.l.b16 %v308
        %v430 = vunpack.c.h.b16 %v308
        %v431 = vunpack.c.l.b16 %v309
        %v432 = vunpack.c.h.b16 %v309
        %v433 = vunpack.c.l.b16 %v310
        %v434 = vunpack.c.h.b16 %v310
        %v435 = vunpack.c.l.b16 %v311
        %v436 = vunpack.c.h.b16 %v311
        %v437 = vunpack.c.l.b16 %v312
        %v438 = vunpack.c.h.b16 %v312
        %v439 = vunpack.c.l.b16 %v313
        %v440 = vunpack.c.h.b16 %v313
        %v441 = vunpack.c.l.b16 %v314
        %v442 = vunpack.c.h.b16 %v314
        %v443 = vunpack.c.l.b16 %v315
        %v444 = vunpack.c.h.b16 %v315
        %v445 = vunpack.c.l.b16 %v316
        %v446 = vunpack.c.h.b16 %v316
        %v447 = vunpack.c.l.b16 %v317
        %v448 = vunpack.c.h.b16 %v317
        %v449 = vunpack.c.l.b16 %v318
        %v450 = vunpack.c.h.b16 %v318
        %v451 = vunpack.c.l.b16 %v319
        %v452 = vunpack.c.h.b16 %v319
        %v453 = vunpack.c.l.b16 %v320
        %v454 = vunpack.c.h.b16 %v320
        %v455 = vunpack.c.l.b16 %v321
        %v456 = vunpack.c.h.b16 %v321
        %v457 = vunpack.c.l.b16 %v322
        %v458 = vunpack.c.h.b16 %v322
        %v459 = vunpack.c.l.b16 %v323
        %v460 = vunpack.c.h.b16 %v323
        %v461 = vunpack.c.l.b16 %v324
        %v462 = vunpack.c.h.b16 %v324
        %v463 = vunpack.c.l.b16 %v325
        %v464 = vunpack.c.h.b16 %v325
        %v465 = vunpack.c.l.b16 %v326
        %v466 = vunpack.c.h.b16 %v326
        %v467 = vunpack.c.l.b16 %v327
        %v468 = vunpack.c.h.b16 %v327
        %v469 = vunpack.c.l.b16 %v328
        %v470 = vunpack.c.h.b16 %v328
        %v471 = vunpack.c.l.b16 %v329
        %v472 = vunpack.c.h.b16 %v329
        %v473 = vunpack.c.l.b16 %v330
        %v474 = vunpack.c.h.b16 %v330
        %v475 = vunpack.c.l.b16 %v331
        %v476 = vunpack.c.h.b16 %v331
        %v477 = vunpack.c.l.b16 %v332
        %v478 = vunpack.c.h.b16 %v332
        %v479 = vunpack.c.l.b16 %v333
        %v480 = vunpack.c.h.b16 %v333
        %v481 = vunpack.c.l.b16 %v334
        %v482 = vunpack.c.h.b16 %v334
        %v483 = vunpack.c.l.b16 %v335
        %v484 = vunpack.c.h.b16 %v335
        %v485 = vunpack.c.l.b16 %v336
        %v486 = vunpack.c.h.b16 %v336
        %v487 = vpack.c.b16 %v407, %v391
        %v488 = vpack.c.b16 %v408, %v392
        %v489 = vpack.c.b16 %v409, %v393
        %v490 = vpack.c.b16 %v410, %v394
        %v491 = vpack.c.b16 %v411, %v395
        %v492 = vpack.c.b16 %v412, %v396
        %v493 = vpack.c.b16 %v413, %v397
        %v494 = vpack.c.b16 %v414, %v398
        %v495 = vpack.c.b16 %v415, %v399
        %v496 = vpack.c.b16 %v416, %v400
        %v497 = vpack.c.b16 %v417, %v401
        %v498 = vpack.c.b16 %v418, %v402
        %v499 = vpack.c.b16 %v419, %v403
        %v500 = vpack.c.b16 %v420, %v404
        %v501 = vpack.c.b16 %v421, %v405
        %v502 = vpack.c.b16 %v422, %v406
        %v503 = vpack.c.b16 %v439, %v423
        %v504 = vpack.c.b16 %v440, %v424
        %v505 = vpack.c.b16 %v441, %v425
        %v506 = vpack.c.b16 %v442, %v426
        %v507 = vpack.c.b16 %v443, %v427
        %v508 = vpack.c.b16 %v444, %v428
        %v509 = vpack.c.b16 %v445, %v429
        %v510 = vpack.c.b16 %v446, %v430
        %v511 = vpack.c.b16 %v447, %v431
        %v512 = vpack.c.b16 %v448, %v432
        %v513 = vpack.c.b16 %v449, %v433
        %v514 = vpack.c.b16 %v450, %v434
        %v515 = vpack.c.b16 %v451, %v435
        %v516 = vpack.c.b16 %v452, %v436
        %v517 = vpack.c.b16 %v453, %v437
        %v518 = vpack.c.b16 %v454, %v438
        %v519 = vpack.c.b16 %v471, %v455
        %v520 = vpack.c.b16 %v472, %v456
        %v521 = vpack.c.b16 %v473, %v457
        %v522 = vpack.c.b16 %v474, %v458
        %v523 = vpack.c.b16 %v475, %v459
        %v524 = vpack.c.b16 %v476, %v460
        %v525 = vpack.c.b16 %v477, %v461
        %v526 = vpack.c.b16 %v478, %v462
        %v527 = vpack.c.b16 %v479, %v463
        %v528 = vpack.c.b16 %v480, %v464
        %v529 = vpack.c.b16 %v481, %v465
        %v530 = vpack.c.b16 %v482, %v466
        %v531 = vpack.c.b16 %v483, %v467
        %v532 = vpack.c.b16 %v484, %v468
        %v533 = vpack.c.b16 %v485, %v469
        %v534 = vpack.c.b16 %v486, %v470
        %vm583 = vcmask 392192
        %v585 = vsel %vm583, %v288, 0
        %587 = vmatprep.subr.bf16.mxu0 %v488
        %588 = vmatpush1.bf16.msra.mxu0 %v487
        %589 = vmatprep.subr.bf16.mxu0 %v504
        %590 = vmatpush1.bf16.msra.mxu0 %v503
        %591 = vmatprep.subr.bf16.mxu0 %v520
        %592 = vmatpush1.bf16.msra.mxu0 %v519
        %593 = vmatprep.subr.bf16.mxu0 0
        %594 = vmatpush1.bf16.msra.mxu0 0
        %595 = vmatprep.subr.bf16.mxu0 0
        %596 = vmatpush1.bf16.msra.mxu0 0
        %597 = vmatprep.subr.bf16.mxu0 0
        %598 = vmatpush1.bf16.msra.mxu0 0
        %599 = vmatprep.subr.bf16.mxu0 0
        %600 = vmatpush1.bf16.msra.mxu0 0
        %601 = vmatprep.subr.bf16.mxu0 0
        %602 = vmatpush1.bf16.msra.mxu0 0
        %603 = vmatprep.subr.bf16.mxu0 0
        %604 = vmatpush1.bf16.msra.mxu0 0
        %605 = vmatprep.subr.bf16.mxu0 0
        %606 = vmatpush1.bf16.msra.mxu0 0
        %607 = vmatprep.subr.bf16.mxu0 0
        %608 = vmatpush1.bf16.msra.mxu0 0
        %609 = vmatprep.subr.bf16.mxu0 0
        %610 = vmatpush1.bf16.msra.mxu0 0
        %611 = vmatprep.subr.bf16.mxu0 0
        %612 = vmatpush1.bf16.msra.mxu0 0
        %613 = vmatprep.subr.bf16.mxu0 0
        %614 = vmatpush1.bf16.msra.mxu0 0
        %615 = vmatprep.subr.bf16.mxu0 0
        %616 = vmatpush1.bf16.msra.mxu0 0
        %617 = vmatprep.subr.bf16.mxu0 0
        %618 = vmatpush1.bf16.msra.mxu0 0
        %619 = vmatprep.mubr.bf16.mxu0 0
        %620 = vmatmul.mubr.bf16.gmra.mrb[0].mxu0 %v585
        %v621 = vpop.f32.mrb[0].mxu0
        %v622 = vadd.f32 %v341, %v621
        %v623 = vpop.f32.mrb[0].mxu0
        %v624 = vadd.f32 %v341, %v623
        %v625 = vpop.f32.mrb[0].mxu0
        %v626 = vpop.f32.mrb[0].mxu0
        %627 = vdwg.mxu0
        %628 = vmatprep.subr.bf16.mxu0 %v490
        %629 = vmatpush1.bf16.msra.mxu0 %v489
        %630 = vmatprep.subr.bf16.mxu0 %v506
        %631 = vmatpush1.bf16.msra.mxu0 %v505
        %632 = vmatprep.subr.bf16.mxu0 %v522
        %633 = vmatpush1.bf16.msra.mxu0 %v521
        %634 = vmatprep.subr.bf16.mxu0 0
        %635 = vmatpush1.bf16.msra.mxu0 0
        %636 = vmatprep.subr.bf16.mxu0 0
        %637 = vmatpush1.bf16.msra.mxu0 0
        %638 = vmatprep.subr.bf16.mxu0 0
        %639 = vmatpush1.bf16.msra.mxu0 0
        %640 = vmatprep.subr.bf16.mxu0 0
        %641 = vmatpush1.bf16.msra.mxu0 0
        %642 = vmatprep.subr.bf16.mxu0 0
        %643 = vmatpush1.bf16.msra.mxu0 0
        %644 = vmatprep.subr.bf16.mxu0 0
        %645 = vmatpush1.bf16.msra.mxu0 0
        %646 = vmatprep.subr.bf16.mxu0 0
        %647 = vmatpush1.bf16.msra.mxu0 0
        %648 = vmatprep.subr.bf16.mxu0 0
        %649 = vmatpush1.bf16.msra.mxu0 0
        %650 = vmatprep.subr.bf16.mxu0 0
        %651 = vmatpush1.bf16.msra.mxu0 0
        %652 = vmatprep.subr.bf16.mxu0 0
        %653 = vmatpush1.bf16.msra.mxu0 0
        %654 = vmatprep.subr.bf16.mxu0 0
        %655 = vmatpush1.bf16.msra.mxu0 0
        %656 = vmatprep.subr.bf16.mxu0 0
        %657 = vmatpush1.bf16.msra.mxu0 0
        %658 = vmatprep.subr.bf16.mxu0 0
        %659 = vmatpush1.bf16.msra.mxu0 0
        %660 = vmatprep.mubr.bf16.mxu0 0
        %661 = vmatmul.mubr.bf16.gmra.mrb[0].mxu0 %v585
        %v662 = vpop.f32.mrb[0].mxu0
        %v663 = vadd.f32 %v341, %v662
        %v664 = vpop.f32.mrb[0].mxu0
        %v665 = vadd.f32 %v341, %v664
        %v666 = vpop.f32.mrb[0].mxu0
        %v667 = vpop.f32.mrb[0].mxu0
        %668 = vdwg.mxu0
        %669 = vmatprep.subr.bf16.mxu0 %v492
        %670 = vmatpush1.bf16.msra.mxu0 %v491
        %671 = vmatprep.subr.bf16.mxu0 %v508
        %672 = vmatpush1.bf16.msra.mxu0 %v507
        %673 = vmatprep.subr.bf16.mxu0 %v524
        %674 = vmatpush1.bf16.msra.mxu0 %v523
        %675 = vmatprep.subr.bf16.mxu0 0
        %676 = vmatpush1.bf16.msra.mxu0 0
        %677 = vmatprep.subr.bf16.mxu0 0
        %678 = vmatpush1.bf16.msra.mxu0 0
        %679 = vmatprep.subr.bf16.mxu0 0
        %680 = vmatpush1.bf16.msra.mxu0 0
        %681 = vmatprep.subr.bf16.mxu0 0
        %682 = vmatpush1.bf16.msra.mxu0 0
        %683 = vmatprep.subr.bf16.mxu0 0
        %684 = vmatpush1.bf16.msra.mxu0 0
        %685 = vmatprep.subr.bf16.mxu0 0
        %686 = vmatpush1.bf16.msra.mxu0 0
        %687 = vmatprep.subr.bf16.mxu0 0
        %688 = vmatpush1.bf16.msra.mxu0 0
        %689 = vmatprep.subr.bf16.mxu0 0
        %690 = vmatpush1.bf16.msra.mxu0 0
        %691 = vmatprep.subr.bf16.mxu0 0
        %692 = vmatpush1.bf16.msra.mxu0 0
        %693 = vmatprep.subr.bf16.mxu0 0
        %694 = vmatpush1.bf16.msra.mxu0 0
        %695 = vmatprep.subr.bf16.mxu0 0
        %696 = vmatpush1.bf16.msra.mxu0 0
        %697 = vmatprep.subr.bf16.mxu0 0
        %698 = vmatpush1.bf16.msra.mxu0 0
        %699 = vmatprep.subr.bf16.mxu0 0
        %700 = vmatpush1.bf16.msra.mxu0 0
        %701 = vmatprep.mubr.bf16.mxu0 0
        %702 = vmatmul.mubr.bf16.gmra.mrb[0].mxu0 %v585
        %v703 = vpop.f32.mrb[0].mxu0
        %v704 = vadd.f32 %v341, %v703
        %v705 = vpop.f32.mrb[0].mxu0
        %v706 = vadd.f32 %v341, %v705
        %v707 = vpop.f32.mrb[0].mxu0
        %v708 = vpop.f32.mrb[0].mxu0
        %709 = vdwg.mxu0
        %710 = vmatprep.subr.bf16.mxu0 %v494
        %711 = vmatpush1.bf16.msra.mxu0 %v493
        %712 = vmatprep.subr.bf16.mxu0 %v510
        %713 = vmatpush1.bf16.msra.mxu0 %v509
        %714 = vmatprep.subr.bf16.mxu0 %v526
        %715 = vmatpush1.bf16.msra.mxu0 %v525
        %716 = vmatprep.subr.bf16.mxu0 0
        %717 = vmatpush1.bf16.msra.mxu0 0
        %718 = vmatprep.subr.bf16.mxu0 0
        %719 = vmatpush1.bf16.msra.mxu0 0
        %720 = vmatprep.subr.bf16.mxu0 0
        %721 = vmatpush1.bf16.msra.mxu0 0
        %722 = vmatprep.subr.bf16.mxu0 0
        %723 = vmatpush1.bf16.msra.mxu0 0
        %724 = vmatprep.subr.bf16.mxu0 0
        %725 = vmatpush1.bf16.msra.mxu0 0
        %726 = vmatprep.subr.bf16.mxu0 0
        %727 = vmatpush1.bf16.msra.mxu0 0
        %728 = vmatprep.subr.bf16.mxu0 0
        %729 = vmatpush1.bf16.msra.mxu0 0
        %730 = vmatprep.subr.bf16.mxu0 0
        %731 = vmatpush1.bf16.msra.mxu0 0
        %732 = vmatprep.subr.bf16.mxu0 0
        %733 = vmatpush1.bf16.msra.mxu0 0
        %734 = vmatprep.subr.bf16.mxu0 0
        %735 = vmatpush1.bf16.msra.mxu0 0
        %736 = vmatprep.subr.bf16.mxu0 0
        %737 = vmatpush1.bf16.msra.mxu0 0
        %738 = vmatprep.subr.bf16.mxu0 0
        %739 = vmatpush1.bf16.msra.mxu0 0
        %740 = vmatprep.subr.bf16.mxu0 0
        %741 = vmatpush1.bf16.msra.mxu0 0
        %742 = vmatprep.mubr.bf16.mxu0 0
        %743 = vmatmul.mubr.bf16.gmra.mrb[0].mxu0 %v585
        %v744 = vpop.f32.mrb[0].mxu0
        %v745 = vadd.f32 %v341, %v744
        %v746 = vpop.f32.mrb[0].mxu0
        %v747 = vadd.f32 %v341, %v746
        %v748 = vpop.f32.mrb[0].mxu0
        %v749 = vpop.f32.mrb[0].mxu0
        %750 = vdwg.mxu0
        %751 = vmatprep.subr.bf16.mxu0 %v496
        %752 = vmatpush1.bf16.msra.mxu0 %v495
        %753 = vmatprep.subr.bf16.mxu0 %v512
        %754 = vmatpush1.bf16.msra.mxu0 %v511
        %755 = vmatprep.subr.bf16.mxu0 %v528
        %756 = vmatpush1.bf16.msra.mxu0 %v527
        %757 = vmatprep.subr.bf16.mxu0 0
        %758 = vmatpush1.bf16.msra.mxu0 0
        %759 = vmatprep.subr.bf16.mxu0 0
        %760 = vmatpush1.bf16.msra.mxu0 0
        %761 = vmatprep.subr.bf16.mxu0 0
        %762 = vmatpush1.bf16.msra.mxu0 0
        %763 = vmatprep.subr.bf16.mxu0 0
        %764 = vmatpush1.bf16.msra.mxu0 0
        %765 = vmatprep.subr.bf16.mxu0 0
        %766 = vmatpush1.bf16.msra.mxu0 0
        %767 = vmatprep.subr.bf16.mxu0 0
        %768 = vmatpush1.bf16.msra.mxu0 0
        %769 = vmatprep.subr.bf16.mxu0 0
        %770 = vmatpush1.bf16.msra.mxu0 0
        %771 = vmatprep.subr.bf16.mxu0 0
        %772 = vmatpush1.bf16.msra.mxu0 0
        %773 = vmatprep.subr.bf16.mxu0 0
        %774 = vmatpush1.bf16.msra.mxu0 0
        %775 = vmatprep.subr.bf16.mxu0 0
        %776 = vmatpush1.bf16.msra.mxu0 0
        %777 = vmatprep.subr.bf16.mxu0 0
        %778 = vmatpush1.bf16.msra.mxu0 0
        %779 = vmatprep.subr.bf16.mxu0 0
        %780 = vmatpush1.bf16.msra.mxu0 0
        %781 = vmatprep.subr.bf16.mxu0 0
        %782 = vmatpush1.bf16.msra.mxu0 0
        %783 = vmatprep.mubr.bf16.mxu0 0
        %784 = vmatmul.mubr.bf16.gmra.mrb[0].mxu0 %v585
        %v785 = vpop.f32.mrb[0].mxu0
        %v786 = vadd.f32 %v341, %v785
        %v787 = vpop.f32.mrb[0].mxu0
        %v788 = vadd.f32 %v341, %v787
        %v789 = vpop.f32.mrb[0].mxu0
        %v790 = vpop.f32.mrb[0].mxu0
        %791 = vdwg.mxu0
        %792 = vmatprep.subr.bf16.mxu0 %v498
        %793 = vmatpush1.bf16.msra.mxu0 %v497
        %794 = vmatprep.subr.bf16.mxu0 %v514
        %795 = vmatpush1.bf16.msra.mxu0 %v513
        %796 = vmatprep.subr.bf16.mxu0 %v530
        %797 = vmatpush1.bf16.msra.mxu0 %v529
        %798 = vmatprep.subr.bf16.mxu0 0
        %799 = vmatpush1.bf16.msra.mxu0 0
        %800 = vmatprep.subr.bf16.mxu0 0
        %801 = vmatpush1.bf16.msra.mxu0 0
        %802 = vmatprep.subr.bf16.mxu0 0
        %803 = vmatpush1.bf16.msra.mxu0 0
        %804 = vmatprep.subr.bf16.mxu0 0
        %805 = vmatpush1.bf16.msra.mxu0 0
        %806 = vmatprep.subr.bf16.mxu0 0
        %807 = vmatpush1.bf16.msra.mxu0 0
        %808 = vmatprep.subr.bf16.mxu0 0
        %809 = vmatpush1.bf16.msra.mxu0 0
        %810 = vmatprep.subr.bf16.mxu0 0
        %811 = vmatpush1.bf16.msra.mxu0 0
        %812 = vmatprep.subr.bf16.mxu0 0
        %813 = vmatpush1.bf16.msra.mxu0 0
        %814 = vmatprep.subr.bf16.mxu0 0
        %815 = vmatpush1.bf16.msra.mxu0 0
        %816 = vmatprep.subr.bf16.mxu0 0
        %817 = vmatpush1.bf16.msra.mxu0 0
        %818 = vmatprep.subr.bf16.mxu0 0
        %819 = vmatpush1.bf16.msra.mxu0 0
        %820 = vmatprep.subr.bf16.mxu0 0
        %821 = vmatpush1.bf16.msra.mxu0 0
        %822 = vmatprep.subr.bf16.mxu0 0
        %823 = vmatpush1.bf16.msra.mxu0 0
        %824 = vmatprep.mubr.bf16.mxu0 0
        %825 = vmatmul.mubr.bf16.gmra.mrb[0].mxu0 %v585
        %v826 = vpop.f32.mrb[0].mxu0
        %v827 = vadd.f32 %v341, %v826
        %v828 = vpop.f32.mrb[0].mxu0
        %v829 = vadd.f32 %v341, %v828
        %v830 = vpop.f32.mrb[0].mxu0
        %v831 = vpop.f32.mrb[0].mxu0
        %832 = vdwg.mxu0
        %833 = vmatprep.subr.bf16.mxu0 %v500
        %834 = vmatpush1.bf16.msra.mxu0 %v499
        %835 = vmatprep.subr.bf16.mxu0 %v516
        %836 = vmatpush1.bf16.msra.mxu0 %v515
        %837 = vmatprep.subr.bf16.mxu0 %v532
        %838 = vmatpush1.bf16.msra.mxu0 %v531
        %839 = vmatprep.subr.bf16.mxu0 0
        %840 = vmatpush1.bf16.msra.mxu0 0
        %841 = vmatprep.subr.bf16.mxu0 0
        %842 = vmatpush1.bf16.msra.mxu0 0
        %843 = vmatprep.subr.bf16.mxu0 0
        %844 = vmatpush1.bf16.msra.mxu0 0
        %845 = vmatprep.subr.bf16.mxu0 0
        %846 = vmatpush1.bf16.msra.mxu0 0
        %847 = vmatprep.subr.bf16.mxu0 0
        %848 = vmatpush1.bf16.msra.mxu0 0
        %849 = vmatprep.subr.bf16.mxu0 0
        %850 = vmatpush1.bf16.msra.mxu0 0
        %851 = vmatprep.subr.bf16.mxu0 0
        %852 = vmatpush1.bf16.msra.mxu0 0
        %853 = vmatprep.subr.bf16.mxu0 0
        %854 = vmatpush1.bf16.msra.mxu0 0
        %855 = vmatprep.subr.bf16.mxu0 0
        %856 = vmatpush1.bf16.msra.mxu0 0
        %857 = vmatprep.subr.bf16.mxu0 0
        %858 = vmatpush1.bf16.msra.mxu0 0
        %859 = vmatprep.subr.bf16.mxu0 0
        %860 = vmatpush1.bf16.msra.mxu0 0
        %861 = vmatprep.subr.bf16.mxu0 0
        %862 = vmatpush1.bf16.msra.mxu0 0
        %863 = vmatprep.subr.bf16.mxu0 0
        %864 = vmatpush1.bf16.msra.mxu0 0
        %865 = vmatprep.mubr.bf16.mxu0 0
        %866 = vmatmul.mubr.bf16.gmra.mrb[0].mxu0 %v585
        %v867 = vpop.f32.mrb[0].mxu0
        %v868 = vadd.f32 %v341, %v867
        %v869 = vpop.f32.mrb[0].mxu0
        %v870 = vadd.f32 %v341, %v869
        %v871 = vpop.f32.mrb[0].mxu0
        %v872 = vpop.f32.mrb[0].mxu0
        %873 = vdwg.mxu0
        %874 = vmatprep.subr.bf16.mxu0 %v502
        %875 = vmatpush1.bf16.msra.mxu0 %v501
        %876 = vmatprep.subr.bf16.mxu0 %v518
        %877 = vmatpush1.bf16.msra.mxu0 %v517
        %878 = vmatprep.subr.bf16.mxu0 %v534
        %879 = vmatpush1.bf16.msra.mxu0 %v533
        %880 = vmatprep.subr.bf16.mxu0 0
        %881 = vmatpush1.bf16.msra.mxu0 0
        %882 = vmatprep.subr.bf16.mxu0 0
        %883 = vmatpush1.bf16.msra.mxu0 0
        %884 = vmatprep.subr.bf16.mxu0 0
        %885 = vmatpush1.bf16.msra.mxu0 0
        %886 = vmatprep.subr.bf16.mxu0 0
        %887 = vmatpush1.bf16.msra.mxu0 0
        %888 = vmatprep.subr.bf16.mxu0 0
        %889 = vmatpush1.bf16.msra.mxu0 0
        %890 = vmatprep.subr.bf16.mxu0 0
        %891 = vmatpush1.bf16.msra.mxu0 0
        %892 = vmatprep.subr.bf16.mxu0 0
        %893 = vmatpush1.bf16.msra.mxu0 0
        %894 = vmatprep.subr.bf16.mxu0 0
        %895 = vmatpush1.bf16.msra.mxu0 0
        %896 = vmatprep.subr.bf16.mxu0 0
        %897 = vmatpush1.bf16.msra.mxu0 0
        %898 = vmatprep.subr.bf16.mxu0 0
        %899 = vmatpush1.bf16.msra.mxu0 0
        %900 = vmatprep.subr.bf16.mxu0 0
        %901 = vmatpush1.bf16.msra.mxu0 0
        %902 = vmatprep.subr.bf16.mxu0 0
        %903 = vmatpush1.bf16.msra.mxu0 0
        %904 = vmatprep.subr.bf16.mxu0 0
        %905 = vmatpush1.bf16.msra.mxu0 0
        %906 = vmatprep.mubr.bf16.mxu0 0
        %907 = vmatmul.mubr.bf16.gmra.mrb[0].mxu0 %v585
        %v908 = vpop.f32.mrb[0].mxu0
        %v909 = vadd.f32 %v341, %v908
        %v910 = vpop.f32.mrb[0].mxu0
        %v911 = vadd.f32 %v341, %v910
        %v912 = vpop.f32.mrb[0].mxu0
        %v913 = vpop.f32.mrb[0].mxu0
        %914 = vdwg.mxu0
        %v915 = vxor.u32 %v622, 2147483648
        %v916 = vxor.u32 %v624, 2147483648
        %v917 = vxor.u32 %v663, 2147483648
        %v918 = vxor.u32 %v665, 2147483648
        %v919 = vxor.u32 %v704, 2147483648
        %v920 = vxor.u32 %v706, 2147483648
        %v921 = vxor.u32 %v745, 2147483648
        %v922 = vxor.u32 %v747, 2147483648
        %v923 = vxor.u32 %v786, 2147483648
        %v924 = vxor.u32 %v788, 2147483648
        %v925 = vxor.u32 %v827, 2147483648
        %v926 = vxor.u32 %v829, 2147483648
        %v927 = vxor.u32 %v868, 2147483648
        %v928 = vxor.u32 %v870, 2147483648
        %v929 = vxor.u32 %v909, 2147483648
        %v930 = vxor.u32 %v911, 2147483648
        %v931 = vmul.f32 %v915, 1.442695
        %v932 = vpow.pop %v931
        %v933 = vmul.f32 %v916, 1.442695
        %v934 = vpow.pop %v933
        %v935 = vmul.f32 %v917, 1.442695
        %v936 = vpow.pop %v935
        %v937 = vmul.f32 %v918, 1.442695
        %v938 = vpow.pop %v937
        %v939 = vmul.f32 %v919, 1.442695
        %v940 = vpow.pop %v939
        %v941 = vmul.f32 %v920, 1.442695
        %v942 = vpow.pop %v941
        %v943 = vmul.f32 %v921, 1.442695
        %v944 = vpow.pop %v943
        %v945 = vmul.f32 %v922, 1.442695
        %v946 = vpow.pop %v945
        %v947 = vmul.f32 %v923, 1.442695
        %v948 = vpow.pop %v947
        %v949 = vmul.f32 %v924, 1.442695
        %v950 = vpow.pop %v949
        %v951 = vmul.f32 %v925, 1.442695
        %v952 = vpow.pop %v951
        %v953 = vmul.f32 %v926, 1.442695
        %v954 = vpow.pop %v953
        %v955 = vmul.f32 %v927, 1.442695
        %v956 = vpow.pop %v955
        %v957 = vmul.f32 %v928, 1.442695
        %v958 = vpow.pop %v957
        %v959 = vmul.f32 %v929, 1.442695
        %v960 = vpow.pop %v959
        %v961 = vmul.f32 %v930, 1.442695
        %v962 = vpow.pop %v961
        %v963 = vadd.f32 %v932, 1.0
        %v964 = vadd.f32 %v934, 1.0
        %v965 = vadd.f32 %v936, 1.0
        %v966 = vadd.f32 %v938, 1.0
        %v967 = vadd.f32 %v940, 1.0
        %v968 = vadd.f32 %v942, 1.0
        %v969 = vadd.f32 %v944, 1.0
        %v970 = vadd.f32 %v946, 1.0
        %v971 = vadd.f32 %v948, 1.0
        %v972 = vadd.f32 %v950, 1.0
        %v973 = vadd.f32 %v952, 1.0
        %v974 = vadd.f32 %v954, 1.0
        %v975 = vadd.f32 %v956, 1.0
        %v976 = vadd.f32 %v958, 1.0
        %v977 = vadd.f32 %v960, 1.0
        %v978 = vadd.f32 %v962, 1.0
        %v979 = vrcp.pop %v963
        %v980 = vmul.f32 1.0, %v979
        %v981 = vrcp.pop %v964
        %v982 = vmul.f32 1.0, %v981
        %v983 = vrcp.pop %v965
        %v984 = vmul.f32 1.0, %v983
        %v985 = vrcp.pop %v966
        %v986 = vmul.f32 1.0, %v985
        %v987 = vrcp.pop %v967
        %v988 = vmul.f32 1.0, %v987
        %v989 = vrcp.pop %v968
        %v990 = vmul.f32 1.0, %v989
        %v991 = vrcp.pop %v969
        %v992 = vmul.f32 1.0, %v991
        %v993 = vrcp.pop %v970
        %v994 = vmul.f32 1.0, %v993
        %v995 = vrcp.pop %v971
        %v996 = vmul.f32 1.0, %v995
        %v997 = vrcp.pop %v972
        %v998 = vmul.f32 1.0, %v997
        %v999 = vrcp.pop %v973
        %v1000 = vmul.f32 1.0, %v999
        %v1001 = vrcp.pop %v974
        %v1002 = vmul.f32 1.0, %v1001
        %v1003 = vrcp.pop %v975
        %v1004 = vmul.f32 1.0, %v1003
        %v1005 = vrcp.pop %v976
        %v1006 = vmul.f32 1.0, %v1005
        %v1007 = vrcp.pop %v977
        %v1008 = vmul.f32 1.0, %v1007
        %v1009 = vrcp.pop %v978
        %v1010 = vmul.f32 1.0, %v1009
        %1011 = vst [vmem:[%s285] sm:$0xff] %v980
        %1012 = vst [vmem:[%s285 + $0x8] sm:$0xff] %v982
        %1013 = vst [vmem:[%s285 + $0x10] sm:$0xff] %v984
        %1014 = vst [vmem:[%s285 + $0x18] sm:$0xff] %v986
        %1015 = vst [vmem:[%s285 + $0x20] sm:$0xff] %v988
        %1016 = vst [vmem:[%s285 + $0x28] sm:$0xff] %v990
        %1017 = vst [vmem:[%s285 + $0x30] sm:$0xff] %v992
        %1018 = vst [vmem:[%s285 + $0x38] sm:$0xff] %v994
        %1019 = vst [vmem:[%s285 + $0x40] sm:$0xff] %v996
        %1020 = vst [vmem:[%s285 + $0x48] sm:$0xff] %v998
        %1021 = vst [vmem:[%s285 + $0x50] sm:$0xff] %v1000
        %1022 = vst [vmem:[%s285 + $0x58] sm:$0xff] %v1002
        %1023 = vst [vmem:[%s285 + $0x60] sm:$0xff] %v1004
        %1024 = vst [vmem:[%s285 + $0x68] sm:$0xff] %v1006
        %1025 = vst [vmem:[%s285 + $0x70] sm:$0xff] %v1008
        %1026 = vst [vmem:[%s285 + $0x78] sm:$0xff] %v1010
        %s1027 = smul.u32 16, %s14
        %p1028 = scmp.lt.s32.totalorder %s1027, 63
        %s1029 = scalar_select %p1028, %s1027, 63
        %s1030 = smul.addr %s1029, 8
        %s1031 = scalar_lea.vmem %s3, %s1030
        // Predicated region
        $region56: #{conv_ae_forward.35} parent=50 // pred_check
          %p1032 = pneg %p100
        $region57: #{conv_ae_forward.35} parent=50 // pred_check_branch
          %1034 = sbr.rel (%p1032) target = $region59
        $region58: #{conv_ae_forward.35} parent=50 // pred_region
          %s1035 = smul.u32 16, %s14
        $region59: #{conv_ae_forward.35} parent=50 // pred_fallthru
          _
      $region51: #{conv_ae_forward.35} parent=5 // pred_fallthru
        _
      %p1036 = scmp.le.s32.totalorder 2, %s9
      // Predicated region
      $region60: #{conv_ae_forward.35} parent=5 // pred_check
        %p1037 = pneg %p1036
      $region61: #{conv_ae_forward.35} parent=5 // pred_check_branch
        %1039 = sbr.rel (%p1037) target = $region63
      $region62: #{conv_ae_forward.35} parent=5 // pred_region
        %s1040 = ssub.s32 %s9, 2
        // Predicated region
        $region64: #{conv_ae_forward.35} parent=62 // pred_check
          %p1041 = pneg %p106
        $region65: #{conv_ae_forward.35} parent=62 // pred_check_branch
          %1043 = sbr.rel (%p1041) target = $region67
        $region66: #{conv_ae_forward.35} parent=62 // pred_region
          %s1044 = smul.u32 16, %s15
          %p1045 = scmp.lt.s32.totalorder %s1044, 63
          %s1046 = scalar_select %p1045, %s1044, 63
          %s1047 = smul.addr %s1046, 8
          %s1048 = scalar_lea.vmem %s3, %s1047
        $region67: #{conv_ae_forward.35} parent=62 // pred_fallthru
          _
      $region63: #{conv_ae_forward.35} parent=5 // pred_fallthru
        _
    $region6: #{conv_ae_forward.35} parent=1 // loop_footer
      %s13 = sadd.s32 1, %s9
    $region7: #{conv_ae_forward.35} parent=1 // loop_footer_branch
      %8 = sbr.rel target = $region3
    $region8: #{conv_ae_forward.35} parent=1 // loop_exit
      _

</llo_original>
